<compile_context>
chip_gen: v5e
topology: v5e:2x2
jax: 0.10.0
libtpu: 0.0.40
codegen_flags: <defaults>
</compile_context>

<pallas_src>
import math
import functools

import jax
import jax.numpy as jnp
from jax import lax
from jax.experimental import pallas as pl
from jax.experimental.pallas import tpu as pltpu


# ----------------------------------------------------------------------------
# In-kernel helpers (trace-time Python, run inside the Pallas kernels)
# ----------------------------------------------------------------------------

def _residual_layernorm(x, x2, g, b, eps):
    """LayerNorm(x + x2) over last axis (PyTorch LayerNorm, biased var), f32."""
    y = x + x2
    mean = jnp.mean(y, axis=-1, keepdims=True)
    c = y - mean
    var = jnp.mean(c * c, axis=-1, keepdims=True)
    return c * lax.rsqrt(var + eps) * g + b


def _mha_outproj(q, k, v, wo, n_heads, neg_mask):
    """q:(Lq,D) f32 (already scaled), k/v:(Lk,D) f32, wo:(D,D) bf16.

    Per-head attention with the out-projection folded into the head loop:
    returns sum_h softmax(q_h k_h^T) v_h @ wo[h*dh:(h+1)*dh, :]  -> (Lq, D) f32.
    Keeps the result lane-dense (last dim = D) with no concatenation and no
    per-head partials kept live."""
    Lq, D = q.shape
    dh = D // n_heads
    acc = jnp.zeros((Lq, D), jnp.float32)
    for h in range(n_heads):                       # static unroll, small n_heads
        sl = slice(h * dh, (h + 1) * dh)
        qh = q[:, sl].astype(jnp.bfloat16)
        kh = k[:, sl].astype(jnp.bfloat16)
        vh = v[:, sl].astype(jnp.bfloat16)
        s = lax.dot_general(qh, kh, (((1,), (1,)), ((), ())),
                            preferred_element_type=jnp.float32)     # (Lq, Lk)
        if neg_mask is not None:
            s = s + neg_mask
        s = s - jnp.max(s, axis=-1, keepdims=True)
        p = jnp.exp(s)                                               # EUP
        p = p * pl.reciprocal(jnp.sum(p, axis=-1, keepdims=True), approx=True)
        ctx_h = jnp.dot(p.astype(jnp.bfloat16), vh,
                        preferred_element_type=jnp.float32)          # (Lq, dh)
        acc = acc + jnp.dot(ctx_h.astype(jnp.bfloat16), wo[sl, :],
                            preferred_element_type=jnp.float32)      # (Lq, D)
    return acc


# ----------------------------------------------------------------------------
# Fused sublayer kernels
# ----------------------------------------------------------------------------

def _self_pos_kernel(x_ref,
                     wq_ref, bq_ref, wkv_ref, bkv_ref, wo1_ref, bo1_ref,
                     g1_ref, b1_ref,
                     wv_ref, bv_ref, wo2_ref, bo2_ref, g2_ref, b2_ref,
                     o_ref, *, n_heads, eps):
    """Fused: causal self-attn + residual + LN1, then positional-attn
    (causal prefix-mean of V) + residual + LN2."""
    x = x_ref[...]                                 # (L, D) f32
    L, D = x.shape

    # ---- self attention (causal) ----
    x_bf = x.astype(jnp.bfloat16)
    q = jnp.dot(x_bf, wq_ref[...], preferred_element_type=jnp.float32) + bq_ref[...]
    kv = jnp.dot(x_bf, wkv_ref[...], preferred_element_type=jnp.float32) + bkv_ref[...]
    k = kv[:, :D]
    v = kv[:, D:]

    row = lax.broadcasted_iota(jnp.int32, (L, L), 0)
    col = lax.broadcasted_iota(jnp.int32, (L, L), 1)
    neg_mask = jnp.where(col > row, -1e30, 0.0).astype(jnp.float32)

    wo1 = wo1_ref[...]
    x2 = _mha_outproj(q, k, v, wo1, n_heads, neg_mask) + bo1_ref[...]
    x = _residual_layernorm(x, x2, g1_ref[...], b1_ref[...], eps)

    # ---- positional attention: causal prefix-mean of V (see TODO header) ----
    v2 = jnp.dot(x.astype(jnp.bfloat16), wv_ref[...],
                 preferred_element_type=jnp.float32) + bv_ref[...]
    ones_tri = jnp.where(col <= row, 1.0, 0.0).astype(jnp.bfloat16)   # exact 0/1
    psum = jnp.dot(ones_tri, v2.astype(jnp.bfloat16),
                   preferred_element_type=jnp.float32)                # prefix sum
    inv_cnt = 1.0 / (row[:, :1] + 1).astype(jnp.float32)              # (L, 1)
    ctx = psum * inv_cnt                                              # prefix mean
    x2 = jnp.dot(ctx.astype(jnp.bfloat16), wo2_ref[...],
                 preferred_element_type=jnp.float32) + bo2_ref[...]
    o_ref[...] = _residual_layernorm(x, x2, g2_ref[...], b2_ref[...], eps)


def _src_attn_kernel(x_ref, src_ref, wq_ref, bq_ref, wkv_ref, bkv_ref,
                     wo_ref, bo_ref, g_ref, b_ref, o_ref, *, n_heads, eps):
    """Fused: source attention (full) + residual + LN3."""
    x = x_ref[...]                                 # (Lq, D) f32
    src = src_ref[...]                             # (Lk, D) f32
    D = x.shape[-1]
    q = jnp.dot(x.astype(jnp.bfloat16), wq_ref[...],
                preferred_element_type=jnp.float32) + bq_ref[...]
    kv = jnp.dot(src.astype(jnp.bfloat16), wkv_ref[...],
                 preferred_element_type=jnp.float32) + bkv_ref[...]
    k = kv[:, :D]
    v = kv[:, D:]
    x2 = _mha_outproj(q, k, v, wo_ref[...], n_heads, None) + bo_ref[...]
    o_ref[...] = _residual_layernorm(x, x2, g_ref[...], b_ref[...], eps)


def _ffn_ln_kernel(x_ref, w1_ref, b1_ref, w2_ref, b2_ref, g_ref, b_ref,
                   o_ref, *, eps):
    """Fused: linear1 -> relu -> linear2 -> residual -> LayerNorm (row tile)."""
    x = x_ref[...]                                 # (tr, D) f32
    h = jnp.dot(x.astype(jnp.bfloat16), w1_ref[...],
                preferred_element_type=jnp.float32) + b1_ref[...]
    h = jnp.maximum(h, 0.0)
    x2 = jnp.dot(h.astype(jnp.bfloat16), w2_ref[...],
                 preferred_element_type=jnp.float32) + b2_ref[...]
    o_ref[...] = _residual_layernorm(x, x2, g_ref[...], b_ref[...], eps)


# ----------------------------------------------------------------------------
# pallas_call wrappers
# ----------------------------------------------------------------------------

def _compiler_params(activation_block_bytes, weights):
    """Analytic VMEM budget: double-buffered activation blocks + resident
    weight blocks + headroom for in-kernel intermediates; clamp to v7x's
    64 MiB physical VMEM."""
    wbytes = sum(int(w.size) * w.dtype.itemsize for w in weights)
    est = 2 * (int(activation_block_bytes) + wbytes) + (8 << 20)
    limit = int(min(max(est, 16 << 20), 64 << 20))
    return pltpu.CompilerParams(dimension_semantics=("parallel",),
                                vmem_limit_bytes=limit)


def fused_self_pos_attn(x, sap, pap, ln1_g, ln1_b, ln2_g, ln2_b,
                        *, n_heads, eps=1e-5):
    """Self-attn (causal) + LN1 + positional prefix-mean attn + LN2."""
    B, L, D = x.shape
    kernel = functools.partial(_self_pos_kernel, n_heads=n_heads, eps=eps)
    rep = lambda b: (0, 0)
    weights = (sap['wq'], sap['bq'], sap['wkv'], sap['bkv'], sap['wo'], sap['bo'],
               ln1_g, ln1_b, pap['wv'], pap['bv'], pap['wo'], pap['bo'],
               ln2_g, ln2_b)
    return pl.pallas_call(
        kernel,
        grid=(B,),
        in_specs=[
            pl.BlockSpec((None, L, D), lambda b: (b, 0, 0)),
            pl.BlockSpec((D, D), rep), pl.BlockSpec((1, D), rep),
            pl.BlockSpec((D, 2 * D), rep), pl.BlockSpec((1, 2 * D), rep),
            pl.BlockSpec((D, D), rep), pl.BlockSpec((1, D), rep),
            pl.BlockSpec((1, D), rep), pl.BlockSpec((1, D), rep),
            pl.BlockSpec((D, D), rep), pl.BlockSpec((1, D), rep),
            pl.BlockSpec((D, D), rep), pl.BlockSpec((1, D), rep),
            pl.BlockSpec((1, D), rep), pl.BlockSpec((1, D), rep),
        ],
        out_specs=pl.BlockSpec((None, L, D), lambda b: (b, 0, 0)),
        out_shape=jax.ShapeDtypeStruct((B, L, D), jnp.float32),
        compiler_params=_compiler_params(2 * L * D * 4, weights),
    )(x, *weights)


def fused_src_attn_ln(x, src, ap, ln_g, ln_b, *, n_heads, eps=1e-5):
    """Source attention (full mask) + residual + LN3."""
    B, Lq, D = x.shape
    Lk = src.shape[1]
    kernel = functools.partial(_src_attn_kernel, n_heads=n_heads, eps=eps)
    rep = lambda b: (0, 0)
    weights = (ap['wq'], ap['bq'], ap['wkv'], ap['bkv'], ap['wo'], ap['bo'],
               ln_g, ln_b)
    return pl.pallas_call(
        kernel,
        grid=(B,),
        in_specs=[
            pl.BlockSpec((None, Lq, D), lambda b: (b, 0, 0)),
            pl.BlockSpec((None, Lk, D), lambda b: (b, 0, 0)),
            pl.BlockSpec((D, D), rep), pl.BlockSpec((1, D), rep),
            pl.BlockSpec((D, 2 * D), rep), pl.BlockSpec((1, 2 * D), rep),
            pl.BlockSpec((D, D), rep), pl.BlockSpec((1, D), rep),
            pl.BlockSpec((1, D), rep), pl.BlockSpec((1, D), rep),
        ],
        out_specs=pl.BlockSpec((None, Lq, D), lambda b: (b, 0, 0)),
        out_shape=jax.ShapeDtypeStruct((B, Lq, D), jnp.float32),
        compiler_params=_compiler_params((Lq + Lk + Lq) * D * 4, weights),
    )(x, src, *weights)


def fused_ffn_ln(x, p, ln_g, ln_b, *, eps=1e-5):
    """FFN + residual + LN4, flattened to (B*L, D) and gridded over row tiles
    so the MXU M-dim is not pinned to L."""
    B, L, D = x.shape
    Dh = p['w1'].shape[1]
    rows = B * L
    tr = rows
    for cand in (512, 256, 128):                   # largest divisible row tile
        if rows >= cand and rows % cand == 0:
            tr = cand
            break
    xf = x.reshape(rows, D)
    kernel = functools.partial(_ffn_ln_kernel, eps=eps)
    rep = lambda r: (0, 0)
    weights = (p['w1'], p['b1'], p['w2'], p['b2'], ln_g, ln_b)
    out = pl.pallas_call(
        kernel,
        grid=(rows // tr,),
        in_specs=[
            pl.BlockSpec((tr, D), lambda r: (r, 0)),
            pl.BlockSpec((D, Dh), rep), pl.BlockSpec((1, Dh), rep),
            pl.BlockSpec((Dh, D), rep), pl.BlockSpec((1, D), rep),
            pl.BlockSpec((1, D), rep), pl.BlockSpec((1, D), rep),
        ],
        out_specs=pl.BlockSpec((tr, D), lambda r: (r, 0)),
        out_shape=jax.ShapeDtypeStruct((rows, D), jnp.float32),
        compiler_params=_compiler_params(tr * (2 * D + Dh) * 4, weights),
    )(xf, *weights)
    return out.reshape(B, L, D)


# ----------------------------------------------------------------------------
# Model glue
# ----------------------------------------------------------------------------

def decoder_layer_forward(x, src, p, n_heads):
    """One TransformerDecoderLayer, post-norm, eval mode. p = prepared params."""
    assert src.shape[-1] == x.shape[-1], "reference requires d_src == d_tar"
    # self attention (causal) + LN1, positional attention (prefix-mean) + LN2
    x = fused_self_pos_attn(x, p['self_attn'], p['pos_attn'],
                            p['ln1_g'], p['ln1_b'], p['ln2_g'], p['ln2_b'],
                            n_heads=n_heads)
    # source attention (full) + LN3
    x = fused_src_attn_ln(x, src, p['src_attn'], p['ln3_g'], p['ln3_b'],
                          n_heads=n_heads)
    # feed-forward + LN4
    x = fused_ffn_ln(x, p, p['ln4_g'], p['ln4_b'])
    return x


def transformer_decoder_forward(x, srcs, params, n_heads):
    """x: (B, L, d_tar); srcs: list of (B, S, d_src), one per layer.
    Returns the list of per-layer outputs (B, L, d_tar). Dropout = identity."""
    xs = []
    for layer_p, src in zip(params['layers'], srcs):
        x = decoder_layer_forward(x, src, layer_p, n_heads)
        xs.append(x)
    return xs


# ----------------------------------------------------------------------------
# Parameter initialization (PyTorch layout) + kernel-ready preparation
# ----------------------------------------------------------------------------

def xavier_uniform(key, shape):
    fan_out, fan_in = shape[0], shape[1]
    bound = math.sqrt(6.0 / (fan_in + fan_out))
    return jax.random.uniform(key, shape, jnp.float32, -bound, bound)


def init_mha_params(key, d):
    k1, k2 = jax.random.split(key)
    return {
        'in_proj_weight': xavier_uniform(k1, (3 * d, d)),   # rows: [Wq; Wk; Wv]
        'in_proj_bias': jnp.zeros((3 * d,), jnp.float32),
        'out_proj_weight': xavier_uniform(k2, (d, d)),
        'out_proj_bias': jnp.zeros((d,), jnp.float32),
    }


def init_layer_params(key, d_tar, d_hidden):
    ks = jax.random.split(key, 7)
    p = {
        'self_attn': init_mha_params(ks[0], d_tar),
        'pos_attn': init_mha_params(ks[1], d_tar),
        'src_attn': init_mha_params(ks[2], d_tar),
        'w1': xavier_uniform(ks[3], (d_hidden, d_tar)),
        'b1': jax.random.uniform(ks[4], (d_hidden,), jnp.float32, -0.01, 0.01),
        'w2': xavier_uniform(ks[5], (d_tar, d_hidden)),
        'b2': jax.random.uniform(ks[6], (d_tar,), jnp.float32, -0.01, 0.01),
    }
    for i in (1, 2, 3, 4):
        p[f'ln{i}_g'] = jnp.ones((d_tar,), jnp.float32)
        p[f'ln{i}_b'] = jnp.zeros((d_tar,), jnp.float32)
    return p


def init_decoder_params(key, n_layers, d_tar, d_hidden):
    keys = jax.random.split(key, n_layers)
    return {'layers': [init_layer_params(keys[i], d_tar, d_hidden)
                       for i in range(n_layers)]}


def prepare_layer_params(p, d, n_heads):
    """Transpose / concatenate / cast weights once (bf16 weights, f32 biases).
    The 1/sqrt(dh) query scale is folded into wq/bq here (no in-kernel mul).
    Only the tensors each kernel actually consumes are kept."""
    dh = d // n_heads
    scale = 1.0 / math.sqrt(dh)

    def prep_qkv_attn(ap):            # used by self_attn and src_attn
        w_in, b_in = ap['in_proj_weight'], ap['in_proj_bias']
        return {
            'wq':  (w_in[:d].T * scale).astype(jnp.bfloat16),     # (D, D) scaled
            'bq':  (b_in[:d] * scale).reshape(1, d).astype(jnp.float32),
            'wkv': w_in[d:].T.astype(jnp.bfloat16),               # (D, 2D) K|V
            'bkv': b_in[d:].reshape(1, 2 * d).astype(jnp.float32),
            'wo':  ap['out_proj_weight'].T.astype(jnp.bfloat16),
            'bo':  ap['out_proj_bias'].reshape(1, d).astype(jnp.float32),
        }

    def prep_pos_attn(ap):            # only V / out-proj are needed
        w_in, b_in = ap['in_proj_weight'], ap['in_proj_bias']
        return {
            'wv': w_in[2 * d:].T.astype(jnp.bfloat16),            # (D, D)
            'bv': b_in[2 * d:].reshape(1, d).astype(jnp.float32),
            'wo': ap['out_proj_weight'].T.astype(jnp.bfloat16),
            'bo': ap['out_proj_bias'].reshape(1, d).astype(jnp.float32),
        }

    d_hidden = p['w1'].shape[0]
    out = {
        'self_attn': prep_qkv_attn(p['self_attn']),
        'pos_attn':  prep_pos_attn(p['pos_attn']),
        'src_attn':  prep_qkv_attn(p['src_attn']),
        'w1': p['w1'].T.astype(jnp.bfloat16),                     # (D, Dh)
        'b1': p['b1'].reshape(1, d_hidden).astype(jnp.float32),
        'w2': p['w2'].T.astype(jnp.bfloat16),                     # (Dh, D)
        'b2': p['b2'].reshape(1, d).astype(jnp.float32),
    }
    for i in (1, 2, 3, 4):
        out[f'ln{i}_g'] = p[f'ln{i}_g'].reshape(1, d).astype(jnp.float32)
        out[f'ln{i}_b'] = p[f'ln{i}_b'].reshape(1, d).astype(jnp.float32)
    return out


def prepare_decoder_params(params, d, n_heads):
    return {'layers': [prepare_layer_params(p, d, n_heads)
                       for p in params['layers']]}


# ----------------------------------------------------------------------------
if __name__ == "__main__":
    B, L, S = 2, 8, 8
    d_tar = d_src = 32        # reference code effectively requires d_src == d_tar
    d_hidden = 64
    n_heads = 4
    n_layers = 2

    root = jax.random.PRNGKey(0)
    kx, ksrc, kp = jax.random.split(root, 3)

    x = jax.random.normal(kx, (B, L, d_tar), jnp.float32)
    srcs = [jax.random.normal(jax.random.fold_in(ksrc, i), (B, S, d_src),
                              jnp.float32) for i in range(n_layers)]
    raw_params = init_decoder_params(kp, n_layers, d_tar, d_hidden)
    params = prepare_decoder_params(raw_params, d_tar, n_heads)

    fwd = jax.jit(lambda xx, ss, pp: transformer_decoder_forward(xx, ss, pp, n_heads))
    outs = jax.block_until_ready(fwd(x, srcs, params))

    assert len(outs) == n_layers and all(o.shape == (B, L, d_tar) for o in outs)
    assert all(bool(jnp.all(jnp.isfinite(o))) for o in outs)
    print("KERNEL_OK")
</pallas_src>

<mosaic_0001>
module attributes {stable_mosaic.version = 11 : i64} {
  func.func @_self_pos_kernel(%arg0: i32, %arg1: memref<1x8x32xf32, #tpu.memory_space<vmem>>, %arg2: memref<32x32xbf16, #tpu.memory_space<vmem>>, %arg3: memref<1x32xf32, #tpu.memory_space<vmem>>, %arg4: memref<32x64xbf16, #tpu.memory_space<vmem>>, %arg5: memref<1x64xf32, #tpu.memory_space<vmem>>, %arg6: memref<32x32xbf16, #tpu.memory_space<vmem>>, %arg7: memref<1x32xf32, #tpu.memory_space<vmem>>, %arg8: memref<1x32xf32, #tpu.memory_space<vmem>>, %arg9: memref<1x32xf32, #tpu.memory_space<vmem>>, %arg10: memref<32x32xbf16, #tpu.memory_space<vmem>>, %arg11: memref<1x32xf32, #tpu.memory_space<vmem>>, %arg12: memref<32x32xbf16, #tpu.memory_space<vmem>>, %arg13: memref<1x32xf32, #tpu.memory_space<vmem>>, %arg14: memref<1x32xf32, #tpu.memory_space<vmem>>, %arg15: memref<1x32xf32, #tpu.memory_space<vmem>>, %arg16: memref<1x8x32xf32, #tpu.memory_space<vmem>>) attributes {dimension_semantics = [#tpu.dimension_semantics<parallel>], iteration_bounds = array<i64: 2>, scalar_prefetch = 0 : i64, scratch_operands = 0 : i64, tpu.core_type = #tpu.core_type<tc>, window_params = [{transform_indices = @transform_0, window_bounds = array<i64: 1, 8, 32>}, {pipeline_mode = #tpu.pipeline_mode<synchronous>, transform_indices = @transform_1, window_bounds = array<i64: 32, 32>}, {pipeline_mode = #tpu.pipeline_mode<synchronous>, transform_indices = @transform_2, window_bounds = array<i64: 1, 32>}, {pipeline_mode = #tpu.pipeline_mode<synchronous>, transform_indices = @transform_3, window_bounds = array<i64: 32, 64>}, {pipeline_mode = #tpu.pipeline_mode<synchronous>, transform_indices = @transform_4, window_bounds = array<i64: 1, 64>}, {pipeline_mode = #tpu.pipeline_mode<synchronous>, transform_indices = @transform_5, window_bounds = array<i64: 32, 32>}, {pipeline_mode = #tpu.pipeline_mode<synchronous>, transform_indices = @transform_6, window_bounds = array<i64: 1, 32>}, {pipeline_mode = #tpu.pipeline_mode<synchronous>, transform_indices = @transform_7, window_bounds = array<i64: 1, 32>}, {pipeline_mode = #tpu.pipeline_mode<synchronous>, transform_indices = @transform_8, window_bounds = array<i64: 1, 32>}, {pipeline_mode = #tpu.pipeline_mode<synchronous>, transform_indices = @transform_9, window_bounds = array<i64: 32, 32>}, {pipeline_mode = #tpu.pipeline_mode<synchronous>, transform_indices = @transform_10, window_bounds = array<i64: 1, 32>}, {pipeline_mode = #tpu.pipeline_mode<synchronous>, transform_indices = @transform_11, window_bounds = array<i64: 32, 32>}, {pipeline_mode = #tpu.pipeline_mode<synchronous>, transform_indices = @transform_12, window_bounds = array<i64: 1, 32>}, {pipeline_mode = #tpu.pipeline_mode<synchronous>, transform_indices = @transform_13, window_bounds = array<i64: 1, 32>}, {pipeline_mode = #tpu.pipeline_mode<synchronous>, transform_indices = @transform_14, window_bounds = array<i64: 1, 32>}, {transform_indices = @transform_15, window_bounds = array<i64: 1, 8, 32>}]} {
    %c0 = arith.constant 0 : index
    %c0_0 = arith.constant 0 : index
    %c0_1 = arith.constant 0 : index
    %0 = vector.load %arg1[%c0, %c0_0, %c0_1] : memref<1x8x32xf32, #tpu.memory_space<vmem>>, vector<1x8x32xf32>
    %1 = vector.shape_cast %0 : vector<1x8x32xf32> to vector<8x32xf32>
    %2 = arith.truncf %1 : vector<8x32xf32> to vector<8x32xbf16>
    %c0_2 = arith.constant 0 : index
    %c0_3 = arith.constant 0 : index
    %3 = vector.load %arg2[%c0_2, %c0_3] : memref<32x32xbf16, #tpu.memory_space<vmem>>, vector<32x32xbf16>
    %cst = arith.constant dense<0.000000e+00> : vector<8x32xf32>
    %4 = tpu.matmul %2, %3, %cst {dimension_numbers = #tpu.dot_dimension_numbers<[1], [0], [0], [1], [0, 0, 1, 1], [], []>} : vector<8x32xbf16>, vector<32x32xbf16>, vector<8x32xf32> -> vector<8x32xf32>
    %c0_4 = arith.constant 0 : index
    %c0_5 = arith.constant 0 : index
    %5 = vector.load %arg3[%c0_4, %c0_5] : memref<1x32xf32, #tpu.memory_space<vmem>>, vector<1x32xf32>
    %6 = vector.broadcast %5 : vector<1x32xf32> to vector<8x32xf32>
    %7 = arith.addf %4, %6 : vector<8x32xf32>
    %c0_6 = arith.constant 0 : index
    %c0_7 = arith.constant 0 : index
    %8 = vector.load %arg4[%c0_6, %c0_7] : memref<32x64xbf16, #tpu.memory_space<vmem>>, vector<32x64xbf16>
    %cst_8 = arith.constant dense<0.000000e+00> : vector<8x64xf32>
    %9 = tpu.matmul %2, %8, %cst_8 {dimension_numbers = #tpu.dot_dimension_numbers<[1], [0], [0], [1], [0, 0, 1, 1], [], []>} : vector<8x32xbf16>, vector<32x64xbf16>, vector<8x64xf32> -> vector<8x64xf32>
    %c0_9 = arith.constant 0 : index
    %c0_10 = arith.constant 0 : index
    %10 = vector.load %arg5[%c0_9, %c0_10] : memref<1x64xf32, #tpu.memory_space<vmem>>, vector<1x64xf32>
    %11 = vector.broadcast %10 : vector<1x64xf32> to vector<8x64xf32>
    %12 = arith.addf %9, %11 : vector<8x64xf32>
    %13 = vector.extract_strided_slice %12 {offsets = [0, 0], sizes = [8, 32], strides = [1, 1]} : vector<8x64xf32> to vector<8x32xf32>
    %14 = vector.extract_strided_slice %12 {offsets = [0, 32], sizes = [8, 32], strides = [1, 1]} : vector<8x64xf32> to vector<8x32xf32>
    %15 = tpu.iota {dimensions = array<i32: 0>} : vector<8x8xi32>
    %16 = tpu.iota {dimensions = array<i32: 1>} : vector<8x8xi32>
    %17 = arith.cmpi sgt, %16, %15 : vector<8x8xi32>
    %cst_11 = arith.constant -1.000000e+30 : f32
    %cst_12 = arith.constant 0.000000e+00 : f32
    %18 = vector.broadcast %cst_11 : f32 to vector<8x8xf32>
    %19 = vector.broadcast %cst_12 : f32 to vector<8x8xf32>
    %20 = arith.select %17, %18, %19 : vector<8x8xi1>, vector<8x8xf32>
    %c0_13 = arith.constant 0 : index
    %c0_14 = arith.constant 0 : index
    %21 = vector.load %arg6[%c0_13, %c0_14] : memref<32x32xbf16, #tpu.memory_space<vmem>>, vector<32x32xbf16>
    %cst_15 = arith.constant 0.000000e+00 : f32
    %22 = vector.broadcast %cst_15 : f32 to vector<8x32xf32>
    %23 = vector.extract_strided_slice %7 {offsets = [0, 0], sizes = [8, 8], strides = [1, 1]} : vector<8x32xf32> to vector<8x8xf32>
    %24 = arith.truncf %23 : vector<8x8xf32> to vector<8x8xbf16>
    %25 = vector.extract_strided_slice %13 {offsets = [0, 0], sizes = [8, 8], strides = [1, 1]} : vector<8x32xf32> to vector<8x8xf32>
    %26 = arith.truncf %25 : vector<8x8xf32> to vector<8x8xbf16>
    %27 = vector.extract_strided_slice %14 {offsets = [0, 0], sizes = [8, 8], strides = [1, 1]} : vector<8x32xf32> to vector<8x8xf32>
    %28 = arith.truncf %27 : vector<8x8xf32> to vector<8x8xbf16>
    %cst_16 = arith.constant dense<0.000000e+00> : vector<8x8xf32>
    %29 = tpu.matmul %24, %26, %cst_16 {dimension_numbers = #tpu.dot_dimension_numbers<[1], [1], [0], [0], [0, 0, 1, 0], [], []>} : vector<8x8xbf16>, vector<8x8xbf16>, vector<8x8xf32> -> vector<8x8xf32>
    %30 = arith.addf %29, %20 : vector<8x8xf32>
    %cst_17 = arith.constant dense<0xFF800000> : vector<8xf32>
    %31 = vector.multi_reduction <maximumf>, %30, %cst_17 [1] : vector<8x8xf32> to vector<8xf32>
    %32 = vector.shape_cast %31 : vector<8xf32> to vector<8x1xf32>
    %33 = vector.broadcast %32 : vector<8x1xf32> to vector<8x8xf32>
    %34 = arith.subf %30, %33 : vector<8x8xf32>
    %35 = math.exp %34 : vector<8x8xf32>
    %cst_18 = arith.constant dense<0.000000e+00> : vector<8xf32>
    %36 = vector.multi_reduction <add>, %35, %cst_18 [1] : vector<8x8xf32> to vector<8xf32>
    %37 = vector.shape_cast %36 : vector<8xf32> to vector<8x1xf32>
    %38 = tpu.reciprocal %37 {approx = true} : vector<8x1xf32> -> vector<8x1xf32>
    %39 = vector.broadcast %38 : vector<8x1xf32> to vector<8x8xf32>
    %40 = arith.mulf %35, %39 : vector<8x8xf32>
    %41 = arith.truncf %40 : vector<8x8xf32> to vector<8x8xbf16>
    %cst_19 = arith.constant dense<0.000000e+00> : vector<8x8xf32>
    %42 = tpu.matmul %41, %28, %cst_19 {dimension_numbers = #tpu.dot_dimension_numbers<[1], [0], [0], [1], [0, 0, 1, 1], [], []>} : vector<8x8xbf16>, vector<8x8xbf16>, vector<8x8xf32> -> vector<8x8xf32>
    %43 = arith.truncf %42 : vector<8x8xf32> to vector<8x8xbf16>
    %44 = vector.extract_strided_slice %21 {offsets = [0, 0], sizes = [8, 32], strides = [1, 1]} : vector<32x32xbf16> to vector<8x32xbf16>
    %cst_20 = arith.constant dense<0.000000e+00> : vector<8x32xf32>
    %45 = tpu.matmul %43, %44, %cst_20 {dimension_numbers = #tpu.dot_dimension_numbers<[1], [0], [0], [1], [0, 0, 1, 1], [], []>} : vector<8x8xbf16>, vector<8x32xbf16>, vector<8x32xf32> -> vector<8x32xf32>
    %46 = arith.addf %22, %45 : vector<8x32xf32>
    %47 = vector.extract_strided_slice %7 {offsets = [0, 8], sizes = [8, 8], strides = [1, 1]} : vector<8x32xf32> to vector<8x8xf32>
    %48 = arith.truncf %47 : vector<8x8xf32> to vector<8x8xbf16>
    %49 = vector.extract_strided_slice %13 {offsets = [0, 8], sizes = [8, 8], strides = [1, 1]} : vector<8x32xf32> to vector<8x8xf32>
    %50 = arith.truncf %49 : vector<8x8xf32> to vector<8x8xbf16>
    %51 = vector.extract_strided_slice %14 {offsets = [0, 8], sizes = [8, 8], strides = [1, 1]} : vector<8x32xf32> to vector<8x8xf32>
    %52 = arith.truncf %51 : vector<8x8xf32> to vector<8x8xbf16>
    %cst_21 = arith.constant dense<0.000000e+00> : vector<8x8xf32>
    %53 = tpu.matmul %48, %50, %cst_21 {dimension_numbers = #tpu.dot_dimension_numbers<[1], [1], [0], [0], [0, 0, 1, 0], [], []>} : vector<8x8xbf16>, vector<8x8xbf16>, vector<8x8xf32> -> vector<8x8xf32>
    %54 = arith.addf %53, %20 : vector<8x8xf32>
    %cst_22 = arith.constant dense<0xFF800000> : vector<8xf32>
    %55 = vector.multi_reduction <maximumf>, %54, %cst_22 [1] : vector<8x8xf32> to vector<8xf32>
    %56 = vector.shape_cast %55 : vector<8xf32> to vector<8x1xf32>
    %57 = vector.broadcast %56 : vector<8x1xf32> to vector<8x8xf32>
    %58 = arith.subf %54, %57 : vector<8x8xf32>
    %59 = math.exp %58 : vector<8x8xf32>
    %cst_23 = arith.constant dense<0.000000e+00> : vector<8xf32>
    %60 = vector.multi_reduction <add>, %59, %cst_23 [1] : vector<8x8xf32> to vector<8xf32>
    %61 = vector.shape_cast %60 : vector<8xf32> to vector<8x1xf32>
    %62 = tpu.reciprocal %61 {approx = true} : vector<8x1xf32> -> vector<8x1xf32>
    %63 = vector.broadcast %62 : vector<8x1xf32> to vector<8x8xf32>
    %64 = arith.mulf %59, %63 : vector<8x8xf32>
    %65 = arith.truncf %64 : vector<8x8xf32> to vector<8x8xbf16>
    %cst_24 = arith.constant dense<0.000000e+00> : vector<8x8xf32>
    %66 = tpu.matmul %65, %52, %cst_24 {dimension_numbers = #tpu.dot_dimension_numbers<[1], [0], [0], [1], [0, 0, 1, 1], [], []>} : vector<8x8xbf16>, vector<8x8xbf16>, vector<8x8xf32> -> vector<8x8xf32>
    %67 = arith.truncf %66 : vector<8x8xf32> to vector<8x8xbf16>
    %68 = vector.extract_strided_slice %21 {offsets = [8, 0], sizes = [8, 32], strides = [1, 1]} : vector<32x32xbf16> to vector<8x32xbf16>
    %cst_25 = arith.constant dense<0.000000e+00> : vector<8x32xf32>
    %69 = tpu.matmul %67, %68, %cst_25 {dimension_numbers = #tpu.dot_dimension_numbers<[1], [0], [0], [1], [0, 0, 1, 1], [], []>} : vector<8x8xbf16>, vector<8x32xbf16>, vector<8x32xf32> -> vector<8x32xf32>
    %70 = arith.addf %46, %69 : vector<8x32xf32>
    %71 = vector.extract_strided_slice %7 {offsets = [0, 16], sizes = [8, 8], strides = [1, 1]} : vector<8x32xf32> to vector<8x8xf32>
    %72 = arith.truncf %71 : vector<8x8xf32> to vector<8x8xbf16>
    %73 = vector.extract_strided_slice %13 {offsets = [0, 16], sizes = [8, 8], strides = [1, 1]} : vector<8x32xf32> to vector<8x8xf32>
    %74 = arith.truncf %73 : vector<8x8xf32> to vector<8x8xbf16>
    %75 = vector.extract_strided_slice %14 {offsets = [0, 16], sizes = [8, 8], strides = [1, 1]} : vector<8x32xf32> to vector<8x8xf32>
    %76 = arith.truncf %75 : vector<8x8xf32> to vector<8x8xbf16>
    %cst_26 = arith.constant dense<0.000000e+00> : vector<8x8xf32>
    %77 = tpu.matmul %72, %74, %cst_26 {dimension_numbers = #tpu.dot_dimension_numbers<[1], [1], [0], [0], [0, 0, 1, 0], [], []>} : vector<8x8xbf16>, vector<8x8xbf16>, vector<8x8xf32> -> vector<8x8xf32>
    %78 = arith.addf %77, %20 : vector<8x8xf32>
    %cst_27 = arith.constant dense<0xFF800000> : vector<8xf32>
    %79 = vector.multi_reduction <maximumf>, %78, %cst_27 [1] : vector<8x8xf32> to vector<8xf32>
    %80 = vector.shape_cast %79 : vector<8xf32> to vector<8x1xf32>
    %81 = vector.broadcast %80 : vector<8x1xf32> to vector<8x8xf32>
    %82 = arith.subf %78, %81 : vector<8x8xf32>
    %83 = math.exp %82 : vector<8x8xf32>
    %cst_28 = arith.constant dense<0.000000e+00> : vector<8xf32>
    %84 = vector.multi_reduction <add>, %83, %cst_28 [1] : vector<8x8xf32> to vector<8xf32>
    %85 = vector.shape_cast %84 : vector<8xf32> to vector<8x1xf32>
    %86 = tpu.reciprocal %85 {approx = true} : vector<8x1xf32> -> vector<8x1xf32>
    %87 = vector.broadcast %86 : vector<8x1xf32> to vector<8x8xf32>
    %88 = arith.mulf %83, %87 : vector<8x8xf32>
    %89 = arith.truncf %88 : vector<8x8xf32> to vector<8x8xbf16>
    %cst_29 = arith.constant dense<0.000000e+00> : vector<8x8xf32>
    %90 = tpu.matmul %89, %76, %cst_29 {dimension_numbers = #tpu.dot_dimension_numbers<[1], [0], [0], [1], [0, 0, 1, 1], [], []>} : vector<8x8xbf16>, vector<8x8xbf16>, vector<8x8xf32> -> vector<8x8xf32>
    %91 = arith.truncf %90 : vector<8x8xf32> to vector<8x8xbf16>
    %92 = vector.extract_strided_slice %21 {offsets = [16, 0], sizes = [8, 32], strides = [1, 1]} : vector<32x32xbf16> to vector<8x32xbf16>
    %cst_30 = arith.constant dense<0.000000e+00> : vector<8x32xf32>
    %93 = tpu.matmul %91, %92, %cst_30 {dimension_numbers = #tpu.dot_dimension_numbers<[1], [0], [0], [1], [0, 0, 1, 1], [], []>} : vector<8x8xbf16>, vector<8x32xbf16>, vector<8x32xf32> -> vector<8x32xf32>
    %94 = arith.addf %70, %93 : vector<8x32xf32>
    %95 = vector.extract_strided_slice %7 {offsets = [0, 24], sizes = [8, 8], strides = [1, 1]} : vector<8x32xf32> to vector<8x8xf32>
    %96 = arith.truncf %95 : vector<8x8xf32> to vector<8x8xbf16>
    %97 = vector.extract_strided_slice %13 {offsets = [0, 24], sizes = [8, 8], strides = [1, 1]} : vector<8x32xf32> to vector<8x8xf32>
    %98 = arith.truncf %97 : vector<8x8xf32> to vector<8x8xbf16>
    %99 = vector.extract_strided_slice %14 {offsets = [0, 24], sizes = [8, 8], strides = [1, 1]} : vector<8x32xf32> to vector<8x8xf32>
    %100 = arith.truncf %99 : vector<8x8xf32> to vector<8x8xbf16>
    %cst_31 = arith.constant dense<0.000000e+00> : vector<8x8xf32>
    %101 = tpu.matmul %96, %98, %cst_31 {dimension_numbers = #tpu.dot_dimension_numbers<[1], [1], [0], [0], [0, 0, 1, 0], [], []>} : vector<8x8xbf16>, vector<8x8xbf16>, vector<8x8xf32> -> vector<8x8xf32>
    %102 = arith.addf %101, %20 : vector<8x8xf32>
    %cst_32 = arith.constant dense<0xFF800000> : vector<8xf32>
    %103 = vector.multi_reduction <maximumf>, %102, %cst_32 [1] : vector<8x8xf32> to vector<8xf32>
    %104 = vector.shape_cast %103 : vector<8xf32> to vector<8x1xf32>
    %105 = vector.broadcast %104 : vector<8x1xf32> to vector<8x8xf32>
    %106 = arith.subf %102, %105 : vector<8x8xf32>
    %107 = math.exp %106 : vector<8x8xf32>
    %cst_33 = arith.constant dense<0.000000e+00> : vector<8xf32>
    %108 = vector.multi_reduction <add>, %107, %cst_33 [1] : vector<8x8xf32> to vector<8xf32>
    %109 = vector.shape_cast %108 : vector<8xf32> to vector<8x1xf32>
    %110 = tpu.reciprocal %109 {approx = true} : vector<8x1xf32> -> vector<8x1xf32>
    %111 = vector.broadcast %110 : vector<8x1xf32> to vector<8x8xf32>
    %112 = arith.mulf %107, %111 : vector<8x8xf32>
    %113 = arith.truncf %112 : vector<8x8xf32> to vector<8x8xbf16>
    %cst_34 = arith.constant dense<0.000000e+00> : vector<8x8xf32>
    %114 = tpu.matmul %113, %100, %cst_34 {dimension_numbers = #tpu.dot_dimension_numbers<[1], [0], [0], [1], [0, 0, 1, 1], [], []>} : vector<8x8xbf16>, vector<8x8xbf16>, vector<8x8xf32> -> vector<8x8xf32>
    %115 = arith.truncf %114 : vector<8x8xf32> to vector<8x8xbf16>
    %116 = vector.extract_strided_slice %21 {offsets = [24, 0], sizes = [8, 32], strides = [1, 1]} : vector<32x32xbf16> to vector<8x32xbf16>
    %cst_35 = arith.constant dense<0.000000e+00> : vector<8x32xf32>
    %117 = tpu.matmul %115, %116, %cst_35 {dimension_numbers = #tpu.dot_dimension_numbers<[1], [0], [0], [1], [0, 0, 1, 1], [], []>} : vector<8x8xbf16>, vector<8x32xbf16>, vector<8x32xf32> -> vector<8x32xf32>
    %118 = arith.addf %94, %117 : vector<8x32xf32>
    %c0_36 = arith.constant 0 : index
    %c0_37 = arith.constant 0 : index
    %119 = vector.load %arg7[%c0_36, %c0_37] : memref<1x32xf32, #tpu.memory_space<vmem>>, vector<1x32xf32>
    %120 = vector.broadcast %119 : vector<1x32xf32> to vector<8x32xf32>
    %121 = arith.addf %118, %120 : vector<8x32xf32>
    %c0_38 = arith.constant 0 : index
    %c0_39 = arith.constant 0 : index
    %122 = vector.load %arg8[%c0_38, %c0_39] : memref<1x32xf32, #tpu.memory_space<vmem>>, vector<1x32xf32>
    %c0_40 = arith.constant 0 : index
    %c0_41 = arith.constant 0 : index
    %123 = vector.load %arg9[%c0_40, %c0_41] : memref<1x32xf32, #tpu.memory_space<vmem>>, vector<1x32xf32>
    %124 = arith.addf %1, %121 : vector<8x32xf32>
    %cst_42 = arith.constant dense<0.000000e+00> : vector<8xf32>
    %125 = vector.multi_reduction <add>, %124, %cst_42 [1] : vector<8x32xf32> to vector<8xf32>
    %126 = vector.shape_cast %125 : vector<8xf32> to vector<8x1xf32>
    %cst_43 = arith.constant 3.200000e+01 : f32
    %127 = vector.broadcast %cst_43 : f32 to vector<8x1xf32>
    %128 = arith.divf %126, %127 : vector<8x1xf32>
    %129 = vector.broadcast %128 : vector<8x1xf32> to vector<8x32xf32>
    %130 = arith.subf %124, %129 : vector<8x32xf32>
    %131 = arith.mulf %130, %130 : vector<8x32xf32>
    %cst_44 = arith.constant dense<0.000000e+00> : vector<8xf32>
    %132 = vector.multi_reduction <add>, %131, %cst_44 [1] : vector<8x32xf32> to vector<8xf32>
    %133 = vector.shape_cast %132 : vector<8xf32> to vector<8x1xf32>
    %cst_45 = arith.constant 3.200000e+01 : f32
    %134 = vector.broadcast %cst_45 : f32 to vector<8x1xf32>
    %135 = arith.divf %133, %134 : vector<8x1xf32>
    %cst_46 = arith.constant 9.99999974E-6 : f32
    %136 = vector.broadcast %cst_46 : f32 to vector<8x1xf32>
    %137 = arith.addf %135, %136 : vector<8x1xf32>
    %138 = math.rsqrt %137 : vector<8x1xf32>
    %139 = vector.broadcast %138 : vector<8x1xf32> to vector<8x32xf32>
    %140 = arith.mulf %130, %139 : vector<8x32xf32>
    %141 = vector.broadcast %122 : vector<1x32xf32> to vector<8x32xf32>
    %142 = arith.mulf %140, %141 : vector<8x32xf32>
    %143 = vector.broadcast %123 : vector<1x32xf32> to vector<8x32xf32>
    %144 = arith.addf %142, %143 : vector<8x32xf32>
    %145 = arith.truncf %144 : vector<8x32xf32> to vector<8x32xbf16>
    %c0_47 = arith.constant 0 : index
    %c0_48 = arith.constant 0 : index
    %146 = vector.load %arg10[%c0_47, %c0_48] : memref<32x32xbf16, #tpu.memory_space<vmem>>, vector<32x32xbf16>
    %cst_49 = arith.constant dense<0.000000e+00> : vector<8x32xf32>
    %147 = tpu.matmul %145, %146, %cst_49 {dimension_numbers = #tpu.dot_dimension_numbers<[1], [0], [0], [1], [0, 0, 1, 1], [], []>} : vector<8x32xbf16>, vector<32x32xbf16>, vector<8x32xf32> -> vector<8x32xf32>
    %c0_50 = arith.constant 0 : index
    %c0_51 = arith.constant 0 : index
    %148 = vector.load %arg11[%c0_50, %c0_51] : memref<1x32xf32, #tpu.memory_space<vmem>>, vector<1x32xf32>
    %149 = vector.broadcast %148 : vector<1x32xf32> to vector<8x32xf32>
    %150 = arith.addf %147, %149 : vector<8x32xf32>
    %151 = arith.cmpi sle, %16, %15 : vector<8x8xi32>
    %cst_52 = arith.constant 1.000000e+00 : f32
    %cst_53 = arith.constant 0.000000e+00 : f32
    %152 = vector.broadcast %cst_52 : f32 to vector<8x8xf32>
    %153 = vector.broadcast %cst_53 : f32 to vector<8x8xf32>
    %154 = arith.select %151, %152, %153 : vector<8x8xi1>, vector<8x8xf32>
    %155 = arith.truncf %154 : vector<8x8xf32> to vector<8x8xbf16>
    %156 = arith.truncf %150 : vector<8x32xf32> to vector<8x32xbf16>
    %cst_54 = arith.constant dense<0.000000e+00> : vector<8x32xf32>
    %157 = tpu.matmul %155, %156, %cst_54 {dimension_numbers = #tpu.dot_dimension_numbers<[1], [0], [0], [1], [0, 0, 1, 1], [], []>} : vector<8x8xbf16>, vector<8x32xbf16>, vector<8x32xf32> -> vector<8x32xf32>
    %158 = vector.extract_strided_slice %15 {offsets = [0, 0], sizes = [8, 1], strides = [1, 1]} : vector<8x8xi32> to vector<8x1xi32>
    %c1_i32 = arith.constant 1 : i32
    %159 = vector.broadcast %c1_i32 : i32 to vector<8x1xi32>
    %160 = arith.addi %158, %159 : vector<8x1xi32>
    %161 = arith.sitofp %160 : vector<8x1xi32> to vector<8x1xf32>
    %cst_55 = arith.constant 1.000000e+00 : f32
    %162 = vector.broadcast %cst_55 : f32 to vector<8x1xf32>
    %163 = arith.divf %162, %161 : vector<8x1xf32>
    %164 = vector.broadcast %163 : vector<8x1xf32> to vector<8x32xf32>
    %165 = arith.mulf %157, %164 : vector<8x32xf32>
    %166 = arith.truncf %165 : vector<8x32xf32> to vector<8x32xbf16>
    %c0_56 = arith.constant 0 : index
    %c0_57 = arith.constant 0 : index
    %167 = vector.load %arg12[%c0_56, %c0_57] : memref<32x32xbf16, #tpu.memory_space<vmem>>, vector<32x32xbf16>
    %cst_58 = arith.constant dense<0.000000e+00> : vector<8x32xf32>
    %168 = tpu.matmul %166, %167, %cst_58 {dimension_numbers = #tpu.dot_dimension_numbers<[1], [0], [0], [1], [0, 0, 1, 1], [], []>} : vector<8x32xbf16>, vector<32x32xbf16>, vector<8x32xf32> -> vector<8x32xf32>
    %c0_59 = arith.constant 0 : index
    %c0_60 = arith.constant 0 : index
    %169 = vector.load %arg13[%c0_59, %c0_60] : memref<1x32xf32, #tpu.memory_space<vmem>>, vector<1x32xf32>
    %170 = vector.broadcast %169 : vector<1x32xf32> to vector<8x32xf32>
    %171 = arith.addf %168, %170 : vector<8x32xf32>
    %c0_61 = arith.constant 0 : index
    %c0_62 = arith.constant 0 : index
    %172 = vector.load %arg14[%c0_61, %c0_62] : memref<1x32xf32, #tpu.memory_space<vmem>>, vector<1x32xf32>
    %c0_63 = arith.constant 0 : index
    %c0_64 = arith.constant 0 : index
    %173 = vector.load %arg15[%c0_63, %c0_64] : memref<1x32xf32, #tpu.memory_space<vmem>>, vector<1x32xf32>
    %174 = arith.addf %144, %171 : vector<8x32xf32>
    %cst_65 = arith.constant dense<0.000000e+00> : vector<8xf32>
    %175 = vector.multi_reduction <add>, %174, %cst_65 [1] : vector<8x32xf32> to vector<8xf32>
    %176 = vector.shape_cast %175 : vector<8xf32> to vector<8x1xf32>
    %cst_66 = arith.constant 3.200000e+01 : f32
    %177 = vector.broadcast %cst_66 : f32 to vector<8x1xf32>
    %178 = arith.divf %176, %177 : vector<8x1xf32>
    %179 = vector.broadcast %178 : vector<8x1xf32> to vector<8x32xf32>
    %180 = arith.subf %174, %179 : vector<8x32xf32>
    %181 = arith.mulf %180, %180 : vector<8x32xf32>
    %cst_67 = arith.constant dense<0.000000e+00> : vector<8xf32>
    %182 = vector.multi_reduction <add>, %181, %cst_67 [1] : vector<8x32xf32> to vector<8xf32>
    %183 = vector.shape_cast %182 : vector<8xf32> to vector<8x1xf32>
    %cst_68 = arith.constant 3.200000e+01 : f32
    %184 = vector.broadcast %cst_68 : f32 to vector<8x1xf32>
    %185 = arith.divf %183, %184 : vector<8x1xf32>
    %cst_69 = arith.constant 9.99999974E-6 : f32
    %186 = vector.broadcast %cst_69 : f32 to vector<8x1xf32>
    %187 = arith.addf %185, %186 : vector<8x1xf32>
    %188 = math.rsqrt %187 : vector<8x1xf32>
    %189 = vector.broadcast %188 : vector<8x1xf32> to vector<8x32xf32>
    %190 = arith.mulf %180, %189 : vector<8x32xf32>
    %191 = vector.broadcast %172 : vector<1x32xf32> to vector<8x32xf32>
    %192 = arith.mulf %190, %191 : vector<8x32xf32>
    %193 = vector.broadcast %173 : vector<1x32xf32> to vector<8x32xf32>
    %194 = arith.addf %192, %193 : vector<8x32xf32>
    %c0_70 = arith.constant 0 : index
    %c0_71 = arith.constant 0 : index
    %c0_72 = arith.constant 0 : index
    %195 = vector.load %arg16[%c0_70, %c0_71, %c0_72] : memref<1x8x32xf32, #tpu.memory_space<vmem>>, vector<1x8x32xf32>
    %196 = vector.shape_cast %195 : vector<1x8x32xf32> to vector<8x32xf32>
    %197 = vector.shape_cast %194 : vector<8x32xf32> to vector<1x8x32xf32>
    tpu.vector_store %arg16[%c0_70, %c0_71, %c0_72], %197 {strides = array<i32>} : memref<1x8x32xf32, #tpu.memory_space<vmem>>, vector<1x8x32xf32>,
    return
  }
  func.func @transform_0(%arg0: i32) -> (i32, i32, i32) {
    %c0_i32 = arith.constant 0 : i32
    %c0_i32_0 = arith.constant 0 : i32
    %c0_i32_1 = arith.constant 0 : i32
    return %arg0, %c0_i32, %c0_i32_0 : i32, i32, i32
  }
  func.func @transform_1(%arg0: i32) -> (i32, i32) {
    %c0_i32 = arith.constant 0 : i32
    %c0_i32_0 = arith.constant 0 : i32
    %c0_i32_1 = arith.constant 0 : i32
    return %c0_i32, %c0_i32_0 : i32, i32
  }
  func.func @transform_2(%arg0: i32) -> (i32, i32) {
    %c0_i32 = arith.constant 0 : i32
    %c0_i32_0 = arith.constant 0 : i32
    %c0_i32_1 = arith.constant 0 : i32
    return %c0_i32, %c0_i32_0 : i32, i32
  }
  func.func @transform_3(%arg0: i32) -> (i32, i32) {
    %c0_i32 = arith.constant 0 : i32
    %c0_i32_0 = arith.constant 0 : i32
    %c0_i32_1 = arith.constant 0 : i32
    return %c0_i32, %c0_i32_0 : i32, i32
  }
  func.func @transform_4(%arg0: i32) -> (i32, i32) {
    %c0_i32 = arith.constant 0 : i32
    %c0_i32_0 = arith.constant 0 : i32
    %c0_i32_1 = arith.constant 0 : i32
    return %c0_i32, %c0_i32_0 : i32, i32
  }
  func.func @transform_5(%arg0: i32) -> (i32, i32) {
    %c0_i32 = arith.constant 0 : i32
    %c0_i32_0 = arith.constant 0 : i32
    %c0_i32_1 = arith.constant 0 : i32
    return %c0_i32, %c0_i32_0 : i32, i32
  }
  func.func @transform_6(%arg0: i32) -> (i32, i32) {
    %c0_i32 = arith.constant 0 : i32
    %c0_i32_0 = arith.constant 0 : i32
    %c0_i32_1 = arith.constant 0 : i32
    return %c0_i32, %c0_i32_0 : i32, i32
  }
  func.func @transform_7(%arg0: i32) -> (i32, i32) {
    %c0_i32 = arith.constant 0 : i32
    %c0_i32_0 = arith.constant 0 : i32
    %c0_i32_1 = arith.constant 0 : i32
    return %c0_i32, %c0_i32_0 : i32, i32
  }
  func.func @transform_8(%arg0: i32) -> (i32, i32) {
    %c0_i32 = arith.constant 0 : i32
    %c0_i32_0 = arith.constant 0 : i32
    %c0_i32_1 = arith.constant 0 : i32
    return %c0_i32, %c0_i32_0 : i32, i32
  }
  func.func @transform_9(%arg0: i32) -> (i32, i32) {
    %c0_i32 = arith.constant 0 : i32
    %c0_i32_0 = arith.constant 0 : i32
    %c0_i32_1 = arith.constant 0 : i32
    return %c0_i32, %c0_i32_0 : i32, i32
  }
  func.func @transform_10(%arg0: i32) -> (i32, i32) {
    %c0_i32 = arith.constant 0 : i32
    %c0_i32_0 = arith.constant 0 : i32
    %c0_i32_1 = arith.constant 0 : i32
    return %c0_i32, %c0_i32_0 : i32, i32
  }
  func.func @transform_11(%arg0: i32) -> (i32, i32) {
    %c0_i32 = arith.constant 0 : i32
    %c0_i32_0 = arith.constant 0 : i32
    %c0_i32_1 = arith.constant 0 : i32
    return %c0_i32, %c0_i32_0 : i32, i32
  }
  func.func @transform_12(%arg0: i32) -> (i32, i32) {
    %c0_i32 = arith.constant 0 : i32
    %c0_i32_0 = arith.constant 0 : i32
    %c0_i32_1 = arith.constant 0 : i32
    return %c0_i32, %c0_i32_0 : i32, i32
  }
  func.func @transform_13(%arg0: i32) -> (i32, i32) {
    %c0_i32 = arith.constant 0 : i32
    %c0_i32_0 = arith.constant 0 : i32
    %c0_i32_1 = arith.constant 0 : i32
    return %c0_i32, %c0_i32_0 : i32, i32
  }
  func.func @transform_14(%arg0: i32) -> (i32, i32) {
    %c0_i32 = arith.constant 0 : i32
    %c0_i32_0 = arith.constant 0 : i32
    %c0_i32_1 = arith.constant 0 : i32
    return %c0_i32, %c0_i32_0 : i32, i32
  }
  func.func @transform_15(%arg0: i32) -> (i32, i32, i32) {
    %c0_i32 = arith.constant 0 : i32
    %c0_i32_0 = arith.constant 0 : i32
    %c0_i32_1 = arith.constant 0 : i32
    return %arg0, %c0_i32, %c0_i32_0 : i32, i32, i32
  }
}

module attributes {stable_mosaic.version = 11 : i64} {
  func.func @_src_attn_kernel(%arg0: i32, %arg1: memref<1x8x32xf32, #tpu.memory_space<vmem>>, %arg2: memref<1x8x32xf32, #tpu.memory_space<vmem>>, %arg3: memref<32x32xbf16, #tpu.memory_space<vmem>>, %arg4: memref<1x32xf32, #tpu.memory_space<vmem>>, %arg5: memref<32x64xbf16, #tpu.memory_space<vmem>>, %arg6: memref<1x64xf32, #tpu.memory_space<vmem>>, %arg7: memref<32x32xbf16, #tpu.memory_space<vmem>>, %arg8: memref<1x32xf32, #tpu.memory_space<vmem>>, %arg9: memref<1x32xf32, #tpu.memory_space<vmem>>, %arg10: memref<1x32xf32, #tpu.memory_space<vmem>>, %arg11: memref<1x8x32xf32, #tpu.memory_space<vmem>>) attributes {dimension_semantics = [#tpu.dimension_semantics<parallel>], iteration_bounds = array<i64: 2>, scalar_prefetch = 0 : i64, scratch_operands = 0 : i64, tpu.core_type = #tpu.core_type<tc>, window_params = [{transform_indices = @transform_0, window_bounds = array<i64: 1, 8, 32>}, {transform_indices = @transform_1, window_bounds = array<i64: 1, 8, 32>}, {pipeline_mode = #tpu.pipeline_mode<synchronous>, transform_indices = @transform_2, window_bounds = array<i64: 32, 32>}, {pipeline_mode = #tpu.pipeline_mode<synchronous>, transform_indices = @transform_3, window_bounds = array<i64: 1, 32>}, {pipeline_mode = #tpu.pipeline_mode<synchronous>, transform_indices = @transform_4, window_bounds = array<i64: 32, 64>}, {pipeline_mode = #tpu.pipeline_mode<synchronous>, transform_indices = @transform_5, window_bounds = array<i64: 1, 64>}, {pipeline_mode = #tpu.pipeline_mode<synchronous>, transform_indices = @transform_6, window_bounds = array<i64: 32, 32>}, {pipeline_mode = #tpu.pipeline_mode<synchronous>, transform_indices = @transform_7, window_bounds = array<i64: 1, 32>}, {pipeline_mode = #tpu.pipeline_mode<synchronous>, transform_indices = @transform_8, window_bounds = array<i64: 1, 32>}, {pipeline_mode = #tpu.pipeline_mode<synchronous>, transform_indices = @transform_9, window_bounds = array<i64: 1, 32>}, {transform_indices = @transform_10, window_bounds = array<i64: 1, 8, 32>}]} {
    %c0 = arith.constant 0 : index
    %c0_0 = arith.constant 0 : index
    %c0_1 = arith.constant 0 : index
    %0 = vector.load %arg1[%c0, %c0_0, %c0_1] : memref<1x8x32xf32, #tpu.memory_space<vmem>>, vector<1x8x32xf32>
    %1 = vector.shape_cast %0 : vector<1x8x32xf32> to vector<8x32xf32>
    %c0_2 = arith.constant 0 : index
    %c0_3 = arith.constant 0 : index
    %c0_4 = arith.constant 0 : index
    %2 = vector.load %arg2[%c0_2, %c0_3, %c0_4] : memref<1x8x32xf32, #tpu.memory_space<vmem>>, vector<1x8x32xf32>
    %3 = vector.shape_cast %2 : vector<1x8x32xf32> to vector<8x32xf32>
    %4 = arith.truncf %1 : vector<8x32xf32> to vector<8x32xbf16>
    %c0_5 = arith.constant 0 : index
    %c0_6 = arith.constant 0 : index
    %5 = vector.load %arg3[%c0_5, %c0_6] : memref<32x32xbf16, #tpu.memory_space<vmem>>, vector<32x32xbf16>
    %cst = arith.constant dense<0.000000e+00> : vector<8x32xf32>
    %6 = tpu.matmul %4, %5, %cst {dimension_numbers = #tpu.dot_dimension_numbers<[1], [0], [0], [1], [0, 0, 1, 1], [], []>} : vector<8x32xbf16>, vector<32x32xbf16>, vector<8x32xf32> -> vector<8x32xf32>
    %c0_7 = arith.constant 0 : index
    %c0_8 = arith.constant 0 : index
    %7 = vector.load %arg4[%c0_7, %c0_8] : memref<1x32xf32, #tpu.memory_space<vmem>>, vector<1x32xf32>
    %8 = vector.broadcast %7 : vector<1x32xf32> to vector<8x32xf32>
    %9 = arith.addf %6, %8 : vector<8x32xf32>
    %10 = arith.truncf %3 : vector<8x32xf32> to vector<8x32xbf16>
    %c0_9 = arith.constant 0 : index
    %c0_10 = arith.constant 0 : index
    %11 = vector.load %arg5[%c0_9, %c0_10] : memref<32x64xbf16, #tpu.memory_space<vmem>>, vector<32x64xbf16>
    %cst_11 = arith.constant dense<0.000000e+00> : vector<8x64xf32>
    %12 = tpu.matmul %10, %11, %cst_11 {dimension_numbers = #tpu.dot_dimension_numbers<[1], [0], [0], [1], [0, 0, 1, 1], [], []>} : vector<8x32xbf16>, vector<32x64xbf16>, vector<8x64xf32> -> vector<8x64xf32>
    %c0_12 = arith.constant 0 : index
    %c0_13 = arith.constant 0 : index
    %13 = vector.load %arg6[%c0_12, %c0_13] : memref<1x64xf32, #tpu.memory_space<vmem>>, vector<1x64xf32>
    %14 = vector.broadcast %13 : vector<1x64xf32> to vector<8x64xf32>
    %15 = arith.addf %12, %14 : vector<8x64xf32>
    %16 = vector.extract_strided_slice %15 {offsets = [0, 0], sizes = [8, 32], strides = [1, 1]} : vector<8x64xf32> to vector<8x32xf32>
    %17 = vector.extract_strided_slice %15 {offsets = [0, 32], sizes = [8, 32], strides = [1, 1]} : vector<8x64xf32> to vector<8x32xf32>
    %c0_14 = arith.constant 0 : index
    %c0_15 = arith.constant 0 : index
    %18 = vector.load %arg7[%c0_14, %c0_15] : memref<32x32xbf16, #tpu.memory_space<vmem>>, vector<32x32xbf16>
    %cst_16 = arith.constant 0.000000e+00 : f32
    %19 = vector.broadcast %cst_16 : f32 to vector<8x32xf32>
    %20 = vector.extract_strided_slice %9 {offsets = [0, 0], sizes = [8, 8], strides = [1, 1]} : vector<8x32xf32> to vector<8x8xf32>
    %21 = arith.truncf %20 : vector<8x8xf32> to vector<8x8xbf16>
    %22 = vector.extract_strided_slice %16 {offsets = [0, 0], sizes = [8, 8], strides = [1, 1]} : vector<8x32xf32> to vector<8x8xf32>
    %23 = arith.truncf %22 : vector<8x8xf32> to vector<8x8xbf16>
    %24 = vector.extract_strided_slice %17 {offsets = [0, 0], sizes = [8, 8], strides = [1, 1]} : vector<8x32xf32> to vector<8x8xf32>
    %25 = arith.truncf %24 : vector<8x8xf32> to vector<8x8xbf16>
    %cst_17 = arith.constant dense<0.000000e+00> : vector<8x8xf32>
    %26 = tpu.matmul %21, %23, %cst_17 {dimension_numbers = #tpu.dot_dimension_numbers<[1], [1], [0], [0], [0, 0, 1, 0], [], []>} : vector<8x8xbf16>, vector<8x8xbf16>, vector<8x8xf32> -> vector<8x8xf32>
    %cst_18 = arith.constant dense<0xFF800000> : vector<8xf32>
    %27 = vector.multi_reduction <maximumf>, %26, %cst_18 [1] : vector<8x8xf32> to vector<8xf32>
    %28 = vector.shape_cast %27 : vector<8xf32> to vector<8x1xf32>
    %29 = vector.broadcast %28 : vector<8x1xf32> to vector<8x8xf32>
    %30 = arith.subf %26, %29 : vector<8x8xf32>
    %31 = math.exp %30 : vector<8x8xf32>
    %cst_19 = arith.constant dense<0.000000e+00> : vector<8xf32>
    %32 = vector.multi_reduction <add>, %31, %cst_19 [1] : vector<8x8xf32> to vector<8xf32>
    %33 = vector.shape_cast %32 : vector<8xf32> to vector<8x1xf32>
    %34 = tpu.reciprocal %33 {approx = true} : vector<8x1xf32> -> vector<8x1xf32>
    %35 = vector.broadcast %34 : vector<8x1xf32> to vector<8x8xf32>
    %36 = arith.mulf %31, %35 : vector<8x8xf32>
    %37 = arith.truncf %36 : vector<8x8xf32> to vector<8x8xbf16>
    %cst_20 = arith.constant dense<0.000000e+00> : vector<8x8xf32>
    %38 = tpu.matmul %37, %25, %cst_20 {dimension_numbers = #tpu.dot_dimension_numbers<[1], [0], [0], [1], [0, 0, 1, 1], [], []>} : vector<8x8xbf16>, vector<8x8xbf16>, vector<8x8xf32> -> vector<8x8xf32>
    %39 = arith.truncf %38 : vector<8x8xf32> to vector<8x8xbf16>
    %40 = vector.extract_strided_slice %18 {offsets = [0, 0], sizes = [8, 32], strides = [1, 1]} : vector<32x32xbf16> to vector<8x32xbf16>
    %cst_21 = arith.constant dense<0.000000e+00> : vector<8x32xf32>
    %41 = tpu.matmul %39, %40, %cst_21 {dimension_numbers = #tpu.dot_dimension_numbers<[1], [0], [0], [1], [0, 0, 1, 1], [], []>} : vector<8x8xbf16>, vector<8x32xbf16>, vector<8x32xf32> -> vector<8x32xf32>
    %42 = arith.addf %19, %41 : vector<8x32xf32>
    %43 = vector.extract_strided_slice %9 {offsets = [0, 8], sizes = [8, 8], strides = [1, 1]} : vector<8x32xf32> to vector<8x8xf32>
    %44 = arith.truncf %43 : vector<8x8xf32> to vector<8x8xbf16>
    %45 = vector.extract_strided_slice %16 {offsets = [0, 8], sizes = [8, 8], strides = [1, 1]} : vector<8x32xf32> to vector<8x8xf32>
    %46 = arith.truncf %45 : vector<8x8xf32> to vector<8x8xbf16>
    %47 = vector.extract_strided_slice %17 {offsets = [0, 8], sizes = [8, 8], strides = [1, 1]} : vector<8x32xf32> to vector<8x8xf32>
    %48 = arith.truncf %47 : vector<8x8xf32> to vector<8x8xbf16>
    %cst_22 = arith.constant dense<0.000000e+00> : vector<8x8xf32>
    %49 = tpu.matmul %44, %46, %cst_22 {dimension_numbers = #tpu.dot_dimension_numbers<[1], [1], [0], [0], [0, 0, 1, 0], [], []>} : vector<8x8xbf16>, vector<8x8xbf16>, vector<8x8xf32> -> vector<8x8xf32>
    %cst_23 = arith.constant dense<0xFF800000> : vector<8xf32>
    %50 = vector.multi_reduction <maximumf>, %49, %cst_23 [1] : vector<8x8xf32> to vector<8xf32>
    %51 = vector.shape_cast %50 : vector<8xf32> to vector<8x1xf32>
    %52 = vector.broadcast %51 : vector<8x1xf32> to vector<8x8xf32>
    %53 = arith.subf %49, %52 : vector<8x8xf32>
    %54 = math.exp %53 : vector<8x8xf32>
    %cst_24 = arith.constant dense<0.000000e+00> : vector<8xf32>
    %55 = vector.multi_reduction <add>, %54, %cst_24 [1] : vector<8x8xf32> to vector<8xf32>
    %56 = vector.shape_cast %55 : vector<8xf32> to vector<8x1xf32>
    %57 = tpu.reciprocal %56 {approx = true} : vector<8x1xf32> -> vector<8x1xf32>
    %58 = vector.broadcast %57 : vector<8x1xf32> to vector<8x8xf32>
    %59 = arith.mulf %54, %58 : vector<8x8xf32>
    %60 = arith.truncf %59 : vector<8x8xf32> to vector<8x8xbf16>
    %cst_25 = arith.constant dense<0.000000e+00> : vector<8x8xf32>
    %61 = tpu.matmul %60, %48, %cst_25 {dimension_numbers = #tpu.dot_dimension_numbers<[1], [0], [0], [1], [0, 0, 1, 1], [], []>} : vector<8x8xbf16>, vector<8x8xbf16>, vector<8x8xf32> -> vector<8x8xf32>
    %62 = arith.truncf %61 : vector<8x8xf32> to vector<8x8xbf16>
    %63 = vector.extract_strided_slice %18 {offsets = [8, 0], sizes = [8, 32], strides = [1, 1]} : vector<32x32xbf16> to vector<8x32xbf16>
    %cst_26 = arith.constant dense<0.000000e+00> : vector<8x32xf32>
    %64 = tpu.matmul %62, %63, %cst_26 {dimension_numbers = #tpu.dot_dimension_numbers<[1], [0], [0], [1], [0, 0, 1, 1], [], []>} : vector<8x8xbf16>, vector<8x32xbf16>, vector<8x32xf32> -> vector<8x32xf32>
    %65 = arith.addf %42, %64 : vector<8x32xf32>
    %66 = vector.extract_strided_slice %9 {offsets = [0, 16], sizes = [8, 8], strides = [1, 1]} : vector<8x32xf32> to vector<8x8xf32>
    %67 = arith.truncf %66 : vector<8x8xf32> to vector<8x8xbf16>
    %68 = vector.extract_strided_slice %16 {offsets = [0, 16], sizes = [8, 8], strides = [1, 1]} : vector<8x32xf32> to vector<8x8xf32>
    %69 = arith.truncf %68 : vector<8x8xf32> to vector<8x8xbf16>
    %70 = vector.extract_strided_slice %17 {offsets = [0, 16], sizes = [8, 8], strides = [1, 1]} : vector<8x32xf32> to vector<8x8xf32>
    %71 = arith.truncf %70 : vector<8x8xf32> to vector<8x8xbf16>
    %cst_27 = arith.constant dense<0.000000e+00> : vector<8x8xf32>
    %72 = tpu.matmul %67, %69, %cst_27 {dimension_numbers = #tpu.dot_dimension_numbers<[1], [1], [0], [0], [0, 0, 1, 0], [], []>} : vector<8x8xbf16>, vector<8x8xbf16>, vector<8x8xf32> -> vector<8x8xf32>
    %cst_28 = arith.constant dense<0xFF800000> : vector<8xf32>
    %73 = vector.multi_reduction <maximumf>, %72, %cst_28 [1] : vector<8x8xf32> to vector<8xf32>
    %74 = vector.shape_cast %73 : vector<8xf32> to vector<8x1xf32>
    %75 = vector.broadcast %74 : vector<8x1xf32> to vector<8x8xf32>
    %76 = arith.subf %72, %75 : vector<8x8xf32>
    %77 = math.exp %76 : vector<8x8xf32>
    %cst_29 = arith.constant dense<0.000000e+00> : vector<8xf32>
    %78 = vector.multi_reduction <add>, %77, %cst_29 [1] : vector<8x8xf32> to vector<8xf32>
    %79 = vector.shape_cast %78 : vector<8xf32> to vector<8x1xf32>
    %80 = tpu.reciprocal %79 {approx = true} : vector<8x1xf32> -> vector<8x1xf32>
    %81 = vector.broadcast %80 : vector<8x1xf32> to vector<8x8xf32>
    %82 = arith.mulf %77, %81 : vector<8x8xf32>
    %83 = arith.truncf %82 : vector<8x8xf32> to vector<8x8xbf16>
    %cst_30 = arith.constant dense<0.000000e+00> : vector<8x8xf32>
    %84 = tpu.matmul %83, %71, %cst_30 {dimension_numbers = #tpu.dot_dimension_numbers<[1], [0], [0], [1], [0, 0, 1, 1], [], []>} : vector<8x8xbf16>, vector<8x8xbf16>, vector<8x8xf32> -> vector<8x8xf32>
    %85 = arith.truncf %84 : vector<8x8xf32> to vector<8x8xbf16>
    %86 = vector.extract_strided_slice %18 {offsets = [16, 0], sizes = [8, 32], strides = [1, 1]} : vector<32x32xbf16> to vector<8x32xbf16>
    %cst_31 = arith.constant dense<0.000000e+00> : vector<8x32xf32>
    %87 = tpu.matmul %85, %86, %cst_31 {dimension_numbers = #tpu.dot_dimension_numbers<[1], [0], [0], [1], [0, 0, 1, 1], [], []>} : vector<8x8xbf16>, vector<8x32xbf16>, vector<8x32xf32> -> vector<8x32xf32>
    %88 = arith.addf %65, %87 : vector<8x32xf32>
    %89 = vector.extract_strided_slice %9 {offsets = [0, 24], sizes = [8, 8], strides = [1, 1]} : vector<8x32xf32> to vector<8x8xf32>
    %90 = arith.truncf %89 : vector<8x8xf32> to vector<8x8xbf16>
    %91 = vector.extract_strided_slice %16 {offsets = [0, 24], sizes = [8, 8], strides = [1, 1]} : vector<8x32xf32> to vector<8x8xf32>
    %92 = arith.truncf %91 : vector<8x8xf32> to vector<8x8xbf16>
    %93 = vector.extract_strided_slice %17 {offsets = [0, 24], sizes = [8, 8], strides = [1, 1]} : vector<8x32xf32> to vector<8x8xf32>
    %94 = arith.truncf %93 : vector<8x8xf32> to vector<8x8xbf16>
    %cst_32 = arith.constant dense<0.000000e+00> : vector<8x8xf32>
    %95 = tpu.matmul %90, %92, %cst_32 {dimension_numbers = #tpu.dot_dimension_numbers<[1], [1], [0], [0], [0, 0, 1, 0], [], []>} : vector<8x8xbf16>, vector<8x8xbf16>, vector<8x8xf32> -> vector<8x8xf32>
    %cst_33 = arith.constant dense<0xFF800000> : vector<8xf32>
    %96 = vector.multi_reduction <maximumf>, %95, %cst_33 [1] : vector<8x8xf32> to vector<8xf32>
    %97 = vector.shape_cast %96 : vector<8xf32> to vector<8x1xf32>
    %98 = vector.broadcast %97 : vector<8x1xf32> to vector<8x8xf32>
    %99 = arith.subf %95, %98 : vector<8x8xf32>
    %100 = math.exp %99 : vector<8x8xf32>
    %cst_34 = arith.constant dense<0.000000e+00> : vector<8xf32>
    %101 = vector.multi_reduction <add>, %100, %cst_34 [1] : vector<8x8xf32> to vector<8xf32>
    %102 = vector.shape_cast %101 : vector<8xf32> to vector<8x1xf32>
    %103 = tpu.reciprocal %102 {approx = true} : vector<8x1xf32> -> vector<8x1xf32>
    %104 = vector.broadcast %103 : vector<8x1xf32> to vector<8x8xf32>
    %105 = arith.mulf %100, %104 : vector<8x8xf32>
    %106 = arith.truncf %105 : vector<8x8xf32> to vector<8x8xbf16>
    %cst_35 = arith.constant dense<0.000000e+00> : vector<8x8xf32>
    %107 = tpu.matmul %106, %94, %cst_35 {dimension_numbers = #tpu.dot_dimension_numbers<[1], [0], [0], [1], [0, 0, 1, 1], [], []>} : vector<8x8xbf16>, vector<8x8xbf16>, vector<8x8xf32> -> vector<8x8xf32>
    %108 = arith.truncf %107 : vector<8x8xf32> to vector<8x8xbf16>
    %109 = vector.extract_strided_slice %18 {offsets = [24, 0], sizes = [8, 32], strides = [1, 1]} : vector<32x32xbf16> to vector<8x32xbf16>
    %cst_36 = arith.constant dense<0.000000e+00> : vector<8x32xf32>
    %110 = tpu.matmul %108, %109, %cst_36 {dimension_numbers = #tpu.dot_dimension_numbers<[1], [0], [0], [1], [0, 0, 1, 1], [], []>} : vector<8x8xbf16>, vector<8x32xbf16>, vector<8x32xf32> -> vector<8x32xf32>
    %111 = arith.addf %88, %110 : vector<8x32xf32>
    %c0_37 = arith.constant 0 : index
    %c0_38 = arith.constant 0 : index
    %112 = vector.load %arg8[%c0_37, %c0_38] : memref<1x32xf32, #tpu.memory_space<vmem>>, vector<1x32xf32>
    %113 = vector.broadcast %112 : vector<1x32xf32> to vector<8x32xf32>
    %114 = arith.addf %111, %113 : vector<8x32xf32>
    %c0_39 = arith.constant 0 : index
    %c0_40 = arith.constant 0 : index
    %115 = vector.load %arg9[%c0_39, %c0_40] : memref<1x32xf32, #tpu.memory_space<vmem>>, vector<1x32xf32>
    %c0_41 = arith.constant 0 : index
    %c0_42 = arith.constant 0 : index
    %116 = vector.load %arg10[%c0_41, %c0_42] : memref<1x32xf32, #tpu.memory_space<vmem>>, vector<1x32xf32>
    %117 = arith.addf %1, %114 : vector<8x32xf32>
    %cst_43 = arith.constant dense<0.000000e+00> : vector<8xf32>
    %118 = vector.multi_reduction <add>, %117, %cst_43 [1] : vector<8x32xf32> to vector<8xf32>
    %119 = vector.shape_cast %118 : vector<8xf32> to vector<8x1xf32>
    %cst_44 = arith.constant 3.200000e+01 : f32
    %120 = vector.broadcast %cst_44 : f32 to vector<8x1xf32>
    %121 = arith.divf %119, %120 : vector<8x1xf32>
    %122 = vector.broadcast %121 : vector<8x1xf32> to vector<8x32xf32>
    %123 = arith.subf %117, %122 : vector<8x32xf32>
    %124 = arith.mulf %123, %123 : vector<8x32xf32>
    %cst_45 = arith.constant dense<0.000000e+00> : vector<8xf32>
    %125 = vector.multi_reduction <add>, %124, %cst_45 [1] : vector<8x32xf32> to vector<8xf32>
    %126 = vector.shape_cast %125 : vector<8xf32> to vector<8x1xf32>
    %cst_46 = arith.constant 3.200000e+01 : f32
    %127 = vector.broadcast %cst_46 : f32 to vector<8x1xf32>
    %128 = arith.divf %126, %127 : vector<8x1xf32>
    %cst_47 = arith.constant 9.99999974E-6 : f32
    %129 = vector.broadcast %cst_47 : f32 to vector<8x1xf32>
    %130 = arith.addf %128, %129 : vector<8x1xf32>
    %131 = math.rsqrt %130 : vector<8x1xf32>
    %132 = vector.broadcast %131 : vector<8x1xf32> to vector<8x32xf32>
    %133 = arith.mulf %123, %132 : vector<8x32xf32>
    %134 = vector.broadcast %115 : vector<1x32xf32> to vector<8x32xf32>
    %135 = arith.mulf %133, %134 : vector<8x32xf32>
    %136 = vector.broadcast %116 : vector<1x32xf32> to vector<8x32xf32>
    %137 = arith.addf %135, %136 : vector<8x32xf32>
    %c0_48 = arith.constant 0 : index
    %c0_49 = arith.constant 0 : index
    %c0_50 = arith.constant 0 : index
    %138 = vector.load %arg11[%c0_48, %c0_49, %c0_50] : memref<1x8x32xf32, #tpu.memory_space<vmem>>, vector<1x8x32xf32>
    %139 = vector.shape_cast %138 : vector<1x8x32xf32> to vector<8x32xf32>
    %140 = vector.shape_cast %137 : vector<8x32xf32> to vector<1x8x32xf32>
    tpu.vector_store %arg11[%c0_48, %c0_49, %c0_50], %140 {strides = array<i32>} : memref<1x8x32xf32, #tpu.memory_space<vmem>>, vector<1x8x32xf32>,
    return
  }
  func.func @transform_0(%arg0: i32) -> (i32, i32, i32) {
    %c0_i32 = arith.constant 0 : i32
    %c0_i32_0 = arith.constant 0 : i32
    %c0_i32_1 = arith.constant 0 : i32
    return %arg0, %c0_i32, %c0_i32_0 : i32, i32, i32
  }
  func.func @transform_1(%arg0: i32) -> (i32, i32, i32) {
    %c0_i32 = arith.constant 0 : i32
    %c0_i32_0 = arith.constant 0 : i32
    %c0_i32_1 = arith.constant 0 : i32
    return %arg0, %c0_i32, %c0_i32_0 : i32, i32, i32
  }
  func.func @transform_2(%arg0: i32) -> (i32, i32) {
    %c0_i32 = arith.constant 0 : i32
    %c0_i32_0 = arith.constant 0 : i32
    %c0_i32_1 = arith.constant 0 : i32
    return %c0_i32, %c0_i32_0 : i32, i32
  }
  func.func @transform_3(%arg0: i32) -> (i32, i32) {
    %c0_i32 = arith.constant 0 : i32
    %c0_i32_0 = arith.constant 0 : i32
    %c0_i32_1 = arith.constant 0 : i32
    return %c0_i32, %c0_i32_0 : i32, i32
  }
  func.func @transform_4(%arg0: i32) -> (i32, i32) {
    %c0_i32 = arith.constant 0 : i32
    %c0_i32_0 = arith.constant 0 : i32
    %c0_i32_1 = arith.constant 0 : i32
    return %c0_i32, %c0_i32_0 : i32, i32
  }
  func.func @transform_5(%arg0: i32) -> (i32, i32) {
    %c0_i32 = arith.constant 0 : i32
    %c0_i32_0 = arith.constant 0 : i32
    %c0_i32_1 = arith.constant 0 : i32
    return %c0_i32, %c0_i32_0 : i32, i32
  }
  func.func @transform_6(%arg0: i32) -> (i32, i32) {
    %c0_i32 = arith.constant 0 : i32
    %c0_i32_0 = arith.constant 0 : i32
    %c0_i32_1 = arith.constant 0 : i32
    return %c0_i32, %c0_i32_0 : i32, i32
  }
  func.func @transform_7(%arg0: i32) -> (i32, i32) {
    %c0_i32 = arith.constant 0 : i32
    %c0_i32_0 = arith.constant 0 : i32
    %c0_i32_1 = arith.constant 0 : i32
    return %c0_i32, %c0_i32_0 : i32, i32
  }
  func.func @transform_8(%arg0: i32) -> (i32, i32) {
    %c0_i32 = arith.constant 0 : i32
    %c0_i32_0 = arith.constant 0 : i32
    %c0_i32_1 = arith.constant 0 : i32
    return %c0_i32, %c0_i32_0 : i32, i32
  }
  func.func @transform_9(%arg0: i32) -> (i32, i32) {
    %c0_i32 = arith.constant 0 : i32
    %c0_i32_0 = arith.constant 0 : i32
    %c0_i32_1 = arith.constant 0 : i32
    return %c0_i32, %c0_i32_0 : i32, i32
  }
  func.func @transform_10(%arg0: i32) -> (i32, i32, i32) {
    %c0_i32 = arith.constant 0 : i32
    %c0_i32_0 = arith.constant 0 : i32
    %c0_i32_1 = arith.constant 0 : i32
    return %arg0, %c0_i32, %c0_i32_0 : i32, i32, i32
  }
}

module attributes {stable_mosaic.version = 11 : i64} {
  func.func @_ffn_ln_kernel(%arg0: i32, %arg1: memref<16x32xf32, #tpu.memory_space<vmem>>, %arg2: memref<32x64xbf16, #tpu.memory_space<vmem>>, %arg3: memref<1x64xf32, #tpu.memory_space<vmem>>, %arg4: memref<64x32xbf16, #tpu.memory_space<vmem>>, %arg5: memref<1x32xf32, #tpu.memory_space<vmem>>, %arg6: memref<1x32xf32, #tpu.memory_space<vmem>>, %arg7: memref<1x32xf32, #tpu.memory_space<vmem>>, %arg8: memref<16x32xf32, #tpu.memory_space<vmem>>) attributes {dimension_semantics = [#tpu.dimension_semantics<parallel>], iteration_bounds = array<i64: 1>, scalar_prefetch = 0 : i64, scratch_operands = 0 : i64, tpu.core_type = #tpu.core_type<tc>, window_params = [{transform_indices = @transform_0, window_bounds = array<i64: 16, 32>}, {pipeline_mode = #tpu.pipeline_mode<synchronous>, transform_indices = @transform_1, window_bounds = array<i64: 32, 64>}, {pipeline_mode = #tpu.pipeline_mode<synchronous>, transform_indices = @transform_2, window_bounds = array<i64: 1, 64>}, {pipeline_mode = #tpu.pipeline_mode<synchronous>, transform_indices = @transform_3, window_bounds = array<i64: 64, 32>}, {pipeline_mode = #tpu.pipeline_mode<synchronous>, transform_indices = @transform_4, window_bounds = array<i64: 1, 32>}, {pipeline_mode = #tpu.pipeline_mode<synchronous>, transform_indices = @transform_5, window_bounds = array<i64: 1, 32>}, {pipeline_mode = #tpu.pipeline_mode<synchronous>, transform_indices = @transform_6, window_bounds = array<i64: 1, 32>}, {transform_indices = @transform_7, window_bounds = array<i64: 16, 32>}]} {
    %c0 = arith.constant 0 : index
    %c0_0 = arith.constant 0 : index
    %0 = vector.load %arg1[%c0, %c0_0] : memref<16x32xf32, #tpu.memory_space<vmem>>, vector<16x32xf32>
    %1 = arith.truncf %0 : vector<16x32xf32> to vector<16x32xbf16>
    %c0_1 = arith.constant 0 : index
    %c0_2 = arith.constant 0 : index
    %2 = vector.load %arg2[%c0_1, %c0_2] : memref<32x64xbf16, #tpu.memory_space<vmem>>, vector<32x64xbf16>
    %cst = arith.constant dense<0.000000e+00> : vector<16x64xf32>
    %3 = tpu.matmul %1, %2, %cst {dimension_numbers = #tpu.dot_dimension_numbers<[1], [0], [0], [1], [0, 0, 1, 1], [], []>} : vector<16x32xbf16>, vector<32x64xbf16>, vector<16x64xf32> -> vector<16x64xf32>
    %c0_3 = arith.constant 0 : index
    %c0_4 = arith.constant 0 : index
    %4 = vector.load %arg3[%c0_3, %c0_4] : memref<1x64xf32, #tpu.memory_space<vmem>>, vector<1x64xf32>
    %5 = vector.broadcast %4 : vector<1x64xf32> to vector<16x64xf32>
    %6 = arith.addf %3, %5 : vector<16x64xf32>
    %cst_5 = arith.constant 0.000000e+00 : f32
    %7 = vector.broadcast %cst_5 : f32 to vector<16x64xf32>
    %8 = arith.maximumf %6, %7 : vector<16x64xf32>
    %9 = arith.truncf %8 : vector<16x64xf32> to vector<16x64xbf16>
    %c0_6 = arith.constant 0 : index
    %c0_7 = arith.constant 0 : index
    %10 = vector.load %arg4[%c0_6, %c0_7] : memref<64x32xbf16, #tpu.memory_space<vmem>>, vector<64x32xbf16>
    %cst_8 = arith.constant dense<0.000000e+00> : vector<16x32xf32>
    %11 = tpu.matmul %9, %10, %cst_8 {dimension_numbers = #tpu.dot_dimension_numbers<[1], [0], [0], [1], [0, 0, 1, 1], [], []>} : vector<16x64xbf16>, vector<64x32xbf16>, vector<16x32xf32> -> vector<16x32xf32>
    %c0_9 = arith.constant 0 : index
    %c0_10 = arith.constant 0 : index
    %12 = vector.load %arg5[%c0_9, %c0_10] : memref<1x32xf32, #tpu.memory_space<vmem>>, vector<1x32xf32>
    %13 = vector.broadcast %12 : vector<1x32xf32> to vector<16x32xf32>
    %14 = arith.addf %11, %13 : vector<16x32xf32>
    %c0_11 = arith.constant 0 : index
    %c0_12 = arith.constant 0 : index
    %15 = vector.load %arg6[%c0_11, %c0_12] : memref<1x32xf32, #tpu.memory_space<vmem>>, vector<1x32xf32>
    %c0_13 = arith.constant 0 : index
    %c0_14 = arith.constant 0 : index
    %16 = vector.load %arg7[%c0_13, %c0_14] : memref<1x32xf32, #tpu.memory_space<vmem>>, vector<1x32xf32>
    %17 = arith.addf %0, %14 : vector<16x32xf32>
    %cst_15 = arith.constant dense<0.000000e+00> : vector<16xf32>
    %18 = vector.multi_reduction <add>, %17, %cst_15 [1] : vector<16x32xf32> to vector<16xf32>
    %19 = vector.shape_cast %18 : vector<16xf32> to vector<16x1xf32>
    %cst_16 = arith.constant 3.200000e+01 : f32
    %20 = vector.broadcast %cst_16 : f32 to vector<16x1xf32>
    %21 = arith.divf %19, %20 : vector<16x1xf32>
    %22 = vector.broadcast %21 : vector<16x1xf32> to vector<16x32xf32>
    %23 = arith.subf %17, %22 : vector<16x32xf32>
    %24 = arith.mulf %23, %23 : vector<16x32xf32>
    %cst_17 = arith.constant dense<0.000000e+00> : vector<16xf32>
    %25 = vector.multi_reduction <add>, %24, %cst_17 [1] : vector<16x32xf32> to vector<16xf32>
    %26 = vector.shape_cast %25 : vector<16xf32> to vector<16x1xf32>
    %cst_18 = arith.constant 3.200000e+01 : f32
    %27 = vector.broadcast %cst_18 : f32 to vector<16x1xf32>
    %28 = arith.divf %26, %27 : vector<16x1xf32>
    %cst_19 = arith.constant 9.99999974E-6 : f32
    %29 = vector.broadcast %cst_19 : f32 to vector<16x1xf32>
    %30 = arith.addf %28, %29 : vector<16x1xf32>
    %31 = math.rsqrt %30 : vector<16x1xf32>
    %32 = vector.broadcast %31 : vector<16x1xf32> to vector<16x32xf32>
    %33 = arith.mulf %23, %32 : vector<16x32xf32>
    %34 = vector.broadcast %15 : vector<1x32xf32> to vector<16x32xf32>
    %35 = arith.mulf %33, %34 : vector<16x32xf32>
    %36 = vector.broadcast %16 : vector<1x32xf32> to vector<16x32xf32>
    %37 = arith.addf %35, %36 : vector<16x32xf32>
    %c0_20 = arith.constant 0 : index
    %c0_21 = arith.constant 0 : index
    %38 = vector.load %arg8[%c0_20, %c0_21] : memref<16x32xf32, #tpu.memory_space<vmem>>, vector<16x32xf32>
    tpu.vector_store %arg8[%c0_20, %c0_21], %37 {strides = array<i32>} : memref<16x32xf32, #tpu.memory_space<vmem>>, vector<16x32xf32>,
    return
  }
  func.func @transform_0(%arg0: i32) -> (i32, i32) {
    %c0_i32 = arith.constant 0 : i32
    %c0_i32_0 = arith.constant 0 : i32
    return %arg0, %c0_i32 : i32, i32
  }
  func.func @transform_1(%arg0: i32) -> (i32, i32) {
    %c0_i32 = arith.constant 0 : i32
    %c0_i32_0 = arith.constant 0 : i32
    %c0_i32_1 = arith.constant 0 : i32
    return %c0_i32, %c0_i32_0 : i32, i32
  }
  func.func @transform_2(%arg0: i32) -> (i32, i32) {
    %c0_i32 = arith.constant 0 : i32
    %c0_i32_0 = arith.constant 0 : i32
    %c0_i32_1 = arith.constant 0 : i32
    return %c0_i32, %c0_i32_0 : i32, i32
  }
  func.func @transform_3(%arg0: i32) -> (i32, i32) {
    %c0_i32 = arith.constant 0 : i32
    %c0_i32_0 = arith.constant 0 : i32
    %c0_i32_1 = arith.constant 0 : i32
    return %c0_i32, %c0_i32_0 : i32, i32
  }
  func.func @transform_4(%arg0: i32) -> (i32, i32) {
    %c0_i32 = arith.constant 0 : i32
    %c0_i32_0 = arith.constant 0 : i32
    %c0_i32_1 = arith.constant 0 : i32
    return %c0_i32, %c0_i32_0 : i32, i32
  }
  func.func @transform_5(%arg0: i32) -> (i32, i32) {
    %c0_i32 = arith.constant 0 : i32
    %c0_i32_0 = arith.constant 0 : i32
    %c0_i32_1 = arith.constant 0 : i32
    return %c0_i32, %c0_i32_0 : i32, i32
  }
  func.func @transform_6(%arg0: i32) -> (i32, i32) {
    %c0_i32 = arith.constant 0 : i32
    %c0_i32_0 = arith.constant 0 : i32
    %c0_i32_1 = arith.constant 0 : i32
    return %c0_i32, %c0_i32_0 : i32, i32
  }
  func.func @transform_7(%arg0: i32) -> (i32, i32) {
    %c0_i32 = arith.constant 0 : i32
    %c0_i32_0 = arith.constant 0 : i32
    return %arg0, %c0_i32 : i32, i32
  }
}

module attributes {stable_mosaic.version = 11 : i64} {
  func.func @_self_pos_kernel(%arg0: i32, %arg1: memref<1x8x32xf32, #tpu.memory_space<vmem>>, %arg2: memref<32x32xbf16, #tpu.memory_space<vmem>>, %arg3: memref<1x32xf32, #tpu.memory_space<vmem>>, %arg4: memref<32x64xbf16, #tpu.memory_space<vmem>>, %arg5: memref<1x64xf32, #tpu.memory_space<vmem>>, %arg6: memref<32x32xbf16, #tpu.memory_space<vmem>>, %arg7: memref<1x32xf32, #tpu.memory_space<vmem>>, %arg8: memref<1x32xf32, #tpu.memory_space<vmem>>, %arg9: memref<1x32xf32, #tpu.memory_space<vmem>>, %arg10: memref<32x32xbf16, #tpu.memory_space<vmem>>, %arg11: memref<1x32xf32, #tpu.memory_space<vmem>>, %arg12: memref<32x32xbf16, #tpu.memory_space<vmem>>, %arg13: memref<1x32xf32, #tpu.memory_space<vmem>>, %arg14: memref<1x32xf32, #tpu.memory_space<vmem>>, %arg15: memref<1x32xf32, #tpu.memory_space<vmem>>, %arg16: memref<1x8x32xf32, #tpu.memory_space<vmem>>) attributes {dimension_semantics = [#tpu.dimension_semantics<parallel>], iteration_bounds = array<i64: 2>, scalar_prefetch = 0 : i64, scratch_operands = 0 : i64, tpu.core_type = #tpu.core_type<tc>, window_params = [{transform_indices = @transform_0, window_bounds = array<i64: 1, 8, 32>}, {pipeline_mode = #tpu.pipeline_mode<synchronous>, transform_indices = @transform_1, window_bounds = array<i64: 32, 32>}, {pipeline_mode = #tpu.pipeline_mode<synchronous>, transform_indices = @transform_2, window_bounds = array<i64: 1, 32>}, {pipeline_mode = #tpu.pipeline_mode<synchronous>, transform_indices = @transform_3, window_bounds = array<i64: 32, 64>}, {pipeline_mode = #tpu.pipeline_mode<synchronous>, transform_indices = @transform_4, window_bounds = array<i64: 1, 64>}, {pipeline_mode = #tpu.pipeline_mode<synchronous>, transform_indices = @transform_5, window_bounds = array<i64: 32, 32>}, {pipeline_mode = #tpu.pipeline_mode<synchronous>, transform_indices = @transform_6, window_bounds = array<i64: 1, 32>}, {pipeline_mode = #tpu.pipeline_mode<synchronous>, transform_indices = @transform_7, window_bounds = array<i64: 1, 32>}, {pipeline_mode = #tpu.pipeline_mode<synchronous>, transform_indices = @transform_8, window_bounds = array<i64: 1, 32>}, {pipeline_mode = #tpu.pipeline_mode<synchronous>, transform_indices = @transform_9, window_bounds = array<i64: 32, 32>}, {pipeline_mode = #tpu.pipeline_mode<synchronous>, transform_indices = @transform_10, window_bounds = array<i64: 1, 32>}, {pipeline_mode = #tpu.pipeline_mode<synchronous>, transform_indices = @transform_11, window_bounds = array<i64: 32, 32>}, {pipeline_mode = #tpu.pipeline_mode<synchronous>, transform_indices = @transform_12, window_bounds = array<i64: 1, 32>}, {pipeline_mode = #tpu.pipeline_mode<synchronous>, transform_indices = @transform_13, window_bounds = array<i64: 1, 32>}, {pipeline_mode = #tpu.pipeline_mode<synchronous>, transform_indices = @transform_14, window_bounds = array<i64: 1, 32>}, {transform_indices = @transform_15, window_bounds = array<i64: 1, 8, 32>}]} {
    %c0 = arith.constant 0 : index
    %c0_0 = arith.constant 0 : index
    %c0_1 = arith.constant 0 : index
    %0 = vector.load %arg1[%c0, %c0_0, %c0_1] : memref<1x8x32xf32, #tpu.memory_space<vmem>>, vector<1x8x32xf32>
    %1 = vector.shape_cast %0 : vector<1x8x32xf32> to vector<8x32xf32>
    %2 = arith.truncf %1 : vector<8x32xf32> to vector<8x32xbf16>
    %c0_2 = arith.constant 0 : index
    %c0_3 = arith.constant 0 : index
    %3 = vector.load %arg2[%c0_2, %c0_3] : memref<32x32xbf16, #tpu.memory_space<vmem>>, vector<32x32xbf16>
    %cst = arith.constant dense<0.000000e+00> : vector<8x32xf32>
    %4 = tpu.matmul %2, %3, %cst {dimension_numbers = #tpu.dot_dimension_numbers<[1], [0], [0], [1], [0, 0, 1, 1], [], []>} : vector<8x32xbf16>, vector<32x32xbf16>, vector<8x32xf32> -> vector<8x32xf32>
    %c0_4 = arith.constant 0 : index
    %c0_5 = arith.constant 0 : index
    %5 = vector.load %arg3[%c0_4, %c0_5] : memref<1x32xf32, #tpu.memory_space<vmem>>, vector<1x32xf32>
    %6 = vector.broadcast %5 : vector<1x32xf32> to vector<8x32xf32>
    %7 = arith.addf %4, %6 : vector<8x32xf32>
    %c0_6 = arith.constant 0 : index
    %c0_7 = arith.constant 0 : index
    %8 = vector.load %arg4[%c0_6, %c0_7] : memref<32x64xbf16, #tpu.memory_space<vmem>>, vector<32x64xbf16>
    %cst_8 = arith.constant dense<0.000000e+00> : vector<8x64xf32>
    %9 = tpu.matmul %2, %8, %cst_8 {dimension_numbers = #tpu.dot_dimension_numbers<[1], [0], [0], [1], [0, 0, 1, 1], [], []>} : vector<8x32xbf16>, vector<32x64xbf16>, vector<8x64xf32> -> vector<8x64xf32>
    %c0_9 = arith.constant 0 : index
    %c0_10 = arith.constant 0 : index
    %10 = vector.load %arg5[%c0_9, %c0_10] : memref<1x64xf32, #tpu.memory_space<vmem>>, vector<1x64xf32>
    %11 = vector.broadcast %10 : vector<1x64xf32> to vector<8x64xf32>
    %12 = arith.addf %9, %11 : vector<8x64xf32>
    %13 = vector.extract_strided_slice %12 {offsets = [0, 0], sizes = [8, 32], strides = [1, 1]} : vector<8x64xf32> to vector<8x32xf32>
    %14 = vector.extract_strided_slice %12 {offsets = [0, 32], sizes = [8, 32], strides = [1, 1]} : vector<8x64xf32> to vector<8x32xf32>
    %15 = tpu.iota {dimensions = array<i32: 0>} : vector<8x8xi32>
    %16 = tpu.iota {dimensions = array<i32: 1>} : vector<8x8xi32>
    %17 = arith.cmpi sgt, %16, %15 : vector<8x8xi32>
    %cst_11 = arith.constant -1.000000e+30 : f32
    %cst_12 = arith.constant 0.000000e+00 : f32
    %18 = vector.broadcast %cst_11 : f32 to vector<8x8xf32>
    %19 = vector.broadcast %cst_12 : f32 to vector<8x8xf32>
    %20 = arith.select %17, %18, %19 : vector<8x8xi1>, vector<8x8xf32>
    %c0_13 = arith.constant 0 : index
    %c0_14 = arith.constant 0 : index
    %21 = vector.load %arg6[%c0_13, %c0_14] : memref<32x32xbf16, #tpu.memory_space<vmem>>, vector<32x32xbf16>
    %cst_15 = arith.constant 0.000000e+00 : f32
    %22 = vector.broadcast %cst_15 : f32 to vector<8x32xf32>
    %23 = vector.extract_strided_slice %7 {offsets = [0, 0], sizes = [8, 8], strides = [1, 1]} : vector<8x32xf32> to vector<8x8xf32>
    %24 = arith.truncf %23 : vector<8x8xf32> to vector<8x8xbf16>
    %25 = vector.extract_strided_slice %13 {offsets = [0, 0], sizes = [8, 8], strides = [1, 1]} : vector<8x32xf32> to vector<8x8xf32>
    %26 = arith.truncf %25 : vector<8x8xf32> to vector<8x8xbf16>
    %27 = vector.extract_strided_slice %14 {offsets = [0, 0], sizes = [8, 8], strides = [1, 1]} : vector<8x32xf32> to vector<8x8xf32>
    %28 = arith.truncf %27 : vector<8x8xf32> to vector<8x8xbf16>
    %cst_16 = arith.constant dense<0.000000e+00> : vector<8x8xf32>
    %29 = tpu.matmul %24, %26, %cst_16 {dimension_numbers = #tpu.dot_dimension_numbers<[1], [1], [0], [0], [0, 0, 1, 0], [], []>} : vector<8x8xbf16>, vector<8x8xbf16>, vector<8x8xf32> -> vector<8x8xf32>
    %30 = arith.addf %29, %20 : vector<8x8xf32>
    %cst_17 = arith.constant dense<0xFF800000> : vector<8xf32>
    %31 = vector.multi_reduction <maximumf>, %30, %cst_17 [1] : vector<8x8xf32> to vector<8xf32>
    %32 = vector.shape_cast %31 : vector<8xf32> to vector<8x1xf32>
    %33 = vector.broadcast %32 : vector<8x1xf32> to vector<8x8xf32>
    %34 = arith.subf %30, %33 : vector<8x8xf32>
    %35 = math.exp %34 : vector<8x8xf32>
    %cst_18 = arith.constant dense<0.000000e+00> : vector<8xf32>
    %36 = vector.multi_reduction <add>, %35, %cst_18 [1] : vector<8x8xf32> to vector<8xf32>
    %37 = vector.shape_cast %36 : vector<8xf32> to vector<8x1xf32>
    %38 = tpu.reciprocal %37 {approx = true} : vector<8x1xf32> -> vector<8x1xf32>
    %39 = vector.broadcast %38 : vector<8x1xf32> to vector<8x8xf32>
    %40 = arith.mulf %35, %39 : vector<8x8xf32>
    %41 = arith.truncf %40 : vector<8x8xf32> to vector<8x8xbf16>
    %cst_19 = arith.constant dense<0.000000e+00> : vector<8x8xf32>
    %42 = tpu.matmul %41, %28, %cst_19 {dimension_numbers = #tpu.dot_dimension_numbers<[1], [0], [0], [1], [0, 0, 1, 1], [], []>} : vector<8x8xbf16>, vector<8x8xbf16>, vector<8x8xf32> -> vector<8x8xf32>
    %43 = arith.truncf %42 : vector<8x8xf32> to vector<8x8xbf16>
    %44 = vector.extract_strided_slice %21 {offsets = [0, 0], sizes = [8, 32], strides = [1, 1]} : vector<32x32xbf16> to vector<8x32xbf16>
    %cst_20 = arith.constant dense<0.000000e+00> : vector<8x32xf32>
    %45 = tpu.matmul %43, %44, %cst_20 {dimension_numbers = #tpu.dot_dimension_numbers<[1], [0], [0], [1], [0, 0, 1, 1], [], []>} : vector<8x8xbf16>, vector<8x32xbf16>, vector<8x32xf32> -> vector<8x32xf32>
    %46 = arith.addf %22, %45 : vector<8x32xf32>
    %47 = vector.extract_strided_slice %7 {offsets = [0, 8], sizes = [8, 8], strides = [1, 1]} : vector<8x32xf32> to vector<8x8xf32>
    %48 = arith.truncf %47 : vector<8x8xf32> to vector<8x8xbf16>
    %49 = vector.extract_strided_slice %13 {offsets = [0, 8], sizes = [8, 8], strides = [1, 1]} : vector<8x32xf32> to vector<8x8xf32>
    %50 = arith.truncf %49 : vector<8x8xf32> to vector<8x8xbf16>
    %51 = vector.extract_strided_slice %14 {offsets = [0, 8], sizes = [8, 8], strides = [1, 1]} : vector<8x32xf32> to vector<8x8xf32>
    %52 = arith.truncf %51 : vector<8x8xf32> to vector<8x8xbf16>
    %cst_21 = arith.constant dense<0.000000e+00> : vector<8x8xf32>
    %53 = tpu.matmul %48, %50, %cst_21 {dimension_numbers = #tpu.dot_dimension_numbers<[1], [1], [0], [0], [0, 0, 1, 0], [], []>} : vector<8x8xbf16>, vector<8x8xbf16>, vector<8x8xf32> -> vector<8x8xf32>
    %54 = arith.addf %53, %20 : vector<8x8xf32>
    %cst_22 = arith.constant dense<0xFF800000> : vector<8xf32>
    %55 = vector.multi_reduction <maximumf>, %54, %cst_22 [1] : vector<8x8xf32> to vector<8xf32>
    %56 = vector.shape_cast %55 : vector<8xf32> to vector<8x1xf32>
    %57 = vector.broadcast %56 : vector<8x1xf32> to vector<8x8xf32>
    %58 = arith.subf %54, %57 : vector<8x8xf32>
    %59 = math.exp %58 : vector<8x8xf32>
    %cst_23 = arith.constant dense<0.000000e+00> : vector<8xf32>
    %60 = vector.multi_reduction <add>, %59, %cst_23 [1] : vector<8x8xf32> to vector<8xf32>
    %61 = vector.shape_cast %60 : vector<8xf32> to vector<8x1xf32>
    %62 = tpu.reciprocal %61 {approx = true} : vector<8x1xf32> -> vector<8x1xf32>
    %63 = vector.broadcast %62 : vector<8x1xf32> to vector<8x8xf32>
    %64 = arith.mulf %59, %63 : vector<8x8xf32>
    %65 = arith.truncf %64 : vector<8x8xf32> to vector<8x8xbf16>
    %cst_24 = arith.constant dense<0.000000e+00> : vector<8x8xf32>
    %66 = tpu.matmul %65, %52, %cst_24 {dimension_numbers = #tpu.dot_dimension_numbers<[1], [0], [0], [1], [0, 0, 1, 1], [], []>} : vector<8x8xbf16>, vector<8x8xbf16>, vector<8x8xf32> -> vector<8x8xf32>
    %67 = arith.truncf %66 : vector<8x8xf32> to vector<8x8xbf16>
    %68 = vector.extract_strided_slice %21 {offsets = [8, 0], sizes = [8, 32], strides = [1, 1]} : vector<32x32xbf16> to vector<8x32xbf16>
    %cst_25 = arith.constant dense<0.000000e+00> : vector<8x32xf32>
    %69 = tpu.matmul %67, %68, %cst_25 {dimension_numbers = #tpu.dot_dimension_numbers<[1], [0], [0], [1], [0, 0, 1, 1], [], []>} : vector<8x8xbf16>, vector<8x32xbf16>, vector<8x32xf32> -> vector<8x32xf32>
    %70 = arith.addf %46, %69 : vector<8x32xf32>
    %71 = vector.extract_strided_slice %7 {offsets = [0, 16], sizes = [8, 8], strides = [1, 1]} : vector<8x32xf32> to vector<8x8xf32>
    %72 = arith.truncf %71 : vector<8x8xf32> to vector<8x8xbf16>
    %73 = vector.extract_strided_slice %13 {offsets = [0, 16], sizes = [8, 8], strides = [1, 1]} : vector<8x32xf32> to vector<8x8xf32>
    %74 = arith.truncf %73 : vector<8x8xf32> to vector<8x8xbf16>
    %75 = vector.extract_strided_slice %14 {offsets = [0, 16], sizes = [8, 8], strides = [1, 1]} : vector<8x32xf32> to vector<8x8xf32>
    %76 = arith.truncf %75 : vector<8x8xf32> to vector<8x8xbf16>
    %cst_26 = arith.constant dense<0.000000e+00> : vector<8x8xf32>
    %77 = tpu.matmul %72, %74, %cst_26 {dimension_numbers = #tpu.dot_dimension_numbers<[1], [1], [0], [0], [0, 0, 1, 0], [], []>} : vector<8x8xbf16>, vector<8x8xbf16>, vector<8x8xf32> -> vector<8x8xf32>
    %78 = arith.addf %77, %20 : vector<8x8xf32>
    %cst_27 = arith.constant dense<0xFF800000> : vector<8xf32>
    %79 = vector.multi_reduction <maximumf>, %78, %cst_27 [1] : vector<8x8xf32> to vector<8xf32>
    %80 = vector.shape_cast %79 : vector<8xf32> to vector<8x1xf32>
    %81 = vector.broadcast %80 : vector<8x1xf32> to vector<8x8xf32>
    %82 = arith.subf %78, %81 : vector<8x8xf32>
    %83 = math.exp %82 : vector<8x8xf32>
    %cst_28 = arith.constant dense<0.000000e+00> : vector<8xf32>
    %84 = vector.multi_reduction <add>, %83, %cst_28 [1] : vector<8x8xf32> to vector<8xf32>
    %85 = vector.shape_cast %84 : vector<8xf32> to vector<8x1xf32>
    %86 = tpu.reciprocal %85 {approx = true} : vector<8x1xf32> -> vector<8x1xf32>
    %87 = vector.broadcast %86 : vector<8x1xf32> to vector<8x8xf32>
    %88 = arith.mulf %83, %87 : vector<8x8xf32>
    %89 = arith.truncf %88 : vector<8x8xf32> to vector<8x8xbf16>
    %cst_29 = arith.constant dense<0.000000e+00> : vector<8x8xf32>
    %90 = tpu.matmul %89, %76, %cst_29 {dimension_numbers = #tpu.dot_dimension_numbers<[1], [0], [0], [1], [0, 0, 1, 1], [], []>} : vector<8x8xbf16>, vector<8x8xbf16>, vector<8x8xf32> -> vector<8x8xf32>
    %91 = arith.truncf %90 : vector<8x8xf32> to vector<8x8xbf16>
    %92 = vector.extract_strided_slice %21 {offsets = [16, 0], sizes = [8, 32], strides = [1, 1]} : vector<32x32xbf16> to vector<8x32xbf16>
    %cst_30 = arith.constant dense<0.000000e+00> : vector<8x32xf32>
    %93 = tpu.matmul %91, %92, %cst_30 {dimension_numbers = #tpu.dot_dimension_numbers<[1], [0], [0], [1], [0, 0, 1, 1], [], []>} : vector<8x8xbf16>, vector<8x32xbf16>, vector<8x32xf32> -> vector<8x32xf32>
    %94 = arith.addf %70, %93 : vector<8x32xf32>
    %95 = vector.extract_strided_slice %7 {offsets = [0, 24], sizes = [8, 8], strides = [1, 1]} : vector<8x32xf32> to vector<8x8xf32>
    %96 = arith.truncf %95 : vector<8x8xf32> to vector<8x8xbf16>
    %97 = vector.extract_strided_slice %13 {offsets = [0, 24], sizes = [8, 8], strides = [1, 1]} : vector<8x32xf32> to vector<8x8xf32>
    %98 = arith.truncf %97 : vector<8x8xf32> to vector<8x8xbf16>
    %99 = vector.extract_strided_slice %14 {offsets = [0, 24], sizes = [8, 8], strides = [1, 1]} : vector<8x32xf32> to vector<8x8xf32>
    %100 = arith.truncf %99 : vector<8x8xf32> to vector<8x8xbf16>
    %cst_31 = arith.constant dense<0.000000e+00> : vector<8x8xf32>
    %101 = tpu.matmul %96, %98, %cst_31 {dimension_numbers = #tpu.dot_dimension_numbers<[1], [1], [0], [0], [0, 0, 1, 0], [], []>} : vector<8x8xbf16>, vector<8x8xbf16>, vector<8x8xf32> -> vector<8x8xf32>
    %102 = arith.addf %101, %20 : vector<8x8xf32>
    %cst_32 = arith.constant dense<0xFF800000> : vector<8xf32>
    %103 = vector.multi_reduction <maximumf>, %102, %cst_32 [1] : vector<8x8xf32> to vector<8xf32>
    %104 = vector.shape_cast %103 : vector<8xf32> to vector<8x1xf32>
    %105 = vector.broadcast %104 : vector<8x1xf32> to vector<8x8xf32>
    %106 = arith.subf %102, %105 : vector<8x8xf32>
    %107 = math.exp %106 : vector<8x8xf32>
    %cst_33 = arith.constant dense<0.000000e+00> : vector<8xf32>
    %108 = vector.multi_reduction <add>, %107, %cst_33 [1] : vector<8x8xf32> to vector<8xf32>
    %109 = vector.shape_cast %108 : vector<8xf32> to vector<8x1xf32>
    %110 = tpu.reciprocal %109 {approx = true} : vector<8x1xf32> -> vector<8x1xf32>
    %111 = vector.broadcast %110 : vector<8x1xf32> to vector<8x8xf32>
    %112 = arith.mulf %107, %111 : vector<8x8xf32>
    %113 = arith.truncf %112 : vector<8x8xf32> to vector<8x8xbf16>
    %cst_34 = arith.constant dense<0.000000e+00> : vector<8x8xf32>
    %114 = tpu.matmul %113, %100, %cst_34 {dimension_numbers = #tpu.dot_dimension_numbers<[1], [0], [0], [1], [0, 0, 1, 1], [], []>} : vector<8x8xbf16>, vector<8x8xbf16>, vector<8x8xf32> -> vector<8x8xf32>
    %115 = arith.truncf %114 : vector<8x8xf32> to vector<8x8xbf16>
    %116 = vector.extract_strided_slice %21 {offsets = [24, 0], sizes = [8, 32], strides = [1, 1]} : vector<32x32xbf16> to vector<8x32xbf16>
    %cst_35 = arith.constant dense<0.000000e+00> : vector<8x32xf32>
    %117 = tpu.matmul %115, %116, %cst_35 {dimension_numbers = #tpu.dot_dimension_numbers<[1], [0], [0], [1], [0, 0, 1, 1], [], []>} : vector<8x8xbf16>, vector<8x32xbf16>, vector<8x32xf32> -> vector<8x32xf32>
    %118 = arith.addf %94, %117 : vector<8x32xf32>
    %c0_36 = arith.constant 0 : index
    %c0_37 = arith.constant 0 : index
    %119 = vector.load %arg7[%c0_36, %c0_37] : memref<1x32xf32, #tpu.memory_space<vmem>>, vector<1x32xf32>
    %120 = vector.broadcast %119 : vector<1x32xf32> to vector<8x32xf32>
    %121 = arith.addf %118, %120 : vector<8x32xf32>
    %c0_38 = arith.constant 0 : index
    %c0_39 = arith.constant 0 : index
    %122 = vector.load %arg8[%c0_38, %c0_39] : memref<1x32xf32, #tpu.memory_space<vmem>>, vector<1x32xf32>
    %c0_40 = arith.constant 0 : index
    %c0_41 = arith.constant 0 : index
    %123 = vector.load %arg9[%c0_40, %c0_41] : memref<1x32xf32, #tpu.memory_space<vmem>>, vector<1x32xf32>
    %124 = arith.addf %1, %121 : vector<8x32xf32>
    %cst_42 = arith.constant dense<0.000000e+00> : vector<8xf32>
    %125 = vector.multi_reduction <add>, %124, %cst_42 [1] : vector<8x32xf32> to vector<8xf32>
    %126 = vector.shape_cast %125 : vector<8xf32> to vector<8x1xf32>
    %cst_43 = arith.constant 3.200000e+01 : f32
    %127 = vector.broadcast %cst_43 : f32 to vector<8x1xf32>
    %128 = arith.divf %126, %127 : vector<8x1xf32>
    %129 = vector.broadcast %128 : vector<8x1xf32> to vector<8x32xf32>
    %130 = arith.subf %124, %129 : vector<8x32xf32>
    %131 = arith.mulf %130, %130 : vector<8x32xf32>
    %cst_44 = arith.constant dense<0.000000e+00> : vector<8xf32>
    %132 = vector.multi_reduction <add>, %131, %cst_44 [1] : vector<8x32xf32> to vector<8xf32>
    %133 = vector.shape_cast %132 : vector<8xf32> to vector<8x1xf32>
    %cst_45 = arith.constant 3.200000e+01 : f32
    %134 = vector.broadcast %cst_45 : f32 to vector<8x1xf32>
    %135 = arith.divf %133, %134 : vector<8x1xf32>
    %cst_46 = arith.constant 9.99999974E-6 : f32
    %136 = vector.broadcast %cst_46 : f32 to vector<8x1xf32>
    %137 = arith.addf %135, %136 : vector<8x1xf32>
    %138 = math.rsqrt %137 : vector<8x1xf32>
    %139 = vector.broadcast %138 : vector<8x1xf32> to vector<8x32xf32>
    %140 = arith.mulf %130, %139 : vector<8x32xf32>
    %141 = vector.broadcast %122 : vector<1x32xf32> to vector<8x32xf32>
    %142 = arith.mulf %140, %141 : vector<8x32xf32>
    %143 = vector.broadcast %123 : vector<1x32xf32> to vector<8x32xf32>
    %144 = arith.addf %142, %143 : vector<8x32xf32>
    %145 = arith.truncf %144 : vector<8x32xf32> to vector<8x32xbf16>
    %c0_47 = arith.constant 0 : index
    %c0_48 = arith.constant 0 : index
    %146 = vector.load %arg10[%c0_47, %c0_48] : memref<32x32xbf16, #tpu.memory_space<vmem>>, vector<32x32xbf16>
    %cst_49 = arith.constant dense<0.000000e+00> : vector<8x32xf32>
    %147 = tpu.matmul %145, %146, %cst_49 {dimension_numbers = #tpu.dot_dimension_numbers<[1], [0], [0], [1], [0, 0, 1, 1], [], []>} : vector<8x32xbf16>, vector<32x32xbf16>, vector<8x32xf32> -> vector<8x32xf32>
    %c0_50 = arith.constant 0 : index
    %c0_51 = arith.constant 0 : index
    %148 = vector.load %arg11[%c0_50, %c0_51] : memref<1x32xf32, #tpu.memory_space<vmem>>, vector<1x32xf32>
    %149 = vector.broadcast %148 : vector<1x32xf32> to vector<8x32xf32>
    %150 = arith.addf %147, %149 : vector<8x32xf32>
    %151 = arith.cmpi sle, %16, %15 : vector<8x8xi32>
    %cst_52 = arith.constant 1.000000e+00 : f32
    %cst_53 = arith.constant 0.000000e+00 : f32
    %152 = vector.broadcast %cst_52 : f32 to vector<8x8xf32>
    %153 = vector.broadcast %cst_53 : f32 to vector<8x8xf32>
    %154 = arith.select %151, %152, %153 : vector<8x8xi1>, vector<8x8xf32>
    %155 = arith.truncf %154 : vector<8x8xf32> to vector<8x8xbf16>
    %156 = arith.truncf %150 : vector<8x32xf32> to vector<8x32xbf16>
    %cst_54 = arith.constant dense<0.000000e+00> : vector<8x32xf32>
    %157 = tpu.matmul %155, %156, %cst_54 {dimension_numbers = #tpu.dot_dimension_numbers<[1], [0], [0], [1], [0, 0, 1, 1], [], []>} : vector<8x8xbf16>, vector<8x32xbf16>, vector<8x32xf32> -> vector<8x32xf32>
    %158 = vector.extract_strided_slice %15 {offsets = [0, 0], sizes = [8, 1], strides = [1, 1]} : vector<8x8xi32> to vector<8x1xi32>
    %c1_i32 = arith.constant 1 : i32
    %159 = vector.broadcast %c1_i32 : i32 to vector<8x1xi32>
    %160 = arith.addi %158, %159 : vector<8x1xi32>
    %161 = arith.sitofp %160 : vector<8x1xi32> to vector<8x1xf32>
    %cst_55 = arith.constant 1.000000e+00 : f32
    %162 = vector.broadcast %cst_55 : f32 to vector<8x1xf32>
    %163 = arith.divf %162, %161 : vector<8x1xf32>
    %164 = vector.broadcast %163 : vector<8x1xf32> to vector<8x32xf32>
    %165 = arith.mulf %157, %164 : vector<8x32xf32>
    %166 = arith.truncf %165 : vector<8x32xf32> to vector<8x32xbf16>
    %c0_56 = arith.constant 0 : index
    %c0_57 = arith.constant 0 : index
    %167 = vector.load %arg12[%c0_56, %c0_57] : memref<32x32xbf16, #tpu.memory_space<vmem>>, vector<32x32xbf16>
    %cst_58 = arith.constant dense<0.000000e+00> : vector<8x32xf32>
    %168 = tpu.matmul %166, %167, %cst_58 {dimension_numbers = #tpu.dot_dimension_numbers<[1], [0], [0], [1], [0, 0, 1, 1], [], []>} : vector<8x32xbf16>, vector<32x32xbf16>, vector<8x32xf32> -> vector<8x32xf32>
    %c0_59 = arith.constant 0 : index
    %c0_60 = arith.constant 0 : index
    %169 = vector.load %arg13[%c0_59, %c0_60] : memref<1x32xf32, #tpu.memory_space<vmem>>, vector<1x32xf32>
    %170 = vector.broadcast %169 : vector<1x32xf32> to vector<8x32xf32>
    %171 = arith.addf %168, %170 : vector<8x32xf32>
    %c0_61 = arith.constant 0 : index
    %c0_62 = arith.constant 0 : index
    %172 = vector.load %arg14[%c0_61, %c0_62] : memref<1x32xf32, #tpu.memory_space<vmem>>, vector<1x32xf32>
    %c0_63 = arith.constant 0 : index
    %c0_64 = arith.constant 0 : index
    %173 = vector.load %arg15[%c0_63, %c0_64] : memref<1x32xf32, #tpu.memory_space<vmem>>, vector<1x32xf32>
    %174 = arith.addf %144, %171 : vector<8x32xf32>
    %cst_65 = arith.constant dense<0.000000e+00> : vector<8xf32>
    %175 = vector.multi_reduction <add>, %174, %cst_65 [1] : vector<8x32xf32> to vector<8xf32>
    %176 = vector.shape_cast %175 : vector<8xf32> to vector<8x1xf32>
    %cst_66 = arith.constant 3.200000e+01 : f32
    %177 = vector.broadcast %cst_66 : f32 to vector<8x1xf32>
    %178 = arith.divf %176, %177 : vector<8x1xf32>
    %179 = vector.broadcast %178 : vector<8x1xf32> to vector<8x32xf32>
    %180 = arith.subf %174, %179 : vector<8x32xf32>
    %181 = arith.mulf %180, %180 : vector<8x32xf32>
    %cst_67 = arith.constant dense<0.000000e+00> : vector<8xf32>
    %182 = vector.multi_reduction <add>, %181, %cst_67 [1] : vector<8x32xf32> to vector<8xf32>
    %183 = vector.shape_cast %182 : vector<8xf32> to vector<8x1xf32>
    %cst_68 = arith.constant 3.200000e+01 : f32
    %184 = vector.broadcast %cst_68 : f32 to vector<8x1xf32>
    %185 = arith.divf %183, %184 : vector<8x1xf32>
    %cst_69 = arith.constant 9.99999974E-6 : f32
    %186 = vector.broadcast %cst_69 : f32 to vector<8x1xf32>
    %187 = arith.addf %185, %186 : vector<8x1xf32>
    %188 = math.rsqrt %187 : vector<8x1xf32>
    %189 = vector.broadcast %188 : vector<8x1xf32> to vector<8x32xf32>
    %190 = arith.mulf %180, %189 : vector<8x32xf32>
    %191 = vector.broadcast %172 : vector<1x32xf32> to vector<8x32xf32>
    %192 = arith.mulf %190, %191 : vector<8x32xf32>
    %193 = vector.broadcast %173 : vector<1x32xf32> to vector<8x32xf32>
    %194 = arith.addf %192, %193 : vector<8x32xf32>
    %c0_70 = arith.constant 0 : index
    %c0_71 = arith.constant 0 : index
    %c0_72 = arith.constant 0 : index
    %195 = vector.load %arg16[%c0_70, %c0_71, %c0_72] : memref<1x8x32xf32, #tpu.memory_space<vmem>>, vector<1x8x32xf32>
    %196 = vector.shape_cast %195 : vector<1x8x32xf32> to vector<8x32xf32>
    %197 = vector.shape_cast %194 : vector<8x32xf32> to vector<1x8x32xf32>
    tpu.vector_store %arg16[%c0_70, %c0_71, %c0_72], %197 {strides = array<i32>} : memref<1x8x32xf32, #tpu.memory_space<vmem>>, vector<1x8x32xf32>,
    return
  }
  func.func @transform_0(%arg0: i32) -> (i32, i32, i32) {
    %c0_i32 = arith.constant 0 : i32
    %c0_i32_0 = arith.constant 0 : i32
    %c0_i32_1 = arith.constant 0 : i32
    return %arg0, %c0_i32, %c0_i32_0 : i32, i32, i32
  }
  func.func @transform_1(%arg0: i32) -> (i32, i32) {
    %c0_i32 = arith.constant 0 : i32
    %c0_i32_0 = arith.constant 0 : i32
    %c0_i32_1 = arith.constant 0 : i32
    return %c0_i32, %c0_i32_0 : i32, i32
  }
  func.func @transform_2(%arg0: i32) -> (i32, i32) {
    %c0_i32 = arith.constant 0 : i32
    %c0_i32_0 = arith.constant 0 : i32
    %c0_i32_1 = arith.constant 0 : i32
    return %c0_i32, %c0_i32_0 : i32, i32
  }
  func.func @transform_3(%arg0: i32) -> (i32, i32) {
    %c0_i32 = arith.constant 0 : i32
    %c0_i32_0 = arith.constant 0 : i32
    %c0_i32_1 = arith.constant 0 : i32
    return %c0_i32, %c0_i32_0 : i32, i32
  }
  func.func @transform_4(%arg0: i32) -> (i32, i32) {
    %c0_i32 = arith.constant 0 : i32
    %c0_i32_0 = arith.constant 0 : i32
    %c0_i32_1 = arith.constant 0 : i32
    return %c0_i32, %c0_i32_0 : i32, i32
  }
  func.func @transform_5(%arg0: i32) -> (i32, i32) {
    %c0_i32 = arith.constant 0 : i32
    %c0_i32_0 = arith.constant 0 : i32
    %c0_i32_1 = arith.constant 0 : i32
    return %c0_i32, %c0_i32_0 : i32, i32
  }
  func.func @transform_6(%arg0: i32) -> (i32, i32) {
    %c0_i32 = arith.constant 0 : i32
    %c0_i32_0 = arith.constant 0 : i32
    %c0_i32_1 = arith.constant 0 : i32
    return %c0_i32, %c0_i32_0 : i32, i32
  }
  func.func @transform_7(%arg0: i32) -> (i32, i32) {
    %c0_i32 = arith.constant 0 : i32
    %c0_i32_0 = arith.constant 0 : i32
    %c0_i32_1 = arith.constant 0 : i32
    return %c0_i32, %c0_i32_0 : i32, i32
  }
  func.func @transform_8(%arg0: i32) -> (i32, i32) {
    %c0_i32 = arith.constant 0 : i32
    %c0_i32_0 = arith.constant 0 : i32
    %c0_i32_1 = arith.constant 0 : i32
    return %c0_i32, %c0_i32_0 : i32, i32
  }
  func.func @transform_9(%arg0: i32) -> (i32, i32) {
    %c0_i32 = arith.constant 0 : i32
    %c0_i32_0 = arith.constant 0 : i32
    %c0_i32_1 = arith.constant 0 : i32
    return %c0_i32, %c0_i32_0 : i32, i32
  }
  func.func @transform_10(%arg0: i32) -> (i32, i32) {
    %c0_i32 = arith.constant 0 : i32
    %c0_i32_0 = arith.constant 0 : i32
    %c0_i32_1 = arith.constant 0 : i32
    return %c0_i32, %c0_i32_0 : i32, i32
  }
  func.func @transform_11(%arg0: i32) -> (i32, i32) {
    %c0_i32 = arith.constant 0 : i32
    %c0_i32_0 = arith.constant 0 : i32
    %c0_i32_1 = arith.constant 0 : i32
    return %c0_i32, %c0_i32_0 : i32, i32
  }
  func.func @transform_12(%arg0: i32) -> (i32, i32) {
    %c0_i32 = arith.constant 0 : i32
    %c0_i32_0 = arith.constant 0 : i32
    %c0_i32_1 = arith.constant 0 : i32
    return %c0_i32, %c0_i32_0 : i32, i32
  }
  func.func @transform_13(%arg0: i32) -> (i32, i32) {
    %c0_i32 = arith.constant 0 : i32
    %c0_i32_0 = arith.constant 0 : i32
    %c0_i32_1 = arith.constant 0 : i32
    return %c0_i32, %c0_i32_0 : i32, i32
  }
  func.func @transform_14(%arg0: i32) -> (i32, i32) {
    %c0_i32 = arith.constant 0 : i32
    %c0_i32_0 = arith.constant 0 : i32
    %c0_i32_1 = arith.constant 0 : i32
    return %c0_i32, %c0_i32_0 : i32, i32
  }
  func.func @transform_15(%arg0: i32) -> (i32, i32, i32) {
    %c0_i32 = arith.constant 0 : i32
    %c0_i32_0 = arith.constant 0 : i32
    %c0_i32_1 = arith.constant 0 : i32
    return %arg0, %c0_i32, %c0_i32_0 : i32, i32, i32
  }
}

module attributes {stable_mosaic.version = 11 : i64} {
  func.func @_ffn_ln_kernel(%arg0: i32, %arg1: memref<16x32xf32, #tpu.memory_space<vmem>>, %arg2: memref<32x64xbf16, #tpu.memory_space<vmem>>, %arg3: memref<1x64xf32, #tpu.memory_space<vmem>>, %arg4: memref<64x32xbf16, #tpu.memory_space<vmem>>, %arg5: memref<1x32xf32, #tpu.memory_space<vmem>>, %arg6: memref<1x32xf32, #tpu.memory_space<vmem>>, %arg7: memref<1x32xf32, #tpu.memory_space<vmem>>, %arg8: memref<16x32xf32, #tpu.memory_space<vmem>>) attributes {dimension_semantics = [#tpu.dimension_semantics<parallel>], iteration_bounds = array<i64: 1>, scalar_prefetch = 0 : i64, scratch_operands = 0 : i64, tpu.core_type = #tpu.core_type<tc>, window_params = [{transform_indices = @transform_0, window_bounds = array<i64: 16, 32>}, {pipeline_mode = #tpu.pipeline_mode<synchronous>, transform_indices = @transform_1, window_bounds = array<i64: 32, 64>}, {pipeline_mode = #tpu.pipeline_mode<synchronous>, transform_indices = @transform_2, window_bounds = array<i64: 1, 64>}, {pipeline_mode = #tpu.pipeline_mode<synchronous>, transform_indices = @transform_3, window_bounds = array<i64: 64, 32>}, {pipeline_mode = #tpu.pipeline_mode<synchronous>, transform_indices = @transform_4, window_bounds = array<i64: 1, 32>}, {pipeline_mode = #tpu.pipeline_mode<synchronous>, transform_indices = @transform_5, window_bounds = array<i64: 1, 32>}, {pipeline_mode = #tpu.pipeline_mode<synchronous>, transform_indices = @transform_6, window_bounds = array<i64: 1, 32>}, {transform_indices = @transform_7, window_bounds = array<i64: 16, 32>}]} {
    %c0 = arith.constant 0 : index
    %c0_0 = arith.constant 0 : index
    %0 = vector.load %arg1[%c0, %c0_0] : memref<16x32xf32, #tpu.memory_space<vmem>>, vector<16x32xf32>
    %1 = arith.truncf %0 : vector<16x32xf32> to vector<16x32xbf16>
    %c0_1 = arith.constant 0 : index
    %c0_2 = arith.constant 0 : index
    %2 = vector.load %arg2[%c0_1, %c0_2] : memref<32x64xbf16, #tpu.memory_space<vmem>>, vector<32x64xbf16>
    %cst = arith.constant dense<0.000000e+00> : vector<16x64xf32>
    %3 = tpu.matmul %1, %2, %cst {dimension_numbers = #tpu.dot_dimension_numbers<[1], [0], [0], [1], [0, 0, 1, 1], [], []>} : vector<16x32xbf16>, vector<32x64xbf16>, vector<16x64xf32> -> vector<16x64xf32>
    %c0_3 = arith.constant 0 : index
    %c0_4 = arith.constant 0 : index
    %4 = vector.load %arg3[%c0_3, %c0_4] : memref<1x64xf32, #tpu.memory_space<vmem>>, vector<1x64xf32>
    %5 = vector.broadcast %4 : vector<1x64xf32> to vector<16x64xf32>
    %6 = arith.addf %3, %5 : vector<16x64xf32>
    %cst_5 = arith.constant 0.000000e+00 : f32
    %7 = vector.broadcast %cst_5 : f32 to vector<16x64xf32>
    %8 = arith.maximumf %6, %7 : vector<16x64xf32>
    %9 = arith.truncf %8 : vector<16x64xf32> to vector<16x64xbf16>
    %c0_6 = arith.constant 0 : index
    %c0_7 = arith.constant 0 : index
    %10 = vector.load %arg4[%c0_6, %c0_7] : memref<64x32xbf16, #tpu.memory_space<vmem>>, vector<64x32xbf16>
    %cst_8 = arith.constant dense<0.000000e+00> : vector<16x32xf32>
    %11 = tpu.matmul %9, %10, %cst_8 {dimension_numbers = #tpu.dot_dimension_numbers<[1], [0], [0], [1], [0, 0, 1, 1], [], []>} : vector<16x64xbf16>, vector<64x32xbf16>, vector<16x32xf32> -> vector<16x32xf32>
    %c0_9 = arith.constant 0 : index
    %c0_10 = arith.constant 0 : index
    %12 = vector.load %arg5[%c0_9, %c0_10] : memref<1x32xf32, #tpu.memory_space<vmem>>, vector<1x32xf32>
    %13 = vector.broadcast %12 : vector<1x32xf32> to vector<16x32xf32>
    %14 = arith.addf %11, %13 : vector<16x32xf32>
    %c0_11 = arith.constant 0 : index
    %c0_12 = arith.constant 0 : index
    %15 = vector.load %arg6[%c0_11, %c0_12] : memref<1x32xf32, #tpu.memory_space<vmem>>, vector<1x32xf32>
    %c0_13 = arith.constant 0 : index
    %c0_14 = arith.constant 0 : index
    %16 = vector.load %arg7[%c0_13, %c0_14] : memref<1x32xf32, #tpu.memory_space<vmem>>, vector<1x32xf32>
    %17 = arith.addf %0, %14 : vector<16x32xf32>
    %cst_15 = arith.constant dense<0.000000e+00> : vector<16xf32>
    %18 = vector.multi_reduction <add>, %17, %cst_15 [1] : vector<16x32xf32> to vector<16xf32>
    %19 = vector.shape_cast %18 : vector<16xf32> to vector<16x1xf32>
    %cst_16 = arith.constant 3.200000e+01 : f32
    %20 = vector.broadcast %cst_16 : f32 to vector<16x1xf32>
    %21 = arith.divf %19, %20 : vector<16x1xf32>
    %22 = vector.broadcast %21 : vector<16x1xf32> to vector<16x32xf32>
    %23 = arith.subf %17, %22 : vector<16x32xf32>
    %24 = arith.mulf %23, %23 : vector<16x32xf32>
    %cst_17 = arith.constant dense<0.000000e+00> : vector<16xf32>
    %25 = vector.multi_reduction <add>, %24, %cst_17 [1] : vector<16x32xf32> to vector<16xf32>
    %26 = vector.shape_cast %25 : vector<16xf32> to vector<16x1xf32>
    %cst_18 = arith.constant 3.200000e+01 : f32
    %27 = vector.broadcast %cst_18 : f32 to vector<16x1xf32>
    %28 = arith.divf %26, %27 : vector<16x1xf32>
    %cst_19 = arith.constant 9.99999974E-6 : f32
    %29 = vector.broadcast %cst_19 : f32 to vector<16x1xf32>
    %30 = arith.addf %28, %29 : vector<16x1xf32>
    %31 = math.rsqrt %30 : vector<16x1xf32>
    %32 = vector.broadcast %31 : vector<16x1xf32> to vector<16x32xf32>
    %33 = arith.mulf %23, %32 : vector<16x32xf32>
    %34 = vector.broadcast %15 : vector<1x32xf32> to vector<16x32xf32>
    %35 = arith.mulf %33, %34 : vector<16x32xf32>
    %36 = vector.broadcast %16 : vector<1x32xf32> to vector<16x32xf32>
    %37 = arith.addf %35, %36 : vector<16x32xf32>
    %c0_20 = arith.constant 0 : index
    %c0_21 = arith.constant 0 : index
    %38 = vector.load %arg8[%c0_20, %c0_21] : memref<16x32xf32, #tpu.memory_space<vmem>>, vector<16x32xf32>
    tpu.vector_store %arg8[%c0_20, %c0_21], %37 {strides = array<i32>} : memref<16x32xf32, #tpu.memory_space<vmem>>, vector<16x32xf32>,
    return
  }
  func.func @transform_0(%arg0: i32) -> (i32, i32) {
    %c0_i32 = arith.constant 0 : i32
    %c0_i32_0 = arith.constant 0 : i32
    return %arg0, %c0_i32 : i32, i32
  }
  func.func @transform_1(%arg0: i32) -> (i32, i32) {
    %c0_i32 = arith.constant 0 : i32
    %c0_i32_0 = arith.constant 0 : i32
    %c0_i32_1 = arith.constant 0 : i32
    return %c0_i32, %c0_i32_0 : i32, i32
  }
  func.func @transform_2(%arg0: i32) -> (i32, i32) {
    %c0_i32 = arith.constant 0 : i32
    %c0_i32_0 = arith.constant 0 : i32
    %c0_i32_1 = arith.constant 0 : i32
    return %c0_i32, %c0_i32_0 : i32, i32
  }
  func.func @transform_3(%arg0: i32) -> (i32, i32) {
    %c0_i32 = arith.constant 0 : i32
    %c0_i32_0 = arith.constant 0 : i32
    %c0_i32_1 = arith.constant 0 : i32
    return %c0_i32, %c0_i32_0 : i32, i32
  }
  func.func @transform_4(%arg0: i32) -> (i32, i32) {
    %c0_i32 = arith.constant 0 : i32
    %c0_i32_0 = arith.constant 0 : i32
    %c0_i32_1 = arith.constant 0 : i32
    return %c0_i32, %c0_i32_0 : i32, i32
  }
  func.func @transform_5(%arg0: i32) -> (i32, i32) {
    %c0_i32 = arith.constant 0 : i32
    %c0_i32_0 = arith.constant 0 : i32
    %c0_i32_1 = arith.constant 0 : i32
    return %c0_i32, %c0_i32_0 : i32, i32
  }
  func.func @transform_6(%arg0: i32) -> (i32, i32) {
    %c0_i32 = arith.constant 0 : i32
    %c0_i32_0 = arith.constant 0 : i32
    %c0_i32_1 = arith.constant 0 : i32
    return %c0_i32, %c0_i32_0 : i32, i32
  }
  func.func @transform_7(%arg0: i32) -> (i32, i32) {
    %c0_i32 = arith.constant 0 : i32
    %c0_i32_0 = arith.constant 0 : i32
    return %arg0, %c0_i32 : i32, i32
  }
}

module attributes {stable_mosaic.version = 11 : i64} {
  func.func @_src_attn_kernel(%arg0: i32, %arg1: memref<1x8x32xf32, #tpu.memory_space<vmem>>, %arg2: memref<1x8x32xf32, #tpu.memory_space<vmem>>, %arg3: memref<32x32xbf16, #tpu.memory_space<vmem>>, %arg4: memref<1x32xf32, #tpu.memory_space<vmem>>, %arg5: memref<32x64xbf16, #tpu.memory_space<vmem>>, %arg6: memref<1x64xf32, #tpu.memory_space<vmem>>, %arg7: memref<32x32xbf16, #tpu.memory_space<vmem>>, %arg8: memref<1x32xf32, #tpu.memory_space<vmem>>, %arg9: memref<1x32xf32, #tpu.memory_space<vmem>>, %arg10: memref<1x32xf32, #tpu.memory_space<vmem>>, %arg11: memref<1x8x32xf32, #tpu.memory_space<vmem>>) attributes {dimension_semantics = [#tpu.dimension_semantics<parallel>], iteration_bounds = array<i64: 2>, scalar_prefetch = 0 : i64, scratch_operands = 0 : i64, tpu.core_type = #tpu.core_type<tc>, window_params = [{transform_indices = @transform_0, window_bounds = array<i64: 1, 8, 32>}, {transform_indices = @transform_1, window_bounds = array<i64: 1, 8, 32>}, {pipeline_mode = #tpu.pipeline_mode<synchronous>, transform_indices = @transform_2, window_bounds = array<i64: 32, 32>}, {pipeline_mode = #tpu.pipeline_mode<synchronous>, transform_indices = @transform_3, window_bounds = array<i64: 1, 32>}, {pipeline_mode = #tpu.pipeline_mode<synchronous>, transform_indices = @transform_4, window_bounds = array<i64: 32, 64>}, {pipeline_mode = #tpu.pipeline_mode<synchronous>, transform_indices = @transform_5, window_bounds = array<i64: 1, 64>}, {pipeline_mode = #tpu.pipeline_mode<synchronous>, transform_indices = @transform_6, window_bounds = array<i64: 32, 32>}, {pipeline_mode = #tpu.pipeline_mode<synchronous>, transform_indices = @transform_7, window_bounds = array<i64: 1, 32>}, {pipeline_mode = #tpu.pipeline_mode<synchronous>, transform_indices = @transform_8, window_bounds = array<i64: 1, 32>}, {pipeline_mode = #tpu.pipeline_mode<synchronous>, transform_indices = @transform_9, window_bounds = array<i64: 1, 32>}, {transform_indices = @transform_10, window_bounds = array<i64: 1, 8, 32>}]} {
    %c0 = arith.constant 0 : index
    %c0_0 = arith.constant 0 : index
    %c0_1 = arith.constant 0 : index
    %0 = vector.load %arg1[%c0, %c0_0, %c0_1] : memref<1x8x32xf32, #tpu.memory_space<vmem>>, vector<1x8x32xf32>
    %1 = vector.shape_cast %0 : vector<1x8x32xf32> to vector<8x32xf32>
    %c0_2 = arith.constant 0 : index
    %c0_3 = arith.constant 0 : index
    %c0_4 = arith.constant 0 : index
    %2 = vector.load %arg2[%c0_2, %c0_3, %c0_4] : memref<1x8x32xf32, #tpu.memory_space<vmem>>, vector<1x8x32xf32>
    %3 = vector.shape_cast %2 : vector<1x8x32xf32> to vector<8x32xf32>
    %4 = arith.truncf %1 : vector<8x32xf32> to vector<8x32xbf16>
    %c0_5 = arith.constant 0 : index
    %c0_6 = arith.constant 0 : index
    %5 = vector.load %arg3[%c0_5, %c0_6] : memref<32x32xbf16, #tpu.memory_space<vmem>>, vector<32x32xbf16>
    %cst = arith.constant dense<0.000000e+00> : vector<8x32xf32>
    %6 = tpu.matmul %4, %5, %cst {dimension_numbers = #tpu.dot_dimension_numbers<[1], [0], [0], [1], [0, 0, 1, 1], [], []>} : vector<8x32xbf16>, vector<32x32xbf16>, vector<8x32xf32> -> vector<8x32xf32>
    %c0_7 = arith.constant 0 : index
    %c0_8 = arith.constant 0 : index
    %7 = vector.load %arg4[%c0_7, %c0_8] : memref<1x32xf32, #tpu.memory_space<vmem>>, vector<1x32xf32>
    %8 = vector.broadcast %7 : vector<1x32xf32> to vector<8x32xf32>
    %9 = arith.addf %6, %8 : vector<8x32xf32>
    %10 = arith.truncf %3 : vector<8x32xf32> to vector<8x32xbf16>
    %c0_9 = arith.constant 0 : index
    %c0_10 = arith.constant 0 : index
    %11 = vector.load %arg5[%c0_9, %c0_10] : memref<32x64xbf16, #tpu.memory_space<vmem>>, vector<32x64xbf16>
    %cst_11 = arith.constant dense<0.000000e+00> : vector<8x64xf32>
    %12 = tpu.matmul %10, %11, %cst_11 {dimension_numbers = #tpu.dot_dimension_numbers<[1], [0], [0], [1], [0, 0, 1, 1], [], []>} : vector<8x32xbf16>, vector<32x64xbf16>, vector<8x64xf32> -> vector<8x64xf32>
    %c0_12 = arith.constant 0 : index
    %c0_13 = arith.constant 0 : index
    %13 = vector.load %arg6[%c0_12, %c0_13] : memref<1x64xf32, #tpu.memory_space<vmem>>, vector<1x64xf32>
    %14 = vector.broadcast %13 : vector<1x64xf32> to vector<8x64xf32>
    %15 = arith.addf %12, %14 : vector<8x64xf32>
    %16 = vector.extract_strided_slice %15 {offsets = [0, 0], sizes = [8, 32], strides = [1, 1]} : vector<8x64xf32> to vector<8x32xf32>
    %17 = vector.extract_strided_slice %15 {offsets = [0, 32], sizes = [8, 32], strides = [1, 1]} : vector<8x64xf32> to vector<8x32xf32>
    %c0_14 = arith.constant 0 : index
    %c0_15 = arith.constant 0 : index
    %18 = vector.load %arg7[%c0_14, %c0_15] : memref<32x32xbf16, #tpu.memory_space<vmem>>, vector<32x32xbf16>
    %cst_16 = arith.constant 0.000000e+00 : f32
    %19 = vector.broadcast %cst_16 : f32 to vector<8x32xf32>
    %20 = vector.extract_strided_slice %9 {offsets = [0, 0], sizes = [8, 8], strides = [1, 1]} : vector<8x32xf32> to vector<8x8xf32>
    %21 = arith.truncf %20 : vector<8x8xf32> to vector<8x8xbf16>
    %22 = vector.extract_strided_slice %16 {offsets = [0, 0], sizes = [8, 8], strides = [1, 1]} : vector<8x32xf32> to vector<8x8xf32>
    %23 = arith.truncf %22 : vector<8x8xf32> to vector<8x8xbf16>
    %24 = vector.extract_strided_slice %17 {offsets = [0, 0], sizes = [8, 8], strides = [1, 1]} : vector<8x32xf32> to vector<8x8xf32>
    %25 = arith.truncf %24 : vector<8x8xf32> to vector<8x8xbf16>
    %cst_17 = arith.constant dense<0.000000e+00> : vector<8x8xf32>
    %26 = tpu.matmul %21, %23, %cst_17 {dimension_numbers = #tpu.dot_dimension_numbers<[1], [1], [0], [0], [0, 0, 1, 0], [], []>} : vector<8x8xbf16>, vector<8x8xbf16>, vector<8x8xf32> -> vector<8x8xf32>
    %cst_18 = arith.constant dense<0xFF800000> : vector<8xf32>
    %27 = vector.multi_reduction <maximumf>, %26, %cst_18 [1] : vector<8x8xf32> to vector<8xf32>
    %28 = vector.shape_cast %27 : vector<8xf32> to vector<8x1xf32>
    %29 = vector.broadcast %28 : vector<8x1xf32> to vector<8x8xf32>
    %30 = arith.subf %26, %29 : vector<8x8xf32>
    %31 = math.exp %30 : vector<8x8xf32>
    %cst_19 = arith.constant dense<0.000000e+00> : vector<8xf32>
    %32 = vector.multi_reduction <add>, %31, %cst_19 [1] : vector<8x8xf32> to vector<8xf32>
    %33 = vector.shape_cast %32 : vector<8xf32> to vector<8x1xf32>
    %34 = tpu.reciprocal %33 {approx = true} : vector<8x1xf32> -> vector<8x1xf32>
    %35 = vector.broadcast %34 : vector<8x1xf32> to vector<8x8xf32>
    %36 = arith.mulf %31, %35 : vector<8x8xf32>
    %37 = arith.truncf %36 : vector<8x8xf32> to vector<8x8xbf16>
    %cst_20 = arith.constant dense<0.000000e+00> : vector<8x8xf32>
    %38 = tpu.matmul %37, %25, %cst_20 {dimension_numbers = #tpu.dot_dimension_numbers<[1], [0], [0], [1], [0, 0, 1, 1], [], []>} : vector<8x8xbf16>, vector<8x8xbf16>, vector<8x8xf32> -> vector<8x8xf32>
    %39 = arith.truncf %38 : vector<8x8xf32> to vector<8x8xbf16>
    %40 = vector.extract_strided_slice %18 {offsets = [0, 0], sizes = [8, 32], strides = [1, 1]} : vector<32x32xbf16> to vector<8x32xbf16>
    %cst_21 = arith.constant dense<0.000000e+00> : vector<8x32xf32>
    %41 = tpu.matmul %39, %40, %cst_21 {dimension_numbers = #tpu.dot_dimension_numbers<[1], [0], [0], [1], [0, 0, 1, 1], [], []>} : vector<8x8xbf16>, vector<8x32xbf16>, vector<8x32xf32> -> vector<8x32xf32>
    %42 = arith.addf %19, %41 : vector<8x32xf32>
    %43 = vector.extract_strided_slice %9 {offsets = [0, 8], sizes = [8, 8], strides = [1, 1]} : vector<8x32xf32> to vector<8x8xf32>
    %44 = arith.truncf %43 : vector<8x8xf32> to vector<8x8xbf16>
    %45 = vector.extract_strided_slice %16 {offsets = [0, 8], sizes = [8, 8], strides = [1, 1]} : vector<8x32xf32> to vector<8x8xf32>
    %46 = arith.truncf %45 : vector<8x8xf32> to vector<8x8xbf16>
    %47 = vector.extract_strided_slice %17 {offsets = [0, 8], sizes = [8, 8], strides = [1, 1]} : vector<8x32xf32> to vector<8x8xf32>
    %48 = arith.truncf %47 : vector<8x8xf32> to vector<8x8xbf16>
    %cst_22 = arith.constant dense<0.000000e+00> : vector<8x8xf32>
    %49 = tpu.matmul %44, %46, %cst_22 {dimension_numbers = #tpu.dot_dimension_numbers<[1], [1], [0], [0], [0, 0, 1, 0], [], []>} : vector<8x8xbf16>, vector<8x8xbf16>, vector<8x8xf32> -> vector<8x8xf32>
    %cst_23 = arith.constant dense<0xFF800000> : vector<8xf32>
    %50 = vector.multi_reduction <maximumf>, %49, %cst_23 [1] : vector<8x8xf32> to vector<8xf32>
    %51 = vector.shape_cast %50 : vector<8xf32> to vector<8x1xf32>
    %52 = vector.broadcast %51 : vector<8x1xf32> to vector<8x8xf32>
    %53 = arith.subf %49, %52 : vector<8x8xf32>
    %54 = math.exp %53 : vector<8x8xf32>
    %cst_24 = arith.constant dense<0.000000e+00> : vector<8xf32>
    %55 = vector.multi_reduction <add>, %54, %cst_24 [1] : vector<8x8xf32> to vector<8xf32>
    %56 = vector.shape_cast %55 : vector<8xf32> to vector<8x1xf32>
    %57 = tpu.reciprocal %56 {approx = true} : vector<8x1xf32> -> vector<8x1xf32>
    %58 = vector.broadcast %57 : vector<8x1xf32> to vector<8x8xf32>
    %59 = arith.mulf %54, %58 : vector<8x8xf32>
    %60 = arith.truncf %59 : vector<8x8xf32> to vector<8x8xbf16>
    %cst_25 = arith.constant dense<0.000000e+00> : vector<8x8xf32>
    %61 = tpu.matmul %60, %48, %cst_25 {dimension_numbers = #tpu.dot_dimension_numbers<[1], [0], [0], [1], [0, 0, 1, 1], [], []>} : vector<8x8xbf16>, vector<8x8xbf16>, vector<8x8xf32> -> vector<8x8xf32>
    %62 = arith.truncf %61 : vector<8x8xf32> to vector<8x8xbf16>
    %63 = vector.extract_strided_slice %18 {offsets = [8, 0], sizes = [8, 32], strides = [1, 1]} : vector<32x32xbf16> to vector<8x32xbf16>
    %cst_26 = arith.constant dense<0.000000e+00> : vector<8x32xf32>
    %64 = tpu.matmul %62, %63, %cst_26 {dimension_numbers = #tpu.dot_dimension_numbers<[1], [0], [0], [1], [0, 0, 1, 1], [], []>} : vector<8x8xbf16>, vector<8x32xbf16>, vector<8x32xf32> -> vector<8x32xf32>
    %65 = arith.addf %42, %64 : vector<8x32xf32>
    %66 = vector.extract_strided_slice %9 {offsets = [0, 16], sizes = [8, 8], strides = [1, 1]} : vector<8x32xf32> to vector<8x8xf32>
    %67 = arith.truncf %66 : vector<8x8xf32> to vector<8x8xbf16>
    %68 = vector.extract_strided_slice %16 {offsets = [0, 16], sizes = [8, 8], strides = [1, 1]} : vector<8x32xf32> to vector<8x8xf32>
    %69 = arith.truncf %68 : vector<8x8xf32> to vector<8x8xbf16>
    %70 = vector.extract_strided_slice %17 {offsets = [0, 16], sizes = [8, 8], strides = [1, 1]} : vector<8x32xf32> to vector<8x8xf32>
    %71 = arith.truncf %70 : vector<8x8xf32> to vector<8x8xbf16>
    %cst_27 = arith.constant dense<0.000000e+00> : vector<8x8xf32>
    %72 = tpu.matmul %67, %69, %cst_27 {dimension_numbers = #tpu.dot_dimension_numbers<[1], [1], [0], [0], [0, 0, 1, 0], [], []>} : vector<8x8xbf16>, vector<8x8xbf16>, vector<8x8xf32> -> vector<8x8xf32>
    %cst_28 = arith.constant dense<0xFF800000> : vector<8xf32>
    %73 = vector.multi_reduction <maximumf>, %72, %cst_28 [1] : vector<8x8xf32> to vector<8xf32>
    %74 = vector.shape_cast %73 : vector<8xf32> to vector<8x1xf32>
    %75 = vector.broadcast %74 : vector<8x1xf32> to vector<8x8xf32>
    %76 = arith.subf %72, %75 : vector<8x8xf32>
    %77 = math.exp %76 : vector<8x8xf32>
    %cst_29 = arith.constant dense<0.000000e+00> : vector<8xf32>
    %78 = vector.multi_reduction <add>, %77, %cst_29 [1] : vector<8x8xf32> to vector<8xf32>
    %79 = vector.shape_cast %78 : vector<8xf32> to vector<8x1xf32>
    %80 = tpu.reciprocal %79 {approx = true} : vector<8x1xf32> -> vector<8x1xf32>
    %81 = vector.broadcast %80 : vector<8x1xf32> to vector<8x8xf32>
    %82 = arith.mulf %77, %81 : vector<8x8xf32>
    %83 = arith.truncf %82 : vector<8x8xf32> to vector<8x8xbf16>
    %cst_30 = arith.constant dense<0.000000e+00> : vector<8x8xf32>
    %84 = tpu.matmul %83, %71, %cst_30 {dimension_numbers = #tpu.dot_dimension_numbers<[1], [0], [0], [1], [0, 0, 1, 1], [], []>} : vector<8x8xbf16>, vector<8x8xbf16>, vector<8x8xf32> -> vector<8x8xf32>
    %85 = arith.truncf %84 : vector<8x8xf32> to vector<8x8xbf16>
    %86 = vector.extract_strided_slice %18 {offsets = [16, 0], sizes = [8, 32], strides = [1, 1]} : vector<32x32xbf16> to vector<8x32xbf16>
    %cst_31 = arith.constant dense<0.000000e+00> : vector<8x32xf32>
    %87 = tpu.matmul %85, %86, %cst_31 {dimension_numbers = #tpu.dot_dimension_numbers<[1], [0], [0], [1], [0, 0, 1, 1], [], []>} : vector<8x8xbf16>, vector<8x32xbf16>, vector<8x32xf32> -> vector<8x32xf32>
    %88 = arith.addf %65, %87 : vector<8x32xf32>
    %89 = vector.extract_strided_slice %9 {offsets = [0, 24], sizes = [8, 8], strides = [1, 1]} : vector<8x32xf32> to vector<8x8xf32>
    %90 = arith.truncf %89 : vector<8x8xf32> to vector<8x8xbf16>
    %91 = vector.extract_strided_slice %16 {offsets = [0, 24], sizes = [8, 8], strides = [1, 1]} : vector<8x32xf32> to vector<8x8xf32>
    %92 = arith.truncf %91 : vector<8x8xf32> to vector<8x8xbf16>
    %93 = vector.extract_strided_slice %17 {offsets = [0, 24], sizes = [8, 8], strides = [1, 1]} : vector<8x32xf32> to vector<8x8xf32>
    %94 = arith.truncf %93 : vector<8x8xf32> to vector<8x8xbf16>
    %cst_32 = arith.constant dense<0.000000e+00> : vector<8x8xf32>
    %95 = tpu.matmul %90, %92, %cst_32 {dimension_numbers = #tpu.dot_dimension_numbers<[1], [1], [0], [0], [0, 0, 1, 0], [], []>} : vector<8x8xbf16>, vector<8x8xbf16>, vector<8x8xf32> -> vector<8x8xf32>
    %cst_33 = arith.constant dense<0xFF800000> : vector<8xf32>
    %96 = vector.multi_reduction <maximumf>, %95, %cst_33 [1] : vector<8x8xf32> to vector<8xf32>
    %97 = vector.shape_cast %96 : vector<8xf32> to vector<8x1xf32>
    %98 = vector.broadcast %97 : vector<8x1xf32> to vector<8x8xf32>
    %99 = arith.subf %95, %98 : vector<8x8xf32>
    %100 = math.exp %99 : vector<8x8xf32>
    %cst_34 = arith.constant dense<0.000000e+00> : vector<8xf32>
    %101 = vector.multi_reduction <add>, %100, %cst_34 [1] : vector<8x8xf32> to vector<8xf32>
    %102 = vector.shape_cast %101 : vector<8xf32> to vector<8x1xf32>
    %103 = tpu.reciprocal %102 {approx = true} : vector<8x1xf32> -> vector<8x1xf32>
    %104 = vector.broadcast %103 : vector<8x1xf32> to vector<8x8xf32>
    %105 = arith.mulf %100, %104 : vector<8x8xf32>
    %106 = arith.truncf %105 : vector<8x8xf32> to vector<8x8xbf16>
    %cst_35 = arith.constant dense<0.000000e+00> : vector<8x8xf32>
    %107 = tpu.matmul %106, %94, %cst_35 {dimension_numbers = #tpu.dot_dimension_numbers<[1], [0], [0], [1], [0, 0, 1, 1], [], []>} : vector<8x8xbf16>, vector<8x8xbf16>, vector<8x8xf32> -> vector<8x8xf32>
    %108 = arith.truncf %107 : vector<8x8xf32> to vector<8x8xbf16>
    %109 = vector.extract_strided_slice %18 {offsets = [24, 0], sizes = [8, 32], strides = [1, 1]} : vector<32x32xbf16> to vector<8x32xbf16>
    %cst_36 = arith.constant dense<0.000000e+00> : vector<8x32xf32>
    %110 = tpu.matmul %108, %109, %cst_36 {dimension_numbers = #tpu.dot_dimension_numbers<[1], [0], [0], [1], [0, 0, 1, 1], [], []>} : vector<8x8xbf16>, vector<8x32xbf16>, vector<8x32xf32> -> vector<8x32xf32>
    %111 = arith.addf %88, %110 : vector<8x32xf32>
    %c0_37 = arith.constant 0 : index
    %c0_38 = arith.constant 0 : index
    %112 = vector.load %arg8[%c0_37, %c0_38] : memref<1x32xf32, #tpu.memory_space<vmem>>, vector<1x32xf32>
    %113 = vector.broadcast %112 : vector<1x32xf32> to vector<8x32xf32>
    %114 = arith.addf %111, %113 : vector<8x32xf32>
    %c0_39 = arith.constant 0 : index
    %c0_40 = arith.constant 0 : index
    %115 = vector.load %arg9[%c0_39, %c0_40] : memref<1x32xf32, #tpu.memory_space<vmem>>, vector<1x32xf32>
    %c0_41 = arith.constant 0 : index
    %c0_42 = arith.constant 0 : index
    %116 = vector.load %arg10[%c0_41, %c0_42] : memref<1x32xf32, #tpu.memory_space<vmem>>, vector<1x32xf32>
    %117 = arith.addf %1, %114 : vector<8x32xf32>
    %cst_43 = arith.constant dense<0.000000e+00> : vector<8xf32>
    %118 = vector.multi_reduction <add>, %117, %cst_43 [1] : vector<8x32xf32> to vector<8xf32>
    %119 = vector.shape_cast %118 : vector<8xf32> to vector<8x1xf32>
    %cst_44 = arith.constant 3.200000e+01 : f32
    %120 = vector.broadcast %cst_44 : f32 to vector<8x1xf32>
    %121 = arith.divf %119, %120 : vector<8x1xf32>
    %122 = vector.broadcast %121 : vector<8x1xf32> to vector<8x32xf32>
    %123 = arith.subf %117, %122 : vector<8x32xf32>
    %124 = arith.mulf %123, %123 : vector<8x32xf32>
    %cst_45 = arith.constant dense<0.000000e+00> : vector<8xf32>
    %125 = vector.multi_reduction <add>, %124, %cst_45 [1] : vector<8x32xf32> to vector<8xf32>
    %126 = vector.shape_cast %125 : vector<8xf32> to vector<8x1xf32>
    %cst_46 = arith.constant 3.200000e+01 : f32
    %127 = vector.broadcast %cst_46 : f32 to vector<8x1xf32>
    %128 = arith.divf %126, %127 : vector<8x1xf32>
    %cst_47 = arith.constant 9.99999974E-6 : f32
    %129 = vector.broadcast %cst_47 : f32 to vector<8x1xf32>
    %130 = arith.addf %128, %129 : vector<8x1xf32>
    %131 = math.rsqrt %130 : vector<8x1xf32>
    %132 = vector.broadcast %131 : vector<8x1xf32> to vector<8x32xf32>
    %133 = arith.mulf %123, %132 : vector<8x32xf32>
    %134 = vector.broadcast %115 : vector<1x32xf32> to vector<8x32xf32>
    %135 = arith.mulf %133, %134 : vector<8x32xf32>
    %136 = vector.broadcast %116 : vector<1x32xf32> to vector<8x32xf32>
    %137 = arith.addf %135, %136 : vector<8x32xf32>
    %c0_48 = arith.constant 0 : index
    %c0_49 = arith.constant 0 : index
    %c0_50 = arith.constant 0 : index
    %138 = vector.load %arg11[%c0_48, %c0_49, %c0_50] : memref<1x8x32xf32, #tpu.memory_space<vmem>>, vector<1x8x32xf32>
    %139 = vector.shape_cast %138 : vector<1x8x32xf32> to vector<8x32xf32>
    %140 = vector.shape_cast %137 : vector<8x32xf32> to vector<1x8x32xf32>
    tpu.vector_store %arg11[%c0_48, %c0_49, %c0_50], %140 {strides = array<i32>} : memref<1x8x32xf32, #tpu.memory_space<vmem>>, vector<1x8x32xf32>,
    return
  }
  func.func @transform_0(%arg0: i32) -> (i32, i32, i32) {
    %c0_i32 = arith.constant 0 : i32
    %c0_i32_0 = arith.constant 0 : i32
    %c0_i32_1 = arith.constant 0 : i32
    return %arg0, %c0_i32, %c0_i32_0 : i32, i32, i32
  }
  func.func @transform_1(%arg0: i32) -> (i32, i32, i32) {
    %c0_i32 = arith.constant 0 : i32
    %c0_i32_0 = arith.constant 0 : i32
    %c0_i32_1 = arith.constant 0 : i32
    return %arg0, %c0_i32, %c0_i32_0 : i32, i32, i32
  }
  func.func @transform_2(%arg0: i32) -> (i32, i32) {
    %c0_i32 = arith.constant 0 : i32
    %c0_i32_0 = arith.constant 0 : i32
    %c0_i32_1 = arith.constant 0 : i32
    return %c0_i32, %c0_i32_0 : i32, i32
  }
  func.func @transform_3(%arg0: i32) -> (i32, i32) {
    %c0_i32 = arith.constant 0 : i32
    %c0_i32_0 = arith.constant 0 : i32
    %c0_i32_1 = arith.constant 0 : i32
    return %c0_i32, %c0_i32_0 : i32, i32
  }
  func.func @transform_4(%arg0: i32) -> (i32, i32) {
    %c0_i32 = arith.constant 0 : i32
    %c0_i32_0 = arith.constant 0 : i32
    %c0_i32_1 = arith.constant 0 : i32
    return %c0_i32, %c0_i32_0 : i32, i32
  }
  func.func @transform_5(%arg0: i32) -> (i32, i32) {
    %c0_i32 = arith.constant 0 : i32
    %c0_i32_0 = arith.constant 0 : i32
    %c0_i32_1 = arith.constant 0 : i32
    return %c0_i32, %c0_i32_0 : i32, i32
  }
  func.func @transform_6(%arg0: i32) -> (i32, i32) {
    %c0_i32 = arith.constant 0 : i32
    %c0_i32_0 = arith.constant 0 : i32
    %c0_i32_1 = arith.constant 0 : i32
    return %c0_i32, %c0_i32_0 : i32, i32
  }
  func.func @transform_7(%arg0: i32) -> (i32, i32) {
    %c0_i32 = arith.constant 0 : i32
    %c0_i32_0 = arith.constant 0 : i32
    %c0_i32_1 = arith.constant 0 : i32
    return %c0_i32, %c0_i32_0 : i32, i32
  }
  func.func @transform_8(%arg0: i32) -> (i32, i32) {
    %c0_i32 = arith.constant 0 : i32
    %c0_i32_0 = arith.constant 0 : i32
    %c0_i32_1 = arith.constant 0 : i32
    return %c0_i32, %c0_i32_0 : i32, i32
  }
  func.func @transform_9(%arg0: i32) -> (i32, i32) {
    %c0_i32 = arith.constant 0 : i32
    %c0_i32_0 = arith.constant 0 : i32
    %c0_i32_1 = arith.constant 0 : i32
    return %c0_i32, %c0_i32_0 : i32, i32
  }
  func.func @transform_10(%arg0: i32) -> (i32, i32, i32) {
    %c0_i32 = arith.constant 0 : i32
    %c0_i32_0 = arith.constant 0 : i32
    %c0_i32_1 = arith.constant 0 : i32
    return %arg0, %c0_i32, %c0_i32_0 : i32, i32, i32
  }
}

</mosaic_0001>

<llo_original>
// kernel: _lambda_.8
$region0: #{_lambda_.8}
  #allocation0 [shape = 'u32[]', space=smem, size = 0x4, offset = 0x4, fixed_abs, tag = 'smem constant byte address 0x4 - core index']
  #allocation1 [shape = 'u32[72,128]{1,0:T(1,128)}', space=vmem, size = 0x9000, scoped, tag = 'internal scratch']
  %s0 = inlined_call_operand.vmem [shape: f32[16,32], index: 0, kind: input, shape index: {}]
  %s1 = inlined_call_operand.vmem [shape: bf16[32,64], index: 1, kind: input, shape index: {}]
  %s2 = inlined_call_operand.hbm [shape: f32[1,64], index: 2, kind: input, shape index: {}]
  %s3 = inlined_call_operand.vmem [shape: bf16[64,32], index: 3, kind: input, shape index: {}]
  %s4 = inlined_call_operand.hbm [shape: f32[1,32], index: 4, kind: input, shape index: {}]
  %s5 = inlined_call_operand.hbm [shape: f32[1,32], index: 5, kind: input, shape index: {}]
  %s6 = inlined_call_operand.hbm [shape: f32[1,32], index: 6, kind: input, shape index: {}]
  %s7 = inlined_call_operand.vmem [shape: f32[16,32], index: 7, kind: output, shape index: {}]
  %s8 = sld [smem:[#allocation0]]
  $region54: #{_lambda_.8} parent=0
    _
  %s10 = ssub.s32 1, %s8
  %s11 = scalar_select 0, %s10, %s8
  $region1: #{_lambda_.8} parent=0
    #allocation2 [shape = 'u8[512]{0}', space=vmem, size = 0x400, scoped, tag = 'input window, operand 2, single buffered']
    #allocation3 [shape = 's32[1]{0}', space=sflag, size = 0x4, scoped, tag = 'scoped memory for _lambda_.8']
    #allocation4 [shape = 'u8[512]{0}', space=vmem, size = 0x400, scoped, tag = 'input window, operand 4, single buffered']
    #allocation5 [shape = 's32[1]{0}', space=sflag, size = 0x4, scoped, tag = 'scoped memory for _lambda_.8']
    #allocation6 [shape = 'u8[512]{0}', space=vmem, size = 0x400, scoped, tag = 'input window, operand 5, single buffered']
    #allocation7 [shape = 'u8[512]{0}', space=vmem, size = 0x400, scoped, tag = 'input window, operand 6, single buffered']
    #allocation8 [shape = 's32[1]{0}', space=sflag, size = 0x4, scoped, tag = 'scoped memory for _lambda_.8']
    %12 = vsyncpa [#allocation3], 0
    %13 = vsyncpa [#allocation5], 0
    %14 = vsyncpa [#allocation8], 0
    // Predicated region
    $region2: #{_lambda_.8} parent=1 // pred_check
      _
    $region3: #{_lambda_.8} parent=1 // pred_check_branch
      %16 = sbr.rel (0) target = $region5
    $region4: #{_lambda_.8} parent=1 // pred_region
      _
    $region5: #{_lambda_.8} parent=1 // pred_fallthru
      _
    // Predicated region
    $region6: #{_lambda_.8} parent=1 // pred_check
      _
    $region7: #{_lambda_.8} parent=1 // pred_check_branch
      %18 = sbr.rel (0) target = $region9
    $region8: #{_lambda_.8} parent=1 // pred_region
      _
    $region9: #{_lambda_.8} parent=1 // pred_fallthru
      _
    // Predicated region
    $region10: #{_lambda_.8} parent=1 // pred_check
      _
    $region11: #{_lambda_.8} parent=1 // pred_check_branch
      %20 = sbr.rel (0) target = $region13
    $region12: #{_lambda_.8} parent=1 // pred_region
      %22 = vsyncadd [#allocation3], 0
      %s24 = sshll.u32 %s2, 4
      %s25 = int_to_ptr.hbm [resolvable:$true] %s24
      %s26 = sshll.u32 [#allocation2], 4
      %s27 = int_to_ptr.vmem [resolvable:$true] %s26
      %29 = dma.hbm_to_vmem [thread:$0]  %s25, 16, %s27, [#allocation3]
    $region13: #{_lambda_.8} parent=1 // pred_fallthru
      _
    // Predicated region
    $region14: #{_lambda_.8} parent=1 // pred_check
      _
    $region15: #{_lambda_.8} parent=1 // pred_check_branch
      %31 = sbr.rel (0) target = $region17
    $region16: #{_lambda_.8} parent=1 // pred_region
      _
    $region17: #{_lambda_.8} parent=1 // pred_fallthru
      _
    // Predicated region
    $region18: #{_lambda_.8} parent=1 // pred_check
      _
    $region19: #{_lambda_.8} parent=1 // pred_check_branch
      %33 = sbr.rel (0) target = $region21
    $region20: #{_lambda_.8} parent=1 // pred_region
      %35 = vsyncadd [#allocation5], 0
      %s37 = sshll.u32 %s4, 4
      %s38 = int_to_ptr.hbm [resolvable:$true] %s37
      %s39 = sshll.u32 [#allocation4], 4
      %s40 = int_to_ptr.vmem [resolvable:$true] %s39
      %42 = dma.hbm_to_vmem [thread:$0]  %s38, 16, %s40, [#allocation5]
    $region21: #{_lambda_.8} parent=1 // pred_fallthru
      _
    // Predicated region
    $region22: #{_lambda_.8} parent=1 // pred_check
      _
    $region23: #{_lambda_.8} parent=1 // pred_check_branch
      %44 = sbr.rel (0) target = $region25
    $region24: #{_lambda_.8} parent=1 // pred_region
      %46 = vsyncadd [#allocation5], 0
      %s48 = sshll.u32 %s5, 4
      %s49 = int_to_ptr.hbm [resolvable:$true] %s48
      %s50 = sshll.u32 [#allocation6], 4
      %s51 = int_to_ptr.vmem [resolvable:$true] %s50
      %53 = dma.hbm_to_vmem [thread:$0]  %s49, 16, %s51, [#allocation5]
    $region25: #{_lambda_.8} parent=1 // pred_fallthru
      _
    // Predicated region
    $region26: #{_lambda_.8} parent=1 // pred_check
      _
    $region27: #{_lambda_.8} parent=1 // pred_check_branch
      %55 = sbr.rel (0) target = $region29
    $region28: #{_lambda_.8} parent=1 // pred_region
      %57 = vsyncadd [#allocation8], 0
      %s59 = sshll.u32 %s6, 4
      %s60 = int_to_ptr.hbm [resolvable:$true] %s59
      %s61 = sshll.u32 [#allocation7], 4
      %s62 = int_to_ptr.vmem [resolvable:$true] %s61
      %64 = dma.hbm_to_vmem [thread:$0]  %s60, 16, %s62, [#allocation8]
    $region29: #{_lambda_.8} parent=1 // pred_fallthru
      _
    // Predicated region
    $region30: #{_lambda_.8} parent=1 // pred_check
      _
    $region31: #{_lambda_.8} parent=1 // pred_check_branch
      %66 = sbr.rel (0) target = $region33
    $region32: #{_lambda_.8} parent=1 // pred_region
      %68 = dma.done [#allocation3], 16
    $region33: #{_lambda_.8} parent=1 // pred_fallthru
      _
    // Predicated region
    $region34: #{_lambda_.8} parent=1 // pred_check
      _
    $region35: #{_lambda_.8} parent=1 // pred_check_branch
      %70 = sbr.rel (0) target = $region37
    $region36: #{_lambda_.8} parent=1 // pred_region
      %72 = dma.done [#allocation5], 16
    $region37: #{_lambda_.8} parent=1 // pred_fallthru
      _
    // Predicated region
    $region38: #{_lambda_.8} parent=1 // pred_check
      _
    $region39: #{_lambda_.8} parent=1 // pred_check_branch
      %74 = sbr.rel (0) target = $region41
    $region40: #{_lambda_.8} parent=1 // pred_region
      %76 = dma.done [#allocation5], 16
    $region41: #{_lambda_.8} parent=1 // pred_fallthru
      _
    // Predicated region
    $region42: #{_lambda_.8} parent=1 // pred_check
      _
    $region43: #{_lambda_.8} parent=1 // pred_check_branch
      %78 = sbr.rel (0) target = $region45
    $region44: #{_lambda_.8} parent=1 // pred_region
      %80 = dma.done [#allocation8], 16
    $region45: #{_lambda_.8} parent=1 // pred_fallthru
      _
    %v82 = vld [vmem:[%s0] sm:$0xff]
    %v83 = vld [vmem:[%s0 + $0x8] sm:$0xff]
    %v84 = vpack.c.bf16 %v83, %v82
    %v85 = vld [vmem:[%s1] sm:$0xf]
    %v86 = vld [vmem:[%s1 + $0x4] sm:$0xf]
    %v87 = vld [vmem:[%s1 + $0x8] sm:$0xf]
    %v88 = vld [vmem:[%s1 + $0xc] sm:$0xf]
    %v89 = vld [vmem:[#allocation2] sm:$0x1]
    %v91 = vperm.slane %v89, 0
    %v97 = vunpack.c.l.b16 %v85
    %v98 = vunpack.c.l.b16 %v86
    %v99 = vunpack.c.l.b16 %v87
    %v100 = vunpack.c.l.b16 %v88
    %v101 = vpack.c.b16 %v98, %v97
    %v102 = vpack.c.b16 %v100, %v99
    %vm105 = vcmask 261120
    %v107 = vsel %vm105, %v84, 0
    %109 = vmatpush.bf16.msra.mxu0 0
    %110 = vmatpush.bf16.msra.mxu0 0
    %111 = vmatpush.bf16.msra.mxu0 0
    %112 = vmatpush.bf16.msra.mxu0 0
    %113 = vmatpush.bf16.msra.mxu0 0
    %114 = vmatpush.bf16.msra.mxu0 0
    %115 = vmatpush.bf16.msra.mxu0 %v102
    %116 = vmatpush.bf16.msra.mxu0 %v101
    %117 = vmatmul.bf16.gmra.mxu0 %v107
    %v118 = vpop.f32.mrf.mxu0
    %v119 = vadd.f32 %v91, %v118
    %v120 = vpop.f32.mrf.mxu0
    %v121 = vadd.f32 %v91, %v120
    %122 = vdwg.mxu0
    %v123 = vmax.f32 %v119, 0.0
    %v124 = vmax.f32 %v121, 0.0
    %v125 = vpack.c.bf16 %v124, %v123
    %v126 = vld [vmem:[%s3] sm:$0xf]
    %v127 = vld [vmem:[%s3 + $0x4] sm:$0xf]
    %v128 = vld [vmem:[%s3 + $0x8] sm:$0xf]
    %v129 = vld [vmem:[%s3 + $0xc] sm:$0xf]
    %v130 = vld [vmem:[%s3 + $0x10] sm:$0xf]
    %v131 = vld [vmem:[%s3 + $0x14] sm:$0xf]
    %v132 = vld [vmem:[%s3 + $0x18] sm:$0xf]
    %v133 = vld [vmem:[%s3 + $0x1c] sm:$0xf]
    %v134 = vld [vmem:[#allocation4] sm:$0x1]
    %v136 = vperm.slane %v134, 0
    %v146 = vunpack.c.l.b16 %v126
    %v147 = vunpack.c.l.b16 %v127
    %v148 = vunpack.c.l.b16 %v128
    %v149 = vunpack.c.l.b16 %v129
    %v150 = vunpack.c.l.b16 %v130
    %v151 = vunpack.c.l.b16 %v131
    %v152 = vunpack.c.l.b16 %v132
    %v153 = vunpack.c.l.b16 %v133
    %v154 = vpack.c.b16 %v147, %v146
    %v155 = vpack.c.b16 %v149, %v148
    %v156 = vpack.c.b16 %v151, %v150
    %v157 = vpack.c.b16 %v153, %v152
    %vm162 = vcmask 523264
    %v164 = vsel %vm162, %v125, 0
    %166 = vmatpush.bf16.msra.mxu0 0
    %167 = vmatpush.bf16.msra.mxu0 0
    %168 = vmatpush.bf16.msra.mxu0 0
    %169 = vmatpush.bf16.msra.mxu0 0
    %170 = vmatpush.bf16.msra.mxu0 %v157
    %171 = vmatpush.bf16.msra.mxu0 %v156
    %172 = vmatpush.bf16.msra.mxu0 %v155
    %173 = vmatpush.bf16.msra.mxu0 %v154
    %174 = vmatmul.bf16.gmra.mxu0 %v164
    %v175 = vpop.f32.mrf.mxu0
    %v176 = vadd.f32 %v136, %v175
    %v177 = vpop.f32.mrf.mxu0
    %v178 = vadd.f32 %v136, %v177
    %179 = vdwg.mxu0
    %v180 = vld [vmem:[#allocation6] sm:$0x1]
    %v181 = vld [vmem:[#allocation7] sm:$0x1]
    %v182 = vadd.f32 %v82, %v176
    %v183 = vadd.f32 %v83, %v178
    %v184 = vsel %vm105, %v182, 0.0
    %185 = vadd.xlane.f32.xlu0 %v184
    %v186 = vpop.xlane.xlu0 %185
    %v187 = vsel %vm105, %v183, 0.0
    %188 = vadd.xlane.f32.xlu0 %v187
    %v189 = vpop.xlane.xlu0 %188
    %v190 = vrcp.pop 32.0
    %v191 = vmul.f32 32.0, %v190
    %v192 = vsub.f32 1.0, %v191
    %v193 = vmul.f32 %v190, %v192
    %v194 = vadd.f32 %v190, %v193
    %vm195 = vweird.f32 %v190
    %v196 = vsel %vm195, %v190, %v194
    %v197 = vmul.f32 %v186, %v196
    %v198 = vmul.f32 %v189, %v196
    %v199 = vsub.f32 %v182, %v197
    %v200 = vsub.f32 %v183, %v198
    %v201 = vmul.f32 %v199, %v199
    %v202 = vmul.f32 %v200, %v200
    %v203 = vsel %vm105, %v201, 0.0
    %204 = vadd.xlane.f32.xlu0 %v203
    %v205 = vpop.xlane.xlu0 %204
    %v206 = vsel %vm105, %v202, 0.0
    %207 = vadd.xlane.f32.xlu0 %v206
    %v208 = vpop.xlane.xlu0 %207
    %v209 = vmul.f32 %v205, %v196
    %v210 = vmul.f32 %v208, %v196
    %v211 = vadd.f32 %v209, 1e-05
    %v212 = vadd.f32 %v210, 1e-05
    %v213 = vrsqrt.pop %v211
    %v214 = vmul.f32 %v213, %v211
    %v215 = vmul.f32 %v214, %v213
    %v216 = vmul.f32 0.5, %v215
    %v217 = vsub.f32 1.5, %v216
    %v218 = vmul.f32 %v213, %v217
    %vm219 = vweird.f32 %v211
    %vm220 = vweird.f32 %v213
    %vm221 = vmor %vm219, %vm220
    %v222 = vsel %vm221, %v213, %v218
    %v223 = vrsqrt.pop %v212
    %v224 = vmul.f32 %v223, %v212
    %v225 = vmul.f32 %v224, %v223
    %v226 = vmul.f32 0.5, %v225
    %v227 = vsub.f32 1.5, %v226
    %v228 = vmul.f32 %v223, %v227
    %vm229 = vweird.f32 %v212
    %vm230 = vweird.f32 %v223
    %vm231 = vmor %vm229, %vm230
    %v232 = vsel %vm231, %v223, %v228
    %v233 = vmul.f32 %v199, %v222
    %v234 = vmul.f32 %v200, %v232
    %v236 = vperm.slane %v180, 0
    %v238 = vmul.f32 %v233, %v236
    %v239 = vmul.f32 %v234, %v236
    %v241 = vperm.slane %v181, 0
    %v243 = vadd.f32 %v238, %v241
    %v244 = vadd.f32 %v239, %v241
    %245 = vst.msk [vmem:[%s7] sm:$0xff] %vm105, %v243
    %246 = vst.msk [vmem:[%s7 + $0x8] sm:$0xff] %vm105, %v244
    // Predicated region
    $region46: #{_lambda_.8} parent=1 // pred_check
      _
    $region47: #{_lambda_.8} parent=1 // pred_check_branch
      %248 = sbr.rel (0) target = $region49
    $region48: #{_lambda_.8} parent=1 // pred_region
      _
    $region49: #{_lambda_.8} parent=1 // pred_fallthru
      _
    // Predicated region
    $region50: #{_lambda_.8} parent=1 // pred_check
      _
    $region51: #{_lambda_.8} parent=1 // pred_check_branch
      %250 = sbr.rel (0) target = $region53
    $region52: #{_lambda_.8} parent=1 // pred_region
      _
    $region53: #{_lambda_.8} parent=1 // pred_fallthru
      _
    %251 = vsyncpa [#allocation3], 1
    %252 = vsyncpa [#allocation5], 1
    %253 = vsyncpa [#allocation8], 1

// kernel: _lambda_.7
$region0: #{_lambda_.7}
  #allocation0 [shape = 'u32[]', space=smem, size = 0x4, offset = 0x4, fixed_abs, tag = 'smem constant byte address 0x4 - core index']
  #allocation1 [shape = 'u32[72,128]{1,0:T(1,128)}', space=vmem, size = 0x9000, scoped, tag = 'internal scratch']
  %s0 = inlined_call_operand.vmem [shape: f32[2,8,32], index: 0, kind: input, shape index: {}]
  %s1 = inlined_call_operand.hbm [shape: f32[2,8,32], index: 1, kind: input, shape index: {}]
  %s2 = inlined_call_operand.hbm [shape: bf16[32,32], index: 2, kind: input, shape index: {}]
  %s3 = inlined_call_operand.hbm [shape: f32[1,32], index: 3, kind: input, shape index: {}]
  %s4 = inlined_call_operand.hbm [shape: bf16[32,64], index: 4, kind: input, shape index: {}]
  %s5 = inlined_call_operand.hbm [shape: f32[1,64], index: 5, kind: input, shape index: {}]
  %s6 = inlined_call_operand.hbm [shape: bf16[32,32], index: 6, kind: input, shape index: {}]
  %s7 = inlined_call_operand.hbm [shape: f32[1,32], index: 7, kind: input, shape index: {}]
  %s8 = inlined_call_operand.hbm [shape: f32[1,32], index: 8, kind: input, shape index: {}]
  %s9 = inlined_call_operand.hbm [shape: f32[1,32], index: 9, kind: input, shape index: {}]
  %s10 = inlined_call_operand.vmem [shape: f32[2,8,32], index: 10, kind: output, shape index: {}]
  %s11 = sld [smem:[#allocation0]]
  $region109: #{_lambda_.7} parent=0
    _
  %s13 = ssub.s32 1, %s11
  %s14 = scalar_select 0, %s13, %s11
  $region1: #{_lambda_.7} parent=0
    #allocation2 [shape = 'u8[8192]{0}', space=vmem, size = 0x2000, scoped, tag = 'input window, operand 1']
    #allocation3 [shape = 's32[2]{0}', space=sflag, size = 0x8, scoped, tag = 'scoped memory for _lambda_.7']
    #allocation4 [shape = 'u8[8192]{0}', space=vmem, size = 0x2000, scoped, tag = 'input window, operand 2, single buffered']
    #allocation5 [shape = 's32[1]{0}', space=sflag, size = 0x4, scoped, tag = 'scoped memory for _lambda_.7']
    #allocation6 [shape = 'u8[512]{0}', space=vmem, size = 0x400, scoped, tag = 'input window, operand 3, single buffered']
    #allocation7 [shape = 'u8[8192]{0}', space=vmem, size = 0x2000, scoped, tag = 'input window, operand 4, single buffered']
    #allocation8 [shape = 's32[1]{0}', space=sflag, size = 0x4, scoped, tag = 'scoped memory for _lambda_.7']
    #allocation9 [shape = 'u8[512]{0}', space=vmem, size = 0x400, scoped, tag = 'input window, operand 5, single buffered']
    #allocation10 [shape = 'u8[8192]{0}', space=vmem, size = 0x2000, scoped, tag = 'input window, operand 6, single buffered']
    #allocation11 [shape = 's32[1]{0}', space=sflag, size = 0x4, scoped, tag = 'scoped memory for _lambda_.7']
    #allocation12 [shape = 'u8[512]{0}', space=vmem, size = 0x400, scoped, tag = 'input window, operand 7, single buffered']
    #allocation13 [shape = 'u8[512]{0}', space=vmem, size = 0x400, scoped, tag = 'input window, operand 8, single buffered']
    #allocation14 [shape = 's32[1]{0}', space=sflag, size = 0x4, scoped, tag = 'scoped memory for _lambda_.7']
    #allocation15 [shape = 'u8[512]{0}', space=vmem, size = 0x400, scoped, tag = 'input window, operand 9, single buffered']
    %15 = vsyncpa [#allocation3], 0
    %s16 = scalar_lea.sflag [#allocation3], 1
    %17 = vsyncpa %s16, 0
    %18 = vsyncpa [#allocation5], 0
    %19 = vsyncpa [#allocation8], 0
    %20 = vsyncpa [#allocation11], 0
    %21 = vsyncpa [#allocation14], 0
    loop: start=0, step=1, limit=4
    $region2: #{_lambda_.7} parent=1 // loop_pre_header
      _
    $region3: #{_lambda_.7} parent=1 // loop_header
      %s23 = sphi 0, %s27
      %p24 = scmp.ge.s32.totalorder %s23, 4
      %s33 = sphi 0, %s35
      %s36 = sphi 0, %s33
      %s37 = sphi 0, %s36
      %s53 = sphi 0, %s37
      %s59 = sphi 0, %s61
      %s62 = sphi 0, %s59
      %s63 = sphi 0, %s62
      %s79 = sphi 0, %s63
      %s83 = sphi 0, %s83
      %s85 = sphi 0, %s83
      %s86 = sphi 0, %s85
      %s100 = sphi 0, %s86
      %s104 = sphi 0, %s104
      %s106 = sphi 0, %s104
      %s107 = sphi 0, %s106
      %s121 = sphi 0, %s107
      %s125 = sphi 0, %s125
      %s127 = sphi 0, %s125
      %s128 = sphi 0, %s127
      %s142 = sphi 0, %s128
      %s146 = sphi 0, %s146
      %s148 = sphi 0, %s146
      %s149 = sphi 0, %s148
      %s163 = sphi 0, %s149
      %s167 = sphi 0, %s167
      %s169 = sphi 0, %s167
      %s170 = sphi 0, %s169
      %s184 = sphi 0, %s170
      %s188 = sphi 0, %s188
      %s190 = sphi 0, %s188
      %s191 = sphi 0, %s190
      %s205 = sphi 0, %s191
      %s209 = sphi 0, %s209
      %s211 = sphi 0, %s209
      %s212 = sphi 0, %s211
      %s226 = sphi 0, %s212
      %s230 = sphi 0, %s230
      %s232 = sphi 0, %s230
      %s233 = sphi 0, %s232
      %s247 = sphi 0, %s233
      %s253 = sphi 0, %s255
      %s256 = sphi 0, %s253
      %s257 = sphi 0, %s256
      %s273 = sphi 0, %s257
    $region4: #{_lambda_.7} parent=1 // loop_header_branch
      %26 = sbr.rel (%p24) target = $region8
    $region5: #{_lambda_.7} parent=1 // loop_body
      %s28 = ssub.s32 %s23, 1
      %s29 = ssub.s32 %s23, 2
      %s30 = sadd.s32 %s23, 1
      %s31 = ssub.s32 %s23, %s30
      %p32 = scmp.eq.s32.totalorder %s31, 0
      %s34 = sadd.s32 %s33, 1
      %s35 = scalar_select %p32, %s33, %s34
      %p38 = pneg %p32
      %p39 = scmp.eq.s32.totalorder %s23, 1
      %p40 = por %p38, %p39
      %p41 = scmp.ne.s32.totalorder %s33, %s36
      %p42 = scmp.eq.s32.totalorder %s23, 0
      %p43 = por %p41, %p42
      %p44 = scmp.ne.s32.totalorder %s33, %s36
      %p45 = scmp.eq.s32.totalorder %s28, 1
      %p46 = por %p44, %p45
      %p47 = scmp.ne.s32.totalorder %s36, %s37
      %p48 = scmp.eq.s32.totalorder %s28, 0
      %p49 = por %p47, %p48
      %p50 = scmp.ne.s32.totalorder %s36, %s37
      %p51 = scmp.eq.s32.totalorder %s29, 1
      %p52 = por %p50, %p51
      %p54 = scmp.ne.s32.totalorder %s37, %s53
      %p55 = scmp.eq.s32.totalorder %s29, 0
      %p56 = por %p54, %p55
      %s57 = ssub.s32 %s23, %s30
      %p58 = scmp.eq.s32.totalorder %s57, 0
      %s60 = sadd.s32 %s59, 1
      %s61 = scalar_select %p58, %s59, %s60
      %p64 = pneg %p58
      %p65 = scmp.eq.s32.totalorder %s23, 1
      %p66 = por %p64, %p65
      %p67 = scmp.ne.s32.totalorder %s59, %s62
      %p68 = scmp.eq.s32.totalorder %s23, 0
      %p69 = por %p67, %p68
      %p70 = scmp.ne.s32.totalorder %s59, %s62
      %p71 = scmp.eq.s32.totalorder %s28, 1
      %p72 = por %p70, %p71
      %p73 = scmp.ne.s32.totalorder %s62, %s63
      %p74 = scmp.eq.s32.totalorder %s28, 0
      %p75 = por %p73, %p74
      %p76 = scmp.ne.s32.totalorder %s62, %s63
      %p77 = scmp.eq.s32.totalorder %s29, 1
      %p78 = por %p76, %p77
      %p80 = scmp.ne.s32.totalorder %s63, %s79
      %p81 = scmp.eq.s32.totalorder %s29, 0
      %p82 = por %p80, %p81
      %s84 = sadd.s32 %s83, 1
      %p87 = scmp.eq.s32.totalorder %s23, 1
      %p88 = scmp.ne.s32.totalorder %s83, %s85
      %p89 = scmp.eq.s32.totalorder %s23, 0
      %p90 = por %p88, %p89
      %p91 = scmp.ne.s32.totalorder %s83, %s85
      %p92 = scmp.eq.s32.totalorder %s28, 1
      %p93 = por %p91, %p92
      %p94 = scmp.ne.s32.totalorder %s85, %s86
      %p95 = scmp.eq.s32.totalorder %s28, 0
      %p96 = por %p94, %p95
      %p97 = scmp.ne.s32.totalorder %s85, %s86
      %p98 = scmp.eq.s32.totalorder %s29, 1
      %p99 = por %p97, %p98
      %p101 = scmp.ne.s32.totalorder %s86, %s100
      %p102 = scmp.eq.s32.totalorder %s29, 0
      %p103 = por %p101, %p102
      %s105 = sadd.s32 %s104, 1
      %p108 = scmp.eq.s32.totalorder %s23, 1
      %p109 = scmp.ne.s32.totalorder %s104, %s106
      %p110 = scmp.eq.s32.totalorder %s23, 0
      %p111 = por %p109, %p110
      %p112 = scmp.ne.s32.totalorder %s104, %s106
      %p113 = scmp.eq.s32.totalorder %s28, 1
      %p114 = por %p112, %p113
      %p115 = scmp.ne.s32.totalorder %s106, %s107
      %p116 = scmp.eq.s32.totalorder %s28, 0
      %p117 = por %p115, %p116
      %p118 = scmp.ne.s32.totalorder %s106, %s107
      %p119 = scmp.eq.s32.totalorder %s29, 1
      %p120 = por %p118, %p119
      %p122 = scmp.ne.s32.totalorder %s107, %s121
      %p123 = scmp.eq.s32.totalorder %s29, 0
      %p124 = por %p122, %p123
      %s126 = sadd.s32 %s125, 1
      %p129 = scmp.eq.s32.totalorder %s23, 1
      %p130 = scmp.ne.s32.totalorder %s125, %s127
      %p131 = scmp.eq.s32.totalorder %s23, 0
      %p132 = por %p130, %p131
      %p133 = scmp.ne.s32.totalorder %s125, %s127
      %p134 = scmp.eq.s32.totalorder %s28, 1
      %p135 = por %p133, %p134
      %p136 = scmp.ne.s32.totalorder %s127, %s128
      %p137 = scmp.eq.s32.totalorder %s28, 0
      %p138 = por %p136, %p137
      %p139 = scmp.ne.s32.totalorder %s127, %s128
      %p140 = scmp.eq.s32.totalorder %s29, 1
      %p141 = por %p139, %p140
      %p143 = scmp.ne.s32.totalorder %s128, %s142
      %p144 = scmp.eq.s32.totalorder %s29, 0
      %p145 = por %p143, %p144
      %s147 = sadd.s32 %s146, 1
      %p150 = scmp.eq.s32.totalorder %s23, 1
      %p151 = scmp.ne.s32.totalorder %s146, %s148
      %p152 = scmp.eq.s32.totalorder %s23, 0
      %p153 = por %p151, %p152
      %p154 = scmp.ne.s32.totalorder %s146, %s148
      %p155 = scmp.eq.s32.totalorder %s28, 1
      %p156 = por %p154, %p155
      %p157 = scmp.ne.s32.totalorder %s148, %s149
      %p158 = scmp.eq.s32.totalorder %s28, 0
      %p159 = por %p157, %p158
      %p160 = scmp.ne.s32.totalorder %s148, %s149
      %p161 = scmp.eq.s32.totalorder %s29, 1
      %p162 = por %p160, %p161
      %p164 = scmp.ne.s32.totalorder %s149, %s163
      %p165 = scmp.eq.s32.totalorder %s29, 0
      %p166 = por %p164, %p165
      %s168 = sadd.s32 %s167, 1
      %p171 = scmp.eq.s32.totalorder %s23, 1
      %p172 = scmp.ne.s32.totalorder %s167, %s169
      %p173 = scmp.eq.s32.totalorder %s23, 0
      %p174 = por %p172, %p173
      %p175 = scmp.ne.s32.totalorder %s167, %s169
      %p176 = scmp.eq.s32.totalorder %s28, 1
      %p177 = por %p175, %p176
      %p178 = scmp.ne.s32.totalorder %s169, %s170
      %p179 = scmp.eq.s32.totalorder %s28, 0
      %p180 = por %p178, %p179
      %p181 = scmp.ne.s32.totalorder %s169, %s170
      %p182 = scmp.eq.s32.totalorder %s29, 1
      %p183 = por %p181, %p182
      %p185 = scmp.ne.s32.totalorder %s170, %s184
      %p186 = scmp.eq.s32.totalorder %s29, 0
      %p187 = por %p185, %p186
      %s189 = sadd.s32 %s188, 1
      %p192 = scmp.eq.s32.totalorder %s23, 1
      %p193 = scmp.ne.s32.totalorder %s188, %s190
      %p194 = scmp.eq.s32.totalorder %s23, 0
      %p195 = por %p193, %p194
      %p196 = scmp.ne.s32.totalorder %s188, %s190
      %p197 = scmp.eq.s32.totalorder %s28, 1
      %p198 = por %p196, %p197
      %p199 = scmp.ne.s32.totalorder %s190, %s191
      %p200 = scmp.eq.s32.totalorder %s28, 0
      %p201 = por %p199, %p200
      %p202 = scmp.ne.s32.totalorder %s190, %s191
      %p203 = scmp.eq.s32.totalorder %s29, 1
      %p204 = por %p202, %p203
      %p206 = scmp.ne.s32.totalorder %s191, %s205
      %p207 = scmp.eq.s32.totalorder %s29, 0
      %p208 = por %p206, %p207
      %s210 = sadd.s32 %s209, 1
      %p213 = scmp.eq.s32.totalorder %s23, 1
      %p214 = scmp.ne.s32.totalorder %s209, %s211
      %p215 = scmp.eq.s32.totalorder %s23, 0
      %p216 = por %p214, %p215
      %p217 = scmp.ne.s32.totalorder %s209, %s211
      %p218 = scmp.eq.s32.totalorder %s28, 1
      %p219 = por %p217, %p218
      %p220 = scmp.ne.s32.totalorder %s211, %s212
      %p221 = scmp.eq.s32.totalorder %s28, 0
      %p222 = por %p220, %p221
      %p223 = scmp.ne.s32.totalorder %s211, %s212
      %p224 = scmp.eq.s32.totalorder %s29, 1
      %p225 = por %p223, %p224
      %p227 = scmp.ne.s32.totalorder %s212, %s226
      %p228 = scmp.eq.s32.totalorder %s29, 0
      %p229 = por %p227, %p228
      %s231 = sadd.s32 %s230, 1
      %p234 = scmp.eq.s32.totalorder %s23, 1
      %p235 = scmp.ne.s32.totalorder %s230, %s232
      %p236 = scmp.eq.s32.totalorder %s23, 0
      %p237 = por %p235, %p236
      %p238 = scmp.ne.s32.totalorder %s230, %s232
      %p239 = scmp.eq.s32.totalorder %s28, 1
      %p240 = por %p238, %p239
      %p241 = scmp.ne.s32.totalorder %s232, %s233
      %p242 = scmp.eq.s32.totalorder %s28, 0
      %p243 = por %p241, %p242
      %p244 = scmp.ne.s32.totalorder %s232, %s233
      %p245 = scmp.eq.s32.totalorder %s29, 1
      %p246 = por %p244, %p245
      %p248 = scmp.ne.s32.totalorder %s233, %s247
      %p249 = scmp.eq.s32.totalorder %s29, 0
      %p250 = por %p248, %p249
      %s251 = ssub.s32 %s23, %s30
      %p252 = scmp.eq.s32.totalorder %s251, 0
      %s254 = sadd.s32 %s253, 1
      %s255 = scalar_select %p252, %s253, %s254
      %p258 = pneg %p252
      %p259 = scmp.eq.s32.totalorder %s23, 1
      %p260 = por %p258, %p259
      %p261 = scmp.ne.s32.totalorder %s253, %s256
      %p262 = scmp.eq.s32.totalorder %s23, 0
      %p263 = por %p261, %p262
      %p264 = scmp.ne.s32.totalorder %s253, %s256
      %p265 = scmp.eq.s32.totalorder %s28, 1
      %p266 = por %p264, %p265
      %p267 = scmp.ne.s32.totalorder %s256, %s257
      %p268 = scmp.eq.s32.totalorder %s28, 0
      %p269 = por %p267, %p268
      %p270 = scmp.ne.s32.totalorder %s256, %s257
      %p271 = scmp.eq.s32.totalorder %s29, 1
      %p272 = por %p270, %p271
      %p274 = scmp.ne.s32.totalorder %s257, %s273
      %p275 = scmp.eq.s32.totalorder %s29, 0
      %p276 = por %p274, %p275
      %p277 = scmp.le.s32.totalorder 1, %s23
      %p278 = scmp.lt.s32.totalorder %s23, 3
      %p279 = pnand %p277, %p278
      %p280 = pneg %p279
      // Predicated region
      $region9: #{_lambda_.7} parent=5 // pred_check
        _
      $region10: #{_lambda_.7} parent=5 // pred_check_branch
        %282 = sbr.rel (%p279) target = $region12
      $region11: #{_lambda_.7} parent=5 // pred_region
        %s283 = ssub.s32 %s23, 1
        // Predicated region
        $region13: #{_lambda_.7} parent=11 // pred_check
          %p284 = pneg %p96
        $region14: #{_lambda_.7} parent=11 // pred_check_branch
          %286 = sbr.rel (%p284) target = $region16
        $region15: #{_lambda_.7} parent=11 // pred_region
          %288 = vsyncadd [#allocation5], 0
          %s289 = sshll.u32 %s2, 4
          %s290 = int_to_ptr.hbm [resolvable:$true] %s289
          %s291 = sshll.u32 [#allocation4], 4
          %s292 = int_to_ptr.vmem [resolvable:$true] %s291
          %297 = dma.hbm_to_vmem [thread:$0]  %s290, 256, %s292, [#allocation5], 64, 64, 4
        $region16: #{_lambda_.7} parent=11 // pred_fallthru
          _
        // Predicated region
        $region17: #{_lambda_.7} parent=11 // pred_check
          %p298 = pneg %p117
        $region18: #{_lambda_.7} parent=11 // pred_check_branch
          %300 = sbr.rel (%p298) target = $region20
        $region19: #{_lambda_.7} parent=11 // pred_region
          %302 = vsyncadd [#allocation5], 0
          %s304 = sshll.u32 %s3, 4
          %s305 = int_to_ptr.hbm [resolvable:$true] %s304
          %s306 = sshll.u32 [#allocation6], 4
          %s307 = int_to_ptr.vmem [resolvable:$true] %s306
          %309 = dma.hbm_to_vmem [thread:$0]  %s305, 16, %s307, [#allocation5]
        $region20: #{_lambda_.7} parent=11 // pred_fallthru
          _
        // Predicated region
        $region21: #{_lambda_.7} parent=11 // pred_check
          %p310 = pneg %p138
        $region22: #{_lambda_.7} parent=11 // pred_check_branch
          %312 = sbr.rel (%p310) target = $region24
        $region23: #{_lambda_.7} parent=11 // pred_region
          %314 = vsyncadd [#allocation8], 0
          %s315 = sshll.u32 %s4, 4
          %s316 = int_to_ptr.hbm [resolvable:$true] %s315
          %s317 = sshll.u32 [#allocation7], 4
          %s318 = int_to_ptr.vmem [resolvable:$true] %s317
          %323 = dma.hbm_to_vmem [thread:$0]  %s316, 256, %s318, [#allocation8], 64, 64, 4
        $region24: #{_lambda_.7} parent=11 // pred_fallthru
          _
        // Predicated region
        $region25: #{_lambda_.7} parent=11 // pred_check
          %p324 = pneg %p159
        $region26: #{_lambda_.7} parent=11 // pred_check_branch
          %326 = sbr.rel (%p324) target = $region28
        $region27: #{_lambda_.7} parent=11 // pred_region
          %328 = vsyncadd [#allocation8], 0
          %s330 = sshll.u32 %s5, 4
          %s331 = int_to_ptr.hbm [resolvable:$true] %s330
          %s332 = sshll.u32 [#allocation9], 4
          %s333 = int_to_ptr.vmem [resolvable:$true] %s332
          %335 = dma.hbm_to_vmem [thread:$0]  %s331, 16, %s333, [#allocation8]
        $region28: #{_lambda_.7} parent=11 // pred_fallthru
          _
        // Predicated region
        $region29: #{_lambda_.7} parent=11 // pred_check
          %p336 = pneg %p180
        $region30: #{_lambda_.7} parent=11 // pred_check_branch
          %338 = sbr.rel (%p336) target = $region32
        $region31: #{_lambda_.7} parent=11 // pred_region
          %340 = vsyncadd [#allocation11], 0
          %s341 = sshll.u32 %s6, 4
          %s342 = int_to_ptr.hbm [resolvable:$true] %s341
          %s343 = sshll.u32 [#allocation10], 4
          %s344 = int_to_ptr.vmem [resolvable:$true] %s343
          %349 = dma.hbm_to_vmem [thread:$0]  %s342, 256, %s344, [#allocation11], 64, 64, 4
        $region32: #{_lambda_.7} parent=11 // pred_fallthru
          _
        // Predicated region
        $region33: #{_lambda_.7} parent=11 // pred_check
          %p350 = pneg %p201
        $region34: #{_lambda_.7} parent=11 // pred_check_branch
          %352 = sbr.rel (%p350) target = $region36
        $region35: #{_lambda_.7} parent=11 // pred_region
          %354 = vsyncadd [#allocation11], 0
          %s356 = sshll.u32 %s7, 4
          %s357 = int_to_ptr.hbm [resolvable:$true] %s356
          %s358 = sshll.u32 [#allocation12], 4
          %s359 = int_to_ptr.vmem [resolvable:$true] %s358
          %361 = dma.hbm_to_vmem [thread:$0]  %s357, 16, %s359, [#allocation11]
        $region36: #{_lambda_.7} parent=11 // pred_fallthru
          _
        // Predicated region
        $region37: #{_lambda_.7} parent=11 // pred_check
          %p362 = pneg %p222
        $region38: #{_lambda_.7} parent=11 // pred_check_branch
          %364 = sbr.rel (%p362) target = $region40
        $region39: #{_lambda_.7} parent=11 // pred_region
          %366 = vsyncadd [#allocation14], 0
          %s368 = sshll.u32 %s8, 4
          %s369 = int_to_ptr.hbm [resolvable:$true] %s368
          %s370 = sshll.u32 [#allocation13], 4
          %s371 = int_to_ptr.vmem [resolvable:$true] %s370
          %373 = dma.hbm_to_vmem [thread:$0]  %s369, 16, %s371, [#allocation14]
        $region40: #{_lambda_.7} parent=11 // pred_fallthru
          _
        // Predicated region
        $region41: #{_lambda_.7} parent=11 // pred_check
          %p374 = pneg %p243
        $region42: #{_lambda_.7} parent=11 // pred_check_branch
          %376 = sbr.rel (%p374) target = $region44
        $region43: #{_lambda_.7} parent=11 // pred_region
          %378 = vsyncadd [#allocation14], 0
          %s380 = sshll.u32 %s9, 4
          %s381 = int_to_ptr.hbm [resolvable:$true] %s380
          %s382 = sshll.u32 [#allocation15], 4
          %s383 = int_to_ptr.vmem [resolvable:$true] %s382
          %385 = dma.hbm_to_vmem [thread:$0]  %s381, 16, %s383, [#allocation14]
        $region44: #{_lambda_.7} parent=11 // pred_fallthru
          _
      $region12: #{_lambda_.7} parent=5 // pred_fallthru
        _
      %p386 = scmp.lt.s32.totalorder %s23, 2
      // Predicated region
      $region45: #{_lambda_.7} parent=5 // pred_check
        %p387 = pneg %p386
      $region46: #{_lambda_.7} parent=5 // pred_check_branch
        %389 = sbr.rel (%p387) target = $region48
      $region47: #{_lambda_.7} parent=5 // pred_region
        // Predicated region
        $region49: #{_lambda_.7} parent=47 // pred_check
          %p390 = pneg %p43
        $region50: #{_lambda_.7} parent=47 // pred_check_branch
          %392 = sbr.rel (%p390) target = $region52
        $region51: #{_lambda_.7} parent=47 // pred_region
          %p393 = scmp.lt.s32.totalorder %s23, 1
          %s394 = scalar_select %p393, %s23, 1
          %s395 = smul.addr %s394, 8
          %s396 = scalar_lea.vmem %s0, %s395
        $region52: #{_lambda_.7} parent=47 // pred_fallthru
          _
        // Predicated region
        $region53: #{_lambda_.7} parent=47 // pred_check
          %p397 = pneg %p69
        $region54: #{_lambda_.7} parent=47 // pred_check_branch
          %399 = sbr.rel (%p397) target = $region56
        $region55: #{_lambda_.7} parent=47 // pred_region
          %s400 = sand.u32 %s59, 1
          %s401 = scalar_lea.sflag [#allocation3], %s400
          %s402 = sand.u32 %s59, 1
          %s403 = smul.addr %s402, 8
          %s404 = scalar_lea.vmem [#allocation2], %s403
          %406 = vsyncadd %s401, 0
          %s407 = smul.addr %s23, 8
          %s408 = scalar_lea.hbm %s1, %s407
          %s410 = sshll.u32 %s408, 4
          %s411 = int_to_ptr.hbm [resolvable:$true] %s410
          %s412 = sshll.u32 %s404, 4
          %s413 = int_to_ptr.vmem [resolvable:$true] %s412
          %415 = dma.hbm_to_vmem [thread:$0]  %s411, 128, %s413, %s401
        $region56: #{_lambda_.7} parent=47 // pred_fallthru
          _
      $region48: #{_lambda_.7} parent=5 // pred_fallthru
        _
      %p416 = scmp.le.s32.totalorder 1, %s23
      %p417 = scmp.lt.s32.totalorder %s23, 3
      %p418 = pnand %p416, %p417
      %p419 = pneg %p418
      // Predicated region
      $region57: #{_lambda_.7} parent=5 // pred_check
        _
      $region58: #{_lambda_.7} parent=5 // pred_check_branch
        %421 = sbr.rel (%p418) target = $region60
      $region59: #{_lambda_.7} parent=5 // pred_region
        %s422 = ssub.s32 %s23, 1
        %s423 = sand.u32 %s62, 1
        %s424 = scalar_lea.sflag [#allocation3], %s423
        %s425 = sand.u32 %s62, 1
        %s426 = smul.addr %s425, 8
        %s427 = scalar_lea.vmem [#allocation2], %s426
        // Predicated region
        $region61: #{_lambda_.7} parent=59 // pred_check
          %p428 = pneg %p75
        $region62: #{_lambda_.7} parent=59 // pred_check_branch
          %430 = sbr.rel (%p428) target = $region64
        $region63: #{_lambda_.7} parent=59 // pred_region
          %432 = dma.done %s424, 128
        $region64: #{_lambda_.7} parent=59 // pred_fallthru
          _
        // Predicated region
        $region65: #{_lambda_.7} parent=59 // pred_check
          %p433 = pneg %p96
        $region66: #{_lambda_.7} parent=59 // pred_check_branch
          %435 = sbr.rel (%p433) target = $region68
        $region67: #{_lambda_.7} parent=59 // pred_region
          %437 = dma.done [#allocation5], 256
        $region68: #{_lambda_.7} parent=59 // pred_fallthru
          _
        // Predicated region
        $region69: #{_lambda_.7} parent=59 // pred_check
          %p438 = pneg %p117
        $region70: #{_lambda_.7} parent=59 // pred_check_branch
          %440 = sbr.rel (%p438) target = $region72
        $region71: #{_lambda_.7} parent=59 // pred_region
          %442 = dma.done [#allocation5], 16
        $region72: #{_lambda_.7} parent=59 // pred_fallthru
          _
        // Predicated region
        $region73: #{_lambda_.7} parent=59 // pred_check
          %p443 = pneg %p138
        $region74: #{_lambda_.7} parent=59 // pred_check_branch
          %445 = sbr.rel (%p443) target = $region76
        $region75: #{_lambda_.7} parent=59 // pred_region
          %447 = dma.done [#allocation8], 256
        $region76: #{_lambda_.7} parent=59 // pred_fallthru
          _
        // Predicated region
        $region77: #{_lambda_.7} parent=59 // pred_check
          %p448 = pneg %p159
        $region78: #{_lambda_.7} parent=59 // pred_check_branch
          %450 = sbr.rel (%p448) target = $region80
        $region79: #{_lambda_.7} parent=59 // pred_region
          %452 = dma.done [#allocation8], 16
        $region80: #{_lambda_.7} parent=59 // pred_fallthru
          _
        // Predicated region
        $region81: #{_lambda_.7} parent=59 // pred_check
          %p453 = pneg %p180
        $region82: #{_lambda_.7} parent=59 // pred_check_branch
          %455 = sbr.rel (%p453) target = $region84
        $region83: #{_lambda_.7} parent=59 // pred_region
          %457 = dma.done [#allocation11], 256
        $region84: #{_lambda_.7} parent=59 // pred_fallthru
          _
        // Predicated region
        $region85: #{_lambda_.7} parent=59 // pred_check
          %p458 = pneg %p201
        $region86: #{_lambda_.7} parent=59 // pred_check_branch
          %460 = sbr.rel (%p458) target = $region88
        $region87: #{_lambda_.7} parent=59 // pred_region
          %462 = dma.done [#allocation11], 16
        $region88: #{_lambda_.7} parent=59 // pred_fallthru
          _
        // Predicated region
        $region89: #{_lambda_.7} parent=59 // pred_check
          %p463 = pneg %p222
        $region90: #{_lambda_.7} parent=59 // pred_check_branch
          %465 = sbr.rel (%p463) target = $region92
        $region91: #{_lambda_.7} parent=59 // pred_region
          %467 = dma.done [#allocation14], 16
        $region92: #{_lambda_.7} parent=59 // pred_fallthru
          _
        // Predicated region
        $region93: #{_lambda_.7} parent=59 // pred_check
          %p468 = pneg %p243
        $region94: #{_lambda_.7} parent=59 // pred_check_branch
          %470 = sbr.rel (%p468) target = $region96
        $region95: #{_lambda_.7} parent=59 // pred_region
          %472 = dma.done [#allocation14], 16
        $region96: #{_lambda_.7} parent=59 // pred_fallthru
          _
        %p473 = scmp.lt.s32.totalorder %s28, 1
        %s474 = scalar_select %p473, %s28, 1
        %s475 = smul.addr %s474, 8
        %s476 = scalar_lea.vmem %s0, %s475
        %p477 = pneg %p49
        %p478 = pneg %p46
        %s479 = sand.u32 %s62, 1
        %s480 = scalar_lea.sflag [#allocation3], %s479
        %s481 = sand.u32 %s62, 1
        %s482 = smul.addr %s481, 8
        %s483 = scalar_lea.vmem [#allocation2], %s482
        %p484 = pneg %p75
        %p485 = pneg %p72
        %p486 = pneg %p96
        %p487 = pneg %p93
        %p488 = pneg %p117
        %p489 = pneg %p114
        %p490 = pneg %p138
        %p491 = pneg %p135
        %p492 = pneg %p159
        %p493 = pneg %p156
        %p494 = pneg %p180
        %p495 = pneg %p177
        %p496 = pneg %p201
        %p497 = pneg %p198
        %p498 = pneg %p222
        %p499 = pneg %p219
        %p500 = pneg %p243
        %p501 = pneg %p240
        %p502 = pneg %p269
        %p503 = pneg %p266
        %p504 = scmp.lt.s32.totalorder %s28, 1
        %s505 = scalar_select %p504, %s28, 1
        %s506 = smul.addr %s505, 8
        %s507 = scalar_lea.vmem %s10, %s506
        %p508 = scmp.lt.s32.totalorder %s28, 1
        %s509 = scalar_select %p508, %s28, 1
        %s510 = smul.addr %s509, 8
        %s511 = scalar_lea.vmem %s0, %s510
        %p512 = scmp.lt.s32.totalorder %s28, 1
        %s513 = scalar_select %p512, %s28, 1
        %s514 = smul.addr %s513, 8
        %s515 = scalar_lea.vmem %s10, %s514
        %v517 = vld [vmem:[%s511] sm:$0xff]
        %v518 = vld [vmem:[%s427] sm:$0xff]
        %v519 = vpack.c.bf16 %v517, %v517
        %v520 = vld [vmem:[#allocation4] sm:$0xf]
        %v521 = vld [vmem:[#allocation4 + $0x4] sm:$0xf]
        %v522 = vld [vmem:[#allocation4 + $0x8] sm:$0xf]
        %v523 = vld [vmem:[#allocation4 + $0xc] sm:$0xf]
        %v524 = vld [vmem:[#allocation6] sm:$0x1]
        %v526 = vperm.slane %v524, 0
        %v532 = vunpack.c.l.b16 %v520
        %v533 = vunpack.c.l.b16 %v521
        %v534 = vunpack.c.l.b16 %v522
        %v535 = vunpack.c.l.b16 %v523
        %v536 = vpack.c.b16 %v533, %v532
        %v537 = vpack.c.b16 %v535, %v534
        %vm540 = vcmask 261120
        %v542 = vsel %vm540, %v519, 0
        %544 = vmatpush.bf16.msra.mxu0 0
        %545 = vmatpush.bf16.msra.mxu0 0
        %546 = vmatpush.bf16.msra.mxu0 0
        %547 = vmatpush.bf16.msra.mxu0 0
        %548 = vmatpush.bf16.msra.mxu0 0
        %549 = vmatpush.bf16.msra.mxu0 0
        %550 = vmatpush.bf16.msra.mxu0 %v537
        %551 = vmatpush.bf16.msra.mxu0 %v536
        %552 = vmatmul.bf16.gmra.mxu0 %v542
        %v553 = vpop.f32.mrf.mxu0
        %v554 = vadd.f32 %v526, %v553
        %v555 = vpop.f32.mrf.mxu0
        %556 = vdwg.mxu0
        %v557 = vpack.c.bf16 %v518, %v518
        %v558 = vld [vmem:[#allocation7] sm:$0xf]
        %v559 = vld [vmem:[#allocation7 + $0x4] sm:$0xf]
        %v560 = vld [vmem:[#allocation7 + $0x8] sm:$0xf]
        %v561 = vld [vmem:[#allocation7 + $0xc] sm:$0xf]
        %v562 = vld [vmem:[#allocation9] sm:$0x1]
        %v564 = vperm.slane %v562, 0
        %v570 = vunpack.c.l.b16 %v558
        %v571 = vunpack.c.l.b16 %v559
        %v572 = vunpack.c.l.b16 %v560
        %v573 = vunpack.c.l.b16 %v561
        %v574 = vpack.c.b16 %v571, %v570
        %v575 = vpack.c.b16 %v573, %v572
        %v579 = vsel %vm540, %v557, 0
        %581 = vmatpush.bf16.msra.mxu0 0
        %582 = vmatpush.bf16.msra.mxu0 0
        %583 = vmatpush.bf16.msra.mxu0 0
        %584 = vmatpush.bf16.msra.mxu0 0
        %585 = vmatpush.bf16.msra.mxu0 0
        %586 = vmatpush.bf16.msra.mxu0 0
        %587 = vmatpush.bf16.msra.mxu0 %v575
        %588 = vmatpush.bf16.msra.mxu0 %v574
        %589 = vmatmul.bf16.gmra.mxu0 %v579
        %v590 = vpop.f32.mrf.mxu0
        %v591 = vadd.f32 %v564, %v590
        %v592 = vpop.f32.mrf.mxu0
        %593 = vdwg.mxu0
        %v594 = vld [vmem:[#allocation10] sm:$0xf]
        %v595 = vld [vmem:[#allocation10 + $0x4] sm:$0xf]
        %v596 = vld [vmem:[#allocation10 + $0x8] sm:$0xf]
        %v597 = vld [vmem:[#allocation10 + $0xc] sm:$0xf]
        %v598 = vpack.c.bf16 %v554, %v554
        %v599 = vpack.c.bf16 %v591, %v591
        %vm600 = vcmask 64512
        %v602 = vsel %vm600, %v598, 0
        %v605 = vsel %vm600, %v599, 0
        %607 = vmatpush.bf16.xpose.msra.mxu0 0
        %608 = vmatpush.bf16.xpose.msra.mxu0 0
        %609 = vmatpush.bf16.xpose.msra.mxu0 0
        %610 = vmatpush.bf16.xpose.msra.mxu0 0
        %611 = vmatpush.bf16.xpose.msra.mxu0 0
        %612 = vmatpush.bf16.xpose.msra.mxu0 0
        %613 = vmatpush.bf16.xpose.msra.mxu0 0
        %614 = vmatpush.bf16.xpose.msra.mxu0 %v605
        %615 = vmatmul.bf16.gmra.mxu0 %v602
        %v616 = vpop.f32.mrf.mxu0
        %v617 = vadd.f32 0.0, %v616
        %v618 = vpop.f32.mrf.mxu0
        %619 = vdwg.mxu0
        %v620 = vsel %vm600, %v617, -inf
        %621 = vmax.xlane.f32.xlu0 %v620
        %v622 = vpop.xlane.xlu0 %621
        %v623 = vsub.f32 %v617, %v622
        %v624 = vmul.f32 %v623, 1.442695
        %v625 = vpow.pop %v624
        %v626 = vsel %vm600, %v625, 0.0
        %627 = vadd.xlane.f32.xlu0 %v626
        %v628 = vpop.xlane.xlu0 %627
        %v629 = vrcp.pop %v628
        %v630 = vmul.f32 %v625, %v629
        %v631 = vpack.c.bf16 %v630, %v630
        %633 = vrot.lane.b32.xlu0 %v599, 96
        %v634 = vpop.permute.xlu0 %633
        %v636 = vsel %vm600, %v631, 0
        %vm638 = vcmask 1043456
        %v640 = vsel %vm638, %v634, 0
        %642 = vmatpush.bf16.msra.mxu0 0
        %643 = vmatpush.bf16.msra.mxu0 0
        %644 = vmatpush.bf16.msra.mxu0 0
        %645 = vmatpush.bf16.msra.mxu0 0
        %646 = vmatpush.bf16.msra.mxu0 0
        %647 = vmatpush.bf16.msra.mxu0 0
        %648 = vmatpush.bf16.msra.mxu0 0
        %649 = vmatpush.bf16.msra.mxu0 %v640
        %650 = vmatmul.bf16.gmra.mxu0 %v636
        %v651 = vpop.f32.mrf.mxu0
        %v652 = vadd.f32 0.0, %v651
        %v653 = vpop.f32.mrf.mxu0
        %654 = vdwg.mxu0
        %v655 = vpack.c.bf16 %v652, %v652
        %657 = vrot.lane.b32.xlu0 %v598, 120
        %v658 = vpop.permute.xlu0 %657
        %659 = vrot.lane.b32.xlu0 %v599, 120
        %v660 = vpop.permute.xlu0 %659
        %v662 = vsel %vm600, %v658, 0
        %v665 = vsel %vm600, %v660, 0
        %667 = vmatpush.bf16.xpose.msra.mxu0 0
        %668 = vmatpush.bf16.xpose.msra.mxu0 0
        %669 = vmatpush.bf16.xpose.msra.mxu0 0
        %670 = vmatpush.bf16.xpose.msra.mxu0 0
        %671 = vmatpush.bf16.xpose.msra.mxu0 0
        %672 = vmatpush.bf16.xpose.msra.mxu0 0
        %673 = vmatpush.bf16.xpose.msra.mxu0 0
        %674 = vmatpush.bf16.xpose.msra.mxu0 %v665
        %675 = vmatmul.bf16.gmra.mxu0 %v662
        %v676 = vpop.f32.mrf.mxu0
        %v677 = vadd.f32 0.0, %v676
        %v678 = vpop.f32.mrf.mxu0
        %679 = vdwg.mxu0
        %v680 = vsel %vm600, %v677, -inf
        %681 = vmax.xlane.f32.xlu0 %v680
        %v682 = vpop.xlane.xlu0 %681
        %v683 = vsub.f32 %v677, %v682
        %v684 = vmul.f32 %v683, 1.442695
        %v685 = vpow.pop %v684
        %v686 = vsel %vm600, %v685, 0.0
        %687 = vadd.xlane.f32.xlu0 %v686
        %v688 = vpop.xlane.xlu0 %687
        %v689 = vrcp.pop %v688
        %v690 = vmul.f32 %v685, %v689
        %v691 = vpack.c.bf16 %v690, %v690
        %692 = vrot.lane.b32.xlu0 %v599, 88
        %v693 = vpop.permute.xlu0 %692
        %v695 = vsel %vm600, %v691, 0
        %v698 = vsel %vm638, %v693, 0
        %700 = vmatpush.bf16.msra.mxu0 0
        %701 = vmatpush.bf16.msra.mxu0 0
        %702 = vmatpush.bf16.msra.mxu0 0
        %703 = vmatpush.bf16.msra.mxu0 0
        %704 = vmatpush.bf16.msra.mxu0 0
        %705 = vmatpush.bf16.msra.mxu0 0
        %706 = vmatpush.bf16.msra.mxu0 0
        %707 = vmatpush.bf16.msra.mxu0 %v698
        %708 = vmatmul.bf16.gmra.mxu0 %v695
        %v709 = vpop.f32.mrf.mxu0
        %v710 = vadd.f32 0.0, %v709
        %v711 = vpop.f32.mrf.mxu0
        %712 = vdwg.mxu0
        %v713 = vpack.c.bf16 %v710, %v710
        %v715 = vsel %vm600, %v713, 0
        %v718 = vsel %vm638, %v595, 0
        %720 = vmatpush.bf16.msra.mxu0 0
        %721 = vmatpush.bf16.msra.mxu0 0
        %722 = vmatpush.bf16.msra.mxu0 0
        %723 = vmatpush.bf16.msra.mxu0 0
        %724 = vmatpush.bf16.msra.mxu0 0
        %725 = vmatpush.bf16.msra.mxu0 0
        %726 = vmatpush.bf16.msra.mxu0 0
        %727 = vmatpush.bf16.msra.mxu0 %v718
        %728 = vmatmul.bf16.gmra.mxu0 %v715
        %v729 = vpop.f32.mrf.mxu0
        %v730 = vadd.f32 0.0, %v729
        %v731 = vpop.f32.mrf.mxu0
        %732 = vdwg.mxu0
        %v734 = vsel %vm600, %v655, 0
        %v737 = vsel %vm638, %v594, 0
        %739 = vmatpush.bf16.msra.mxu0 0
        %740 = vmatpush.bf16.msra.mxu0 0
        %741 = vmatpush.bf16.msra.mxu0 0
        %742 = vmatpush.bf16.msra.mxu0 0
        %743 = vmatpush.bf16.msra.mxu0 0
        %744 = vmatpush.bf16.msra.mxu0 0
        %745 = vmatpush.bf16.msra.mxu0 0
        %746 = vmatpush.bf16.msra.mxu0 %v737
        %747 = vmatmul.bf16.gmra.mxu0 %v734
        %v748 = vpop.f32.mrf.mxu0
        %v749 = vadd.f32 %v730, %v748
        %v750 = vpop.f32.mrf.mxu0
        %751 = vdwg.mxu0
        %752 = vrot.lane.b32.xlu0 %v598, 112
        %v753 = vpop.permute.xlu0 %752
        %754 = vrot.lane.b32.xlu0 %v599, 112
        %v755 = vpop.permute.xlu0 %754
        %v757 = vsel %vm600, %v753, 0
        %v760 = vsel %vm600, %v755, 0
        %762 = vmatpush.bf16.xpose.msra.mxu0 0
        %763 = vmatpush.bf16.xpose.msra.mxu0 0
        %764 = vmatpush.bf16.xpose.msra.mxu0 0
        %765 = vmatpush.bf16.xpose.msra.mxu0 0
        %766 = vmatpush.bf16.xpose.msra.mxu0 0
        %767 = vmatpush.bf16.xpose.msra.mxu0 0
        %768 = vmatpush.bf16.xpose.msra.mxu0 0
        %769 = vmatpush.bf16.xpose.msra.mxu0 %v760
        %770 = vmatmul.bf16.gmra.mxu0 %v757
        %v771 = vpop.f32.mrf.mxu0
        %v772 = vadd.f32 0.0, %v771
        %v773 = vpop.f32.mrf.mxu0
        %774 = vdwg.mxu0
        %v775 = vsel %vm600, %v772, -inf
        %776 = vmax.xlane.f32.xlu0 %v775
        %v777 = vpop.xlane.xlu0 %776
        %v778 = vsub.f32 %v772, %v777
        %v779 = vmul.f32 %v778, 1.442695
        %v780 = vpow.pop %v779
        %v781 = vsel %vm600, %v780, 0.0
        %782 = vadd.xlane.f32.xlu0 %v781
        %v783 = vpop.xlane.xlu0 %782
        %v784 = vrcp.pop %v783
        %v785 = vmul.f32 %v780, %v784
        %v786 = vpack.c.bf16 %v785, %v785
        %787 = vrot.lane.b32.xlu0 %v599, 80
        %v788 = vpop.permute.xlu0 %787
        %v790 = vsel %vm600, %v786, 0
        %v793 = vsel %vm638, %v788, 0
        %795 = vmatpush.bf16.msra.mxu0 0
        %796 = vmatpush.bf16.msra.mxu0 0
        %797 = vmatpush.bf16.msra.mxu0 0
        %798 = vmatpush.bf16.msra.mxu0 0
        %799 = vmatpush.bf16.msra.mxu0 0
        %800 = vmatpush.bf16.msra.mxu0 0
        %801 = vmatpush.bf16.msra.mxu0 0
        %802 = vmatpush.bf16.msra.mxu0 %v793
        %803 = vmatmul.bf16.gmra.mxu0 %v790
        %v804 = vpop.f32.mrf.mxu0
        %v805 = vadd.f32 0.0, %v804
        %v806 = vpop.f32.mrf.mxu0
        %807 = vdwg.mxu0
        %v808 = vpack.c.bf16 %v805, %v805
        %v810 = vsel %vm600, %v808, 0
        %v813 = vsel %vm638, %v596, 0
        %815 = vmatpush.bf16.msra.mxu0 0
        %816 = vmatpush.bf16.msra.mxu0 0
        %817 = vmatpush.bf16.msra.mxu0 0
        %818 = vmatpush.bf16.msra.mxu0 0
        %819 = vmatpush.bf16.msra.mxu0 0
        %820 = vmatpush.bf16.msra.mxu0 0
        %821 = vmatpush.bf16.msra.mxu0 0
        %822 = vmatpush.bf16.msra.mxu0 %v813
        %823 = vmatmul.bf16.gmra.mxu0 %v810
        %v824 = vpop.f32.mrf.mxu0
        %v825 = vadd.f32 0.0, %v824
        %v826 = vpop.f32.mrf.mxu0
        %827 = vdwg.mxu0
        %v828 = vadd.f32 %v749, %v825
        %829 = vrot.lane.b32.xlu0 %v598, 104
        %v830 = vpop.permute.xlu0 %829
        %831 = vrot.lane.b32.xlu0 %v599, 104
        %v832 = vpop.permute.xlu0 %831
        %v834 = vsel %vm600, %v830, 0
        %v837 = vsel %vm600, %v832, 0
        %839 = vmatpush.bf16.xpose.msra.mxu0 0
        %840 = vmatpush.bf16.xpose.msra.mxu0 0
        %841 = vmatpush.bf16.xpose.msra.mxu0 0
        %842 = vmatpush.bf16.xpose.msra.mxu0 0
        %843 = vmatpush.bf16.xpose.msra.mxu0 0
        %844 = vmatpush.bf16.xpose.msra.mxu0 0
        %845 = vmatpush.bf16.xpose.msra.mxu0 0
        %846 = vmatpush.bf16.xpose.msra.mxu0 %v837
        %847 = vmatmul.bf16.gmra.mxu0 %v834
        %v848 = vpop.f32.mrf.mxu0
        %v849 = vadd.f32 0.0, %v848
        %v850 = vpop.f32.mrf.mxu0
        %851 = vdwg.mxu0
        %v852 = vsel %vm600, %v849, -inf
        %853 = vmax.xlane.f32.xlu0 %v852
        %v854 = vpop.xlane.xlu0 %853
        %v855 = vsub.f32 %v849, %v854
        %v856 = vmul.f32 %v855, 1.442695
        %v857 = vpow.pop %v856
        %v858 = vsel %vm600, %v857, 0.0
        %859 = vadd.xlane.f32.xlu0 %v858
        %v860 = vpop.xlane.xlu0 %859
        %v861 = vrcp.pop %v860
        %v862 = vmul.f32 %v857, %v861
        %v863 = vpack.c.bf16 %v862, %v862
        %864 = vrot.lane.b32.xlu0 %v599, 72
        %v865 = vpop.permute.xlu0 %864
        %v867 = vsel %vm600, %v863, 0
        %v870 = vsel %vm638, %v865, 0
        %872 = vmatpush.bf16.msra.mxu0 0
        %873 = vmatpush.bf16.msra.mxu0 0
        %874 = vmatpush.bf16.msra.mxu0 0
        %875 = vmatpush.bf16.msra.mxu0 0
        %876 = vmatpush.bf16.msra.mxu0 0
        %877 = vmatpush.bf16.msra.mxu0 0
        %878 = vmatpush.bf16.msra.mxu0 0
        %879 = vmatpush.bf16.msra.mxu0 %v870
        %880 = vmatmul.bf16.gmra.mxu0 %v867
        %v881 = vpop.f32.mrf.mxu0
        %v882 = vadd.f32 0.0, %v881
        %v883 = vpop.f32.mrf.mxu0
        %884 = vdwg.mxu0
        %v885 = vpack.c.bf16 %v882, %v882
        %v887 = vsel %vm600, %v885, 0
        %v890 = vsel %vm638, %v597, 0
        %892 = vmatpush.bf16.msra.mxu0 0
        %893 = vmatpush.bf16.msra.mxu0 0
        %894 = vmatpush.bf16.msra.mxu0 0
        %895 = vmatpush.bf16.msra.mxu0 0
        %896 = vmatpush.bf16.msra.mxu0 0
        %897 = vmatpush.bf16.msra.mxu0 0
        %898 = vmatpush.bf16.msra.mxu0 0
        %899 = vmatpush.bf16.msra.mxu0 %v890
        %900 = vmatmul.bf16.gmra.mxu0 %v887
        %v901 = vpop.f32.mrf.mxu0
        %v902 = vadd.f32 0.0, %v901
        %v903 = vpop.f32.mrf.mxu0
        %904 = vdwg.mxu0
        %v905 = vadd.f32 %v828, %v902
        %v906 = vld [vmem:[#allocation12] sm:$0x1]
        %v908 = vperm.slane %v906, 0
        %v910 = vadd.f32 %v905, %v908
        %v911 = vld [vmem:[#allocation13] sm:$0x1]
        %v912 = vld [vmem:[#allocation15] sm:$0x1]
        %v913 = vadd.f32 %v517, %v910
        %v914 = vsel %vm540, %v913, 0.0
        %915 = vadd.xlane.f32.xlu0 %v914
        %v916 = vpop.xlane.xlu0 %915
        %v917 = vrcp.pop 32.0
        %v918 = vmul.f32 32.0, %v917
        %v919 = vsub.f32 1.0, %v918
        %v920 = vmul.f32 %v917, %v919
        %v921 = vadd.f32 %v917, %v920
        %vm922 = vweird.f32 %v917
        %v923 = vsel %vm922, %v917, %v921
        %v924 = vmul.f32 %v916, %v923
        %v925 = vsub.f32 %v913, %v924
        %v926 = vmul.f32 %v925, %v925
        %v927 = vsel %vm540, %v926, 0.0
        %928 = vadd.xlane.f32.xlu0 %v927
        %v929 = vpop.xlane.xlu0 %928
        %v930 = vmul.f32 %v929, %v923
        %v931 = vadd.f32 %v930, 1e-05
        %v932 = vrsqrt.pop %v931
        %v933 = vmul.f32 %v932, %v931
        %v934 = vmul.f32 %v933, %v932
        %v935 = vmul.f32 0.5, %v934
        %v936 = vsub.f32 1.5, %v935
        %v937 = vmul.f32 %v932, %v936
        %vm938 = vweird.f32 %v931
        %vm939 = vweird.f32 %v932
        %vm940 = vmor %vm938, %vm939
        %v941 = vsel %vm940, %v932, %v937
        %v942 = vmul.f32 %v925, %v941
        %v944 = vperm.slane %v911, 0
        %v946 = vmul.f32 %v942, %v944
        %v948 = vperm.slane %v912, 0
        %v950 = vadd.f32 %v946, %v948
        %951 = vst.msk [vmem:[%s515] sm:$0xff] %vm540, %v950
        %p952 = scmp.lt.s32.totalorder %s28, 1
        %s953 = scalar_select %p952, %s28, 1
        %s954 = smul.addr %s953, 8
        %s955 = scalar_lea.vmem %s10, %s954
        // Predicated region
        $region97: #{_lambda_.7} parent=59 // pred_check
          %p956 = pneg %p266
        $region98: #{_lambda_.7} parent=59 // pred_check_branch
          %958 = sbr.rel (%p956) target = $region100
        $region99: #{_lambda_.7} parent=59 // pred_region
          _
        $region100: #{_lambda_.7} parent=59 // pred_fallthru
          _
      $region60: #{_lambda_.7} parent=5 // pred_fallthru
        _
      %p959 = scmp.le.s32.totalorder 2, %s23
      // Predicated region
      $region101: #{_lambda_.7} parent=5 // pred_check
        %p960 = pneg %p959
      $region102: #{_lambda_.7} parent=5 // pred_check_branch
        %962 = sbr.rel (%p960) target = $region104
      $region103: #{_lambda_.7} parent=5 // pred_region
        %s963 = ssub.s32 %s23, 2
        // Predicated region
        $region105: #{_lambda_.7} parent=103 // pred_check
          %p964 = pneg %p272
        $region106: #{_lambda_.7} parent=103 // pred_check_branch
          %966 = sbr.rel (%p964) target = $region108
        $region107: #{_lambda_.7} parent=103 // pred_region
          %p967 = scmp.lt.s32.totalorder %s29, 1
          %s968 = scalar_select %p967, %s29, 1
          %s969 = smul.addr %s968, 8
          %s970 = scalar_lea.vmem %s10, %s969
        $region108: #{_lambda_.7} parent=103 // pred_fallthru
          _
      $region104: #{_lambda_.7} parent=5 // pred_fallthru
        _
    $region6: #{_lambda_.7} parent=1 // loop_footer
      %s27 = sadd.s32 1, %s23
    $region7: #{_lambda_.7} parent=1 // loop_footer_branch
      %22 = sbr.rel target = $region3
    $region8: #{_lambda_.7} parent=1 // loop_exit
      _
    %971 = vsyncpa [#allocation3], 1
    %s972 = scalar_lea.sflag [#allocation3], 1
    %973 = vsyncpa %s972, 1
    %974 = vsyncpa [#allocation5], 1
    %975 = vsyncpa [#allocation8], 1
    %976 = vsyncpa [#allocation11], 1
    %977 = vsyncpa [#allocation14], 1

// kernel: _lambda_.6
$region0: #{_lambda_.6}
  #allocation0 [shape = 'u32[]', space=smem, size = 0x4, offset = 0x4, fixed_abs, tag = 'smem constant byte address 0x4 - core index']
  #allocation1 [shape = 'u32[72,128]{1,0:T(1,128)}', space=vmem, size = 0x9000, scoped, tag = 'internal scratch']
  %s0 = inlined_call_operand.hbm [shape: f32[2,8,32], index: 0, kind: input, shape index: {}]
  %s1 = inlined_call_operand.hbm [shape: bf16[32,32], index: 1, kind: input, shape index: {}]
  %s2 = inlined_call_operand.hbm [shape: f32[1,32], index: 2, kind: input, shape index: {}]
  %s3 = inlined_call_operand.hbm [shape: bf16[32,64], index: 3, kind: input, shape index: {}]
  %s4 = inlined_call_operand.hbm [shape: f32[1,64], index: 4, kind: input, shape index: {}]
  %s5 = inlined_call_operand.hbm [shape: bf16[32,32], index: 5, kind: input, shape index: {}]
  %s6 = inlined_call_operand.hbm [shape: f32[1,32], index: 6, kind: input, shape index: {}]
  %s7 = inlined_call_operand.hbm [shape: f32[1,32], index: 7, kind: input, shape index: {}]
  %s8 = inlined_call_operand.hbm [shape: f32[1,32], index: 8, kind: input, shape index: {}]
  %s9 = inlined_call_operand.hbm [shape: bf16[32,32], index: 9, kind: input, shape index: {}]
  %s10 = inlined_call_operand.hbm [shape: f32[1,32], index: 10, kind: input, shape index: {}]
  %s11 = inlined_call_operand.hbm [shape: bf16[32,32], index: 11, kind: input, shape index: {}]
  %s12 = inlined_call_operand.hbm [shape: f32[1,32], index: 12, kind: input, shape index: {}]
  %s13 = inlined_call_operand.hbm [shape: f32[1,32], index: 13, kind: input, shape index: {}]
  %s14 = inlined_call_operand.hbm [shape: f32[1,32], index: 14, kind: input, shape index: {}]
  %s15 = inlined_call_operand.vmem [shape: f32[2,8,32], index: 15, kind: output, shape index: {}]
  %s16 = sld [smem:[#allocation0]]
  $region153: #{_lambda_.6} parent=0
    _
  %s18 = ssub.s32 1, %s16
  %s19 = scalar_select 0, %s18, %s16
  $region1: #{_lambda_.6} parent=0
    #allocation2 [shape = 'u8[8192]{0}', space=vmem, size = 0x2000, scoped, tag = 'input window, operand 0']
    #allocation3 [shape = 's32[2]{0}', space=sflag, size = 0x8, scoped, tag = 'scoped memory for _lambda_.6']
    #allocation4 [shape = 'u8[8192]{0}', space=vmem, size = 0x2000, scoped, tag = 'input window, operand 1, single buffered']
    #allocation5 [shape = 's32[1]{0}', space=sflag, size = 0x4, scoped, tag = 'scoped memory for _lambda_.6']
    #allocation6 [shape = 'u8[512]{0}', space=vmem, size = 0x400, scoped, tag = 'input window, operand 2, single buffered']
    #allocation7 [shape = 'u8[8192]{0}', space=vmem, size = 0x2000, scoped, tag = 'input window, operand 3, single buffered']
    #allocation8 [shape = 's32[1]{0}', space=sflag, size = 0x4, scoped, tag = 'scoped memory for _lambda_.6']
    #allocation9 [shape = 'u8[512]{0}', space=vmem, size = 0x400, scoped, tag = 'input window, operand 4, single buffered']
    #allocation10 [shape = 'u8[8192]{0}', space=vmem, size = 0x2000, scoped, tag = 'input window, operand 5, single buffered']
    #allocation11 [shape = 's32[1]{0}', space=sflag, size = 0x4, scoped, tag = 'scoped memory for _lambda_.6']
    #allocation12 [shape = 'u8[512]{0}', space=vmem, size = 0x400, scoped, tag = 'input window, operand 6, single buffered']
    #allocation13 [shape = 'u8[512]{0}', space=vmem, size = 0x400, scoped, tag = 'input window, operand 7, single buffered']
    #allocation14 [shape = 's32[1]{0}', space=sflag, size = 0x4, scoped, tag = 'scoped memory for _lambda_.6']
    #allocation15 [shape = 'u8[512]{0}', space=vmem, size = 0x400, scoped, tag = 'input window, operand 8, single buffered']
    #allocation16 [shape = 'u8[8192]{0}', space=vmem, size = 0x2000, scoped, tag = 'input window, operand 9, single buffered']
    #allocation17 [shape = 's32[1]{0}', space=sflag, size = 0x4, scoped, tag = 'scoped memory for _lambda_.6']
    #allocation18 [shape = 'u8[512]{0}', space=vmem, size = 0x400, scoped, tag = 'input window, operand 10, single buffered']
    #allocation19 [shape = 'u8[8192]{0}', space=vmem, size = 0x2000, scoped, tag = 'input window, operand 11, single buffered']
    #allocation20 [shape = 's32[1]{0}', space=sflag, size = 0x4, scoped, tag = 'scoped memory for _lambda_.6']
    #allocation21 [shape = 'u8[512]{0}', space=vmem, size = 0x400, scoped, tag = 'input window, operand 12, single buffered']
    #allocation22 [shape = 'u8[512]{0}', space=vmem, size = 0x400, scoped, tag = 'input window, operand 13, single buffered']
    #allocation23 [shape = 's32[1]{0}', space=sflag, size = 0x4, scoped, tag = 'scoped memory for _lambda_.6']
    #allocation24 [shape = 'u8[512]{0}', space=vmem, size = 0x400, scoped, tag = 'input window, operand 14, single buffered']
    %20 = vsyncpa [#allocation3], 0
    %s21 = scalar_lea.sflag [#allocation3], 1
    %22 = vsyncpa %s21, 0
    %23 = vsyncpa [#allocation5], 0
    %24 = vsyncpa [#allocation8], 0
    %25 = vsyncpa [#allocation11], 0
    %26 = vsyncpa [#allocation14], 0
    %27 = vsyncpa [#allocation17], 0
    %28 = vsyncpa [#allocation20], 0
    %29 = vsyncpa [#allocation23], 0
    loop: start=0, step=1, limit=4
    $region2: #{_lambda_.6} parent=1 // loop_pre_header
      _
    $region3: #{_lambda_.6} parent=1 // loop_header
      %s31 = sphi 0, %s35
      %p32 = scmp.ge.s32.totalorder %s31, 4
      %s41 = sphi 0, %s43
      %s44 = sphi 0, %s41
      %s45 = sphi 0, %s44
      %s61 = sphi 0, %s45
      %s65 = sphi 0, %s65
      %s67 = sphi 0, %s65
      %s68 = sphi 0, %s67
      %s82 = sphi 0, %s68
      %s86 = sphi 0, %s86
      %s88 = sphi 0, %s86
      %s89 = sphi 0, %s88
      %s103 = sphi 0, %s89
      %s107 = sphi 0, %s107
      %s109 = sphi 0, %s107
      %s110 = sphi 0, %s109
      %s124 = sphi 0, %s110
      %s128 = sphi 0, %s128
      %s130 = sphi 0, %s128
      %s131 = sphi 0, %s130
      %s145 = sphi 0, %s131
      %s149 = sphi 0, %s149
      %s151 = sphi 0, %s149
      %s152 = sphi 0, %s151
      %s166 = sphi 0, %s152
      %s170 = sphi 0, %s170
      %s172 = sphi 0, %s170
      %s173 = sphi 0, %s172
      %s187 = sphi 0, %s173
      %s191 = sphi 0, %s191
      %s193 = sphi 0, %s191
      %s194 = sphi 0, %s193
      %s208 = sphi 0, %s194
      %s212 = sphi 0, %s212
      %s214 = sphi 0, %s212
      %s215 = sphi 0, %s214
      %s229 = sphi 0, %s215
      %s233 = sphi 0, %s233
      %s235 = sphi 0, %s233
      %s236 = sphi 0, %s235
      %s250 = sphi 0, %s236
      %s254 = sphi 0, %s254
      %s256 = sphi 0, %s254
      %s257 = sphi 0, %s256
      %s271 = sphi 0, %s257
      %s275 = sphi 0, %s275
      %s277 = sphi 0, %s275
      %s278 = sphi 0, %s277
      %s292 = sphi 0, %s278
      %s296 = sphi 0, %s296
      %s298 = sphi 0, %s296
      %s299 = sphi 0, %s298
      %s313 = sphi 0, %s299
      %s317 = sphi 0, %s317
      %s319 = sphi 0, %s317
      %s320 = sphi 0, %s319
      %s334 = sphi 0, %s320
      %s338 = sphi 0, %s338
      %s340 = sphi 0, %s338
      %s341 = sphi 0, %s340
      %s355 = sphi 0, %s341
      %s361 = sphi 0, %s363
      %s364 = sphi 0, %s361
      %s365 = sphi 0, %s364
      %s381 = sphi 0, %s365
    $region4: #{_lambda_.6} parent=1 // loop_header_branch
      %34 = sbr.rel (%p32) target = $region8
    $region5: #{_lambda_.6} parent=1 // loop_body
      %s36 = ssub.s32 %s31, 1
      %s37 = ssub.s32 %s31, 2
      %s38 = sadd.s32 %s31, 1
      %s39 = ssub.s32 %s31, %s38
      %p40 = scmp.eq.s32.totalorder %s39, 0
      %s42 = sadd.s32 %s41, 1
      %s43 = scalar_select %p40, %s41, %s42
      %p46 = pneg %p40
      %p47 = scmp.eq.s32.totalorder %s31, 1
      %p48 = por %p46, %p47
      %p49 = scmp.ne.s32.totalorder %s41, %s44
      %p50 = scmp.eq.s32.totalorder %s31, 0
      %p51 = por %p49, %p50
      %p52 = scmp.ne.s32.totalorder %s41, %s44
      %p53 = scmp.eq.s32.totalorder %s36, 1
      %p54 = por %p52, %p53
      %p55 = scmp.ne.s32.totalorder %s44, %s45
      %p56 = scmp.eq.s32.totalorder %s36, 0
      %p57 = por %p55, %p56
      %p58 = scmp.ne.s32.totalorder %s44, %s45
      %p59 = scmp.eq.s32.totalorder %s37, 1
      %p60 = por %p58, %p59
      %p62 = scmp.ne.s32.totalorder %s45, %s61
      %p63 = scmp.eq.s32.totalorder %s37, 0
      %p64 = por %p62, %p63
      %s66 = sadd.s32 %s65, 1
      %p69 = scmp.eq.s32.totalorder %s31, 1
      %p70 = scmp.ne.s32.totalorder %s65, %s67
      %p71 = scmp.eq.s32.totalorder %s31, 0
      %p72 = por %p70, %p71
      %p73 = scmp.ne.s32.totalorder %s65, %s67
      %p74 = scmp.eq.s32.totalorder %s36, 1
      %p75 = por %p73, %p74
      %p76 = scmp.ne.s32.totalorder %s67, %s68
      %p77 = scmp.eq.s32.totalorder %s36, 0
      %p78 = por %p76, %p77
      %p79 = scmp.ne.s32.totalorder %s67, %s68
      %p80 = scmp.eq.s32.totalorder %s37, 1
      %p81 = por %p79, %p80
      %p83 = scmp.ne.s32.totalorder %s68, %s82
      %p84 = scmp.eq.s32.totalorder %s37, 0
      %p85 = por %p83, %p84
      %s87 = sadd.s32 %s86, 1
      %p90 = scmp.eq.s32.totalorder %s31, 1
      %p91 = scmp.ne.s32.totalorder %s86, %s88
      %p92 = scmp.eq.s32.totalorder %s31, 0
      %p93 = por %p91, %p92
      %p94 = scmp.ne.s32.totalorder %s86, %s88
      %p95 = scmp.eq.s32.totalorder %s36, 1
      %p96 = por %p94, %p95
      %p97 = scmp.ne.s32.totalorder %s88, %s89
      %p98 = scmp.eq.s32.totalorder %s36, 0
      %p99 = por %p97, %p98
      %p100 = scmp.ne.s32.totalorder %s88, %s89
      %p101 = scmp.eq.s32.totalorder %s37, 1
      %p102 = por %p100, %p101
      %p104 = scmp.ne.s32.totalorder %s89, %s103
      %p105 = scmp.eq.s32.totalorder %s37, 0
      %p106 = por %p104, %p105
      %s108 = sadd.s32 %s107, 1
      %p111 = scmp.eq.s32.totalorder %s31, 1
      %p112 = scmp.ne.s32.totalorder %s107, %s109
      %p113 = scmp.eq.s32.totalorder %s31, 0
      %p114 = por %p112, %p113
      %p115 = scmp.ne.s32.totalorder %s107, %s109
      %p116 = scmp.eq.s32.totalorder %s36, 1
      %p117 = por %p115, %p116
      %p118 = scmp.ne.s32.totalorder %s109, %s110
      %p119 = scmp.eq.s32.totalorder %s36, 0
      %p120 = por %p118, %p119
      %p121 = scmp.ne.s32.totalorder %s109, %s110
      %p122 = scmp.eq.s32.totalorder %s37, 1
      %p123 = por %p121, %p122
      %p125 = scmp.ne.s32.totalorder %s110, %s124
      %p126 = scmp.eq.s32.totalorder %s37, 0
      %p127 = por %p125, %p126
      %s129 = sadd.s32 %s128, 1
      %p132 = scmp.eq.s32.totalorder %s31, 1
      %p133 = scmp.ne.s32.totalorder %s128, %s130
      %p134 = scmp.eq.s32.totalorder %s31, 0
      %p135 = por %p133, %p134
      %p136 = scmp.ne.s32.totalorder %s128, %s130
      %p137 = scmp.eq.s32.totalorder %s36, 1
      %p138 = por %p136, %p137
      %p139 = scmp.ne.s32.totalorder %s130, %s131
      %p140 = scmp.eq.s32.totalorder %s36, 0
      %p141 = por %p139, %p140
      %p142 = scmp.ne.s32.totalorder %s130, %s131
      %p143 = scmp.eq.s32.totalorder %s37, 1
      %p144 = por %p142, %p143
      %p146 = scmp.ne.s32.totalorder %s131, %s145
      %p147 = scmp.eq.s32.totalorder %s37, 0
      %p148 = por %p146, %p147
      %s150 = sadd.s32 %s149, 1
      %p153 = scmp.eq.s32.totalorder %s31, 1
      %p154 = scmp.ne.s32.totalorder %s149, %s151
      %p155 = scmp.eq.s32.totalorder %s31, 0
      %p156 = por %p154, %p155
      %p157 = scmp.ne.s32.totalorder %s149, %s151
      %p158 = scmp.eq.s32.totalorder %s36, 1
      %p159 = por %p157, %p158
      %p160 = scmp.ne.s32.totalorder %s151, %s152
      %p161 = scmp.eq.s32.totalorder %s36, 0
      %p162 = por %p160, %p161
      %p163 = scmp.ne.s32.totalorder %s151, %s152
      %p164 = scmp.eq.s32.totalorder %s37, 1
      %p165 = por %p163, %p164
      %p167 = scmp.ne.s32.totalorder %s152, %s166
      %p168 = scmp.eq.s32.totalorder %s37, 0
      %p169 = por %p167, %p168
      %s171 = sadd.s32 %s170, 1
      %p174 = scmp.eq.s32.totalorder %s31, 1
      %p175 = scmp.ne.s32.totalorder %s170, %s172
      %p176 = scmp.eq.s32.totalorder %s31, 0
      %p177 = por %p175, %p176
      %p178 = scmp.ne.s32.totalorder %s170, %s172
      %p179 = scmp.eq.s32.totalorder %s36, 1
      %p180 = por %p178, %p179
      %p181 = scmp.ne.s32.totalorder %s172, %s173
      %p182 = scmp.eq.s32.totalorder %s36, 0
      %p183 = por %p181, %p182
      %p184 = scmp.ne.s32.totalorder %s172, %s173
      %p185 = scmp.eq.s32.totalorder %s37, 1
      %p186 = por %p184, %p185
      %p188 = scmp.ne.s32.totalorder %s173, %s187
      %p189 = scmp.eq.s32.totalorder %s37, 0
      %p190 = por %p188, %p189
      %s192 = sadd.s32 %s191, 1
      %p195 = scmp.eq.s32.totalorder %s31, 1
      %p196 = scmp.ne.s32.totalorder %s191, %s193
      %p197 = scmp.eq.s32.totalorder %s31, 0
      %p198 = por %p196, %p197
      %p199 = scmp.ne.s32.totalorder %s191, %s193
      %p200 = scmp.eq.s32.totalorder %s36, 1
      %p201 = por %p199, %p200
      %p202 = scmp.ne.s32.totalorder %s193, %s194
      %p203 = scmp.eq.s32.totalorder %s36, 0
      %p204 = por %p202, %p203
      %p205 = scmp.ne.s32.totalorder %s193, %s194
      %p206 = scmp.eq.s32.totalorder %s37, 1
      %p207 = por %p205, %p206
      %p209 = scmp.ne.s32.totalorder %s194, %s208
      %p210 = scmp.eq.s32.totalorder %s37, 0
      %p211 = por %p209, %p210
      %s213 = sadd.s32 %s212, 1
      %p216 = scmp.eq.s32.totalorder %s31, 1
      %p217 = scmp.ne.s32.totalorder %s212, %s214
      %p218 = scmp.eq.s32.totalorder %s31, 0
      %p219 = por %p217, %p218
      %p220 = scmp.ne.s32.totalorder %s212, %s214
      %p221 = scmp.eq.s32.totalorder %s36, 1
      %p222 = por %p220, %p221
      %p223 = scmp.ne.s32.totalorder %s214, %s215
      %p224 = scmp.eq.s32.totalorder %s36, 0
      %p225 = por %p223, %p224
      %p226 = scmp.ne.s32.totalorder %s214, %s215
      %p227 = scmp.eq.s32.totalorder %s37, 1
      %p228 = por %p226, %p227
      %p230 = scmp.ne.s32.totalorder %s215, %s229
      %p231 = scmp.eq.s32.totalorder %s37, 0
      %p232 = por %p230, %p231
      %s234 = sadd.s32 %s233, 1
      %p237 = scmp.eq.s32.totalorder %s31, 1
      %p238 = scmp.ne.s32.totalorder %s233, %s235
      %p239 = scmp.eq.s32.totalorder %s31, 0
      %p240 = por %p238, %p239
      %p241 = scmp.ne.s32.totalorder %s233, %s235
      %p242 = scmp.eq.s32.totalorder %s36, 1
      %p243 = por %p241, %p242
      %p244 = scmp.ne.s32.totalorder %s235, %s236
      %p245 = scmp.eq.s32.totalorder %s36, 0
      %p246 = por %p244, %p245
      %p247 = scmp.ne.s32.totalorder %s235, %s236
      %p248 = scmp.eq.s32.totalorder %s37, 1
      %p249 = por %p247, %p248
      %p251 = scmp.ne.s32.totalorder %s236, %s250
      %p252 = scmp.eq.s32.totalorder %s37, 0
      %p253 = por %p251, %p252
      %s255 = sadd.s32 %s254, 1
      %p258 = scmp.eq.s32.totalorder %s31, 1
      %p259 = scmp.ne.s32.totalorder %s254, %s256
      %p260 = scmp.eq.s32.totalorder %s31, 0
      %p261 = por %p259, %p260
      %p262 = scmp.ne.s32.totalorder %s254, %s256
      %p263 = scmp.eq.s32.totalorder %s36, 1
      %p264 = por %p262, %p263
      %p265 = scmp.ne.s32.totalorder %s256, %s257
      %p266 = scmp.eq.s32.totalorder %s36, 0
      %p267 = por %p265, %p266
      %p268 = scmp.ne.s32.totalorder %s256, %s257
      %p269 = scmp.eq.s32.totalorder %s37, 1
      %p270 = por %p268, %p269
      %p272 = scmp.ne.s32.totalorder %s257, %s271
      %p273 = scmp.eq.s32.totalorder %s37, 0
      %p274 = por %p272, %p273
      %s276 = sadd.s32 %s275, 1
      %p279 = scmp.eq.s32.totalorder %s31, 1
      %p280 = scmp.ne.s32.totalorder %s275, %s277
      %p281 = scmp.eq.s32.totalorder %s31, 0
      %p282 = por %p280, %p281
      %p283 = scmp.ne.s32.totalorder %s275, %s277
      %p284 = scmp.eq.s32.totalorder %s36, 1
      %p285 = por %p283, %p284
      %p286 = scmp.ne.s32.totalorder %s277, %s278
      %p287 = scmp.eq.s32.totalorder %s36, 0
      %p288 = por %p286, %p287
      %p289 = scmp.ne.s32.totalorder %s277, %s278
      %p290 = scmp.eq.s32.totalorder %s37, 1
      %p291 = por %p289, %p290
      %p293 = scmp.ne.s32.totalorder %s278, %s292
      %p294 = scmp.eq.s32.totalorder %s37, 0
      %p295 = por %p293, %p294
      %s297 = sadd.s32 %s296, 1
      %p300 = scmp.eq.s32.totalorder %s31, 1
      %p301 = scmp.ne.s32.totalorder %s296, %s298
      %p302 = scmp.eq.s32.totalorder %s31, 0
      %p303 = por %p301, %p302
      %p304 = scmp.ne.s32.totalorder %s296, %s298
      %p305 = scmp.eq.s32.totalorder %s36, 1
      %p306 = por %p304, %p305
      %p307 = scmp.ne.s32.totalorder %s298, %s299
      %p308 = scmp.eq.s32.totalorder %s36, 0
      %p309 = por %p307, %p308
      %p310 = scmp.ne.s32.totalorder %s298, %s299
      %p311 = scmp.eq.s32.totalorder %s37, 1
      %p312 = por %p310, %p311
      %p314 = scmp.ne.s32.totalorder %s299, %s313
      %p315 = scmp.eq.s32.totalorder %s37, 0
      %p316 = por %p314, %p315
      %s318 = sadd.s32 %s317, 1
      %p321 = scmp.eq.s32.totalorder %s31, 1
      %p322 = scmp.ne.s32.totalorder %s317, %s319
      %p323 = scmp.eq.s32.totalorder %s31, 0
      %p324 = por %p322, %p323
      %p325 = scmp.ne.s32.totalorder %s317, %s319
      %p326 = scmp.eq.s32.totalorder %s36, 1
      %p327 = por %p325, %p326
      %p328 = scmp.ne.s32.totalorder %s319, %s320
      %p329 = scmp.eq.s32.totalorder %s36, 0
      %p330 = por %p328, %p329
      %p331 = scmp.ne.s32.totalorder %s319, %s320
      %p332 = scmp.eq.s32.totalorder %s37, 1
      %p333 = por %p331, %p332
      %p335 = scmp.ne.s32.totalorder %s320, %s334
      %p336 = scmp.eq.s32.totalorder %s37, 0
      %p337 = por %p335, %p336
      %s339 = sadd.s32 %s338, 1
      %p342 = scmp.eq.s32.totalorder %s31, 1
      %p343 = scmp.ne.s32.totalorder %s338, %s340
      %p344 = scmp.eq.s32.totalorder %s31, 0
      %p345 = por %p343, %p344
      %p346 = scmp.ne.s32.totalorder %s338, %s340
      %p347 = scmp.eq.s32.totalorder %s36, 1
      %p348 = por %p346, %p347
      %p349 = scmp.ne.s32.totalorder %s340, %s341
      %p350 = scmp.eq.s32.totalorder %s36, 0
      %p351 = por %p349, %p350
      %p352 = scmp.ne.s32.totalorder %s340, %s341
      %p353 = scmp.eq.s32.totalorder %s37, 1
      %p354 = por %p352, %p353
      %p356 = scmp.ne.s32.totalorder %s341, %s355
      %p357 = scmp.eq.s32.totalorder %s37, 0
      %p358 = por %p356, %p357
      %s359 = ssub.s32 %s31, %s38
      %p360 = scmp.eq.s32.totalorder %s359, 0
      %s362 = sadd.s32 %s361, 1
      %s363 = scalar_select %p360, %s361, %s362
      %p366 = pneg %p360
      %p367 = scmp.eq.s32.totalorder %s31, 1
      %p368 = por %p366, %p367
      %p369 = scmp.ne.s32.totalorder %s361, %s364
      %p370 = scmp.eq.s32.totalorder %s31, 0
      %p371 = por %p369, %p370
      %p372 = scmp.ne.s32.totalorder %s361, %s364
      %p373 = scmp.eq.s32.totalorder %s36, 1
      %p374 = por %p372, %p373
      %p375 = scmp.ne.s32.totalorder %s364, %s365
      %p376 = scmp.eq.s32.totalorder %s36, 0
      %p377 = por %p375, %p376
      %p378 = scmp.ne.s32.totalorder %s364, %s365
      %p379 = scmp.eq.s32.totalorder %s37, 1
      %p380 = por %p378, %p379
      %p382 = scmp.ne.s32.totalorder %s365, %s381
      %p383 = scmp.eq.s32.totalorder %s37, 0
      %p384 = por %p382, %p383
      %p385 = scmp.le.s32.totalorder 1, %s31
      %p386 = scmp.lt.s32.totalorder %s31, 3
      %p387 = pnand %p385, %p386
      %p388 = pneg %p387
      // Predicated region
      $region9: #{_lambda_.6} parent=5 // pred_check
        _
      $region10: #{_lambda_.6} parent=5 // pred_check_branch
        %390 = sbr.rel (%p387) target = $region12
      $region11: #{_lambda_.6} parent=5 // pred_region
        %s391 = ssub.s32 %s31, 1
        // Predicated region
        $region13: #{_lambda_.6} parent=11 // pred_check
          %p392 = pneg %p78
        $region14: #{_lambda_.6} parent=11 // pred_check_branch
          %394 = sbr.rel (%p392) target = $region16
        $region15: #{_lambda_.6} parent=11 // pred_region
          %396 = vsyncadd [#allocation5], 0
          %s397 = sshll.u32 %s1, 4
          %s398 = int_to_ptr.hbm [resolvable:$true] %s397
          %s399 = sshll.u32 [#allocation4], 4
          %s400 = int_to_ptr.vmem [resolvable:$true] %s399
          %405 = dma.hbm_to_vmem [thread:$0]  %s398, 256, %s400, [#allocation5], 64, 64, 4
        $region16: #{_lambda_.6} parent=11 // pred_fallthru
          _
        // Predicated region
        $region17: #{_lambda_.6} parent=11 // pred_check
          %p406 = pneg %p99
        $region18: #{_lambda_.6} parent=11 // pred_check_branch
          %408 = sbr.rel (%p406) target = $region20
        $region19: #{_lambda_.6} parent=11 // pred_region
          %410 = vsyncadd [#allocation5], 0
          %s412 = sshll.u32 %s2, 4
          %s413 = int_to_ptr.hbm [resolvable:$true] %s412
          %s414 = sshll.u32 [#allocation6], 4
          %s415 = int_to_ptr.vmem [resolvable:$true] %s414
          %417 = dma.hbm_to_vmem [thread:$0]  %s413, 16, %s415, [#allocation5]
        $region20: #{_lambda_.6} parent=11 // pred_fallthru
          _
        // Predicated region
        $region21: #{_lambda_.6} parent=11 // pred_check
          %p418 = pneg %p120
        $region22: #{_lambda_.6} parent=11 // pred_check_branch
          %420 = sbr.rel (%p418) target = $region24
        $region23: #{_lambda_.6} parent=11 // pred_region
          %422 = vsyncadd [#allocation8], 0
          %s423 = sshll.u32 %s3, 4
          %s424 = int_to_ptr.hbm [resolvable:$true] %s423
          %s425 = sshll.u32 [#allocation7], 4
          %s426 = int_to_ptr.vmem [resolvable:$true] %s425
          %431 = dma.hbm_to_vmem [thread:$0]  %s424, 256, %s426, [#allocation8], 64, 64, 4
        $region24: #{_lambda_.6} parent=11 // pred_fallthru
          _
        // Predicated region
        $region25: #{_lambda_.6} parent=11 // pred_check
          %p432 = pneg %p141
        $region26: #{_lambda_.6} parent=11 // pred_check_branch
          %434 = sbr.rel (%p432) target = $region28
        $region27: #{_lambda_.6} parent=11 // pred_region
          %436 = vsyncadd [#allocation8], 0
          %s438 = sshll.u32 %s4, 4
          %s439 = int_to_ptr.hbm [resolvable:$true] %s438
          %s440 = sshll.u32 [#allocation9], 4
          %s441 = int_to_ptr.vmem [resolvable:$true] %s440
          %443 = dma.hbm_to_vmem [thread:$0]  %s439, 16, %s441, [#allocation8]
        $region28: #{_lambda_.6} parent=11 // pred_fallthru
          _
        // Predicated region
        $region29: #{_lambda_.6} parent=11 // pred_check
          %p444 = pneg %p162
        $region30: #{_lambda_.6} parent=11 // pred_check_branch
          %446 = sbr.rel (%p444) target = $region32
        $region31: #{_lambda_.6} parent=11 // pred_region
          %448 = vsyncadd [#allocation11], 0
          %s449 = sshll.u32 %s5, 4
          %s450 = int_to_ptr.hbm [resolvable:$true] %s449
          %s451 = sshll.u32 [#allocation10], 4
          %s452 = int_to_ptr.vmem [resolvable:$true] %s451
          %457 = dma.hbm_to_vmem [thread:$0]  %s450, 256, %s452, [#allocation11], 64, 64, 4
        $region32: #{_lambda_.6} parent=11 // pred_fallthru
          _
        // Predicated region
        $region33: #{_lambda_.6} parent=11 // pred_check
          %p458 = pneg %p183
        $region34: #{_lambda_.6} parent=11 // pred_check_branch
          %460 = sbr.rel (%p458) target = $region36
        $region35: #{_lambda_.6} parent=11 // pred_region
          %462 = vsyncadd [#allocation11], 0
          %s464 = sshll.u32 %s6, 4
          %s465 = int_to_ptr.hbm [resolvable:$true] %s464
          %s466 = sshll.u32 [#allocation12], 4
          %s467 = int_to_ptr.vmem [resolvable:$true] %s466
          %469 = dma.hbm_to_vmem [thread:$0]  %s465, 16, %s467, [#allocation11]
        $region36: #{_lambda_.6} parent=11 // pred_fallthru
          _
        // Predicated region
        $region37: #{_lambda_.6} parent=11 // pred_check
          %p470 = pneg %p204
        $region38: #{_lambda_.6} parent=11 // pred_check_branch
          %472 = sbr.rel (%p470) target = $region40
        $region39: #{_lambda_.6} parent=11 // pred_region
          %474 = vsyncadd [#allocation14], 0
          %s476 = sshll.u32 %s7, 4
          %s477 = int_to_ptr.hbm [resolvable:$true] %s476
          %s478 = sshll.u32 [#allocation13], 4
          %s479 = int_to_ptr.vmem [resolvable:$true] %s478
          %481 = dma.hbm_to_vmem [thread:$0]  %s477, 16, %s479, [#allocation14]
        $region40: #{_lambda_.6} parent=11 // pred_fallthru
          _
        // Predicated region
        $region41: #{_lambda_.6} parent=11 // pred_check
          %p482 = pneg %p225
        $region42: #{_lambda_.6} parent=11 // pred_check_branch
          %484 = sbr.rel (%p482) target = $region44
        $region43: #{_lambda_.6} parent=11 // pred_region
          %486 = vsyncadd [#allocation14], 0
          %s488 = sshll.u32 %s8, 4
          %s489 = int_to_ptr.hbm [resolvable:$true] %s488
          %s490 = sshll.u32 [#allocation15], 4
          %s491 = int_to_ptr.vmem [resolvable:$true] %s490
          %493 = dma.hbm_to_vmem [thread:$0]  %s489, 16, %s491, [#allocation14]
        $region44: #{_lambda_.6} parent=11 // pred_fallthru
          _
        // Predicated region
        $region45: #{_lambda_.6} parent=11 // pred_check
          %p494 = pneg %p246
        $region46: #{_lambda_.6} parent=11 // pred_check_branch
          %496 = sbr.rel (%p494) target = $region48
        $region47: #{_lambda_.6} parent=11 // pred_region
          %498 = vsyncadd [#allocation17], 0
          %s499 = sshll.u32 %s9, 4
          %s500 = int_to_ptr.hbm [resolvable:$true] %s499
          %s501 = sshll.u32 [#allocation16], 4
          %s502 = int_to_ptr.vmem [resolvable:$true] %s501
          %507 = dma.hbm_to_vmem [thread:$0]  %s500, 256, %s502, [#allocation17], 64, 64, 4
        $region48: #{_lambda_.6} parent=11 // pred_fallthru
          _
        // Predicated region
        $region49: #{_lambda_.6} parent=11 // pred_check
          %p508 = pneg %p267
        $region50: #{_lambda_.6} parent=11 // pred_check_branch
          %510 = sbr.rel (%p508) target = $region52
        $region51: #{_lambda_.6} parent=11 // pred_region
          %512 = vsyncadd [#allocation17], 0
          %s514 = sshll.u32 %s10, 4
          %s515 = int_to_ptr.hbm [resolvable:$true] %s514
          %s516 = sshll.u32 [#allocation18], 4
          %s517 = int_to_ptr.vmem [resolvable:$true] %s516
          %519 = dma.hbm_to_vmem [thread:$0]  %s515, 16, %s517, [#allocation17]
        $region52: #{_lambda_.6} parent=11 // pred_fallthru
          _
        // Predicated region
        $region53: #{_lambda_.6} parent=11 // pred_check
          %p520 = pneg %p288
        $region54: #{_lambda_.6} parent=11 // pred_check_branch
          %522 = sbr.rel (%p520) target = $region56
        $region55: #{_lambda_.6} parent=11 // pred_region
          %524 = vsyncadd [#allocation20], 0
          %s525 = sshll.u32 %s11, 4
          %s526 = int_to_ptr.hbm [resolvable:$true] %s525
          %s527 = sshll.u32 [#allocation19], 4
          %s528 = int_to_ptr.vmem [resolvable:$true] %s527
          %533 = dma.hbm_to_vmem [thread:$0]  %s526, 256, %s528, [#allocation20], 64, 64, 4
        $region56: #{_lambda_.6} parent=11 // pred_fallthru
          _
        // Predicated region
        $region57: #{_lambda_.6} parent=11 // pred_check
          %p534 = pneg %p309
        $region58: #{_lambda_.6} parent=11 // pred_check_branch
          %536 = sbr.rel (%p534) target = $region60
        $region59: #{_lambda_.6} parent=11 // pred_region
          %538 = vsyncadd [#allocation20], 0
          %s540 = sshll.u32 %s12, 4
          %s541 = int_to_ptr.hbm [resolvable:$true] %s540
          %s542 = sshll.u32 [#allocation21], 4
          %s543 = int_to_ptr.vmem [resolvable:$true] %s542
          %545 = dma.hbm_to_vmem [thread:$0]  %s541, 16, %s543, [#allocation20]
        $region60: #{_lambda_.6} parent=11 // pred_fallthru
          _
        // Predicated region
        $region61: #{_lambda_.6} parent=11 // pred_check
          %p546 = pneg %p330
        $region62: #{_lambda_.6} parent=11 // pred_check_branch
          %548 = sbr.rel (%p546) target = $region64
        $region63: #{_lambda_.6} parent=11 // pred_region
          %550 = vsyncadd [#allocation23], 0
          %s552 = sshll.u32 %s13, 4
          %s553 = int_to_ptr.hbm [resolvable:$true] %s552
          %s554 = sshll.u32 [#allocation22], 4
          %s555 = int_to_ptr.vmem [resolvable:$true] %s554
          %557 = dma.hbm_to_vmem [thread:$0]  %s553, 16, %s555, [#allocation23]
        $region64: #{_lambda_.6} parent=11 // pred_fallthru
          _
        // Predicated region
        $region65: #{_lambda_.6} parent=11 // pred_check
          %p558 = pneg %p351
        $region66: #{_lambda_.6} parent=11 // pred_check_branch
          %560 = sbr.rel (%p558) target = $region68
        $region67: #{_lambda_.6} parent=11 // pred_region
          %562 = vsyncadd [#allocation23], 0
          %s564 = sshll.u32 %s14, 4
          %s565 = int_to_ptr.hbm [resolvable:$true] %s564
          %s566 = sshll.u32 [#allocation24], 4
          %s567 = int_to_ptr.vmem [resolvable:$true] %s566
          %569 = dma.hbm_to_vmem [thread:$0]  %s565, 16, %s567, [#allocation23]
        $region68: #{_lambda_.6} parent=11 // pred_fallthru
          _
      $region12: #{_lambda_.6} parent=5 // pred_fallthru
        _
      %p570 = scmp.lt.s32.totalorder %s31, 2
      // Predicated region
      $region69: #{_lambda_.6} parent=5 // pred_check
        %p571 = pneg %p570
      $region70: #{_lambda_.6} parent=5 // pred_check_branch
        %573 = sbr.rel (%p571) target = $region72
      $region71: #{_lambda_.6} parent=5 // pred_region
        // Predicated region
        $region73: #{_lambda_.6} parent=71 // pred_check
          %p574 = pneg %p51
        $region74: #{_lambda_.6} parent=71 // pred_check_branch
          %576 = sbr.rel (%p574) target = $region76
        $region75: #{_lambda_.6} parent=71 // pred_region
          %s577 = sand.u32 %s41, 1
          %s578 = scalar_lea.sflag [#allocation3], %s577
          %s579 = sand.u32 %s41, 1
          %s580 = smul.addr %s579, 8
          %s581 = scalar_lea.vmem [#allocation2], %s580
          %583 = vsyncadd %s578, 0
          %s584 = smul.addr %s31, 8
          %s585 = scalar_lea.hbm %s0, %s584
          %s587 = sshll.u32 %s585, 4
          %s588 = int_to_ptr.hbm [resolvable:$true] %s587
          %s589 = sshll.u32 %s581, 4
          %s590 = int_to_ptr.vmem [resolvable:$true] %s589
          %592 = dma.hbm_to_vmem [thread:$0]  %s588, 128, %s590, %s578
        $region76: #{_lambda_.6} parent=71 // pred_fallthru
          _
      $region72: #{_lambda_.6} parent=5 // pred_fallthru
        _
      %p593 = scmp.le.s32.totalorder 1, %s31
      %p594 = scmp.lt.s32.totalorder %s31, 3
      %p595 = pnand %p593, %p594
      %p596 = pneg %p595
      // Predicated region
      $region77: #{_lambda_.6} parent=5 // pred_check
        _
      $region78: #{_lambda_.6} parent=5 // pred_check_branch
        %598 = sbr.rel (%p595) target = $region80
      $region79: #{_lambda_.6} parent=5 // pred_region
        %s599 = ssub.s32 %s31, 1
        %s600 = sand.u32 %s44, 1
        %s601 = scalar_lea.sflag [#allocation3], %s600
        %s602 = sand.u32 %s44, 1
        %s603 = smul.addr %s602, 8
        %s604 = scalar_lea.vmem [#allocation2], %s603
        // Predicated region
        $region81: #{_lambda_.6} parent=79 // pred_check
          %p605 = pneg %p57
        $region82: #{_lambda_.6} parent=79 // pred_check_branch
          %607 = sbr.rel (%p605) target = $region84
        $region83: #{_lambda_.6} parent=79 // pred_region
          %609 = dma.done %s601, 128
        $region84: #{_lambda_.6} parent=79 // pred_fallthru
          _
        // Predicated region
        $region85: #{_lambda_.6} parent=79 // pred_check
          %p610 = pneg %p78
        $region86: #{_lambda_.6} parent=79 // pred_check_branch
          %612 = sbr.rel (%p610) target = $region88
        $region87: #{_lambda_.6} parent=79 // pred_region
          %614 = dma.done [#allocation5], 256
        $region88: #{_lambda_.6} parent=79 // pred_fallthru
          _
        // Predicated region
        $region89: #{_lambda_.6} parent=79 // pred_check
          %p615 = pneg %p99
        $region90: #{_lambda_.6} parent=79 // pred_check_branch
          %617 = sbr.rel (%p615) target = $region92
        $region91: #{_lambda_.6} parent=79 // pred_region
          %619 = dma.done [#allocation5], 16
        $region92: #{_lambda_.6} parent=79 // pred_fallthru
          _
        // Predicated region
        $region93: #{_lambda_.6} parent=79 // pred_check
          %p620 = pneg %p120
        $region94: #{_lambda_.6} parent=79 // pred_check_branch
          %622 = sbr.rel (%p620) target = $region96
        $region95: #{_lambda_.6} parent=79 // pred_region
          %624 = dma.done [#allocation8], 256
        $region96: #{_lambda_.6} parent=79 // pred_fallthru
          _
        // Predicated region
        $region97: #{_lambda_.6} parent=79 // pred_check
          %p625 = pneg %p141
        $region98: #{_lambda_.6} parent=79 // pred_check_branch
          %627 = sbr.rel (%p625) target = $region100
        $region99: #{_lambda_.6} parent=79 // pred_region
          %629 = dma.done [#allocation8], 16
        $region100: #{_lambda_.6} parent=79 // pred_fallthru
          _
        // Predicated region
        $region101: #{_lambda_.6} parent=79 // pred_check
          %p630 = pneg %p162
        $region102: #{_lambda_.6} parent=79 // pred_check_branch
          %632 = sbr.rel (%p630) target = $region104
        $region103: #{_lambda_.6} parent=79 // pred_region
          %634 = dma.done [#allocation11], 256
        $region104: #{_lambda_.6} parent=79 // pred_fallthru
          _
        // Predicated region
        $region105: #{_lambda_.6} parent=79 // pred_check
          %p635 = pneg %p183
        $region106: #{_lambda_.6} parent=79 // pred_check_branch
          %637 = sbr.rel (%p635) target = $region108
        $region107: #{_lambda_.6} parent=79 // pred_region
          %639 = dma.done [#allocation11], 16
        $region108: #{_lambda_.6} parent=79 // pred_fallthru
          _
        // Predicated region
        $region109: #{_lambda_.6} parent=79 // pred_check
          %p640 = pneg %p204
        $region110: #{_lambda_.6} parent=79 // pred_check_branch
          %642 = sbr.rel (%p640) target = $region112
        $region111: #{_lambda_.6} parent=79 // pred_region
          %644 = dma.done [#allocation14], 16
        $region112: #{_lambda_.6} parent=79 // pred_fallthru
          _
        // Predicated region
        $region113: #{_lambda_.6} parent=79 // pred_check
          %p645 = pneg %p225
        $region114: #{_lambda_.6} parent=79 // pred_check_branch
          %647 = sbr.rel (%p645) target = $region116
        $region115: #{_lambda_.6} parent=79 // pred_region
          %649 = dma.done [#allocation14], 16
        $region116: #{_lambda_.6} parent=79 // pred_fallthru
          _
        // Predicated region
        $region117: #{_lambda_.6} parent=79 // pred_check
          %p650 = pneg %p246
        $region118: #{_lambda_.6} parent=79 // pred_check_branch
          %652 = sbr.rel (%p650) target = $region120
        $region119: #{_lambda_.6} parent=79 // pred_region
          %654 = dma.done [#allocation17], 256
        $region120: #{_lambda_.6} parent=79 // pred_fallthru
          _
        // Predicated region
        $region121: #{_lambda_.6} parent=79 // pred_check
          %p655 = pneg %p267
        $region122: #{_lambda_.6} parent=79 // pred_check_branch
          %657 = sbr.rel (%p655) target = $region124
        $region123: #{_lambda_.6} parent=79 // pred_region
          %659 = dma.done [#allocation17], 16
        $region124: #{_lambda_.6} parent=79 // pred_fallthru
          _
        // Predicated region
        $region125: #{_lambda_.6} parent=79 // pred_check
          %p660 = pneg %p288
        $region126: #{_lambda_.6} parent=79 // pred_check_branch
          %662 = sbr.rel (%p660) target = $region128
        $region127: #{_lambda_.6} parent=79 // pred_region
          %664 = dma.done [#allocation20], 256
        $region128: #{_lambda_.6} parent=79 // pred_fallthru
          _
        // Predicated region
        $region129: #{_lambda_.6} parent=79 // pred_check
          %p665 = pneg %p309
        $region130: #{_lambda_.6} parent=79 // pred_check_branch
          %667 = sbr.rel (%p665) target = $region132
        $region131: #{_lambda_.6} parent=79 // pred_region
          %669 = dma.done [#allocation20], 16
        $region132: #{_lambda_.6} parent=79 // pred_fallthru
          _
        // Predicated region
        $region133: #{_lambda_.6} parent=79 // pred_check
          %p670 = pneg %p330
        $region134: #{_lambda_.6} parent=79 // pred_check_branch
          %672 = sbr.rel (%p670) target = $region136
        $region135: #{_lambda_.6} parent=79 // pred_region
          %674 = dma.done [#allocation23], 16
        $region136: #{_lambda_.6} parent=79 // pred_fallthru
          _
        // Predicated region
        $region137: #{_lambda_.6} parent=79 // pred_check
          %p675 = pneg %p351
        $region138: #{_lambda_.6} parent=79 // pred_check_branch
          %677 = sbr.rel (%p675) target = $region140
        $region139: #{_lambda_.6} parent=79 // pred_region
          %679 = dma.done [#allocation23], 16
        $region140: #{_lambda_.6} parent=79 // pred_fallthru
          _
        %s680 = sand.u32 %s44, 1
        %s681 = scalar_lea.sflag [#allocation3], %s680
        %s682 = sand.u32 %s44, 1
        %s683 = smul.addr %s682, 8
        %s684 = scalar_lea.vmem [#allocation2], %s683
        %p685 = pneg %p57
        %p686 = pneg %p54
        %p687 = pneg %p78
        %p688 = pneg %p75
        %p689 = pneg %p99
        %p690 = pneg %p96
        %p691 = pneg %p120
        %p692 = pneg %p117
        %p693 = pneg %p141
        %p694 = pneg %p138
        %p695 = pneg %p162
        %p696 = pneg %p159
        %p697 = pneg %p183
        %p698 = pneg %p180
        %p699 = pneg %p204
        %p700 = pneg %p201
        %p701 = pneg %p225
        %p702 = pneg %p222
        %p703 = pneg %p246
        %p704 = pneg %p243
        %p705 = pneg %p267
        %p706 = pneg %p264
        %p707 = pneg %p288
        %p708 = pneg %p285
        %p709 = pneg %p309
        %p710 = pneg %p306
        %p711 = pneg %p330
        %p712 = pneg %p327
        %p713 = pneg %p351
        %p714 = pneg %p348
        %p715 = pneg %p377
        %p716 = pneg %p374
        %p717 = scmp.lt.s32.totalorder %s36, 1
        %s718 = scalar_select %p717, %s36, 1
        %s719 = smul.addr %s718, 8
        %s720 = scalar_lea.vmem %s15, %s719
        %p721 = scmp.lt.s32.totalorder %s36, 1
        %s722 = scalar_select %p721, %s36, 1
        %s723 = smul.addr %s722, 8
        %s724 = scalar_lea.vmem %s15, %s723
        %v726 = vld [vmem:[%s604] sm:$0xff]
        %v727 = vpack.c.bf16 %v726, %v726
        %v728 = vld [vmem:[#allocation4] sm:$0xf]
        %v729 = vld [vmem:[#allocation4 + $0x4] sm:$0xf]
        %v730 = vld [vmem:[#allocation4 + $0x8] sm:$0xf]
        %v731 = vld [vmem:[#allocation4 + $0xc] sm:$0xf]
        %v732 = vld [vmem:[#allocation6] sm:$0x1]
        %v734 = vperm.slane %v732, 0
        %v740 = vunpack.c.l.b16 %v728
        %v741 = vunpack.c.l.b16 %v729
        %v742 = vunpack.c.l.b16 %v730
        %v743 = vunpack.c.l.b16 %v731
        %v744 = vpack.c.b16 %v741, %v740
        %v745 = vpack.c.b16 %v743, %v742
        %vm748 = vcmask 261120
        %v750 = vsel %vm748, %v727, 0
        %752 = vmatpush.bf16.msra.mxu0 0
        %753 = vmatpush.bf16.msra.mxu0 0
        %754 = vmatpush.bf16.msra.mxu0 0
        %755 = vmatpush.bf16.msra.mxu0 0
        %756 = vmatpush.bf16.msra.mxu0 0
        %757 = vmatpush.bf16.msra.mxu0 0
        %758 = vmatpush.bf16.msra.mxu0 %v745
        %759 = vmatpush.bf16.msra.mxu0 %v744
        %760 = vmatmul.bf16.gmra.mxu0 %v750
        %v761 = vpop.f32.mrf.mxu0
        %v762 = vadd.f32 %v734, %v761
        %v763 = vpop.f32.mrf.mxu0
        %764 = vdwg.mxu0
        %v765 = vld [vmem:[#allocation7] sm:$0xf]
        %v766 = vld [vmem:[#allocation7 + $0x4] sm:$0xf]
        %v767 = vld [vmem:[#allocation7 + $0x8] sm:$0xf]
        %v768 = vld [vmem:[#allocation7 + $0xc] sm:$0xf]
        %v769 = vld [vmem:[#allocation9] sm:$0x1]
        %v771 = vperm.slane %v769, 0
        %v777 = vunpack.c.l.b16 %v765
        %v778 = vunpack.c.l.b16 %v766
        %v779 = vunpack.c.l.b16 %v767
        %v780 = vunpack.c.l.b16 %v768
        %v781 = vpack.c.b16 %v778, %v777
        %v782 = vpack.c.b16 %v780, %v779
        %785 = vmatpush.bf16.msra.mxu0 0
        %786 = vmatpush.bf16.msra.mxu0 0
        %787 = vmatpush.bf16.msra.mxu0 0
        %788 = vmatpush.bf16.msra.mxu0 0
        %789 = vmatpush.bf16.msra.mxu0 0
        %790 = vmatpush.bf16.msra.mxu0 0
        %791 = vmatpush.bf16.msra.mxu0 %v782
        %792 = vmatpush.bf16.msra.mxu0 %v781
        %793 = vmatmul.bf16.gmra.mxu0 %v750
        %v794 = vpop.f32.mrf.mxu0
        %v795 = vadd.f32 %v771, %v794
        %v796 = vpop.f32.mrf.mxu0
        %797 = vdwg.mxu0
        %v798 = vlaneseq
        %v799 = vshrl.u32 %v798, 7
        %v800 = vlaneseq
        %v801 = vand.u32 %v800, 127
        %vm802 = vcmp.gt.s32.totalorder %v801, %v799
        %v803 = vsel %vm802, -1e+30, 0.0
        %v804 = vld [vmem:[#allocation10] sm:$0xf]
        %v805 = vld [vmem:[#allocation10 + $0x4] sm:$0xf]
        %v806 = vld [vmem:[#allocation10 + $0x8] sm:$0xf]
        %v807 = vld [vmem:[#allocation10 + $0xc] sm:$0xf]
        %v808 = vpack.c.bf16 %v762, %v762
        %v809 = vpack.c.bf16 %v795, %v795
        %vm810 = vcmask 64512
        %v812 = vsel %vm810, %v808, 0
        %v815 = vsel %vm810, %v809, 0
        %817 = vmatpush.bf16.xpose.msra.mxu0 0
        %818 = vmatpush.bf16.xpose.msra.mxu0 0
        %819 = vmatpush.bf16.xpose.msra.mxu0 0
        %820 = vmatpush.bf16.xpose.msra.mxu0 0
        %821 = vmatpush.bf16.xpose.msra.mxu0 0
        %822 = vmatpush.bf16.xpose.msra.mxu0 0
        %823 = vmatpush.bf16.xpose.msra.mxu0 0
        %824 = vmatpush.bf16.xpose.msra.mxu0 %v815
        %825 = vmatmul.bf16.gmra.mxu0 %v812
        %v826 = vpop.f32.mrf.mxu0
        %v827 = vadd.f32 %v803, %v826
        %v828 = vpop.f32.mrf.mxu0
        %829 = vdwg.mxu0
        %v830 = vsel %vm810, %v827, -inf
        %831 = vmax.xlane.f32.xlu0 %v830
        %v832 = vpop.xlane.xlu0 %831
        %v833 = vsub.f32 %v827, %v832
        %v834 = vmul.f32 %v833, 1.442695
        %v835 = vpow.pop %v834
        %v836 = vsel %vm810, %v835, 0.0
        %837 = vadd.xlane.f32.xlu0 %v836
        %v838 = vpop.xlane.xlu0 %837
        %v839 = vrcp.pop %v838
        %v840 = vmul.f32 %v835, %v839
        %v841 = vpack.c.bf16 %v840, %v840
        %843 = vrot.lane.b32.xlu0 %v809, 96
        %v844 = vpop.permute.xlu0 %843
        %v846 = vsel %vm810, %v841, 0
        %vm848 = vcmask 1043456
        %v850 = vsel %vm848, %v844, 0
        %852 = vmatpush.bf16.msra.mxu0 0
        %853 = vmatpush.bf16.msra.mxu0 0
        %854 = vmatpush.bf16.msra.mxu0 0
        %855 = vmatpush.bf16.msra.mxu0 0
        %856 = vmatpush.bf16.msra.mxu0 0
        %857 = vmatpush.bf16.msra.mxu0 0
        %858 = vmatpush.bf16.msra.mxu0 0
        %859 = vmatpush.bf16.msra.mxu0 %v850
        %860 = vmatmul.bf16.gmra.mxu0 %v846
        %v861 = vpop.f32.mrf.mxu0
        %v862 = vadd.f32 0.0, %v861
        %v863 = vpop.f32.mrf.mxu0
        %864 = vdwg.mxu0
        %v865 = vpack.c.bf16 %v862, %v862
        %867 = vrot.lane.b32.xlu0 %v808, 120
        %v868 = vpop.permute.xlu0 %867
        %869 = vrot.lane.b32.xlu0 %v809, 120
        %v870 = vpop.permute.xlu0 %869
        %v872 = vsel %vm810, %v868, 0
        %v875 = vsel %vm810, %v870, 0
        %877 = vmatpush.bf16.xpose.msra.mxu0 0
        %878 = vmatpush.bf16.xpose.msra.mxu0 0
        %879 = vmatpush.bf16.xpose.msra.mxu0 0
        %880 = vmatpush.bf16.xpose.msra.mxu0 0
        %881 = vmatpush.bf16.xpose.msra.mxu0 0
        %882 = vmatpush.bf16.xpose.msra.mxu0 0
        %883 = vmatpush.bf16.xpose.msra.mxu0 0
        %884 = vmatpush.bf16.xpose.msra.mxu0 %v875
        %885 = vmatmul.bf16.gmra.mxu0 %v872
        %v886 = vpop.f32.mrf.mxu0
        %v887 = vadd.f32 %v803, %v886
        %v888 = vpop.f32.mrf.mxu0
        %889 = vdwg.mxu0
        %v890 = vsel %vm810, %v887, -inf
        %891 = vmax.xlane.f32.xlu0 %v890
        %v892 = vpop.xlane.xlu0 %891
        %v893 = vsub.f32 %v887, %v892
        %v894 = vmul.f32 %v893, 1.442695
        %v895 = vpow.pop %v894
        %v896 = vsel %vm810, %v895, 0.0
        %897 = vadd.xlane.f32.xlu0 %v896
        %v898 = vpop.xlane.xlu0 %897
        %v899 = vrcp.pop %v898
        %v900 = vmul.f32 %v895, %v899
        %v901 = vpack.c.bf16 %v900, %v900
        %902 = vrot.lane.b32.xlu0 %v809, 88
        %v903 = vpop.permute.xlu0 %902
        %v905 = vsel %vm810, %v901, 0
        %v908 = vsel %vm848, %v903, 0
        %910 = vmatpush.bf16.msra.mxu0 0
        %911 = vmatpush.bf16.msra.mxu0 0
        %912 = vmatpush.bf16.msra.mxu0 0
        %913 = vmatpush.bf16.msra.mxu0 0
        %914 = vmatpush.bf16.msra.mxu0 0
        %915 = vmatpush.bf16.msra.mxu0 0
        %916 = vmatpush.bf16.msra.mxu0 0
        %917 = vmatpush.bf16.msra.mxu0 %v908
        %918 = vmatmul.bf16.gmra.mxu0 %v905
        %v919 = vpop.f32.mrf.mxu0
        %v920 = vadd.f32 0.0, %v919
        %v921 = vpop.f32.mrf.mxu0
        %922 = vdwg.mxu0
        %v923 = vpack.c.bf16 %v920, %v920
        %v925 = vsel %vm810, %v923, 0
        %v928 = vsel %vm848, %v805, 0
        %930 = vmatpush.bf16.msra.mxu0 0
        %931 = vmatpush.bf16.msra.mxu0 0
        %932 = vmatpush.bf16.msra.mxu0 0
        %933 = vmatpush.bf16.msra.mxu0 0
        %934 = vmatpush.bf16.msra.mxu0 0
        %935 = vmatpush.bf16.msra.mxu0 0
        %936 = vmatpush.bf16.msra.mxu0 0
        %937 = vmatpush.bf16.msra.mxu0 %v928
        %938 = vmatmul.bf16.gmra.mxu0 %v925
        %v939 = vpop.f32.mrf.mxu0
        %v940 = vadd.f32 0.0, %v939
        %v941 = vpop.f32.mrf.mxu0
        %942 = vdwg.mxu0
        %v944 = vsel %vm810, %v865, 0
        %v947 = vsel %vm848, %v804, 0
        %949 = vmatpush.bf16.msra.mxu0 0
        %950 = vmatpush.bf16.msra.mxu0 0
        %951 = vmatpush.bf16.msra.mxu0 0
        %952 = vmatpush.bf16.msra.mxu0 0
        %953 = vmatpush.bf16.msra.mxu0 0
        %954 = vmatpush.bf16.msra.mxu0 0
        %955 = vmatpush.bf16.msra.mxu0 0
        %956 = vmatpush.bf16.msra.mxu0 %v947
        %957 = vmatmul.bf16.gmra.mxu0 %v944
        %v958 = vpop.f32.mrf.mxu0
        %v959 = vadd.f32 %v940, %v958
        %v960 = vpop.f32.mrf.mxu0
        %961 = vdwg.mxu0
        %962 = vrot.lane.b32.xlu0 %v808, 112
        %v963 = vpop.permute.xlu0 %962
        %964 = vrot.lane.b32.xlu0 %v809, 112
        %v965 = vpop.permute.xlu0 %964
        %v967 = vsel %vm810, %v963, 0
        %v970 = vsel %vm810, %v965, 0
        %972 = vmatpush.bf16.xpose.msra.mxu0 0
        %973 = vmatpush.bf16.xpose.msra.mxu0 0
        %974 = vmatpush.bf16.xpose.msra.mxu0 0
        %975 = vmatpush.bf16.xpose.msra.mxu0 0
        %976 = vmatpush.bf16.xpose.msra.mxu0 0
        %977 = vmatpush.bf16.xpose.msra.mxu0 0
        %978 = vmatpush.bf16.xpose.msra.mxu0 0
        %979 = vmatpush.bf16.xpose.msra.mxu0 %v970
        %980 = vmatmul.bf16.gmra.mxu0 %v967
        %v981 = vpop.f32.mrf.mxu0
        %v982 = vadd.f32 %v803, %v981
        %v983 = vpop.f32.mrf.mxu0
        %984 = vdwg.mxu0
        %v985 = vsel %vm810, %v982, -inf
        %986 = vmax.xlane.f32.xlu0 %v985
        %v987 = vpop.xlane.xlu0 %986
        %v988 = vsub.f32 %v982, %v987
        %v989 = vmul.f32 %v988, 1.442695
        %v990 = vpow.pop %v989
        %v991 = vsel %vm810, %v990, 0.0
        %992 = vadd.xlane.f32.xlu0 %v991
        %v993 = vpop.xlane.xlu0 %992
        %v994 = vrcp.pop %v993
        %v995 = vmul.f32 %v990, %v994
        %v996 = vpack.c.bf16 %v995, %v995
        %997 = vrot.lane.b32.xlu0 %v809, 80
        %v998 = vpop.permute.xlu0 %997
        %v1000 = vsel %vm810, %v996, 0
        %v1003 = vsel %vm848, %v998, 0
        %1005 = vmatpush.bf16.msra.mxu0 0
        %1006 = vmatpush.bf16.msra.mxu0 0
        %1007 = vmatpush.bf16.msra.mxu0 0
        %1008 = vmatpush.bf16.msra.mxu0 0
        %1009 = vmatpush.bf16.msra.mxu0 0
        %1010 = vmatpush.bf16.msra.mxu0 0
        %1011 = vmatpush.bf16.msra.mxu0 0
        %1012 = vmatpush.bf16.msra.mxu0 %v1003
        %1013 = vmatmul.bf16.gmra.mxu0 %v1000
        %v1014 = vpop.f32.mrf.mxu0
        %v1015 = vadd.f32 0.0, %v1014
        %v1016 = vpop.f32.mrf.mxu0
        %1017 = vdwg.mxu0
        %v1018 = vpack.c.bf16 %v1015, %v1015
        %v1020 = vsel %vm810, %v1018, 0
        %v1023 = vsel %vm848, %v806, 0
        %1025 = vmatpush.bf16.msra.mxu0 0
        %1026 = vmatpush.bf16.msra.mxu0 0
        %1027 = vmatpush.bf16.msra.mxu0 0
        %1028 = vmatpush.bf16.msra.mxu0 0
        %1029 = vmatpush.bf16.msra.mxu0 0
        %1030 = vmatpush.bf16.msra.mxu0 0
        %1031 = vmatpush.bf16.msra.mxu0 0
        %1032 = vmatpush.bf16.msra.mxu0 %v1023
        %1033 = vmatmul.bf16.gmra.mxu0 %v1020
        %v1034 = vpop.f32.mrf.mxu0
        %v1035 = vadd.f32 0.0, %v1034
        %v1036 = vpop.f32.mrf.mxu0
        %1037 = vdwg.mxu0
        %v1038 = vadd.f32 %v959, %v1035
        %1039 = vrot.lane.b32.xlu0 %v808, 104
        %v1040 = vpop.permute.xlu0 %1039
        %1041 = vrot.lane.b32.xlu0 %v809, 104
        %v1042 = vpop.permute.xlu0 %1041
        %v1044 = vsel %vm810, %v1040, 0
        %v1047 = vsel %vm810, %v1042, 0
        %1049 = vmatpush.bf16.xpose.msra.mxu0 0
        %1050 = vmatpush.bf16.xpose.msra.mxu0 0
        %1051 = vmatpush.bf16.xpose.msra.mxu0 0
        %1052 = vmatpush.bf16.xpose.msra.mxu0 0
        %1053 = vmatpush.bf16.xpose.msra.mxu0 0
        %1054 = vmatpush.bf16.xpose.msra.mxu0 0
        %1055 = vmatpush.bf16.xpose.msra.mxu0 0
        %1056 = vmatpush.bf16.xpose.msra.mxu0 %v1047
        %1057 = vmatmul.bf16.gmra.mxu0 %v1044
        %v1058 = vpop.f32.mrf.mxu0
        %v1059 = vadd.f32 %v803, %v1058
        %v1060 = vpop.f32.mrf.mxu0
        %1061 = vdwg.mxu0
        %v1062 = vsel %vm810, %v1059, -inf
        %1063 = vmax.xlane.f32.xlu0 %v1062
        %v1064 = vpop.xlane.xlu0 %1063
        %v1065 = vsub.f32 %v1059, %v1064
        %v1066 = vmul.f32 %v1065, 1.442695
        %v1067 = vpow.pop %v1066
        %v1068 = vsel %vm810, %v1067, 0.0
        %1069 = vadd.xlane.f32.xlu0 %v1068
        %v1070 = vpop.xlane.xlu0 %1069
        %v1071 = vrcp.pop %v1070
        %v1072 = vmul.f32 %v1067, %v1071
        %v1073 = vpack.c.bf16 %v1072, %v1072
        %1074 = vrot.lane.b32.xlu0 %v809, 72
        %v1075 = vpop.permute.xlu0 %1074
        %v1077 = vsel %vm810, %v1073, 0
        %v1080 = vsel %vm848, %v1075, 0
        %1082 = vmatpush.bf16.msra.mxu0 0
        %1083 = vmatpush.bf16.msra.mxu0 0
        %1084 = vmatpush.bf16.msra.mxu0 0
        %1085 = vmatpush.bf16.msra.mxu0 0
        %1086 = vmatpush.bf16.msra.mxu0 0
        %1087 = vmatpush.bf16.msra.mxu0 0
        %1088 = vmatpush.bf16.msra.mxu0 0
        %1089 = vmatpush.bf16.msra.mxu0 %v1080
        %1090 = vmatmul.bf16.gmra.mxu0 %v1077
        %v1091 = vpop.f32.mrf.mxu0
        %v1092 = vadd.f32 0.0, %v1091
        %v1093 = vpop.f32.mrf.mxu0
        %1094 = vdwg.mxu0
        %v1095 = vpack.c.bf16 %v1092, %v1092
        %v1097 = vsel %vm810, %v1095, 0
        %v1100 = vsel %vm848, %v807, 0
        %1102 = vmatpush.bf16.msra.mxu0 0
        %1103 = vmatpush.bf16.msra.mxu0 0
        %1104 = vmatpush.bf16.msra.mxu0 0
        %1105 = vmatpush.bf16.msra.mxu0 0
        %1106 = vmatpush.bf16.msra.mxu0 0
        %1107 = vmatpush.bf16.msra.mxu0 0
        %1108 = vmatpush.bf16.msra.mxu0 0
        %1109 = vmatpush.bf16.msra.mxu0 %v1100
        %1110 = vmatmul.bf16.gmra.mxu0 %v1097
        %v1111 = vpop.f32.mrf.mxu0
        %v1112 = vadd.f32 0.0, %v1111
        %v1113 = vpop.f32.mrf.mxu0
        %1114 = vdwg.mxu0
        %v1115 = vadd.f32 %v1038, %v1112
        %v1116 = vld [vmem:[#allocation12] sm:$0x1]
        %v1118 = vperm.slane %v1116, 0
        %v1120 = vadd.f32 %v1115, %v1118
        %v1121 = vld [vmem:[#allocation13] sm:$0x1]
        %v1122 = vld [vmem:[#allocation15] sm:$0x1]
        %v1123 = vadd.f32 %v726, %v1120
        %v1124 = vsel %vm748, %v1123, 0.0
        %1125 = vadd.xlane.f32.xlu0 %v1124
        %v1126 = vpop.xlane.xlu0 %1125
        %v1127 = vrcp.pop 32.0
        %v1128 = vmul.f32 32.0, %v1127
        %v1129 = vsub.f32 1.0, %v1128
        %v1130 = vmul.f32 %v1127, %v1129
        %v1131 = vadd.f32 %v1127, %v1130
        %vm1132 = vweird.f32 %v1127
        %v1133 = vsel %vm1132, %v1127, %v1131
        %v1134 = vmul.f32 %v1126, %v1133
        %v1135 = vsub.f32 %v1123, %v1134
        %v1136 = vmul.f32 %v1135, %v1135
        %v1137 = vsel %vm748, %v1136, 0.0
        %1138 = vadd.xlane.f32.xlu0 %v1137
        %v1139 = vpop.xlane.xlu0 %1138
        %v1140 = vmul.f32 %v1139, %v1133
        %v1141 = vadd.f32 %v1140, 1e-05
        %v1142 = vrsqrt.pop %v1141
        %v1143 = vmul.f32 %v1142, %v1141
        %v1144 = vmul.f32 %v1143, %v1142
        %v1145 = vmul.f32 0.5, %v1144
        %v1146 = vsub.f32 1.5, %v1145
        %v1147 = vmul.f32 %v1142, %v1146
        %vm1148 = vweird.f32 %v1141
        %vm1149 = vweird.f32 %v1142
        %vm1150 = vmor %vm1148, %vm1149
        %v1151 = vsel %vm1150, %v1142, %v1147
        %v1152 = vmul.f32 %v1135, %v1151
        %v1154 = vperm.slane %v1121, 0
        %v1156 = vmul.f32 %v1152, %v1154
        %v1158 = vperm.slane %v1122, 0
        %v1160 = vadd.f32 %v1156, %v1158
        %v1161 = vpack.c.bf16 %v1160, %v1160
        %v1162 = vld [vmem:[#allocation16] sm:$0xf]
        %v1163 = vld [vmem:[#allocation16 + $0x4] sm:$0xf]
        %v1164 = vld [vmem:[#allocation16 + $0x8] sm:$0xf]
        %v1165 = vld [vmem:[#allocation16 + $0xc] sm:$0xf]
        %v1166 = vld [vmem:[#allocation18] sm:$0x1]
        %v1168 = vperm.slane %v1166, 0
        %v1174 = vunpack.c.l.b16 %v1162
        %v1175 = vunpack.c.l.b16 %v1163
        %v1176 = vunpack.c.l.b16 %v1164
        %v1177 = vunpack.c.l.b16 %v1165
        %v1178 = vpack.c.b16 %v1175, %v1174
        %v1179 = vpack.c.b16 %v1177, %v1176
        %v1183 = vsel %vm748, %v1161, 0
        %1185 = vmatpush.bf16.msra.mxu0 0
        %1186 = vmatpush.bf16.msra.mxu0 0
        %1187 = vmatpush.bf16.msra.mxu0 0
        %1188 = vmatpush.bf16.msra.mxu0 0
        %1189 = vmatpush.bf16.msra.mxu0 0
        %1190 = vmatpush.bf16.msra.mxu0 0
        %1191 = vmatpush.bf16.msra.mxu0 %v1179
        %1192 = vmatpush.bf16.msra.mxu0 %v1178
        %1193 = vmatmul.bf16.gmra.mxu0 %v1183
        %v1194 = vpop.f32.mrf.mxu0
        %v1195 = vadd.f32 %v1168, %v1194
        %v1196 = vpop.f32.mrf.mxu0
        %1197 = vdwg.mxu0
        %vm1198 = vcmp.le.s32.totalorder %v801, %v799
        %v1199 = vsel %vm1198, 1.0, 0.0
        %v1200 = vpack.c.bf16 %v1199, %v1199
        %v1201 = vpack.c.bf16 %v1195, %v1195
        %v1203 = vsel %vm810, %v1200, 0
        %v1206 = vsel %vm848, %v1201, 0
        %1208 = vmatpush.bf16.msra.mxu0 0
        %1209 = vmatpush.bf16.msra.mxu0 0
        %1210 = vmatpush.bf16.msra.mxu0 0
        %1211 = vmatpush.bf16.msra.mxu0 0
        %1212 = vmatpush.bf16.msra.mxu0 0
        %1213 = vmatpush.bf16.msra.mxu0 0
        %1214 = vmatpush.bf16.msra.mxu0 0
        %1215 = vmatpush.bf16.msra.mxu0 %v1206
        %1216 = vmatmul.bf16.gmra.mxu0 %v1203
        %v1217 = vpop.f32.mrf.mxu0
        %v1218 = vadd.f32 0.0, %v1217
        %v1219 = vpop.f32.mrf.mxu0
        %1220 = vdwg.mxu0
        %v1221 = vadd.s32 %v799, 1
        %v1222 = vcvt.s32.f32 %v1221
        %v1223 = vrcp.pop %v1222
        %v1224 = vmul.f32 %v1222, %v1223
        %v1225 = vsub.f32 1.0, %v1224
        %v1226 = vmul.f32 %v1223, %v1225
        %v1227 = vadd.f32 %v1223, %v1226
        %vm1228 = vweird.f32 %v1222
        %vm1229 = vweird.f32 %v1223
        %vm1230 = vmor %vm1228, %vm1229
        %v1231 = vsel %vm1230, %v1223, %v1227
        %v1232 = vand.u32 2147483647, %v1222
        %vm1233 = vcmp.eq.f32.partialorder %v1232, 8.507059e+37
        %v1234 = vand.u32 %v1222, 2147483648
        %v1235 = vor.u32 1.1754944e-38, %v1234
        %v1236 = vsel %vm1233, %v1235, %v1231
        %v1237 = vmul.f32 1.0, %v1236
        %v1238 = vmul.f32 %v1218, %v1237
        %v1239 = vpack.c.bf16 %v1238, %v1238
        %v1240 = vld [vmem:[#allocation19] sm:$0xf]
        %v1241 = vld [vmem:[#allocation19 + $0x4] sm:$0xf]
        %v1242 = vld [vmem:[#allocation19 + $0x8] sm:$0xf]
        %v1243 = vld [vmem:[#allocation19 + $0xc] sm:$0xf]
        %v1244 = vld [vmem:[#allocation21] sm:$0x1]
        %v1246 = vperm.slane %v1244, 0
        %v1252 = vunpack.c.l.b16 %v1240
        %v1253 = vunpack.c.l.b16 %v1241
        %v1254 = vunpack.c.l.b16 %v1242
        %v1255 = vunpack.c.l.b16 %v1243
        %v1256 = vpack.c.b16 %v1253, %v1252
        %v1257 = vpack.c.b16 %v1255, %v1254
        %v1261 = vsel %vm748, %v1239, 0
        %1263 = vmatpush.bf16.msra.mxu0 0
        %1264 = vmatpush.bf16.msra.mxu0 0
        %1265 = vmatpush.bf16.msra.mxu0 0
        %1266 = vmatpush.bf16.msra.mxu0 0
        %1267 = vmatpush.bf16.msra.mxu0 0
        %1268 = vmatpush.bf16.msra.mxu0 0
        %1269 = vmatpush.bf16.msra.mxu0 %v1257
        %1270 = vmatpush.bf16.msra.mxu0 %v1256
        %1271 = vmatmul.bf16.gmra.mxu0 %v1261
        %v1272 = vpop.f32.mrf.mxu0
        %v1273 = vadd.f32 %v1246, %v1272
        %v1274 = vpop.f32.mrf.mxu0
        %1275 = vdwg.mxu0
        %v1276 = vld [vmem:[#allocation22] sm:$0x1]
        %v1277 = vld [vmem:[#allocation24] sm:$0x1]
        %v1278 = vadd.f32 %v1160, %v1273
        %v1279 = vsel %vm748, %v1278, 0.0
        %1280 = vadd.xlane.f32.xlu0 %v1279
        %v1281 = vpop.xlane.xlu0 %1280
        %v1282 = vmul.f32 %v1281, %v1133
        %v1283 = vsub.f32 %v1278, %v1282
        %v1284 = vmul.f32 %v1283, %v1283
        %v1285 = vsel %vm748, %v1284, 0.0
        %1286 = vadd.xlane.f32.xlu0 %v1285
        %v1287 = vpop.xlane.xlu0 %1286
        %v1288 = vmul.f32 %v1287, %v1133
        %v1289 = vadd.f32 %v1288, 1e-05
        %v1290 = vrsqrt.pop %v1289
        %v1291 = vmul.f32 %v1290, %v1289
        %v1292 = vmul.f32 %v1291, %v1290
        %v1293 = vmul.f32 0.5, %v1292
        %v1294 = vsub.f32 1.5, %v1293
        %v1295 = vmul.f32 %v1290, %v1294
        %vm1296 = vweird.f32 %v1289
        %vm1297 = vweird.f32 %v1290
        %vm1298 = vmor %vm1296, %vm1297
        %v1299 = vsel %vm1298, %v1290, %v1295
        %v1300 = vmul.f32 %v1283, %v1299
        %v1302 = vperm.slane %v1276, 0
        %v1304 = vmul.f32 %v1300, %v1302
        %v1306 = vperm.slane %v1277, 0
        %v1308 = vadd.f32 %v1304, %v1306
        %1309 = vst.msk [vmem:[%s724] sm:$0xff] %vm748, %v1308
        %p1310 = scmp.lt.s32.totalorder %s36, 1
        %s1311 = scalar_select %p1310, %s36, 1
        %s1312 = smul.addr %s1311, 8
        %s1313 = scalar_lea.vmem %s15, %s1312
        // Predicated region
        $region141: #{_lambda_.6} parent=79 // pred_check
          %p1314 = pneg %p374
        $region142: #{_lambda_.6} parent=79 // pred_check_branch
          %1316 = sbr.rel (%p1314) target = $region144
        $region143: #{_lambda_.6} parent=79 // pred_region
          _
        $region144: #{_lambda_.6} parent=79 // pred_fallthru
          _
      $region80: #{_lambda_.6} parent=5 // pred_fallthru
        _
      %p1317 = scmp.le.s32.totalorder 2, %s31
      // Predicated region
      $region145: #{_lambda_.6} parent=5 // pred_check
        %p1318 = pneg %p1317
      $region146: #{_lambda_.6} parent=5 // pred_check_branch
        %1320 = sbr.rel (%p1318) target = $region148
      $region147: #{_lambda_.6} parent=5 // pred_region
        %s1321 = ssub.s32 %s31, 2
        // Predicated region
        $region149: #{_lambda_.6} parent=147 // pred_check
          %p1322 = pneg %p380
        $region150: #{_lambda_.6} parent=147 // pred_check_branch
          %1324 = sbr.rel (%p1322) target = $region152
        $region151: #{_lambda_.6} parent=147 // pred_region
          %p1325 = scmp.lt.s32.totalorder %s37, 1
          %s1326 = scalar_select %p1325, %s37, 1
          %s1327 = smul.addr %s1326, 8
          %s1328 = scalar_lea.vmem %s15, %s1327
        $region152: #{_lambda_.6} parent=147 // pred_fallthru
          _
      $region148: #{_lambda_.6} parent=5 // pred_fallthru
        _
    $region6: #{_lambda_.6} parent=1 // loop_footer
      %s35 = sadd.s32 1, %s31
    $region7: #{_lambda_.6} parent=1 // loop_footer_branch
      %30 = sbr.rel target = $region3
    $region8: #{_lambda_.6} parent=1 // loop_exit
      _
    %1329 = vsyncpa [#allocation3], 1
    %s1330 = scalar_lea.sflag [#allocation3], 1
    %1331 = vsyncpa %s1330, 1
    %1332 = vsyncpa [#allocation5], 1
    %1333 = vsyncpa [#allocation8], 1
    %1334 = vsyncpa [#allocation11], 1
    %1335 = vsyncpa [#allocation14], 1
    %1336 = vsyncpa [#allocation17], 1
    %1337 = vsyncpa [#allocation20], 1
    %1338 = vsyncpa [#allocation23], 1

// kernel: _lambda_.9
$region0: #{_lambda_.9}
  #allocation0 [shape = 'u32[]', space=smem, size = 0x4, offset = 0x4, fixed_abs, tag = 'smem constant byte address 0x4 - core index']
  #allocation1 [shape = 'u32[72,128]{1,0:T(1,128)}', space=vmem, size = 0x9000, scoped, tag = 'internal scratch']
  %s0 = inlined_call_operand.vmem [shape: f32[2,8,32], index: 0, kind: input, shape index: {}]
  %s1 = inlined_call_operand.vmem [shape: bf16[32,32], index: 1, kind: input, shape index: {}]
  %s2 = inlined_call_operand.vmem [shape: f32[1,32], index: 2, kind: input, shape index: {}]
  %s3 = inlined_call_operand.vmem [shape: bf16[32,64], index: 3, kind: input, shape index: {}]
  %s4 = inlined_call_operand.hbm [shape: f32[1,64], index: 4, kind: input, shape index: {}]
  %s5 = inlined_call_operand.vmem [shape: bf16[32,32], index: 5, kind: input, shape index: {}]
  %s6 = inlined_call_operand.hbm [shape: f32[1,32], index: 6, kind: input, shape index: {}]
  %s7 = inlined_call_operand.hbm [shape: f32[1,32], index: 7, kind: input, shape index: {}]
  %s8 = inlined_call_operand.hbm [shape: f32[1,32], index: 8, kind: input, shape index: {}]
  %s9 = inlined_call_operand.hbm [shape: bf16[32,32], index: 9, kind: input, shape index: {}]
  %s10 = inlined_call_operand.hbm [shape: f32[1,32], index: 10, kind: input, shape index: {}]
  %s11 = inlined_call_operand.hbm [shape: bf16[32,32], index: 11, kind: input, shape index: {}]
  %s12 = inlined_call_operand.hbm [shape: f32[1,32], index: 12, kind: input, shape index: {}]
  %s13 = inlined_call_operand.hbm [shape: f32[1,32], index: 13, kind: input, shape index: {}]
  %s14 = inlined_call_operand.hbm [shape: f32[1,32], index: 14, kind: input, shape index: {}]
  %s15 = inlined_call_operand.vmem [shape: f32[2,8,32], index: 15, kind: output, shape index: {}]
  %s16 = sld [smem:[#allocation0]]
  $region133: #{_lambda_.9} parent=0
    _
  %s18 = ssub.s32 1, %s16
  %s19 = scalar_select 0, %s18, %s16
  $region1: #{_lambda_.9} parent=0
    #allocation2 [shape = 'u8[512]{0}', space=vmem, size = 0x400, scoped, tag = 'input window, operand 4, single buffered']
    #allocation3 [shape = 's32[2]{0}', space=sflag, size = 0x8, scoped, tag = 'scoped memory for _lambda_.9']
    #allocation4 [shape = 'u8[512]{0}', space=vmem, size = 0x400, scoped, tag = 'input window, operand 6, single buffered']
    #allocation5 [shape = 's32[1]{0}', space=sflag, size = 0x4, scoped, tag = 'scoped memory for _lambda_.9']
    #allocation6 [shape = 'u8[512]{0}', space=vmem, size = 0x400, scoped, tag = 'input window, operand 7, single buffered']
    #allocation7 [shape = 'u8[512]{0}', space=vmem, size = 0x400, scoped, tag = 'input window, operand 8, single buffered']
    #allocation8 [shape = 's32[1]{0}', space=sflag, size = 0x4, scoped, tag = 'scoped memory for _lambda_.9']
    #allocation9 [shape = 'u8[8192]{0}', space=vmem, size = 0x2000, scoped, tag = 'input window, operand 9, single buffered']
    #allocation10 [shape = 'u8[512]{0}', space=vmem, size = 0x400, scoped, tag = 'input window, operand 10, single buffered']
    #allocation11 [shape = 's32[1]{0}', space=sflag, size = 0x4, scoped, tag = 'scoped memory for _lambda_.9']
    #allocation12 [shape = 'u8[8192]{0}', space=vmem, size = 0x2000, scoped, tag = 'input window, operand 11, single buffered']
    #allocation13 [shape = 'u8[512]{0}', space=vmem, size = 0x400, scoped, tag = 'input window, operand 12, single buffered']
    #allocation14 [shape = 's32[1]{0}', space=sflag, size = 0x4, scoped, tag = 'scoped memory for _lambda_.9']
    #allocation15 [shape = 'u8[512]{0}', space=vmem, size = 0x400, scoped, tag = 'input window, operand 13, single buffered']
    #allocation16 [shape = 'u8[512]{0}', space=vmem, size = 0x400, scoped, tag = 'input window, operand 14, single buffered']
    #allocation17 [shape = 's32[1]{0}', space=sflag, size = 0x4, scoped, tag = 'scoped memory for _lambda_.9']
    %20 = vsyncpa [#allocation3], 0
    %21 = vsyncpa [#allocation5], 0
    %22 = vsyncpa [#allocation8], 0
    %23 = vsyncpa [#allocation11], 0
    %24 = vsyncpa [#allocation14], 0
    %25 = vsyncpa [#allocation17], 0
    loop: start=0, step=1, limit=4
    $region2: #{_lambda_.9} parent=1 // loop_pre_header
      _
    $region3: #{_lambda_.9} parent=1 // loop_header
      %s27 = sphi 0, %s31
      %p28 = scmp.ge.s32.totalorder %s27, 4
      %s37 = sphi 0, %s39
      %s40 = sphi 0, %s37
      %s41 = sphi 0, %s40
      %s57 = sphi 0, %s41
      %s61 = sphi 0, %s61
      %s63 = sphi 0, %s61
      %s64 = sphi 0, %s63
      %s78 = sphi 0, %s64
      %s82 = sphi 0, %s82
      %s84 = sphi 0, %s82
      %s85 = sphi 0, %s84
      %s99 = sphi 0, %s85
      %s103 = sphi 0, %s103
      %s105 = sphi 0, %s103
      %s106 = sphi 0, %s105
      %s120 = sphi 0, %s106
      %s124 = sphi 0, %s124
      %s126 = sphi 0, %s124
      %s127 = sphi 0, %s126
      %s141 = sphi 0, %s127
      %s145 = sphi 0, %s145
      %s147 = sphi 0, %s145
      %s148 = sphi 0, %s147
      %s162 = sphi 0, %s148
      %s166 = sphi 0, %s166
      %s168 = sphi 0, %s166
      %s169 = sphi 0, %s168
      %s183 = sphi 0, %s169
      %s187 = sphi 0, %s187
      %s189 = sphi 0, %s187
      %s190 = sphi 0, %s189
      %s204 = sphi 0, %s190
      %s208 = sphi 0, %s208
      %s210 = sphi 0, %s208
      %s211 = sphi 0, %s210
      %s225 = sphi 0, %s211
      %s229 = sphi 0, %s229
      %s231 = sphi 0, %s229
      %s232 = sphi 0, %s231
      %s246 = sphi 0, %s232
      %s250 = sphi 0, %s250
      %s252 = sphi 0, %s250
      %s253 = sphi 0, %s252
      %s267 = sphi 0, %s253
      %s271 = sphi 0, %s271
      %s273 = sphi 0, %s271
      %s274 = sphi 0, %s273
      %s288 = sphi 0, %s274
      %s292 = sphi 0, %s292
      %s294 = sphi 0, %s292
      %s295 = sphi 0, %s294
      %s309 = sphi 0, %s295
      %s313 = sphi 0, %s313
      %s315 = sphi 0, %s313
      %s316 = sphi 0, %s315
      %s330 = sphi 0, %s316
      %s334 = sphi 0, %s334
      %s336 = sphi 0, %s334
      %s337 = sphi 0, %s336
      %s351 = sphi 0, %s337
      %s357 = sphi 0, %s359
      %s360 = sphi 0, %s357
      %s361 = sphi 0, %s360
      %s377 = sphi 0, %s361
    $region4: #{_lambda_.9} parent=1 // loop_header_branch
      %30 = sbr.rel (%p28) target = $region8
    $region5: #{_lambda_.9} parent=1 // loop_body
      %s32 = ssub.s32 %s27, 1
      %s33 = ssub.s32 %s27, 2
      %s34 = sadd.s32 %s27, 1
      %s35 = ssub.s32 %s27, %s34
      %p36 = scmp.eq.s32.totalorder %s35, 0
      %s38 = sadd.s32 %s37, 1
      %s39 = scalar_select %p36, %s37, %s38
      %p42 = pneg %p36
      %p43 = scmp.eq.s32.totalorder %s27, 1
      %p44 = por %p42, %p43
      %p45 = scmp.ne.s32.totalorder %s37, %s40
      %p46 = scmp.eq.s32.totalorder %s27, 0
      %p47 = por %p45, %p46
      %p48 = scmp.ne.s32.totalorder %s37, %s40
      %p49 = scmp.eq.s32.totalorder %s32, 1
      %p50 = por %p48, %p49
      %p51 = scmp.ne.s32.totalorder %s40, %s41
      %p52 = scmp.eq.s32.totalorder %s32, 0
      %p53 = por %p51, %p52
      %p54 = scmp.ne.s32.totalorder %s40, %s41
      %p55 = scmp.eq.s32.totalorder %s33, 1
      %p56 = por %p54, %p55
      %p58 = scmp.ne.s32.totalorder %s41, %s57
      %p59 = scmp.eq.s32.totalorder %s33, 0
      %p60 = por %p58, %p59
      %s62 = sadd.s32 %s61, 1
      %p65 = scmp.eq.s32.totalorder %s27, 1
      %p66 = scmp.ne.s32.totalorder %s61, %s63
      %p67 = scmp.eq.s32.totalorder %s27, 0
      %p68 = por %p66, %p67
      %p69 = scmp.ne.s32.totalorder %s61, %s63
      %p70 = scmp.eq.s32.totalorder %s32, 1
      %p71 = por %p69, %p70
      %p72 = scmp.ne.s32.totalorder %s63, %s64
      %p73 = scmp.eq.s32.totalorder %s32, 0
      %p74 = por %p72, %p73
      %p75 = scmp.ne.s32.totalorder %s63, %s64
      %p76 = scmp.eq.s32.totalorder %s33, 1
      %p77 = por %p75, %p76
      %p79 = scmp.ne.s32.totalorder %s64, %s78
      %p80 = scmp.eq.s32.totalorder %s33, 0
      %p81 = por %p79, %p80
      %s83 = sadd.s32 %s82, 1
      %p86 = scmp.eq.s32.totalorder %s27, 1
      %p87 = scmp.ne.s32.totalorder %s82, %s84
      %p88 = scmp.eq.s32.totalorder %s27, 0
      %p89 = por %p87, %p88
      %p90 = scmp.ne.s32.totalorder %s82, %s84
      %p91 = scmp.eq.s32.totalorder %s32, 1
      %p92 = por %p90, %p91
      %p93 = scmp.ne.s32.totalorder %s84, %s85
      %p94 = scmp.eq.s32.totalorder %s32, 0
      %p95 = por %p93, %p94
      %p96 = scmp.ne.s32.totalorder %s84, %s85
      %p97 = scmp.eq.s32.totalorder %s33, 1
      %p98 = por %p96, %p97
      %p100 = scmp.ne.s32.totalorder %s85, %s99
      %p101 = scmp.eq.s32.totalorder %s33, 0
      %p102 = por %p100, %p101
      %s104 = sadd.s32 %s103, 1
      %p107 = scmp.eq.s32.totalorder %s27, 1
      %p108 = scmp.ne.s32.totalorder %s103, %s105
      %p109 = scmp.eq.s32.totalorder %s27, 0
      %p110 = por %p108, %p109
      %p111 = scmp.ne.s32.totalorder %s103, %s105
      %p112 = scmp.eq.s32.totalorder %s32, 1
      %p113 = por %p111, %p112
      %p114 = scmp.ne.s32.totalorder %s105, %s106
      %p115 = scmp.eq.s32.totalorder %s32, 0
      %p116 = por %p114, %p115
      %p117 = scmp.ne.s32.totalorder %s105, %s106
      %p118 = scmp.eq.s32.totalorder %s33, 1
      %p119 = por %p117, %p118
      %p121 = scmp.ne.s32.totalorder %s106, %s120
      %p122 = scmp.eq.s32.totalorder %s33, 0
      %p123 = por %p121, %p122
      %s125 = sadd.s32 %s124, 1
      %p128 = scmp.eq.s32.totalorder %s27, 1
      %p129 = scmp.ne.s32.totalorder %s124, %s126
      %p130 = scmp.eq.s32.totalorder %s27, 0
      %p131 = por %p129, %p130
      %p132 = scmp.ne.s32.totalorder %s124, %s126
      %p133 = scmp.eq.s32.totalorder %s32, 1
      %p134 = por %p132, %p133
      %p135 = scmp.ne.s32.totalorder %s126, %s127
      %p136 = scmp.eq.s32.totalorder %s32, 0
      %p137 = por %p135, %p136
      %p138 = scmp.ne.s32.totalorder %s126, %s127
      %p139 = scmp.eq.s32.totalorder %s33, 1
      %p140 = por %p138, %p139
      %p142 = scmp.ne.s32.totalorder %s127, %s141
      %p143 = scmp.eq.s32.totalorder %s33, 0
      %p144 = por %p142, %p143
      %s146 = sadd.s32 %s145, 1
      %p149 = scmp.eq.s32.totalorder %s27, 1
      %p150 = scmp.ne.s32.totalorder %s145, %s147
      %p151 = scmp.eq.s32.totalorder %s27, 0
      %p152 = por %p150, %p151
      %p153 = scmp.ne.s32.totalorder %s145, %s147
      %p154 = scmp.eq.s32.totalorder %s32, 1
      %p155 = por %p153, %p154
      %p156 = scmp.ne.s32.totalorder %s147, %s148
      %p157 = scmp.eq.s32.totalorder %s32, 0
      %p158 = por %p156, %p157
      %p159 = scmp.ne.s32.totalorder %s147, %s148
      %p160 = scmp.eq.s32.totalorder %s33, 1
      %p161 = por %p159, %p160
      %p163 = scmp.ne.s32.totalorder %s148, %s162
      %p164 = scmp.eq.s32.totalorder %s33, 0
      %p165 = por %p163, %p164
      %s167 = sadd.s32 %s166, 1
      %p170 = scmp.eq.s32.totalorder %s27, 1
      %p171 = scmp.ne.s32.totalorder %s166, %s168
      %p172 = scmp.eq.s32.totalorder %s27, 0
      %p173 = por %p171, %p172
      %p174 = scmp.ne.s32.totalorder %s166, %s168
      %p175 = scmp.eq.s32.totalorder %s32, 1
      %p176 = por %p174, %p175
      %p177 = scmp.ne.s32.totalorder %s168, %s169
      %p178 = scmp.eq.s32.totalorder %s32, 0
      %p179 = por %p177, %p178
      %p180 = scmp.ne.s32.totalorder %s168, %s169
      %p181 = scmp.eq.s32.totalorder %s33, 1
      %p182 = por %p180, %p181
      %p184 = scmp.ne.s32.totalorder %s169, %s183
      %p185 = scmp.eq.s32.totalorder %s33, 0
      %p186 = por %p184, %p185
      %s188 = sadd.s32 %s187, 1
      %p191 = scmp.eq.s32.totalorder %s27, 1
      %p192 = scmp.ne.s32.totalorder %s187, %s189
      %p193 = scmp.eq.s32.totalorder %s27, 0
      %p194 = por %p192, %p193
      %p195 = scmp.ne.s32.totalorder %s187, %s189
      %p196 = scmp.eq.s32.totalorder %s32, 1
      %p197 = por %p195, %p196
      %p198 = scmp.ne.s32.totalorder %s189, %s190
      %p199 = scmp.eq.s32.totalorder %s32, 0
      %p200 = por %p198, %p199
      %p201 = scmp.ne.s32.totalorder %s189, %s190
      %p202 = scmp.eq.s32.totalorder %s33, 1
      %p203 = por %p201, %p202
      %p205 = scmp.ne.s32.totalorder %s190, %s204
      %p206 = scmp.eq.s32.totalorder %s33, 0
      %p207 = por %p205, %p206
      %s209 = sadd.s32 %s208, 1
      %p212 = scmp.eq.s32.totalorder %s27, 1
      %p213 = scmp.ne.s32.totalorder %s208, %s210
      %p214 = scmp.eq.s32.totalorder %s27, 0
      %p215 = por %p213, %p214
      %p216 = scmp.ne.s32.totalorder %s208, %s210
      %p217 = scmp.eq.s32.totalorder %s32, 1
      %p218 = por %p216, %p217
      %p219 = scmp.ne.s32.totalorder %s210, %s211
      %p220 = scmp.eq.s32.totalorder %s32, 0
      %p221 = por %p219, %p220
      %p222 = scmp.ne.s32.totalorder %s210, %s211
      %p223 = scmp.eq.s32.totalorder %s33, 1
      %p224 = por %p222, %p223
      %p226 = scmp.ne.s32.totalorder %s211, %s225
      %p227 = scmp.eq.s32.totalorder %s33, 0
      %p228 = por %p226, %p227
      %s230 = sadd.s32 %s229, 1
      %p233 = scmp.eq.s32.totalorder %s27, 1
      %p234 = scmp.ne.s32.totalorder %s229, %s231
      %p235 = scmp.eq.s32.totalorder %s27, 0
      %p236 = por %p234, %p235
      %p237 = scmp.ne.s32.totalorder %s229, %s231
      %p238 = scmp.eq.s32.totalorder %s32, 1
      %p239 = por %p237, %p238
      %p240 = scmp.ne.s32.totalorder %s231, %s232
      %p241 = scmp.eq.s32.totalorder %s32, 0
      %p242 = por %p240, %p241
      %p243 = scmp.ne.s32.totalorder %s231, %s232
      %p244 = scmp.eq.s32.totalorder %s33, 1
      %p245 = por %p243, %p244
      %p247 = scmp.ne.s32.totalorder %s232, %s246
      %p248 = scmp.eq.s32.totalorder %s33, 0
      %p249 = por %p247, %p248
      %s251 = sadd.s32 %s250, 1
      %p254 = scmp.eq.s32.totalorder %s27, 1
      %p255 = scmp.ne.s32.totalorder %s250, %s252
      %p256 = scmp.eq.s32.totalorder %s27, 0
      %p257 = por %p255, %p256
      %p258 = scmp.ne.s32.totalorder %s250, %s252
      %p259 = scmp.eq.s32.totalorder %s32, 1
      %p260 = por %p258, %p259
      %p261 = scmp.ne.s32.totalorder %s252, %s253
      %p262 = scmp.eq.s32.totalorder %s32, 0
      %p263 = por %p261, %p262
      %p264 = scmp.ne.s32.totalorder %s252, %s253
      %p265 = scmp.eq.s32.totalorder %s33, 1
      %p266 = por %p264, %p265
      %p268 = scmp.ne.s32.totalorder %s253, %s267
      %p269 = scmp.eq.s32.totalorder %s33, 0
      %p270 = por %p268, %p269
      %s272 = sadd.s32 %s271, 1
      %p275 = scmp.eq.s32.totalorder %s27, 1
      %p276 = scmp.ne.s32.totalorder %s271, %s273
      %p277 = scmp.eq.s32.totalorder %s27, 0
      %p278 = por %p276, %p277
      %p279 = scmp.ne.s32.totalorder %s271, %s273
      %p280 = scmp.eq.s32.totalorder %s32, 1
      %p281 = por %p279, %p280
      %p282 = scmp.ne.s32.totalorder %s273, %s274
      %p283 = scmp.eq.s32.totalorder %s32, 0
      %p284 = por %p282, %p283
      %p285 = scmp.ne.s32.totalorder %s273, %s274
      %p286 = scmp.eq.s32.totalorder %s33, 1
      %p287 = por %p285, %p286
      %p289 = scmp.ne.s32.totalorder %s274, %s288
      %p290 = scmp.eq.s32.totalorder %s33, 0
      %p291 = por %p289, %p290
      %s293 = sadd.s32 %s292, 1
      %p296 = scmp.eq.s32.totalorder %s27, 1
      %p297 = scmp.ne.s32.totalorder %s292, %s294
      %p298 = scmp.eq.s32.totalorder %s27, 0
      %p299 = por %p297, %p298
      %p300 = scmp.ne.s32.totalorder %s292, %s294
      %p301 = scmp.eq.s32.totalorder %s32, 1
      %p302 = por %p300, %p301
      %p303 = scmp.ne.s32.totalorder %s294, %s295
      %p304 = scmp.eq.s32.totalorder %s32, 0
      %p305 = por %p303, %p304
      %p306 = scmp.ne.s32.totalorder %s294, %s295
      %p307 = scmp.eq.s32.totalorder %s33, 1
      %p308 = por %p306, %p307
      %p310 = scmp.ne.s32.totalorder %s295, %s309
      %p311 = scmp.eq.s32.totalorder %s33, 0
      %p312 = por %p310, %p311
      %s314 = sadd.s32 %s313, 1
      %p317 = scmp.eq.s32.totalorder %s27, 1
      %p318 = scmp.ne.s32.totalorder %s313, %s315
      %p319 = scmp.eq.s32.totalorder %s27, 0
      %p320 = por %p318, %p319
      %p321 = scmp.ne.s32.totalorder %s313, %s315
      %p322 = scmp.eq.s32.totalorder %s32, 1
      %p323 = por %p321, %p322
      %p324 = scmp.ne.s32.totalorder %s315, %s316
      %p325 = scmp.eq.s32.totalorder %s32, 0
      %p326 = por %p324, %p325
      %p327 = scmp.ne.s32.totalorder %s315, %s316
      %p328 = scmp.eq.s32.totalorder %s33, 1
      %p329 = por %p327, %p328
      %p331 = scmp.ne.s32.totalorder %s316, %s330
      %p332 = scmp.eq.s32.totalorder %s33, 0
      %p333 = por %p331, %p332
      %s335 = sadd.s32 %s334, 1
      %p338 = scmp.eq.s32.totalorder %s27, 1
      %p339 = scmp.ne.s32.totalorder %s334, %s336
      %p340 = scmp.eq.s32.totalorder %s27, 0
      %p341 = por %p339, %p340
      %p342 = scmp.ne.s32.totalorder %s334, %s336
      %p343 = scmp.eq.s32.totalorder %s32, 1
      %p344 = por %p342, %p343
      %p345 = scmp.ne.s32.totalorder %s336, %s337
      %p346 = scmp.eq.s32.totalorder %s32, 0
      %p347 = por %p345, %p346
      %p348 = scmp.ne.s32.totalorder %s336, %s337
      %p349 = scmp.eq.s32.totalorder %s33, 1
      %p350 = por %p348, %p349
      %p352 = scmp.ne.s32.totalorder %s337, %s351
      %p353 = scmp.eq.s32.totalorder %s33, 0
      %p354 = por %p352, %p353
      %s355 = ssub.s32 %s27, %s34
      %p356 = scmp.eq.s32.totalorder %s355, 0
      %s358 = sadd.s32 %s357, 1
      %s359 = scalar_select %p356, %s357, %s358
      %p362 = pneg %p356
      %p363 = scmp.eq.s32.totalorder %s27, 1
      %p364 = por %p362, %p363
      %p365 = scmp.ne.s32.totalorder %s357, %s360
      %p366 = scmp.eq.s32.totalorder %s27, 0
      %p367 = por %p365, %p366
      %p368 = scmp.ne.s32.totalorder %s357, %s360
      %p369 = scmp.eq.s32.totalorder %s32, 1
      %p370 = por %p368, %p369
      %p371 = scmp.ne.s32.totalorder %s360, %s361
      %p372 = scmp.eq.s32.totalorder %s32, 0
      %p373 = por %p371, %p372
      %p374 = scmp.ne.s32.totalorder %s360, %s361
      %p375 = scmp.eq.s32.totalorder %s33, 1
      %p376 = por %p374, %p375
      %p378 = scmp.ne.s32.totalorder %s361, %s377
      %p379 = scmp.eq.s32.totalorder %s33, 0
      %p380 = por %p378, %p379
      %p381 = scmp.le.s32.totalorder 1, %s27
      %p382 = scmp.lt.s32.totalorder %s27, 3
      %p383 = pnand %p381, %p382
      %p384 = pneg %p383
      // Predicated region
      $region9: #{_lambda_.9} parent=5 // pred_check
        _
      $region10: #{_lambda_.9} parent=5 // pred_check_branch
        %386 = sbr.rel (%p383) target = $region12
      $region11: #{_lambda_.9} parent=5 // pred_region
        %s387 = ssub.s32 %s27, 1
        // Predicated region
        $region13: #{_lambda_.9} parent=11 // pred_check
          %p388 = pneg %p74
        $region14: #{_lambda_.9} parent=11 // pred_check_branch
          %390 = sbr.rel (%p388) target = $region16
        $region15: #{_lambda_.9} parent=11 // pred_region
          _
        $region16: #{_lambda_.9} parent=11 // pred_fallthru
          _
        // Predicated region
        $region17: #{_lambda_.9} parent=11 // pred_check
          %p391 = pneg %p95
        $region18: #{_lambda_.9} parent=11 // pred_check_branch
          %393 = sbr.rel (%p391) target = $region20
        $region19: #{_lambda_.9} parent=11 // pred_region
          _
        $region20: #{_lambda_.9} parent=11 // pred_fallthru
          _
        // Predicated region
        $region21: #{_lambda_.9} parent=11 // pred_check
          %p394 = pneg %p116
        $region22: #{_lambda_.9} parent=11 // pred_check_branch
          %396 = sbr.rel (%p394) target = $region24
        $region23: #{_lambda_.9} parent=11 // pred_region
          _
        $region24: #{_lambda_.9} parent=11 // pred_fallthru
          _
        // Predicated region
        $region25: #{_lambda_.9} parent=11 // pred_check
          %p397 = pneg %p137
        $region26: #{_lambda_.9} parent=11 // pred_check_branch
          %399 = sbr.rel (%p397) target = $region28
        $region27: #{_lambda_.9} parent=11 // pred_region
          %401 = vsyncadd [#allocation3], 0
          %s403 = sshll.u32 %s4, 4
          %s404 = int_to_ptr.hbm [resolvable:$true] %s403
          %s405 = sshll.u32 [#allocation2], 4
          %s406 = int_to_ptr.vmem [resolvable:$true] %s405
          %408 = dma.hbm_to_vmem [thread:$0]  %s404, 16, %s406, [#allocation3]
        $region28: #{_lambda_.9} parent=11 // pred_fallthru
          _
        // Predicated region
        $region29: #{_lambda_.9} parent=11 // pred_check
          %p409 = pneg %p158
        $region30: #{_lambda_.9} parent=11 // pred_check_branch
          %411 = sbr.rel (%p409) target = $region32
        $region31: #{_lambda_.9} parent=11 // pred_region
          _
        $region32: #{_lambda_.9} parent=11 // pred_fallthru
          _
        // Predicated region
        $region33: #{_lambda_.9} parent=11 // pred_check
          %p412 = pneg %p179
        $region34: #{_lambda_.9} parent=11 // pred_check_branch
          %414 = sbr.rel (%p412) target = $region36
        $region35: #{_lambda_.9} parent=11 // pred_region
          %416 = vsyncadd [#allocation5], 0
          %s418 = sshll.u32 %s6, 4
          %s419 = int_to_ptr.hbm [resolvable:$true] %s418
          %s420 = sshll.u32 [#allocation4], 4
          %s421 = int_to_ptr.vmem [resolvable:$true] %s420
          %423 = dma.hbm_to_vmem [thread:$0]  %s419, 16, %s421, [#allocation5]
        $region36: #{_lambda_.9} parent=11 // pred_fallthru
          _
        // Predicated region
        $region37: #{_lambda_.9} parent=11 // pred_check
          %p424 = pneg %p200
        $region38: #{_lambda_.9} parent=11 // pred_check_branch
          %426 = sbr.rel (%p424) target = $region40
        $region39: #{_lambda_.9} parent=11 // pred_region
          %428 = vsyncadd [#allocation5], 0
          %s430 = sshll.u32 %s7, 4
          %s431 = int_to_ptr.hbm [resolvable:$true] %s430
          %s432 = sshll.u32 [#allocation6], 4
          %s433 = int_to_ptr.vmem [resolvable:$true] %s432
          %435 = dma.hbm_to_vmem [thread:$0]  %s431, 16, %s433, [#allocation5]
        $region40: #{_lambda_.9} parent=11 // pred_fallthru
          _
        // Predicated region
        $region41: #{_lambda_.9} parent=11 // pred_check
          %p436 = pneg %p221
        $region42: #{_lambda_.9} parent=11 // pred_check_branch
          %438 = sbr.rel (%p436) target = $region44
        $region43: #{_lambda_.9} parent=11 // pred_region
          %440 = vsyncadd [#allocation8], 0
          %s442 = sshll.u32 %s8, 4
          %s443 = int_to_ptr.hbm [resolvable:$true] %s442
          %s444 = sshll.u32 [#allocation7], 4
          %s445 = int_to_ptr.vmem [resolvable:$true] %s444
          %447 = dma.hbm_to_vmem [thread:$0]  %s443, 16, %s445, [#allocation8]
        $region44: #{_lambda_.9} parent=11 // pred_fallthru
          _
        // Predicated region
        $region45: #{_lambda_.9} parent=11 // pred_check
          %p448 = pneg %p242
        $region46: #{_lambda_.9} parent=11 // pred_check_branch
          %450 = sbr.rel (%p448) target = $region48
        $region47: #{_lambda_.9} parent=11 // pred_region
          %452 = vsyncadd [#allocation8], 0
          %s453 = sshll.u32 %s9, 4
          %s454 = int_to_ptr.hbm [resolvable:$true] %s453
          %s455 = sshll.u32 [#allocation9], 4
          %s456 = int_to_ptr.vmem [resolvable:$true] %s455
          %461 = dma.hbm_to_vmem [thread:$0]  %s454, 256, %s456, [#allocation8], 64, 64, 4
        $region48: #{_lambda_.9} parent=11 // pred_fallthru
          _
        // Predicated region
        $region49: #{_lambda_.9} parent=11 // pred_check
          %p462 = pneg %p263
        $region50: #{_lambda_.9} parent=11 // pred_check_branch
          %464 = sbr.rel (%p462) target = $region52
        $region51: #{_lambda_.9} parent=11 // pred_region
          %466 = vsyncadd [#allocation11], 0
          %s468 = sshll.u32 %s10, 4
          %s469 = int_to_ptr.hbm [resolvable:$true] %s468
          %s470 = sshll.u32 [#allocation10], 4
          %s471 = int_to_ptr.vmem [resolvable:$true] %s470
          %473 = dma.hbm_to_vmem [thread:$0]  %s469, 16, %s471, [#allocation11]
        $region52: #{_lambda_.9} parent=11 // pred_fallthru
          _
        // Predicated region
        $region53: #{_lambda_.9} parent=11 // pred_check
          %p474 = pneg %p284
        $region54: #{_lambda_.9} parent=11 // pred_check_branch
          %476 = sbr.rel (%p474) target = $region56
        $region55: #{_lambda_.9} parent=11 // pred_region
          %478 = vsyncadd [#allocation11], 0
          %s479 = sshll.u32 %s11, 4
          %s480 = int_to_ptr.hbm [resolvable:$true] %s479
          %s481 = sshll.u32 [#allocation12], 4
          %s482 = int_to_ptr.vmem [resolvable:$true] %s481
          %487 = dma.hbm_to_vmem [thread:$0]  %s480, 256, %s482, [#allocation11], 64, 64, 4
        $region56: #{_lambda_.9} parent=11 // pred_fallthru
          _
        // Predicated region
        $region57: #{_lambda_.9} parent=11 // pred_check
          %p488 = pneg %p305
        $region58: #{_lambda_.9} parent=11 // pred_check_branch
          %490 = sbr.rel (%p488) target = $region60
        $region59: #{_lambda_.9} parent=11 // pred_region
          %492 = vsyncadd [#allocation14], 0
          %s494 = sshll.u32 %s12, 4
          %s495 = int_to_ptr.hbm [resolvable:$true] %s494
          %s496 = sshll.u32 [#allocation13], 4
          %s497 = int_to_ptr.vmem [resolvable:$true] %s496
          %499 = dma.hbm_to_vmem [thread:$0]  %s495, 16, %s497, [#allocation14]
        $region60: #{_lambda_.9} parent=11 // pred_fallthru
          _
        // Predicated region
        $region61: #{_lambda_.9} parent=11 // pred_check
          %p500 = pneg %p326
        $region62: #{_lambda_.9} parent=11 // pred_check_branch
          %502 = sbr.rel (%p500) target = $region64
        $region63: #{_lambda_.9} parent=11 // pred_region
          %504 = vsyncadd [#allocation14], 0
          %s506 = sshll.u32 %s13, 4
          %s507 = int_to_ptr.hbm [resolvable:$true] %s506
          %s508 = sshll.u32 [#allocation15], 4
          %s509 = int_to_ptr.vmem [resolvable:$true] %s508
          %511 = dma.hbm_to_vmem [thread:$0]  %s507, 16, %s509, [#allocation14]
        $region64: #{_lambda_.9} parent=11 // pred_fallthru
          _
        // Predicated region
        $region65: #{_lambda_.9} parent=11 // pred_check
          %p512 = pneg %p347
        $region66: #{_lambda_.9} parent=11 // pred_check_branch
          %514 = sbr.rel (%p512) target = $region68
        $region67: #{_lambda_.9} parent=11 // pred_region
          %516 = vsyncadd [#allocation17], 0
          %s518 = sshll.u32 %s14, 4
          %s519 = int_to_ptr.hbm [resolvable:$true] %s518
          %s520 = sshll.u32 [#allocation16], 4
          %s521 = int_to_ptr.vmem [resolvable:$true] %s520
          %523 = dma.hbm_to_vmem [thread:$0]  %s519, 16, %s521, [#allocation17]
        $region68: #{_lambda_.9} parent=11 // pred_fallthru
          _
      $region12: #{_lambda_.9} parent=5 // pred_fallthru
        _
      %p524 = scmp.lt.s32.totalorder %s27, 2
      // Predicated region
      $region69: #{_lambda_.9} parent=5 // pred_check
        %p525 = pneg %p524
      $region70: #{_lambda_.9} parent=5 // pred_check_branch
        %527 = sbr.rel (%p525) target = $region72
      $region71: #{_lambda_.9} parent=5 // pred_region
        // Predicated region
        $region73: #{_lambda_.9} parent=71 // pred_check
          %p528 = pneg %p47
        $region74: #{_lambda_.9} parent=71 // pred_check_branch
          %530 = sbr.rel (%p528) target = $region76
        $region75: #{_lambda_.9} parent=71 // pred_region
          %p531 = scmp.lt.s32.totalorder %s27, 1
          %s532 = scalar_select %p531, %s27, 1
          %s533 = smul.addr %s532, 8
          %s534 = scalar_lea.vmem %s0, %s533
        $region76: #{_lambda_.9} parent=71 // pred_fallthru
          _
      $region72: #{_lambda_.9} parent=5 // pred_fallthru
        _
      %p535 = scmp.le.s32.totalorder 1, %s27
      %p536 = scmp.lt.s32.totalorder %s27, 3
      %p537 = pnand %p535, %p536
      %p538 = pneg %p537
      // Predicated region
      $region77: #{_lambda_.9} parent=5 // pred_check
        _
      $region78: #{_lambda_.9} parent=5 // pred_check_branch
        %540 = sbr.rel (%p537) target = $region80
      $region79: #{_lambda_.9} parent=5 // pred_region
        %s541 = ssub.s32 %s27, 1
        // Predicated region
        $region81: #{_lambda_.9} parent=79 // pred_check
          %p542 = pneg %p137
        $region82: #{_lambda_.9} parent=79 // pred_check_branch
          %544 = sbr.rel (%p542) target = $region84
        $region83: #{_lambda_.9} parent=79 // pred_region
          %546 = dma.done [#allocation3], 16
        $region84: #{_lambda_.9} parent=79 // pred_fallthru
          _
        // Predicated region
        $region85: #{_lambda_.9} parent=79 // pred_check
          %p547 = pneg %p179
        $region86: #{_lambda_.9} parent=79 // pred_check_branch
          %549 = sbr.rel (%p547) target = $region88
        $region87: #{_lambda_.9} parent=79 // pred_region
          %551 = dma.done [#allocation5], 16
        $region88: #{_lambda_.9} parent=79 // pred_fallthru
          _
        // Predicated region
        $region89: #{_lambda_.9} parent=79 // pred_check
          %p552 = pneg %p200
        $region90: #{_lambda_.9} parent=79 // pred_check_branch
          %554 = sbr.rel (%p552) target = $region92
        $region91: #{_lambda_.9} parent=79 // pred_region
          %556 = dma.done [#allocation5], 16
        $region92: #{_lambda_.9} parent=79 // pred_fallthru
          _
        // Predicated region
        $region93: #{_lambda_.9} parent=79 // pred_check
          %p557 = pneg %p221
        $region94: #{_lambda_.9} parent=79 // pred_check_branch
          %559 = sbr.rel (%p557) target = $region96
        $region95: #{_lambda_.9} parent=79 // pred_region
          %561 = dma.done [#allocation8], 16
        $region96: #{_lambda_.9} parent=79 // pred_fallthru
          _
        // Predicated region
        $region97: #{_lambda_.9} parent=79 // pred_check
          %p562 = pneg %p242
        $region98: #{_lambda_.9} parent=79 // pred_check_branch
          %564 = sbr.rel (%p562) target = $region100
        $region99: #{_lambda_.9} parent=79 // pred_region
          %566 = dma.done [#allocation8], 256
        $region100: #{_lambda_.9} parent=79 // pred_fallthru
          _
        // Predicated region
        $region101: #{_lambda_.9} parent=79 // pred_check
          %p567 = pneg %p263
        $region102: #{_lambda_.9} parent=79 // pred_check_branch
          %569 = sbr.rel (%p567) target = $region104
        $region103: #{_lambda_.9} parent=79 // pred_region
          %571 = dma.done [#allocation11], 16
        $region104: #{_lambda_.9} parent=79 // pred_fallthru
          _
        // Predicated region
        $region105: #{_lambda_.9} parent=79 // pred_check
          %p572 = pneg %p284
        $region106: #{_lambda_.9} parent=79 // pred_check_branch
          %574 = sbr.rel (%p572) target = $region108
        $region107: #{_lambda_.9} parent=79 // pred_region
          %576 = dma.done [#allocation11], 256
        $region108: #{_lambda_.9} parent=79 // pred_fallthru
          _
        // Predicated region
        $region109: #{_lambda_.9} parent=79 // pred_check
          %p577 = pneg %p305
        $region110: #{_lambda_.9} parent=79 // pred_check_branch
          %579 = sbr.rel (%p577) target = $region112
        $region111: #{_lambda_.9} parent=79 // pred_region
          %581 = dma.done [#allocation14], 16
        $region112: #{_lambda_.9} parent=79 // pred_fallthru
          _
        // Predicated region
        $region113: #{_lambda_.9} parent=79 // pred_check
          %p582 = pneg %p326
        $region114: #{_lambda_.9} parent=79 // pred_check_branch
          %584 = sbr.rel (%p582) target = $region116
        $region115: #{_lambda_.9} parent=79 // pred_region
          %586 = dma.done [#allocation14], 16
        $region116: #{_lambda_.9} parent=79 // pred_fallthru
          _
        // Predicated region
        $region117: #{_lambda_.9} parent=79 // pred_check
          %p587 = pneg %p347
        $region118: #{_lambda_.9} parent=79 // pred_check_branch
          %589 = sbr.rel (%p587) target = $region120
        $region119: #{_lambda_.9} parent=79 // pred_region
          %591 = dma.done [#allocation17], 16
        $region120: #{_lambda_.9} parent=79 // pred_fallthru
          _
        %p592 = scmp.lt.s32.totalorder %s32, 1
        %s593 = scalar_select %p592, %s32, 1
        %s594 = smul.addr %s593, 8
        %s595 = scalar_lea.vmem %s0, %s594
        %p596 = pneg %p53
        %p597 = pneg %p50
        %p598 = pneg %p74
        %p599 = pneg %p71
        %p600 = pneg %p95
        %p601 = pneg %p92
        %p602 = pneg %p116
        %p603 = pneg %p113
        %p604 = pneg %p137
        %p605 = pneg %p134
        %p606 = pneg %p158
        %p607 = pneg %p155
        %p608 = pneg %p179
        %p609 = pneg %p176
        %p610 = pneg %p200
        %p611 = pneg %p197
        %p612 = pneg %p221
        %p613 = pneg %p218
        %p614 = pneg %p242
        %p615 = pneg %p239
        %p616 = pneg %p263
        %p617 = pneg %p260
        %p618 = pneg %p284
        %p619 = pneg %p281
        %p620 = pneg %p305
        %p621 = pneg %p302
        %p622 = pneg %p326
        %p623 = pneg %p323
        %p624 = pneg %p347
        %p625 = pneg %p344
        %p626 = pneg %p373
        %p627 = pneg %p370
        %p628 = scmp.lt.s32.totalorder %s32, 1
        %s629 = scalar_select %p628, %s32, 1
        %s630 = smul.addr %s629, 8
        %s631 = scalar_lea.vmem %s15, %s630
        %p632 = scmp.lt.s32.totalorder %s32, 1
        %s633 = scalar_select %p632, %s32, 1
        %s634 = smul.addr %s633, 8
        %s635 = scalar_lea.vmem %s0, %s634
        %p636 = scmp.lt.s32.totalorder %s32, 1
        %s637 = scalar_select %p636, %s32, 1
        %s638 = smul.addr %s637, 8
        %s639 = scalar_lea.vmem %s15, %s638
        %v641 = vld [vmem:[%s635] sm:$0xff]
        %v642 = vpack.c.bf16 %v641, %v641
        %v643 = vld [vmem:[%s1] sm:$0xf]
        %v644 = vld [vmem:[%s1 + $0x4] sm:$0xf]
        %v645 = vld [vmem:[%s1 + $0x8] sm:$0xf]
        %v646 = vld [vmem:[%s1 + $0xc] sm:$0xf]
        %v647 = vld [vmem:[%s2] sm:$0x1]
        %v649 = vperm.slane %v647, 0
        %v655 = vunpack.c.l.b16 %v643
        %v656 = vunpack.c.l.b16 %v644
        %v657 = vunpack.c.l.b16 %v645
        %v658 = vunpack.c.l.b16 %v646
        %v659 = vpack.c.b16 %v656, %v655
        %v660 = vpack.c.b16 %v658, %v657
        %vm663 = vcmask 261120
        %v665 = vsel %vm663, %v642, 0
        %667 = vmatpush.bf16.msra.mxu0 0
        %668 = vmatpush.bf16.msra.mxu0 0
        %669 = vmatpush.bf16.msra.mxu0 0
        %670 = vmatpush.bf16.msra.mxu0 0
        %671 = vmatpush.bf16.msra.mxu0 0
        %672 = vmatpush.bf16.msra.mxu0 0
        %673 = vmatpush.bf16.msra.mxu0 %v660
        %674 = vmatpush.bf16.msra.mxu0 %v659
        %675 = vmatmul.bf16.gmra.mxu0 %v665
        %v676 = vpop.f32.mrf.mxu0
        %v677 = vadd.f32 %v649, %v676
        %v678 = vpop.f32.mrf.mxu0
        %679 = vdwg.mxu0
        %v680 = vld [vmem:[%s3] sm:$0xf]
        %v681 = vld [vmem:[%s3 + $0x4] sm:$0xf]
        %v682 = vld [vmem:[%s3 + $0x8] sm:$0xf]
        %v683 = vld [vmem:[%s3 + $0xc] sm:$0xf]
        %v684 = vld [vmem:[#allocation2] sm:$0x1]
        %v686 = vperm.slane %v684, 0
        %v692 = vunpack.c.l.b16 %v680
        %v693 = vunpack.c.l.b16 %v681
        %v694 = vunpack.c.l.b16 %v682
        %v695 = vunpack.c.l.b16 %v683
        %v696 = vpack.c.b16 %v693, %v692
        %v697 = vpack.c.b16 %v695, %v694
        %700 = vmatpush.bf16.msra.mxu0 0
        %701 = vmatpush.bf16.msra.mxu0 0
        %702 = vmatpush.bf16.msra.mxu0 0
        %703 = vmatpush.bf16.msra.mxu0 0
        %704 = vmatpush.bf16.msra.mxu0 0
        %705 = vmatpush.bf16.msra.mxu0 0
        %706 = vmatpush.bf16.msra.mxu0 %v697
        %707 = vmatpush.bf16.msra.mxu0 %v696
        %708 = vmatmul.bf16.gmra.mxu0 %v665
        %v709 = vpop.f32.mrf.mxu0
        %v710 = vadd.f32 %v686, %v709
        %v711 = vpop.f32.mrf.mxu0
        %712 = vdwg.mxu0
        %v713 = vlaneseq
        %v714 = vshrl.u32 %v713, 7
        %v715 = vlaneseq
        %v716 = vand.u32 %v715, 127
        %vm717 = vcmp.gt.s32.totalorder %v716, %v714
        %v718 = vsel %vm717, -1e+30, 0.0
        %v719 = vld [vmem:[%s5] sm:$0xf]
        %v720 = vld [vmem:[%s5 + $0x4] sm:$0xf]
        %v721 = vld [vmem:[%s5 + $0x8] sm:$0xf]
        %v722 = vld [vmem:[%s5 + $0xc] sm:$0xf]
        %v723 = vpack.c.bf16 %v677, %v677
        %v724 = vpack.c.bf16 %v710, %v710
        %vm725 = vcmask 64512
        %v727 = vsel %vm725, %v723, 0
        %v730 = vsel %vm725, %v724, 0
        %732 = vmatpush.bf16.xpose.msra.mxu0 0
        %733 = vmatpush.bf16.xpose.msra.mxu0 0
        %734 = vmatpush.bf16.xpose.msra.mxu0 0
        %735 = vmatpush.bf16.xpose.msra.mxu0 0
        %736 = vmatpush.bf16.xpose.msra.mxu0 0
        %737 = vmatpush.bf16.xpose.msra.mxu0 0
        %738 = vmatpush.bf16.xpose.msra.mxu0 0
        %739 = vmatpush.bf16.xpose.msra.mxu0 %v730
        %740 = vmatmul.bf16.gmra.mxu0 %v727
        %v741 = vpop.f32.mrf.mxu0
        %v742 = vadd.f32 %v718, %v741
        %v743 = vpop.f32.mrf.mxu0
        %744 = vdwg.mxu0
        %v745 = vsel %vm725, %v742, -inf
        %746 = vmax.xlane.f32.xlu0 %v745
        %v747 = vpop.xlane.xlu0 %746
        %v748 = vsub.f32 %v742, %v747
        %v749 = vmul.f32 %v748, 1.442695
        %v750 = vpow.pop %v749
        %v751 = vsel %vm725, %v750, 0.0
        %752 = vadd.xlane.f32.xlu0 %v751
        %v753 = vpop.xlane.xlu0 %752
        %v754 = vrcp.pop %v753
        %v755 = vmul.f32 %v750, %v754
        %v756 = vpack.c.bf16 %v755, %v755
        %758 = vrot.lane.b32.xlu0 %v724, 96
        %v759 = vpop.permute.xlu0 %758
        %v761 = vsel %vm725, %v756, 0
        %vm763 = vcmask 1043456
        %v765 = vsel %vm763, %v759, 0
        %767 = vmatpush.bf16.msra.mxu0 0
        %768 = vmatpush.bf16.msra.mxu0 0
        %769 = vmatpush.bf16.msra.mxu0 0
        %770 = vmatpush.bf16.msra.mxu0 0
        %771 = vmatpush.bf16.msra.mxu0 0
        %772 = vmatpush.bf16.msra.mxu0 0
        %773 = vmatpush.bf16.msra.mxu0 0
        %774 = vmatpush.bf16.msra.mxu0 %v765
        %775 = vmatmul.bf16.gmra.mxu0 %v761
        %v776 = vpop.f32.mrf.mxu0
        %v777 = vadd.f32 0.0, %v776
        %v778 = vpop.f32.mrf.mxu0
        %779 = vdwg.mxu0
        %v780 = vpack.c.bf16 %v777, %v777
        %782 = vrot.lane.b32.xlu0 %v723, 120
        %v783 = vpop.permute.xlu0 %782
        %784 = vrot.lane.b32.xlu0 %v724, 120
        %v785 = vpop.permute.xlu0 %784
        %v787 = vsel %vm725, %v783, 0
        %v790 = vsel %vm725, %v785, 0
        %792 = vmatpush.bf16.xpose.msra.mxu0 0
        %793 = vmatpush.bf16.xpose.msra.mxu0 0
        %794 = vmatpush.bf16.xpose.msra.mxu0 0
        %795 = vmatpush.bf16.xpose.msra.mxu0 0
        %796 = vmatpush.bf16.xpose.msra.mxu0 0
        %797 = vmatpush.bf16.xpose.msra.mxu0 0
        %798 = vmatpush.bf16.xpose.msra.mxu0 0
        %799 = vmatpush.bf16.xpose.msra.mxu0 %v790
        %800 = vmatmul.bf16.gmra.mxu0 %v787
        %v801 = vpop.f32.mrf.mxu0
        %v802 = vadd.f32 %v718, %v801
        %v803 = vpop.f32.mrf.mxu0
        %804 = vdwg.mxu0
        %v805 = vsel %vm725, %v802, -inf
        %806 = vmax.xlane.f32.xlu0 %v805
        %v807 = vpop.xlane.xlu0 %806
        %v808 = vsub.f32 %v802, %v807
        %v809 = vmul.f32 %v808, 1.442695
        %v810 = vpow.pop %v809
        %v811 = vsel %vm725, %v810, 0.0
        %812 = vadd.xlane.f32.xlu0 %v811
        %v813 = vpop.xlane.xlu0 %812
        %v814 = vrcp.pop %v813
        %v815 = vmul.f32 %v810, %v814
        %v816 = vpack.c.bf16 %v815, %v815
        %817 = vrot.lane.b32.xlu0 %v724, 88
        %v818 = vpop.permute.xlu0 %817
        %v820 = vsel %vm725, %v816, 0
        %v823 = vsel %vm763, %v818, 0
        %825 = vmatpush.bf16.msra.mxu0 0
        %826 = vmatpush.bf16.msra.mxu0 0
        %827 = vmatpush.bf16.msra.mxu0 0
        %828 = vmatpush.bf16.msra.mxu0 0
        %829 = vmatpush.bf16.msra.mxu0 0
        %830 = vmatpush.bf16.msra.mxu0 0
        %831 = vmatpush.bf16.msra.mxu0 0
        %832 = vmatpush.bf16.msra.mxu0 %v823
        %833 = vmatmul.bf16.gmra.mxu0 %v820
        %v834 = vpop.f32.mrf.mxu0
        %v835 = vadd.f32 0.0, %v834
        %v836 = vpop.f32.mrf.mxu0
        %837 = vdwg.mxu0
        %v838 = vpack.c.bf16 %v835, %v835
        %v840 = vsel %vm725, %v838, 0
        %v843 = vsel %vm763, %v720, 0
        %845 = vmatpush.bf16.msra.mxu0 0
        %846 = vmatpush.bf16.msra.mxu0 0
        %847 = vmatpush.bf16.msra.mxu0 0
        %848 = vmatpush.bf16.msra.mxu0 0
        %849 = vmatpush.bf16.msra.mxu0 0
        %850 = vmatpush.bf16.msra.mxu0 0
        %851 = vmatpush.bf16.msra.mxu0 0
        %852 = vmatpush.bf16.msra.mxu0 %v843
        %853 = vmatmul.bf16.gmra.mxu0 %v840
        %v854 = vpop.f32.mrf.mxu0
        %v855 = vadd.f32 0.0, %v854
        %v856 = vpop.f32.mrf.mxu0
        %857 = vdwg.mxu0
        %v859 = vsel %vm725, %v780, 0
        %v862 = vsel %vm763, %v719, 0
        %864 = vmatpush.bf16.msra.mxu0 0
        %865 = vmatpush.bf16.msra.mxu0 0
        %866 = vmatpush.bf16.msra.mxu0 0
        %867 = vmatpush.bf16.msra.mxu0 0
        %868 = vmatpush.bf16.msra.mxu0 0
        %869 = vmatpush.bf16.msra.mxu0 0
        %870 = vmatpush.bf16.msra.mxu0 0
        %871 = vmatpush.bf16.msra.mxu0 %v862
        %872 = vmatmul.bf16.gmra.mxu0 %v859
        %v873 = vpop.f32.mrf.mxu0
        %v874 = vadd.f32 %v855, %v873
        %v875 = vpop.f32.mrf.mxu0
        %876 = vdwg.mxu0
        %877 = vrot.lane.b32.xlu0 %v723, 112
        %v878 = vpop.permute.xlu0 %877
        %879 = vrot.lane.b32.xlu0 %v724, 112
        %v880 = vpop.permute.xlu0 %879
        %v882 = vsel %vm725, %v878, 0
        %v885 = vsel %vm725, %v880, 0
        %887 = vmatpush.bf16.xpose.msra.mxu0 0
        %888 = vmatpush.bf16.xpose.msra.mxu0 0
        %889 = vmatpush.bf16.xpose.msra.mxu0 0
        %890 = vmatpush.bf16.xpose.msra.mxu0 0
        %891 = vmatpush.bf16.xpose.msra.mxu0 0
        %892 = vmatpush.bf16.xpose.msra.mxu0 0
        %893 = vmatpush.bf16.xpose.msra.mxu0 0
        %894 = vmatpush.bf16.xpose.msra.mxu0 %v885
        %895 = vmatmul.bf16.gmra.mxu0 %v882
        %v896 = vpop.f32.mrf.mxu0
        %v897 = vadd.f32 %v718, %v896
        %v898 = vpop.f32.mrf.mxu0
        %899 = vdwg.mxu0
        %v900 = vsel %vm725, %v897, -inf
        %901 = vmax.xlane.f32.xlu0 %v900
        %v902 = vpop.xlane.xlu0 %901
        %v903 = vsub.f32 %v897, %v902
        %v904 = vmul.f32 %v903, 1.442695
        %v905 = vpow.pop %v904
        %v906 = vsel %vm725, %v905, 0.0
        %907 = vadd.xlane.f32.xlu0 %v906
        %v908 = vpop.xlane.xlu0 %907
        %v909 = vrcp.pop %v908
        %v910 = vmul.f32 %v905, %v909
        %v911 = vpack.c.bf16 %v910, %v910
        %912 = vrot.lane.b32.xlu0 %v724, 80
        %v913 = vpop.permute.xlu0 %912
        %v915 = vsel %vm725, %v911, 0
        %v918 = vsel %vm763, %v913, 0
        %920 = vmatpush.bf16.msra.mxu0 0
        %921 = vmatpush.bf16.msra.mxu0 0
        %922 = vmatpush.bf16.msra.mxu0 0
        %923 = vmatpush.bf16.msra.mxu0 0
        %924 = vmatpush.bf16.msra.mxu0 0
        %925 = vmatpush.bf16.msra.mxu0 0
        %926 = vmatpush.bf16.msra.mxu0 0
        %927 = vmatpush.bf16.msra.mxu0 %v918
        %928 = vmatmul.bf16.gmra.mxu0 %v915
        %v929 = vpop.f32.mrf.mxu0
        %v930 = vadd.f32 0.0, %v929
        %v931 = vpop.f32.mrf.mxu0
        %932 = vdwg.mxu0
        %v933 = vpack.c.bf16 %v930, %v930
        %v935 = vsel %vm725, %v933, 0
        %v938 = vsel %vm763, %v721, 0
        %940 = vmatpush.bf16.msra.mxu0 0
        %941 = vmatpush.bf16.msra.mxu0 0
        %942 = vmatpush.bf16.msra.mxu0 0
        %943 = vmatpush.bf16.msra.mxu0 0
        %944 = vmatpush.bf16.msra.mxu0 0
        %945 = vmatpush.bf16.msra.mxu0 0
        %946 = vmatpush.bf16.msra.mxu0 0
        %947 = vmatpush.bf16.msra.mxu0 %v938
        %948 = vmatmul.bf16.gmra.mxu0 %v935
        %v949 = vpop.f32.mrf.mxu0
        %v950 = vadd.f32 0.0, %v949
        %v951 = vpop.f32.mrf.mxu0
        %952 = vdwg.mxu0
        %v953 = vadd.f32 %v874, %v950
        %954 = vrot.lane.b32.xlu0 %v723, 104
        %v955 = vpop.permute.xlu0 %954
        %956 = vrot.lane.b32.xlu0 %v724, 104
        %v957 = vpop.permute.xlu0 %956
        %v959 = vsel %vm725, %v955, 0
        %v962 = vsel %vm725, %v957, 0
        %964 = vmatpush.bf16.xpose.msra.mxu0 0
        %965 = vmatpush.bf16.xpose.msra.mxu0 0
        %966 = vmatpush.bf16.xpose.msra.mxu0 0
        %967 = vmatpush.bf16.xpose.msra.mxu0 0
        %968 = vmatpush.bf16.xpose.msra.mxu0 0
        %969 = vmatpush.bf16.xpose.msra.mxu0 0
        %970 = vmatpush.bf16.xpose.msra.mxu0 0
        %971 = vmatpush.bf16.xpose.msra.mxu0 %v962
        %972 = vmatmul.bf16.gmra.mxu0 %v959
        %v973 = vpop.f32.mrf.mxu0
        %v974 = vadd.f32 %v718, %v973
        %v975 = vpop.f32.mrf.mxu0
        %976 = vdwg.mxu0
        %v977 = vsel %vm725, %v974, -inf
        %978 = vmax.xlane.f32.xlu0 %v977
        %v979 = vpop.xlane.xlu0 %978
        %v980 = vsub.f32 %v974, %v979
        %v981 = vmul.f32 %v980, 1.442695
        %v982 = vpow.pop %v981
        %v983 = vsel %vm725, %v982, 0.0
        %984 = vadd.xlane.f32.xlu0 %v983
        %v985 = vpop.xlane.xlu0 %984
        %v986 = vrcp.pop %v985
        %v987 = vmul.f32 %v982, %v986
        %v988 = vpack.c.bf16 %v987, %v987
        %989 = vrot.lane.b32.xlu0 %v724, 72
        %v990 = vpop.permute.xlu0 %989
        %v992 = vsel %vm725, %v988, 0
        %v995 = vsel %vm763, %v990, 0
        %997 = vmatpush.bf16.msra.mxu0 0
        %998 = vmatpush.bf16.msra.mxu0 0
        %999 = vmatpush.bf16.msra.mxu0 0
        %1000 = vmatpush.bf16.msra.mxu0 0
        %1001 = vmatpush.bf16.msra.mxu0 0
        %1002 = vmatpush.bf16.msra.mxu0 0
        %1003 = vmatpush.bf16.msra.mxu0 0
        %1004 = vmatpush.bf16.msra.mxu0 %v995
        %1005 = vmatmul.bf16.gmra.mxu0 %v992
        %v1006 = vpop.f32.mrf.mxu0
        %v1007 = vadd.f32 0.0, %v1006
        %v1008 = vpop.f32.mrf.mxu0
        %1009 = vdwg.mxu0
        %v1010 = vpack.c.bf16 %v1007, %v1007
        %v1012 = vsel %vm725, %v1010, 0
        %v1015 = vsel %vm763, %v722, 0
        %1017 = vmatpush.bf16.msra.mxu0 0
        %1018 = vmatpush.bf16.msra.mxu0 0
        %1019 = vmatpush.bf16.msra.mxu0 0
        %1020 = vmatpush.bf16.msra.mxu0 0
        %1021 = vmatpush.bf16.msra.mxu0 0
        %1022 = vmatpush.bf16.msra.mxu0 0
        %1023 = vmatpush.bf16.msra.mxu0 0
        %1024 = vmatpush.bf16.msra.mxu0 %v1015
        %1025 = vmatmul.bf16.gmra.mxu0 %v1012
        %v1026 = vpop.f32.mrf.mxu0
        %v1027 = vadd.f32 0.0, %v1026
        %v1028 = vpop.f32.mrf.mxu0
        %1029 = vdwg.mxu0
        %v1030 = vadd.f32 %v953, %v1027
        %v1031 = vld [vmem:[#allocation4] sm:$0x1]
        %v1033 = vperm.slane %v1031, 0
        %v1035 = vadd.f32 %v1030, %v1033
        %v1036 = vld [vmem:[#allocation6] sm:$0x1]
        %v1037 = vld [vmem:[#allocation7] sm:$0x1]
        %v1038 = vadd.f32 %v641, %v1035
        %v1039 = vsel %vm663, %v1038, 0.0
        %1040 = vadd.xlane.f32.xlu0 %v1039
        %v1041 = vpop.xlane.xlu0 %1040
        %v1042 = vrcp.pop 32.0
        %v1043 = vmul.f32 32.0, %v1042
        %v1044 = vsub.f32 1.0, %v1043
        %v1045 = vmul.f32 %v1042, %v1044
        %v1046 = vadd.f32 %v1042, %v1045
        %vm1047 = vweird.f32 %v1042
        %v1048 = vsel %vm1047, %v1042, %v1046
        %v1049 = vmul.f32 %v1041, %v1048
        %v1050 = vsub.f32 %v1038, %v1049
        %v1051 = vmul.f32 %v1050, %v1050
        %v1052 = vsel %vm663, %v1051, 0.0
        %1053 = vadd.xlane.f32.xlu0 %v1052
        %v1054 = vpop.xlane.xlu0 %1053
        %v1055 = vmul.f32 %v1054, %v1048
        %v1056 = vadd.f32 %v1055, 1e-05
        %v1057 = vrsqrt.pop %v1056
        %v1058 = vmul.f32 %v1057, %v1056
        %v1059 = vmul.f32 %v1058, %v1057
        %v1060 = vmul.f32 0.5, %v1059
        %v1061 = vsub.f32 1.5, %v1060
        %v1062 = vmul.f32 %v1057, %v1061
        %vm1063 = vweird.f32 %v1056
        %vm1064 = vweird.f32 %v1057
        %vm1065 = vmor %vm1063, %vm1064
        %v1066 = vsel %vm1065, %v1057, %v1062
        %v1067 = vmul.f32 %v1050, %v1066
        %v1069 = vperm.slane %v1036, 0
        %v1071 = vmul.f32 %v1067, %v1069
        %v1073 = vperm.slane %v1037, 0
        %v1075 = vadd.f32 %v1071, %v1073
        %v1076 = vpack.c.bf16 %v1075, %v1075
        %v1077 = vld [vmem:[#allocation9] sm:$0xf]
        %v1078 = vld [vmem:[#allocation9 + $0x4] sm:$0xf]
        %v1079 = vld [vmem:[#allocation9 + $0x8] sm:$0xf]
        %v1080 = vld [vmem:[#allocation9 + $0xc] sm:$0xf]
        %v1081 = vld [vmem:[#allocation10] sm:$0x1]
        %v1083 = vperm.slane %v1081, 0
        %v1089 = vunpack.c.l.b16 %v1077
        %v1090 = vunpack.c.l.b16 %v1078
        %v1091 = vunpack.c.l.b16 %v1079
        %v1092 = vunpack.c.l.b16 %v1080
        %v1093 = vpack.c.b16 %v1090, %v1089
        %v1094 = vpack.c.b16 %v1092, %v1091
        %v1098 = vsel %vm663, %v1076, 0
        %1100 = vmatpush.bf16.msra.mxu0 0
        %1101 = vmatpush.bf16.msra.mxu0 0
        %1102 = vmatpush.bf16.msra.mxu0 0
        %1103 = vmatpush.bf16.msra.mxu0 0
        %1104 = vmatpush.bf16.msra.mxu0 0
        %1105 = vmatpush.bf16.msra.mxu0 0
        %1106 = vmatpush.bf16.msra.mxu0 %v1094
        %1107 = vmatpush.bf16.msra.mxu0 %v1093
        %1108 = vmatmul.bf16.gmra.mxu0 %v1098
        %v1109 = vpop.f32.mrf.mxu0
        %v1110 = vadd.f32 %v1083, %v1109
        %v1111 = vpop.f32.mrf.mxu0
        %1112 = vdwg.mxu0
        %vm1113 = vcmp.le.s32.totalorder %v716, %v714
        %v1114 = vsel %vm1113, 1.0, 0.0
        %v1115 = vpack.c.bf16 %v1114, %v1114
        %v1116 = vpack.c.bf16 %v1110, %v1110
        %v1118 = vsel %vm725, %v1115, 0
        %v1121 = vsel %vm763, %v1116, 0
        %1123 = vmatpush.bf16.msra.mxu0 0
        %1124 = vmatpush.bf16.msra.mxu0 0
        %1125 = vmatpush.bf16.msra.mxu0 0
        %1126 = vmatpush.bf16.msra.mxu0 0
        %1127 = vmatpush.bf16.msra.mxu0 0
        %1128 = vmatpush.bf16.msra.mxu0 0
        %1129 = vmatpush.bf16.msra.mxu0 0
        %1130 = vmatpush.bf16.msra.mxu0 %v1121
        %1131 = vmatmul.bf16.gmra.mxu0 %v1118
        %v1132 = vpop.f32.mrf.mxu0
        %v1133 = vadd.f32 0.0, %v1132
        %v1134 = vpop.f32.mrf.mxu0
        %1135 = vdwg.mxu0
        %v1136 = vadd.s32 %v714, 1
        %v1137 = vcvt.s32.f32 %v1136
        %v1138 = vrcp.pop %v1137
        %v1139 = vmul.f32 %v1137, %v1138
        %v1140 = vsub.f32 1.0, %v1139
        %v1141 = vmul.f32 %v1138, %v1140
        %v1142 = vadd.f32 %v1138, %v1141
        %vm1143 = vweird.f32 %v1137
        %vm1144 = vweird.f32 %v1138
        %vm1145 = vmor %vm1143, %vm1144
        %v1146 = vsel %vm1145, %v1138, %v1142
        %v1147 = vand.u32 2147483647, %v1137
        %vm1148 = vcmp.eq.f32.partialorder %v1147, 8.507059e+37
        %v1149 = vand.u32 %v1137, 2147483648
        %v1150 = vor.u32 1.1754944e-38, %v1149
        %v1151 = vsel %vm1148, %v1150, %v1146
        %v1152 = vmul.f32 1.0, %v1151
        %v1153 = vmul.f32 %v1133, %v1152
        %v1154 = vpack.c.bf16 %v1153, %v1153
        %v1155 = vld [vmem:[#allocation12] sm:$0xf]
        %v1156 = vld [vmem:[#allocation12 + $0x4] sm:$0xf]
        %v1157 = vld [vmem:[#allocation12 + $0x8] sm:$0xf]
        %v1158 = vld [vmem:[#allocation12 + $0xc] sm:$0xf]
        %v1159 = vld [vmem:[#allocation13] sm:$0x1]
        %v1161 = vperm.slane %v1159, 0
        %v1167 = vunpack.c.l.b16 %v1155
        %v1168 = vunpack.c.l.b16 %v1156
        %v1169 = vunpack.c.l.b16 %v1157
        %v1170 = vunpack.c.l.b16 %v1158
        %v1171 = vpack.c.b16 %v1168, %v1167
        %v1172 = vpack.c.b16 %v1170, %v1169
        %v1176 = vsel %vm663, %v1154, 0
        %1178 = vmatpush.bf16.msra.mxu0 0
        %1179 = vmatpush.bf16.msra.mxu0 0
        %1180 = vmatpush.bf16.msra.mxu0 0
        %1181 = vmatpush.bf16.msra.mxu0 0
        %1182 = vmatpush.bf16.msra.mxu0 0
        %1183 = vmatpush.bf16.msra.mxu0 0
        %1184 = vmatpush.bf16.msra.mxu0 %v1172
        %1185 = vmatpush.bf16.msra.mxu0 %v1171
        %1186 = vmatmul.bf16.gmra.mxu0 %v1176
        %v1187 = vpop.f32.mrf.mxu0
        %v1188 = vadd.f32 %v1161, %v1187
        %v1189 = vpop.f32.mrf.mxu0
        %1190 = vdwg.mxu0
        %v1191 = vld [vmem:[#allocation15] sm:$0x1]
        %v1192 = vld [vmem:[#allocation16] sm:$0x1]
        %v1193 = vadd.f32 %v1075, %v1188
        %v1194 = vsel %vm663, %v1193, 0.0
        %1195 = vadd.xlane.f32.xlu0 %v1194
        %v1196 = vpop.xlane.xlu0 %1195
        %v1197 = vmul.f32 %v1196, %v1048
        %v1198 = vsub.f32 %v1193, %v1197
        %v1199 = vmul.f32 %v1198, %v1198
        %v1200 = vsel %vm663, %v1199, 0.0
        %1201 = vadd.xlane.f32.xlu0 %v1200
        %v1202 = vpop.xlane.xlu0 %1201
        %v1203 = vmul.f32 %v1202, %v1048
        %v1204 = vadd.f32 %v1203, 1e-05
        %v1205 = vrsqrt.pop %v1204
        %v1206 = vmul.f32 %v1205, %v1204
        %v1207 = vmul.f32 %v1206, %v1205
        %v1208 = vmul.f32 0.5, %v1207
        %v1209 = vsub.f32 1.5, %v1208
        %v1210 = vmul.f32 %v1205, %v1209
        %vm1211 = vweird.f32 %v1204
        %vm1212 = vweird.f32 %v1205
        %vm1213 = vmor %vm1211, %vm1212
        %v1214 = vsel %vm1213, %v1205, %v1210
        %v1215 = vmul.f32 %v1198, %v1214
        %v1217 = vperm.slane %v1191, 0
        %v1219 = vmul.f32 %v1215, %v1217
        %v1221 = vperm.slane %v1192, 0
        %v1223 = vadd.f32 %v1219, %v1221
        %1224 = vst.msk [vmem:[%s639] sm:$0xff] %vm663, %v1223
        %p1225 = scmp.lt.s32.totalorder %s32, 1
        %s1226 = scalar_select %p1225, %s32, 1
        %s1227 = smul.addr %s1226, 8
        %s1228 = scalar_lea.vmem %s15, %s1227
        // Predicated region
        $region121: #{_lambda_.9} parent=79 // pred_check
          %p1229 = pneg %p370
        $region122: #{_lambda_.9} parent=79 // pred_check_branch
          %1231 = sbr.rel (%p1229) target = $region124
        $region123: #{_lambda_.9} parent=79 // pred_region
          _
        $region124: #{_lambda_.9} parent=79 // pred_fallthru
          _
      $region80: #{_lambda_.9} parent=5 // pred_fallthru
        _
      %p1232 = scmp.le.s32.totalorder 2, %s27
      // Predicated region
      $region125: #{_lambda_.9} parent=5 // pred_check
        %p1233 = pneg %p1232
      $region126: #{_lambda_.9} parent=5 // pred_check_branch
        %1235 = sbr.rel (%p1233) target = $region128
      $region127: #{_lambda_.9} parent=5 // pred_region
        %s1236 = ssub.s32 %s27, 2
        // Predicated region
        $region129: #{_lambda_.9} parent=127 // pred_check
          %p1237 = pneg %p376
        $region130: #{_lambda_.9} parent=127 // pred_check_branch
          %1239 = sbr.rel (%p1237) target = $region132
        $region131: #{_lambda_.9} parent=127 // pred_region
          %p1240 = scmp.lt.s32.totalorder %s33, 1
          %s1241 = scalar_select %p1240, %s33, 1
          %s1242 = smul.addr %s1241, 8
          %s1243 = scalar_lea.vmem %s15, %s1242
        $region132: #{_lambda_.9} parent=127 // pred_fallthru
          _
      $region128: #{_lambda_.9} parent=5 // pred_fallthru
        _
    $region6: #{_lambda_.9} parent=1 // loop_footer
      %s31 = sadd.s32 1, %s27
    $region7: #{_lambda_.9} parent=1 // loop_footer_branch
      %26 = sbr.rel target = $region3
    $region8: #{_lambda_.9} parent=1 // loop_exit
      _
    %1244 = vsyncpa [#allocation3], 1
    %s1245 = scalar_lea.sflag [#allocation3], 1
    %1246 = vsyncpa %s1245, 1
    %1247 = vsyncpa [#allocation5], 1
    %1248 = vsyncpa [#allocation8], 1
    %1249 = vsyncpa [#allocation11], 1
    %1250 = vsyncpa [#allocation14], 1
    %1251 = vsyncpa [#allocation17], 1

// kernel: _lambda_.11
$region0: #{_lambda_.11}
  #allocation0 [shape = 'u32[]', space=smem, size = 0x4, offset = 0x4, fixed_abs, tag = 'smem constant byte address 0x4 - core index']
  #allocation1 [shape = 'u32[72,128]{1,0:T(1,128)}', space=vmem, size = 0x9000, scoped, tag = 'internal scratch']
  %s0 = inlined_call_operand.vmem [shape: f32[16,32], index: 0, kind: input, shape index: {}]
  %s1 = inlined_call_operand.vmem [shape: bf16[32,64], index: 1, kind: input, shape index: {}]
  %s2 = inlined_call_operand.vmem [shape: f32[1,64], index: 2, kind: input, shape index: {}]
  %s3 = inlined_call_operand.vmem [shape: bf16[64,32], index: 3, kind: input, shape index: {}]
  %s4 = inlined_call_operand.vmem [shape: f32[1,32], index: 4, kind: input, shape index: {}]
  %s5 = inlined_call_operand.vmem [shape: f32[1,32], index: 5, kind: input, shape index: {}]
  %s6 = inlined_call_operand.vmem [shape: f32[1,32], index: 6, kind: input, shape index: {}]
  %s7 = inlined_call_operand.hbm [shape: f32[16,32], index: 7, kind: output, shape index: {}]
  %s8 = sld [smem:[#allocation0]]
  $region38: #{_lambda_.11} parent=0
    _
  %s10 = ssub.s32 1, %s8
  %s11 = scalar_select 0, %s10, %s8
  $region1: #{_lambda_.11} parent=0
    #allocation2 [shape = 'u8[8192]{0}', space=vmem, size = 0x2000, scoped, tag = 'output window, operand 0, single buffered']
    #allocation3 [shape = 's32[1]{0}', space=sflag, size = 0x4, scoped, tag = 'scoped memory for _lambda_.11']
    %12 = vsyncpa [#allocation3], 0
    // Predicated region
    $region2: #{_lambda_.11} parent=1 // pred_check
      _
    $region3: #{_lambda_.11} parent=1 // pred_check_branch
      %14 = sbr.rel (0) target = $region5
    $region4: #{_lambda_.11} parent=1 // pred_region
      _
    $region5: #{_lambda_.11} parent=1 // pred_fallthru
      _
    // Predicated region
    $region6: #{_lambda_.11} parent=1 // pred_check
      _
    $region7: #{_lambda_.11} parent=1 // pred_check_branch
      %16 = sbr.rel (0) target = $region9
    $region8: #{_lambda_.11} parent=1 // pred_region
      _
    $region9: #{_lambda_.11} parent=1 // pred_fallthru
      _
    // Predicated region
    $region10: #{_lambda_.11} parent=1 // pred_check
      _
    $region11: #{_lambda_.11} parent=1 // pred_check_branch
      %18 = sbr.rel (0) target = $region13
    $region12: #{_lambda_.11} parent=1 // pred_region
      _
    $region13: #{_lambda_.11} parent=1 // pred_fallthru
      _
    // Predicated region
    $region14: #{_lambda_.11} parent=1 // pred_check
      _
    $region15: #{_lambda_.11} parent=1 // pred_check_branch
      %20 = sbr.rel (0) target = $region17
    $region16: #{_lambda_.11} parent=1 // pred_region
      _
    $region17: #{_lambda_.11} parent=1 // pred_fallthru
      _
    // Predicated region
    $region18: #{_lambda_.11} parent=1 // pred_check
      _
    $region19: #{_lambda_.11} parent=1 // pred_check_branch
      %22 = sbr.rel (0) target = $region21
    $region20: #{_lambda_.11} parent=1 // pred_region
      _
    $region21: #{_lambda_.11} parent=1 // pred_fallthru
      _
    // Predicated region
    $region22: #{_lambda_.11} parent=1 // pred_check
      _
    $region23: #{_lambda_.11} parent=1 // pred_check_branch
      %24 = sbr.rel (0) target = $region25
    $region24: #{_lambda_.11} parent=1 // pred_region
      _
    $region25: #{_lambda_.11} parent=1 // pred_fallthru
      _
    // Predicated region
    $region26: #{_lambda_.11} parent=1 // pred_check
      _
    $region27: #{_lambda_.11} parent=1 // pred_check_branch
      %26 = sbr.rel (0) target = $region29
    $region28: #{_lambda_.11} parent=1 // pred_region
      _
    $region29: #{_lambda_.11} parent=1 // pred_fallthru
      _
    %v28 = vld [vmem:[%s0] sm:$0xff]
    %v29 = vld [vmem:[%s0 + $0x8] sm:$0xff]
    %v30 = vpack.c.bf16 %v29, %v28
    %v31 = vld [vmem:[%s1] sm:$0xf]
    %v32 = vld [vmem:[%s1 + $0x4] sm:$0xf]
    %v33 = vld [vmem:[%s1 + $0x8] sm:$0xf]
    %v34 = vld [vmem:[%s1 + $0xc] sm:$0xf]
    %v35 = vld [vmem:[%s2] sm:$0x1]
    %v37 = vperm.slane %v35, 0
    %v43 = vunpack.c.l.b16 %v31
    %v44 = vunpack.c.l.b16 %v32
    %v45 = vunpack.c.l.b16 %v33
    %v46 = vunpack.c.l.b16 %v34
    %v47 = vpack.c.b16 %v44, %v43
    %v48 = vpack.c.b16 %v46, %v45
    %vm51 = vcmask 261120
    %v53 = vsel %vm51, %v30, 0
    %55 = vmatpush.bf16.msra.mxu0 0
    %56 = vmatpush.bf16.msra.mxu0 0
    %57 = vmatpush.bf16.msra.mxu0 0
    %58 = vmatpush.bf16.msra.mxu0 0
    %59 = vmatpush.bf16.msra.mxu0 0
    %60 = vmatpush.bf16.msra.mxu0 0
    %61 = vmatpush.bf16.msra.mxu0 %v48
    %62 = vmatpush.bf16.msra.mxu0 %v47
    %63 = vmatmul.bf16.gmra.mxu0 %v53
    %v64 = vpop.f32.mrf.mxu0
    %v65 = vadd.f32 %v37, %v64
    %v66 = vpop.f32.mrf.mxu0
    %v67 = vadd.f32 %v37, %v66
    %68 = vdwg.mxu0
    %v69 = vmax.f32 %v65, 0.0
    %v70 = vmax.f32 %v67, 0.0
    %v71 = vpack.c.bf16 %v70, %v69
    %v72 = vld [vmem:[%s3] sm:$0xf]
    %v73 = vld [vmem:[%s3 + $0x4] sm:$0xf]
    %v74 = vld [vmem:[%s3 + $0x8] sm:$0xf]
    %v75 = vld [vmem:[%s3 + $0xc] sm:$0xf]
    %v76 = vld [vmem:[%s3 + $0x10] sm:$0xf]
    %v77 = vld [vmem:[%s3 + $0x14] sm:$0xf]
    %v78 = vld [vmem:[%s3 + $0x18] sm:$0xf]
    %v79 = vld [vmem:[%s3 + $0x1c] sm:$0xf]
    %v80 = vld [vmem:[%s4] sm:$0x1]
    %v82 = vperm.slane %v80, 0
    %v92 = vunpack.c.l.b16 %v72
    %v93 = vunpack.c.l.b16 %v73
    %v94 = vunpack.c.l.b16 %v74
    %v95 = vunpack.c.l.b16 %v75
    %v96 = vunpack.c.l.b16 %v76
    %v97 = vunpack.c.l.b16 %v77
    %v98 = vunpack.c.l.b16 %v78
    %v99 = vunpack.c.l.b16 %v79
    %v100 = vpack.c.b16 %v93, %v92
    %v101 = vpack.c.b16 %v95, %v94
    %v102 = vpack.c.b16 %v97, %v96
    %v103 = vpack.c.b16 %v99, %v98
    %vm108 = vcmask 523264
    %v110 = vsel %vm108, %v71, 0
    %112 = vmatpush.bf16.msra.mxu0 0
    %113 = vmatpush.bf16.msra.mxu0 0
    %114 = vmatpush.bf16.msra.mxu0 0
    %115 = vmatpush.bf16.msra.mxu0 0
    %116 = vmatpush.bf16.msra.mxu0 %v103
    %117 = vmatpush.bf16.msra.mxu0 %v102
    %118 = vmatpush.bf16.msra.mxu0 %v101
    %119 = vmatpush.bf16.msra.mxu0 %v100
    %120 = vmatmul.bf16.gmra.mxu0 %v110
    %v121 = vpop.f32.mrf.mxu0
    %v122 = vadd.f32 %v82, %v121
    %v123 = vpop.f32.mrf.mxu0
    %v124 = vadd.f32 %v82, %v123
    %125 = vdwg.mxu0
    %v126 = vld [vmem:[%s5] sm:$0x1]
    %v127 = vld [vmem:[%s6] sm:$0x1]
    %v128 = vadd.f32 %v28, %v122
    %v129 = vadd.f32 %v29, %v124
    %v130 = vsel %vm51, %v128, 0.0
    %131 = vadd.xlane.f32.xlu0 %v130
    %v132 = vpop.xlane.xlu0 %131
    %v133 = vsel %vm51, %v129, 0.0
    %134 = vadd.xlane.f32.xlu0 %v133
    %v135 = vpop.xlane.xlu0 %134
    %v136 = vrcp.pop 32.0
    %v137 = vmul.f32 32.0, %v136
    %v138 = vsub.f32 1.0, %v137
    %v139 = vmul.f32 %v136, %v138
    %v140 = vadd.f32 %v136, %v139
    %vm141 = vweird.f32 %v136
    %v142 = vsel %vm141, %v136, %v140
    %v143 = vmul.f32 %v132, %v142
    %v144 = vmul.f32 %v135, %v142
    %v145 = vsub.f32 %v128, %v143
    %v146 = vsub.f32 %v129, %v144
    %v147 = vmul.f32 %v145, %v145
    %v148 = vmul.f32 %v146, %v146
    %v149 = vsel %vm51, %v147, 0.0
    %150 = vadd.xlane.f32.xlu0 %v149
    %v151 = vpop.xlane.xlu0 %150
    %v152 = vsel %vm51, %v148, 0.0
    %153 = vadd.xlane.f32.xlu0 %v152
    %v154 = vpop.xlane.xlu0 %153
    %v155 = vmul.f32 %v151, %v142
    %v156 = vmul.f32 %v154, %v142
    %v157 = vadd.f32 %v155, 1e-05
    %v158 = vadd.f32 %v156, 1e-05
    %v159 = vrsqrt.pop %v157
    %v160 = vmul.f32 %v159, %v157
    %v161 = vmul.f32 %v160, %v159
    %v162 = vmul.f32 0.5, %v161
    %v163 = vsub.f32 1.5, %v162
    %v164 = vmul.f32 %v159, %v163
    %vm165 = vweird.f32 %v157
    %vm166 = vweird.f32 %v159
    %vm167 = vmor %vm165, %vm166
    %v168 = vsel %vm167, %v159, %v164
    %v169 = vrsqrt.pop %v158
    %v170 = vmul.f32 %v169, %v158
    %v171 = vmul.f32 %v170, %v169
    %v172 = vmul.f32 0.5, %v171
    %v173 = vsub.f32 1.5, %v172
    %v174 = vmul.f32 %v169, %v173
    %vm175 = vweird.f32 %v158
    %vm176 = vweird.f32 %v169
    %vm177 = vmor %vm175, %vm176
    %v178 = vsel %vm177, %v169, %v174
    %v179 = vmul.f32 %v145, %v168
    %v180 = vmul.f32 %v146, %v178
    %v182 = vperm.slane %v126, 0
    %v184 = vmul.f32 %v179, %v182
    %v185 = vmul.f32 %v180, %v182
    %v187 = vperm.slane %v127, 0
    %v189 = vadd.f32 %v184, %v187
    %v190 = vadd.f32 %v185, %v187
    %191 = vst.msk [vmem:[#allocation2] sm:$0xff] %vm51, %v189
    %192 = vst.msk [vmem:[#allocation2 + $0x8] sm:$0xff] %vm51, %v190
    // Predicated region
    $region30: #{_lambda_.11} parent=1 // pred_check
      _
    $region31: #{_lambda_.11} parent=1 // pred_check_branch
      %194 = sbr.rel (0) target = $region33
    $region32: #{_lambda_.11} parent=1 // pred_region
      %196 = vsyncadd [#allocation3], 0
      %s197 = sshll.u32 [#allocation2], 4
      %s198 = int_to_ptr.vmem [resolvable:$true] %s197
      %s199 = sshll.u32 %s7, 4
      %s200 = int_to_ptr.hbm [resolvable:$true] %s199
      %205 = dma.vmem_to_hbm [thread:$0]  %s198, 256, %s200, [#allocation3], 128, 128, 8
    $region33: #{_lambda_.11} parent=1 // pred_fallthru
      _
    // Predicated region
    $region34: #{_lambda_.11} parent=1 // pred_check
      _
    $region35: #{_lambda_.11} parent=1 // pred_check_branch
      %207 = sbr.rel (0) target = $region37
    $region36: #{_lambda_.11} parent=1 // pred_region
      %209 = dma.done [#allocation3], 256
    $region37: #{_lambda_.11} parent=1 // pred_fallthru
      _
    %210 = vsyncpa [#allocation3], 1

// kernel: _lambda_.10
$region0: #{_lambda_.10}
  #allocation0 [shape = 'u32[]', space=smem, size = 0x4, offset = 0x4, fixed_abs, tag = 'smem constant byte address 0x4 - core index']
  #allocation1 [shape = 'u32[72,128]{1,0:T(1,128)}', space=vmem, size = 0x9000, scoped, tag = 'internal scratch']
  %s0 = inlined_call_operand.vmem [shape: f32[2,8,32], index: 0, kind: input, shape index: {}]
  %s1 = inlined_call_operand.hbm [shape: f32[2,8,32], index: 1, kind: input, shape index: {}]
  %s2 = inlined_call_operand.hbm [shape: bf16[32,32], index: 2, kind: input, shape index: {}]
  %s3 = inlined_call_operand.vmem [shape: f32[1,32], index: 3, kind: input, shape index: {}]
  %s4 = inlined_call_operand.hbm [shape: bf16[32,64], index: 4, kind: input, shape index: {}]
  %s5 = inlined_call_operand.vmem [shape: f32[1,64], index: 5, kind: input, shape index: {}]
  %s6 = inlined_call_operand.hbm [shape: bf16[32,32], index: 6, kind: input, shape index: {}]
  %s7 = inlined_call_operand.vmem [shape: f32[1,32], index: 7, kind: input, shape index: {}]
  %s8 = inlined_call_operand.hbm [shape: f32[1,32], index: 8, kind: input, shape index: {}]
  %s9 = inlined_call_operand.hbm [shape: f32[1,32], index: 9, kind: input, shape index: {}]
  %s10 = inlined_call_operand.vmem [shape: f32[2,8,32], index: 10, kind: output, shape index: {}]
  %s11 = sld [smem:[#allocation0]]
  $region97: #{_lambda_.10} parent=0
    _
  %s13 = ssub.s32 1, %s11
  %s14 = scalar_select 0, %s13, %s11
  $region1: #{_lambda_.10} parent=0
    #allocation2 [shape = 'u8[8192]{0}', space=vmem, size = 0x2000, scoped, tag = 'input window, operand 1']
    #allocation3 [shape = 's32[2]{0}', space=sflag, size = 0x8, scoped, tag = 'scoped memory for _lambda_.10']
    #allocation4 [shape = 'u8[8192]{0}', space=vmem, size = 0x2000, scoped, tag = 'input window, operand 2, single buffered']
    #allocation5 [shape = 's32[1]{0}', space=sflag, size = 0x4, scoped, tag = 'scoped memory for _lambda_.10']
    #allocation6 [shape = 'u8[8192]{0}', space=vmem, size = 0x2000, scoped, tag = 'input window, operand 4, single buffered']
    #allocation7 [shape = 'u8[8192]{0}', space=vmem, size = 0x2000, scoped, tag = 'input window, operand 6, single buffered']
    #allocation8 [shape = 's32[1]{0}', space=sflag, size = 0x4, scoped, tag = 'scoped memory for _lambda_.10']
    #allocation9 [shape = 'u8[512]{0}', space=vmem, size = 0x400, scoped, tag = 'input window, operand 8, single buffered']
    #allocation10 [shape = 'u8[512]{0}', space=vmem, size = 0x400, scoped, tag = 'input window, operand 9, single buffered']
    #allocation11 [shape = 's32[1]{0}', space=sflag, size = 0x4, scoped, tag = 'scoped memory for _lambda_.10']
    %15 = vsyncpa [#allocation3], 0
    %s16 = scalar_lea.sflag [#allocation3], 1
    %17 = vsyncpa %s16, 0
    %18 = vsyncpa [#allocation5], 0
    %19 = vsyncpa [#allocation8], 0
    %20 = vsyncpa [#allocation11], 0
    loop: start=0, step=1, limit=4
    $region2: #{_lambda_.10} parent=1 // loop_pre_header
      _
    $region3: #{_lambda_.10} parent=1 // loop_header
      %s22 = sphi 0, %s26
      %p23 = scmp.ge.s32.totalorder %s22, 4
      %s32 = sphi 0, %s34
      %s35 = sphi 0, %s32
      %s36 = sphi 0, %s35
      %s52 = sphi 0, %s36
      %s58 = sphi 0, %s60
      %s61 = sphi 0, %s58
      %s62 = sphi 0, %s61
      %s78 = sphi 0, %s62
      %s82 = sphi 0, %s82
      %s84 = sphi 0, %s82
      %s85 = sphi 0, %s84
      %s99 = sphi 0, %s85
      %s103 = sphi 0, %s103
      %s105 = sphi 0, %s103
      %s106 = sphi 0, %s105
      %s120 = sphi 0, %s106
      %s124 = sphi 0, %s124
      %s126 = sphi 0, %s124
      %s127 = sphi 0, %s126
      %s141 = sphi 0, %s127
      %s145 = sphi 0, %s145
      %s147 = sphi 0, %s145
      %s148 = sphi 0, %s147
      %s162 = sphi 0, %s148
      %s166 = sphi 0, %s166
      %s168 = sphi 0, %s166
      %s169 = sphi 0, %s168
      %s183 = sphi 0, %s169
      %s187 = sphi 0, %s187
      %s189 = sphi 0, %s187
      %s190 = sphi 0, %s189
      %s204 = sphi 0, %s190
      %s208 = sphi 0, %s208
      %s210 = sphi 0, %s208
      %s211 = sphi 0, %s210
      %s225 = sphi 0, %s211
      %s229 = sphi 0, %s229
      %s231 = sphi 0, %s229
      %s232 = sphi 0, %s231
      %s246 = sphi 0, %s232
      %s252 = sphi 0, %s254
      %s255 = sphi 0, %s252
      %s256 = sphi 0, %s255
      %s272 = sphi 0, %s256
    $region4: #{_lambda_.10} parent=1 // loop_header_branch
      %25 = sbr.rel (%p23) target = $region8
    $region5: #{_lambda_.10} parent=1 // loop_body
      %s27 = ssub.s32 %s22, 1
      %s28 = ssub.s32 %s22, 2
      %s29 = sadd.s32 %s22, 1
      %s30 = ssub.s32 %s22, %s29
      %p31 = scmp.eq.s32.totalorder %s30, 0
      %s33 = sadd.s32 %s32, 1
      %s34 = scalar_select %p31, %s32, %s33
      %p37 = pneg %p31
      %p38 = scmp.eq.s32.totalorder %s22, 1
      %p39 = por %p37, %p38
      %p40 = scmp.ne.s32.totalorder %s32, %s35
      %p41 = scmp.eq.s32.totalorder %s22, 0
      %p42 = por %p40, %p41
      %p43 = scmp.ne.s32.totalorder %s32, %s35
      %p44 = scmp.eq.s32.totalorder %s27, 1
      %p45 = por %p43, %p44
      %p46 = scmp.ne.s32.totalorder %s35, %s36
      %p47 = scmp.eq.s32.totalorder %s27, 0
      %p48 = por %p46, %p47
      %p49 = scmp.ne.s32.totalorder %s35, %s36
      %p50 = scmp.eq.s32.totalorder %s28, 1
      %p51 = por %p49, %p50
      %p53 = scmp.ne.s32.totalorder %s36, %s52
      %p54 = scmp.eq.s32.totalorder %s28, 0
      %p55 = por %p53, %p54
      %s56 = ssub.s32 %s22, %s29
      %p57 = scmp.eq.s32.totalorder %s56, 0
      %s59 = sadd.s32 %s58, 1
      %s60 = scalar_select %p57, %s58, %s59
      %p63 = pneg %p57
      %p64 = scmp.eq.s32.totalorder %s22, 1
      %p65 = por %p63, %p64
      %p66 = scmp.ne.s32.totalorder %s58, %s61
      %p67 = scmp.eq.s32.totalorder %s22, 0
      %p68 = por %p66, %p67
      %p69 = scmp.ne.s32.totalorder %s58, %s61
      %p70 = scmp.eq.s32.totalorder %s27, 1
      %p71 = por %p69, %p70
      %p72 = scmp.ne.s32.totalorder %s61, %s62
      %p73 = scmp.eq.s32.totalorder %s27, 0
      %p74 = por %p72, %p73
      %p75 = scmp.ne.s32.totalorder %s61, %s62
      %p76 = scmp.eq.s32.totalorder %s28, 1
      %p77 = por %p75, %p76
      %p79 = scmp.ne.s32.totalorder %s62, %s78
      %p80 = scmp.eq.s32.totalorder %s28, 0
      %p81 = por %p79, %p80
      %s83 = sadd.s32 %s82, 1
      %p86 = scmp.eq.s32.totalorder %s22, 1
      %p87 = scmp.ne.s32.totalorder %s82, %s84
      %p88 = scmp.eq.s32.totalorder %s22, 0
      %p89 = por %p87, %p88
      %p90 = scmp.ne.s32.totalorder %s82, %s84
      %p91 = scmp.eq.s32.totalorder %s27, 1
      %p92 = por %p90, %p91
      %p93 = scmp.ne.s32.totalorder %s84, %s85
      %p94 = scmp.eq.s32.totalorder %s27, 0
      %p95 = por %p93, %p94
      %p96 = scmp.ne.s32.totalorder %s84, %s85
      %p97 = scmp.eq.s32.totalorder %s28, 1
      %p98 = por %p96, %p97
      %p100 = scmp.ne.s32.totalorder %s85, %s99
      %p101 = scmp.eq.s32.totalorder %s28, 0
      %p102 = por %p100, %p101
      %s104 = sadd.s32 %s103, 1
      %p107 = scmp.eq.s32.totalorder %s22, 1
      %p108 = scmp.ne.s32.totalorder %s103, %s105
      %p109 = scmp.eq.s32.totalorder %s22, 0
      %p110 = por %p108, %p109
      %p111 = scmp.ne.s32.totalorder %s103, %s105
      %p112 = scmp.eq.s32.totalorder %s27, 1
      %p113 = por %p111, %p112
      %p114 = scmp.ne.s32.totalorder %s105, %s106
      %p115 = scmp.eq.s32.totalorder %s27, 0
      %p116 = por %p114, %p115
      %p117 = scmp.ne.s32.totalorder %s105, %s106
      %p118 = scmp.eq.s32.totalorder %s28, 1
      %p119 = por %p117, %p118
      %p121 = scmp.ne.s32.totalorder %s106, %s120
      %p122 = scmp.eq.s32.totalorder %s28, 0
      %p123 = por %p121, %p122
      %s125 = sadd.s32 %s124, 1
      %p128 = scmp.eq.s32.totalorder %s22, 1
      %p129 = scmp.ne.s32.totalorder %s124, %s126
      %p130 = scmp.eq.s32.totalorder %s22, 0
      %p131 = por %p129, %p130
      %p132 = scmp.ne.s32.totalorder %s124, %s126
      %p133 = scmp.eq.s32.totalorder %s27, 1
      %p134 = por %p132, %p133
      %p135 = scmp.ne.s32.totalorder %s126, %s127
      %p136 = scmp.eq.s32.totalorder %s27, 0
      %p137 = por %p135, %p136
      %p138 = scmp.ne.s32.totalorder %s126, %s127
      %p139 = scmp.eq.s32.totalorder %s28, 1
      %p140 = por %p138, %p139
      %p142 = scmp.ne.s32.totalorder %s127, %s141
      %p143 = scmp.eq.s32.totalorder %s28, 0
      %p144 = por %p142, %p143
      %s146 = sadd.s32 %s145, 1
      %p149 = scmp.eq.s32.totalorder %s22, 1
      %p150 = scmp.ne.s32.totalorder %s145, %s147
      %p151 = scmp.eq.s32.totalorder %s22, 0
      %p152 = por %p150, %p151
      %p153 = scmp.ne.s32.totalorder %s145, %s147
      %p154 = scmp.eq.s32.totalorder %s27, 1
      %p155 = por %p153, %p154
      %p156 = scmp.ne.s32.totalorder %s147, %s148
      %p157 = scmp.eq.s32.totalorder %s27, 0
      %p158 = por %p156, %p157
      %p159 = scmp.ne.s32.totalorder %s147, %s148
      %p160 = scmp.eq.s32.totalorder %s28, 1
      %p161 = por %p159, %p160
      %p163 = scmp.ne.s32.totalorder %s148, %s162
      %p164 = scmp.eq.s32.totalorder %s28, 0
      %p165 = por %p163, %p164
      %s167 = sadd.s32 %s166, 1
      %p170 = scmp.eq.s32.totalorder %s22, 1
      %p171 = scmp.ne.s32.totalorder %s166, %s168
      %p172 = scmp.eq.s32.totalorder %s22, 0
      %p173 = por %p171, %p172
      %p174 = scmp.ne.s32.totalorder %s166, %s168
      %p175 = scmp.eq.s32.totalorder %s27, 1
      %p176 = por %p174, %p175
      %p177 = scmp.ne.s32.totalorder %s168, %s169
      %p178 = scmp.eq.s32.totalorder %s27, 0
      %p179 = por %p177, %p178
      %p180 = scmp.ne.s32.totalorder %s168, %s169
      %p181 = scmp.eq.s32.totalorder %s28, 1
      %p182 = por %p180, %p181
      %p184 = scmp.ne.s32.totalorder %s169, %s183
      %p185 = scmp.eq.s32.totalorder %s28, 0
      %p186 = por %p184, %p185
      %s188 = sadd.s32 %s187, 1
      %p191 = scmp.eq.s32.totalorder %s22, 1
      %p192 = scmp.ne.s32.totalorder %s187, %s189
      %p193 = scmp.eq.s32.totalorder %s22, 0
      %p194 = por %p192, %p193
      %p195 = scmp.ne.s32.totalorder %s187, %s189
      %p196 = scmp.eq.s32.totalorder %s27, 1
      %p197 = por %p195, %p196
      %p198 = scmp.ne.s32.totalorder %s189, %s190
      %p199 = scmp.eq.s32.totalorder %s27, 0
      %p200 = por %p198, %p199
      %p201 = scmp.ne.s32.totalorder %s189, %s190
      %p202 = scmp.eq.s32.totalorder %s28, 1
      %p203 = por %p201, %p202
      %p205 = scmp.ne.s32.totalorder %s190, %s204
      %p206 = scmp.eq.s32.totalorder %s28, 0
      %p207 = por %p205, %p206
      %s209 = sadd.s32 %s208, 1
      %p212 = scmp.eq.s32.totalorder %s22, 1
      %p213 = scmp.ne.s32.totalorder %s208, %s210
      %p214 = scmp.eq.s32.totalorder %s22, 0
      %p215 = por %p213, %p214
      %p216 = scmp.ne.s32.totalorder %s208, %s210
      %p217 = scmp.eq.s32.totalorder %s27, 1
      %p218 = por %p216, %p217
      %p219 = scmp.ne.s32.totalorder %s210, %s211
      %p220 = scmp.eq.s32.totalorder %s27, 0
      %p221 = por %p219, %p220
      %p222 = scmp.ne.s32.totalorder %s210, %s211
      %p223 = scmp.eq.s32.totalorder %s28, 1
      %p224 = por %p222, %p223
      %p226 = scmp.ne.s32.totalorder %s211, %s225
      %p227 = scmp.eq.s32.totalorder %s28, 0
      %p228 = por %p226, %p227
      %s230 = sadd.s32 %s229, 1
      %p233 = scmp.eq.s32.totalorder %s22, 1
      %p234 = scmp.ne.s32.totalorder %s229, %s231
      %p235 = scmp.eq.s32.totalorder %s22, 0
      %p236 = por %p234, %p235
      %p237 = scmp.ne.s32.totalorder %s229, %s231
      %p238 = scmp.eq.s32.totalorder %s27, 1
      %p239 = por %p237, %p238
      %p240 = scmp.ne.s32.totalorder %s231, %s232
      %p241 = scmp.eq.s32.totalorder %s27, 0
      %p242 = por %p240, %p241
      %p243 = scmp.ne.s32.totalorder %s231, %s232
      %p244 = scmp.eq.s32.totalorder %s28, 1
      %p245 = por %p243, %p244
      %p247 = scmp.ne.s32.totalorder %s232, %s246
      %p248 = scmp.eq.s32.totalorder %s28, 0
      %p249 = por %p247, %p248
      %s250 = ssub.s32 %s22, %s29
      %p251 = scmp.eq.s32.totalorder %s250, 0
      %s253 = sadd.s32 %s252, 1
      %s254 = scalar_select %p251, %s252, %s253
      %p257 = pneg %p251
      %p258 = scmp.eq.s32.totalorder %s22, 1
      %p259 = por %p257, %p258
      %p260 = scmp.ne.s32.totalorder %s252, %s255
      %p261 = scmp.eq.s32.totalorder %s22, 0
      %p262 = por %p260, %p261
      %p263 = scmp.ne.s32.totalorder %s252, %s255
      %p264 = scmp.eq.s32.totalorder %s27, 1
      %p265 = por %p263, %p264
      %p266 = scmp.ne.s32.totalorder %s255, %s256
      %p267 = scmp.eq.s32.totalorder %s27, 0
      %p268 = por %p266, %p267
      %p269 = scmp.ne.s32.totalorder %s255, %s256
      %p270 = scmp.eq.s32.totalorder %s28, 1
      %p271 = por %p269, %p270
      %p273 = scmp.ne.s32.totalorder %s256, %s272
      %p274 = scmp.eq.s32.totalorder %s28, 0
      %p275 = por %p273, %p274
      %p276 = scmp.le.s32.totalorder 1, %s22
      %p277 = scmp.lt.s32.totalorder %s22, 3
      %p278 = pnand %p276, %p277
      %p279 = pneg %p278
      // Predicated region
      $region9: #{_lambda_.10} parent=5 // pred_check
        _
      $region10: #{_lambda_.10} parent=5 // pred_check_branch
        %281 = sbr.rel (%p278) target = $region12
      $region11: #{_lambda_.10} parent=5 // pred_region
        %s282 = ssub.s32 %s22, 1
        // Predicated region
        $region13: #{_lambda_.10} parent=11 // pred_check
          %p283 = pneg %p95
        $region14: #{_lambda_.10} parent=11 // pred_check_branch
          %285 = sbr.rel (%p283) target = $region16
        $region15: #{_lambda_.10} parent=11 // pred_region
          %287 = vsyncadd [#allocation5], 0
          %s288 = sshll.u32 %s2, 4
          %s289 = int_to_ptr.hbm [resolvable:$true] %s288
          %s290 = sshll.u32 [#allocation4], 4
          %s291 = int_to_ptr.vmem [resolvable:$true] %s290
          %296 = dma.hbm_to_vmem [thread:$0]  %s289, 256, %s291, [#allocation5], 64, 64, 4
        $region16: #{_lambda_.10} parent=11 // pred_fallthru
          _
        // Predicated region
        $region17: #{_lambda_.10} parent=11 // pred_check
          %p297 = pneg %p116
        $region18: #{_lambda_.10} parent=11 // pred_check_branch
          %299 = sbr.rel (%p297) target = $region20
        $region19: #{_lambda_.10} parent=11 // pred_region
          _
        $region20: #{_lambda_.10} parent=11 // pred_fallthru
          _
        // Predicated region
        $region21: #{_lambda_.10} parent=11 // pred_check
          %p300 = pneg %p137
        $region22: #{_lambda_.10} parent=11 // pred_check_branch
          %302 = sbr.rel (%p300) target = $region24
        $region23: #{_lambda_.10} parent=11 // pred_region
          %304 = vsyncadd [#allocation5], 0
          %s305 = sshll.u32 %s4, 4
          %s306 = int_to_ptr.hbm [resolvable:$true] %s305
          %s307 = sshll.u32 [#allocation6], 4
          %s308 = int_to_ptr.vmem [resolvable:$true] %s307
          %313 = dma.hbm_to_vmem [thread:$0]  %s306, 256, %s308, [#allocation5], 64, 64, 4
        $region24: #{_lambda_.10} parent=11 // pred_fallthru
          _
        // Predicated region
        $region25: #{_lambda_.10} parent=11 // pred_check
          %p314 = pneg %p158
        $region26: #{_lambda_.10} parent=11 // pred_check_branch
          %316 = sbr.rel (%p314) target = $region28
        $region27: #{_lambda_.10} parent=11 // pred_region
          _
        $region28: #{_lambda_.10} parent=11 // pred_fallthru
          _
        // Predicated region
        $region29: #{_lambda_.10} parent=11 // pred_check
          %p317 = pneg %p179
        $region30: #{_lambda_.10} parent=11 // pred_check_branch
          %319 = sbr.rel (%p317) target = $region32
        $region31: #{_lambda_.10} parent=11 // pred_region
          %321 = vsyncadd [#allocation8], 0
          %s322 = sshll.u32 %s6, 4
          %s323 = int_to_ptr.hbm [resolvable:$true] %s322
          %s324 = sshll.u32 [#allocation7], 4
          %s325 = int_to_ptr.vmem [resolvable:$true] %s324
          %330 = dma.hbm_to_vmem [thread:$0]  %s323, 256, %s325, [#allocation8], 64, 64, 4
        $region32: #{_lambda_.10} parent=11 // pred_fallthru
          _
        // Predicated region
        $region33: #{_lambda_.10} parent=11 // pred_check
          %p331 = pneg %p200
        $region34: #{_lambda_.10} parent=11 // pred_check_branch
          %333 = sbr.rel (%p331) target = $region36
        $region35: #{_lambda_.10} parent=11 // pred_region
          _
        $region36: #{_lambda_.10} parent=11 // pred_fallthru
          _
        // Predicated region
        $region37: #{_lambda_.10} parent=11 // pred_check
          %p334 = pneg %p221
        $region38: #{_lambda_.10} parent=11 // pred_check_branch
          %336 = sbr.rel (%p334) target = $region40
        $region39: #{_lambda_.10} parent=11 // pred_region
          %338 = vsyncadd [#allocation8], 0
          %s340 = sshll.u32 %s8, 4
          %s341 = int_to_ptr.hbm [resolvable:$true] %s340
          %s342 = sshll.u32 [#allocation9], 4
          %s343 = int_to_ptr.vmem [resolvable:$true] %s342
          %345 = dma.hbm_to_vmem [thread:$0]  %s341, 16, %s343, [#allocation8]
        $region40: #{_lambda_.10} parent=11 // pred_fallthru
          _
        // Predicated region
        $region41: #{_lambda_.10} parent=11 // pred_check
          %p346 = pneg %p242
        $region42: #{_lambda_.10} parent=11 // pred_check_branch
          %348 = sbr.rel (%p346) target = $region44
        $region43: #{_lambda_.10} parent=11 // pred_region
          %350 = vsyncadd [#allocation11], 0
          %s352 = sshll.u32 %s9, 4
          %s353 = int_to_ptr.hbm [resolvable:$true] %s352
          %s354 = sshll.u32 [#allocation10], 4
          %s355 = int_to_ptr.vmem [resolvable:$true] %s354
          %357 = dma.hbm_to_vmem [thread:$0]  %s353, 16, %s355, [#allocation11]
        $region44: #{_lambda_.10} parent=11 // pred_fallthru
          _
      $region12: #{_lambda_.10} parent=5 // pred_fallthru
        _
      %p358 = scmp.lt.s32.totalorder %s22, 2
      // Predicated region
      $region45: #{_lambda_.10} parent=5 // pred_check
        %p359 = pneg %p358
      $region46: #{_lambda_.10} parent=5 // pred_check_branch
        %361 = sbr.rel (%p359) target = $region48
      $region47: #{_lambda_.10} parent=5 // pred_region
        // Predicated region
        $region49: #{_lambda_.10} parent=47 // pred_check
          %p362 = pneg %p42
        $region50: #{_lambda_.10} parent=47 // pred_check_branch
          %364 = sbr.rel (%p362) target = $region52
        $region51: #{_lambda_.10} parent=47 // pred_region
          %p365 = scmp.lt.s32.totalorder %s22, 1
          %s366 = scalar_select %p365, %s22, 1
          %s367 = smul.addr %s366, 8
          %s368 = scalar_lea.vmem %s0, %s367
        $region52: #{_lambda_.10} parent=47 // pred_fallthru
          _
        // Predicated region
        $region53: #{_lambda_.10} parent=47 // pred_check
          %p369 = pneg %p68
        $region54: #{_lambda_.10} parent=47 // pred_check_branch
          %371 = sbr.rel (%p369) target = $region56
        $region55: #{_lambda_.10} parent=47 // pred_region
          %s372 = sand.u32 %s58, 1
          %s373 = scalar_lea.sflag [#allocation3], %s372
          %s374 = sand.u32 %s58, 1
          %s375 = smul.addr %s374, 8
          %s376 = scalar_lea.vmem [#allocation2], %s375
          %378 = vsyncadd %s373, 0
          %s379 = smul.addr %s22, 8
          %s380 = scalar_lea.hbm %s1, %s379
          %s382 = sshll.u32 %s380, 4
          %s383 = int_to_ptr.hbm [resolvable:$true] %s382
          %s384 = sshll.u32 %s376, 4
          %s385 = int_to_ptr.vmem [resolvable:$true] %s384
          %387 = dma.hbm_to_vmem [thread:$0]  %s383, 128, %s385, %s373
        $region56: #{_lambda_.10} parent=47 // pred_fallthru
          _
      $region48: #{_lambda_.10} parent=5 // pred_fallthru
        _
      %p388 = scmp.le.s32.totalorder 1, %s22
      %p389 = scmp.lt.s32.totalorder %s22, 3
      %p390 = pnand %p388, %p389
      %p391 = pneg %p390
      // Predicated region
      $region57: #{_lambda_.10} parent=5 // pred_check
        _
      $region58: #{_lambda_.10} parent=5 // pred_check_branch
        %393 = sbr.rel (%p390) target = $region60
      $region59: #{_lambda_.10} parent=5 // pred_region
        %s394 = ssub.s32 %s22, 1
        %s395 = sand.u32 %s61, 1
        %s396 = scalar_lea.sflag [#allocation3], %s395
        %s397 = sand.u32 %s61, 1
        %s398 = smul.addr %s397, 8
        %s399 = scalar_lea.vmem [#allocation2], %s398
        // Predicated region
        $region61: #{_lambda_.10} parent=59 // pred_check
          %p400 = pneg %p74
        $region62: #{_lambda_.10} parent=59 // pred_check_branch
          %402 = sbr.rel (%p400) target = $region64
        $region63: #{_lambda_.10} parent=59 // pred_region
          %404 = dma.done %s396, 128
        $region64: #{_lambda_.10} parent=59 // pred_fallthru
          _
        // Predicated region
        $region65: #{_lambda_.10} parent=59 // pred_check
          %p405 = pneg %p95
        $region66: #{_lambda_.10} parent=59 // pred_check_branch
          %407 = sbr.rel (%p405) target = $region68
        $region67: #{_lambda_.10} parent=59 // pred_region
          %409 = dma.done [#allocation5], 256
        $region68: #{_lambda_.10} parent=59 // pred_fallthru
          _
        // Predicated region
        $region69: #{_lambda_.10} parent=59 // pred_check
          %p410 = pneg %p137
        $region70: #{_lambda_.10} parent=59 // pred_check_branch
          %412 = sbr.rel (%p410) target = $region72
        $region71: #{_lambda_.10} parent=59 // pred_region
          %414 = dma.done [#allocation5], 256
        $region72: #{_lambda_.10} parent=59 // pred_fallthru
          _
        // Predicated region
        $region73: #{_lambda_.10} parent=59 // pred_check
          %p415 = pneg %p179
        $region74: #{_lambda_.10} parent=59 // pred_check_branch
          %417 = sbr.rel (%p415) target = $region76
        $region75: #{_lambda_.10} parent=59 // pred_region
          %419 = dma.done [#allocation8], 256
        $region76: #{_lambda_.10} parent=59 // pred_fallthru
          _
        // Predicated region
        $region77: #{_lambda_.10} parent=59 // pred_check
          %p420 = pneg %p221
        $region78: #{_lambda_.10} parent=59 // pred_check_branch
          %422 = sbr.rel (%p420) target = $region80
        $region79: #{_lambda_.10} parent=59 // pred_region
          %424 = dma.done [#allocation8], 16
        $region80: #{_lambda_.10} parent=59 // pred_fallthru
          _
        // Predicated region
        $region81: #{_lambda_.10} parent=59 // pred_check
          %p425 = pneg %p242
        $region82: #{_lambda_.10} parent=59 // pred_check_branch
          %427 = sbr.rel (%p425) target = $region84
        $region83: #{_lambda_.10} parent=59 // pred_region
          %429 = dma.done [#allocation11], 16
        $region84: #{_lambda_.10} parent=59 // pred_fallthru
          _
        %p430 = scmp.lt.s32.totalorder %s27, 1
        %s431 = scalar_select %p430, %s27, 1
        %s432 = smul.addr %s431, 8
        %s433 = scalar_lea.vmem %s0, %s432
        %p434 = pneg %p48
        %p435 = pneg %p45
        %s436 = sand.u32 %s61, 1
        %s437 = scalar_lea.sflag [#allocation3], %s436
        %s438 = sand.u32 %s61, 1
        %s439 = smul.addr %s438, 8
        %s440 = scalar_lea.vmem [#allocation2], %s439
        %p441 = pneg %p74
        %p442 = pneg %p71
        %p443 = pneg %p95
        %p444 = pneg %p92
        %p445 = pneg %p116
        %p446 = pneg %p113
        %p447 = pneg %p137
        %p448 = pneg %p134
        %p449 = pneg %p158
        %p450 = pneg %p155
        %p451 = pneg %p179
        %p452 = pneg %p176
        %p453 = pneg %p200
        %p454 = pneg %p197
        %p455 = pneg %p221
        %p456 = pneg %p218
        %p457 = pneg %p242
        %p458 = pneg %p239
        %p459 = pneg %p268
        %p460 = pneg %p265
        %p461 = scmp.lt.s32.totalorder %s27, 1
        %s462 = scalar_select %p461, %s27, 1
        %s463 = smul.addr %s462, 8
        %s464 = scalar_lea.vmem %s10, %s463
        %p465 = scmp.lt.s32.totalorder %s27, 1
        %s466 = scalar_select %p465, %s27, 1
        %s467 = smul.addr %s466, 8
        %s468 = scalar_lea.vmem %s0, %s467
        %p469 = scmp.lt.s32.totalorder %s27, 1
        %s470 = scalar_select %p469, %s27, 1
        %s471 = smul.addr %s470, 8
        %s472 = scalar_lea.vmem %s10, %s471
        %v474 = vld [vmem:[%s468] sm:$0xff]
        %v475 = vld [vmem:[%s399] sm:$0xff]
        %v476 = vpack.c.bf16 %v474, %v474
        %v477 = vld [vmem:[#allocation4] sm:$0xf]
        %v478 = vld [vmem:[#allocation4 + $0x4] sm:$0xf]
        %v479 = vld [vmem:[#allocation4 + $0x8] sm:$0xf]
        %v480 = vld [vmem:[#allocation4 + $0xc] sm:$0xf]
        %v481 = vld [vmem:[%s3] sm:$0x1]
        %v483 = vperm.slane %v481, 0
        %v489 = vunpack.c.l.b16 %v477
        %v490 = vunpack.c.l.b16 %v478
        %v491 = vunpack.c.l.b16 %v479
        %v492 = vunpack.c.l.b16 %v480
        %v493 = vpack.c.b16 %v490, %v489
        %v494 = vpack.c.b16 %v492, %v491
        %vm497 = vcmask 261120
        %v499 = vsel %vm497, %v476, 0
        %501 = vmatpush.bf16.msra.mxu0 0
        %502 = vmatpush.bf16.msra.mxu0 0
        %503 = vmatpush.bf16.msra.mxu0 0
        %504 = vmatpush.bf16.msra.mxu0 0
        %505 = vmatpush.bf16.msra.mxu0 0
        %506 = vmatpush.bf16.msra.mxu0 0
        %507 = vmatpush.bf16.msra.mxu0 %v494
        %508 = vmatpush.bf16.msra.mxu0 %v493
        %509 = vmatmul.bf16.gmra.mxu0 %v499
        %v510 = vpop.f32.mrf.mxu0
        %v511 = vadd.f32 %v483, %v510
        %v512 = vpop.f32.mrf.mxu0
        %513 = vdwg.mxu0
        %v514 = vpack.c.bf16 %v475, %v475
        %v515 = vld [vmem:[#allocation6] sm:$0xf]
        %v516 = vld [vmem:[#allocation6 + $0x4] sm:$0xf]
        %v517 = vld [vmem:[#allocation6 + $0x8] sm:$0xf]
        %v518 = vld [vmem:[#allocation6 + $0xc] sm:$0xf]
        %v519 = vld [vmem:[%s5] sm:$0x1]
        %v521 = vperm.slane %v519, 0
        %v527 = vunpack.c.l.b16 %v515
        %v528 = vunpack.c.l.b16 %v516
        %v529 = vunpack.c.l.b16 %v517
        %v530 = vunpack.c.l.b16 %v518
        %v531 = vpack.c.b16 %v528, %v527
        %v532 = vpack.c.b16 %v530, %v529
        %v536 = vsel %vm497, %v514, 0
        %538 = vmatpush.bf16.msra.mxu0 0
        %539 = vmatpush.bf16.msra.mxu0 0
        %540 = vmatpush.bf16.msra.mxu0 0
        %541 = vmatpush.bf16.msra.mxu0 0
        %542 = vmatpush.bf16.msra.mxu0 0
        %543 = vmatpush.bf16.msra.mxu0 0
        %544 = vmatpush.bf16.msra.mxu0 %v532
        %545 = vmatpush.bf16.msra.mxu0 %v531
        %546 = vmatmul.bf16.gmra.mxu0 %v536
        %v547 = vpop.f32.mrf.mxu0
        %v548 = vadd.f32 %v521, %v547
        %v549 = vpop.f32.mrf.mxu0
        %550 = vdwg.mxu0
        %v551 = vld [vmem:[#allocation7] sm:$0xf]
        %v552 = vld [vmem:[#allocation7 + $0x4] sm:$0xf]
        %v553 = vld [vmem:[#allocation7 + $0x8] sm:$0xf]
        %v554 = vld [vmem:[#allocation7 + $0xc] sm:$0xf]
        %v555 = vpack.c.bf16 %v511, %v511
        %v556 = vpack.c.bf16 %v548, %v548
        %vm557 = vcmask 64512
        %v559 = vsel %vm557, %v555, 0
        %v562 = vsel %vm557, %v556, 0
        %564 = vmatpush.bf16.xpose.msra.mxu0 0
        %565 = vmatpush.bf16.xpose.msra.mxu0 0
        %566 = vmatpush.bf16.xpose.msra.mxu0 0
        %567 = vmatpush.bf16.xpose.msra.mxu0 0
        %568 = vmatpush.bf16.xpose.msra.mxu0 0
        %569 = vmatpush.bf16.xpose.msra.mxu0 0
        %570 = vmatpush.bf16.xpose.msra.mxu0 0
        %571 = vmatpush.bf16.xpose.msra.mxu0 %v562
        %572 = vmatmul.bf16.gmra.mxu0 %v559
        %v573 = vpop.f32.mrf.mxu0
        %v574 = vadd.f32 0.0, %v573
        %v575 = vpop.f32.mrf.mxu0
        %576 = vdwg.mxu0
        %v577 = vsel %vm557, %v574, -inf
        %578 = vmax.xlane.f32.xlu0 %v577
        %v579 = vpop.xlane.xlu0 %578
        %v580 = vsub.f32 %v574, %v579
        %v581 = vmul.f32 %v580, 1.442695
        %v582 = vpow.pop %v581
        %v583 = vsel %vm557, %v582, 0.0
        %584 = vadd.xlane.f32.xlu0 %v583
        %v585 = vpop.xlane.xlu0 %584
        %v586 = vrcp.pop %v585
        %v587 = vmul.f32 %v582, %v586
        %v588 = vpack.c.bf16 %v587, %v587
        %590 = vrot.lane.b32.xlu0 %v556, 96
        %v591 = vpop.permute.xlu0 %590
        %v593 = vsel %vm557, %v588, 0
        %vm595 = vcmask 1043456
        %v597 = vsel %vm595, %v591, 0
        %599 = vmatpush.bf16.msra.mxu0 0
        %600 = vmatpush.bf16.msra.mxu0 0
        %601 = vmatpush.bf16.msra.mxu0 0
        %602 = vmatpush.bf16.msra.mxu0 0
        %603 = vmatpush.bf16.msra.mxu0 0
        %604 = vmatpush.bf16.msra.mxu0 0
        %605 = vmatpush.bf16.msra.mxu0 0
        %606 = vmatpush.bf16.msra.mxu0 %v597
        %607 = vmatmul.bf16.gmra.mxu0 %v593
        %v608 = vpop.f32.mrf.mxu0
        %v609 = vadd.f32 0.0, %v608
        %v610 = vpop.f32.mrf.mxu0
        %611 = vdwg.mxu0
        %v612 = vpack.c.bf16 %v609, %v609
        %614 = vrot.lane.b32.xlu0 %v555, 120
        %v615 = vpop.permute.xlu0 %614
        %616 = vrot.lane.b32.xlu0 %v556, 120
        %v617 = vpop.permute.xlu0 %616
        %v619 = vsel %vm557, %v615, 0
        %v622 = vsel %vm557, %v617, 0
        %624 = vmatpush.bf16.xpose.msra.mxu0 0
        %625 = vmatpush.bf16.xpose.msra.mxu0 0
        %626 = vmatpush.bf16.xpose.msra.mxu0 0
        %627 = vmatpush.bf16.xpose.msra.mxu0 0
        %628 = vmatpush.bf16.xpose.msra.mxu0 0
        %629 = vmatpush.bf16.xpose.msra.mxu0 0
        %630 = vmatpush.bf16.xpose.msra.mxu0 0
        %631 = vmatpush.bf16.xpose.msra.mxu0 %v622
        %632 = vmatmul.bf16.gmra.mxu0 %v619
        %v633 = vpop.f32.mrf.mxu0
        %v634 = vadd.f32 0.0, %v633
        %v635 = vpop.f32.mrf.mxu0
        %636 = vdwg.mxu0
        %v637 = vsel %vm557, %v634, -inf
        %638 = vmax.xlane.f32.xlu0 %v637
        %v639 = vpop.xlane.xlu0 %638
        %v640 = vsub.f32 %v634, %v639
        %v641 = vmul.f32 %v640, 1.442695
        %v642 = vpow.pop %v641
        %v643 = vsel %vm557, %v642, 0.0
        %644 = vadd.xlane.f32.xlu0 %v643
        %v645 = vpop.xlane.xlu0 %644
        %v646 = vrcp.pop %v645
        %v647 = vmul.f32 %v642, %v646
        %v648 = vpack.c.bf16 %v647, %v647
        %649 = vrot.lane.b32.xlu0 %v556, 88
        %v650 = vpop.permute.xlu0 %649
        %v652 = vsel %vm557, %v648, 0
        %v655 = vsel %vm595, %v650, 0
        %657 = vmatpush.bf16.msra.mxu0 0
        %658 = vmatpush.bf16.msra.mxu0 0
        %659 = vmatpush.bf16.msra.mxu0 0
        %660 = vmatpush.bf16.msra.mxu0 0
        %661 = vmatpush.bf16.msra.mxu0 0
        %662 = vmatpush.bf16.msra.mxu0 0
        %663 = vmatpush.bf16.msra.mxu0 0
        %664 = vmatpush.bf16.msra.mxu0 %v655
        %665 = vmatmul.bf16.gmra.mxu0 %v652
        %v666 = vpop.f32.mrf.mxu0
        %v667 = vadd.f32 0.0, %v666
        %v668 = vpop.f32.mrf.mxu0
        %669 = vdwg.mxu0
        %v670 = vpack.c.bf16 %v667, %v667
        %v672 = vsel %vm557, %v670, 0
        %v675 = vsel %vm595, %v552, 0
        %677 = vmatpush.bf16.msra.mxu0 0
        %678 = vmatpush.bf16.msra.mxu0 0
        %679 = vmatpush.bf16.msra.mxu0 0
        %680 = vmatpush.bf16.msra.mxu0 0
        %681 = vmatpush.bf16.msra.mxu0 0
        %682 = vmatpush.bf16.msra.mxu0 0
        %683 = vmatpush.bf16.msra.mxu0 0
        %684 = vmatpush.bf16.msra.mxu0 %v675
        %685 = vmatmul.bf16.gmra.mxu0 %v672
        %v686 = vpop.f32.mrf.mxu0
        %v687 = vadd.f32 0.0, %v686
        %v688 = vpop.f32.mrf.mxu0
        %689 = vdwg.mxu0
        %v691 = vsel %vm557, %v612, 0
        %v694 = vsel %vm595, %v551, 0
        %696 = vmatpush.bf16.msra.mxu0 0
        %697 = vmatpush.bf16.msra.mxu0 0
        %698 = vmatpush.bf16.msra.mxu0 0
        %699 = vmatpush.bf16.msra.mxu0 0
        %700 = vmatpush.bf16.msra.mxu0 0
        %701 = vmatpush.bf16.msra.mxu0 0
        %702 = vmatpush.bf16.msra.mxu0 0
        %703 = vmatpush.bf16.msra.mxu0 %v694
        %704 = vmatmul.bf16.gmra.mxu0 %v691
        %v705 = vpop.f32.mrf.mxu0
        %v706 = vadd.f32 %v687, %v705
        %v707 = vpop.f32.mrf.mxu0
        %708 = vdwg.mxu0
        %709 = vrot.lane.b32.xlu0 %v555, 112
        %v710 = vpop.permute.xlu0 %709
        %711 = vrot.lane.b32.xlu0 %v556, 112
        %v712 = vpop.permute.xlu0 %711
        %v714 = vsel %vm557, %v710, 0
        %v717 = vsel %vm557, %v712, 0
        %719 = vmatpush.bf16.xpose.msra.mxu0 0
        %720 = vmatpush.bf16.xpose.msra.mxu0 0
        %721 = vmatpush.bf16.xpose.msra.mxu0 0
        %722 = vmatpush.bf16.xpose.msra.mxu0 0
        %723 = vmatpush.bf16.xpose.msra.mxu0 0
        %724 = vmatpush.bf16.xpose.msra.mxu0 0
        %725 = vmatpush.bf16.xpose.msra.mxu0 0
        %726 = vmatpush.bf16.xpose.msra.mxu0 %v717
        %727 = vmatmul.bf16.gmra.mxu0 %v714
        %v728 = vpop.f32.mrf.mxu0
        %v729 = vadd.f32 0.0, %v728
        %v730 = vpop.f32.mrf.mxu0
        %731 = vdwg.mxu0
        %v732 = vsel %vm557, %v729, -inf
        %733 = vmax.xlane.f32.xlu0 %v732
        %v734 = vpop.xlane.xlu0 %733
        %v735 = vsub.f32 %v729, %v734
        %v736 = vmul.f32 %v735, 1.442695
        %v737 = vpow.pop %v736
        %v738 = vsel %vm557, %v737, 0.0
        %739 = vadd.xlane.f32.xlu0 %v738
        %v740 = vpop.xlane.xlu0 %739
        %v741 = vrcp.pop %v740
        %v742 = vmul.f32 %v737, %v741
        %v743 = vpack.c.bf16 %v742, %v742
        %744 = vrot.lane.b32.xlu0 %v556, 80
        %v745 = vpop.permute.xlu0 %744
        %v747 = vsel %vm557, %v743, 0
        %v750 = vsel %vm595, %v745, 0
        %752 = vmatpush.bf16.msra.mxu0 0
        %753 = vmatpush.bf16.msra.mxu0 0
        %754 = vmatpush.bf16.msra.mxu0 0
        %755 = vmatpush.bf16.msra.mxu0 0
        %756 = vmatpush.bf16.msra.mxu0 0
        %757 = vmatpush.bf16.msra.mxu0 0
        %758 = vmatpush.bf16.msra.mxu0 0
        %759 = vmatpush.bf16.msra.mxu0 %v750
        %760 = vmatmul.bf16.gmra.mxu0 %v747
        %v761 = vpop.f32.mrf.mxu0
        %v762 = vadd.f32 0.0, %v761
        %v763 = vpop.f32.mrf.mxu0
        %764 = vdwg.mxu0
        %v765 = vpack.c.bf16 %v762, %v762
        %v767 = vsel %vm557, %v765, 0
        %v770 = vsel %vm595, %v553, 0
        %772 = vmatpush.bf16.msra.mxu0 0
        %773 = vmatpush.bf16.msra.mxu0 0
        %774 = vmatpush.bf16.msra.mxu0 0
        %775 = vmatpush.bf16.msra.mxu0 0
        %776 = vmatpush.bf16.msra.mxu0 0
        %777 = vmatpush.bf16.msra.mxu0 0
        %778 = vmatpush.bf16.msra.mxu0 0
        %779 = vmatpush.bf16.msra.mxu0 %v770
        %780 = vmatmul.bf16.gmra.mxu0 %v767
        %v781 = vpop.f32.mrf.mxu0
        %v782 = vadd.f32 0.0, %v781
        %v783 = vpop.f32.mrf.mxu0
        %784 = vdwg.mxu0
        %v785 = vadd.f32 %v706, %v782
        %786 = vrot.lane.b32.xlu0 %v555, 104
        %v787 = vpop.permute.xlu0 %786
        %788 = vrot.lane.b32.xlu0 %v556, 104
        %v789 = vpop.permute.xlu0 %788
        %v791 = vsel %vm557, %v787, 0
        %v794 = vsel %vm557, %v789, 0
        %796 = vmatpush.bf16.xpose.msra.mxu0 0
        %797 = vmatpush.bf16.xpose.msra.mxu0 0
        %798 = vmatpush.bf16.xpose.msra.mxu0 0
        %799 = vmatpush.bf16.xpose.msra.mxu0 0
        %800 = vmatpush.bf16.xpose.msra.mxu0 0
        %801 = vmatpush.bf16.xpose.msra.mxu0 0
        %802 = vmatpush.bf16.xpose.msra.mxu0 0
        %803 = vmatpush.bf16.xpose.msra.mxu0 %v794
        %804 = vmatmul.bf16.gmra.mxu0 %v791
        %v805 = vpop.f32.mrf.mxu0
        %v806 = vadd.f32 0.0, %v805
        %v807 = vpop.f32.mrf.mxu0
        %808 = vdwg.mxu0
        %v809 = vsel %vm557, %v806, -inf
        %810 = vmax.xlane.f32.xlu0 %v809
        %v811 = vpop.xlane.xlu0 %810
        %v812 = vsub.f32 %v806, %v811
        %v813 = vmul.f32 %v812, 1.442695
        %v814 = vpow.pop %v813
        %v815 = vsel %vm557, %v814, 0.0
        %816 = vadd.xlane.f32.xlu0 %v815
        %v817 = vpop.xlane.xlu0 %816
        %v818 = vrcp.pop %v817
        %v819 = vmul.f32 %v814, %v818
        %v820 = vpack.c.bf16 %v819, %v819
        %821 = vrot.lane.b32.xlu0 %v556, 72
        %v822 = vpop.permute.xlu0 %821
        %v824 = vsel %vm557, %v820, 0
        %v827 = vsel %vm595, %v822, 0
        %829 = vmatpush.bf16.msra.mxu0 0
        %830 = vmatpush.bf16.msra.mxu0 0
        %831 = vmatpush.bf16.msra.mxu0 0
        %832 = vmatpush.bf16.msra.mxu0 0
        %833 = vmatpush.bf16.msra.mxu0 0
        %834 = vmatpush.bf16.msra.mxu0 0
        %835 = vmatpush.bf16.msra.mxu0 0
        %836 = vmatpush.bf16.msra.mxu0 %v827
        %837 = vmatmul.bf16.gmra.mxu0 %v824
        %v838 = vpop.f32.mrf.mxu0
        %v839 = vadd.f32 0.0, %v838
        %v840 = vpop.f32.mrf.mxu0
        %841 = vdwg.mxu0
        %v842 = vpack.c.bf16 %v839, %v839
        %v844 = vsel %vm557, %v842, 0
        %v847 = vsel %vm595, %v554, 0
        %849 = vmatpush.bf16.msra.mxu0 0
        %850 = vmatpush.bf16.msra.mxu0 0
        %851 = vmatpush.bf16.msra.mxu0 0
        %852 = vmatpush.bf16.msra.mxu0 0
        %853 = vmatpush.bf16.msra.mxu0 0
        %854 = vmatpush.bf16.msra.mxu0 0
        %855 = vmatpush.bf16.msra.mxu0 0
        %856 = vmatpush.bf16.msra.mxu0 %v847
        %857 = vmatmul.bf16.gmra.mxu0 %v844
        %v858 = vpop.f32.mrf.mxu0
        %v859 = vadd.f32 0.0, %v858
        %v860 = vpop.f32.mrf.mxu0
        %861 = vdwg.mxu0
        %v862 = vadd.f32 %v785, %v859
        %v863 = vld [vmem:[%s7] sm:$0x1]
        %v865 = vperm.slane %v863, 0
        %v867 = vadd.f32 %v862, %v865
        %v868 = vld [vmem:[#allocation9] sm:$0x1]
        %v869 = vld [vmem:[#allocation10] sm:$0x1]
        %v870 = vadd.f32 %v474, %v867
        %v871 = vsel %vm497, %v870, 0.0
        %872 = vadd.xlane.f32.xlu0 %v871
        %v873 = vpop.xlane.xlu0 %872
        %v874 = vrcp.pop 32.0
        %v875 = vmul.f32 32.0, %v874
        %v876 = vsub.f32 1.0, %v875
        %v877 = vmul.f32 %v874, %v876
        %v878 = vadd.f32 %v874, %v877
        %vm879 = vweird.f32 %v874
        %v880 = vsel %vm879, %v874, %v878
        %v881 = vmul.f32 %v873, %v880
        %v882 = vsub.f32 %v870, %v881
        %v883 = vmul.f32 %v882, %v882
        %v884 = vsel %vm497, %v883, 0.0
        %885 = vadd.xlane.f32.xlu0 %v884
        %v886 = vpop.xlane.xlu0 %885
        %v887 = vmul.f32 %v886, %v880
        %v888 = vadd.f32 %v887, 1e-05
        %v889 = vrsqrt.pop %v888
        %v890 = vmul.f32 %v889, %v888
        %v891 = vmul.f32 %v890, %v889
        %v892 = vmul.f32 0.5, %v891
        %v893 = vsub.f32 1.5, %v892
        %v894 = vmul.f32 %v889, %v893
        %vm895 = vweird.f32 %v888
        %vm896 = vweird.f32 %v889
        %vm897 = vmor %vm895, %vm896
        %v898 = vsel %vm897, %v889, %v894
        %v899 = vmul.f32 %v882, %v898
        %v901 = vperm.slane %v868, 0
        %v903 = vmul.f32 %v899, %v901
        %v905 = vperm.slane %v869, 0
        %v907 = vadd.f32 %v903, %v905
        %908 = vst.msk [vmem:[%s472] sm:$0xff] %vm497, %v907
        %p909 = scmp.lt.s32.totalorder %s27, 1
        %s910 = scalar_select %p909, %s27, 1
        %s911 = smul.addr %s910, 8
        %s912 = scalar_lea.vmem %s10, %s911
        // Predicated region
        $region85: #{_lambda_.10} parent=59 // pred_check
          %p913 = pneg %p265
        $region86: #{_lambda_.10} parent=59 // pred_check_branch
          %915 = sbr.rel (%p913) target = $region88
        $region87: #{_lambda_.10} parent=59 // pred_region
          _
        $region88: #{_lambda_.10} parent=59 // pred_fallthru
          _
      $region60: #{_lambda_.10} parent=5 // pred_fallthru
        _
      %p916 = scmp.le.s32.totalorder 2, %s22
      // Predicated region
      $region89: #{_lambda_.10} parent=5 // pred_check
        %p917 = pneg %p916
      $region90: #{_lambda_.10} parent=5 // pred_check_branch
        %919 = sbr.rel (%p917) target = $region92
      $region91: #{_lambda_.10} parent=5 // pred_region
        %s920 = ssub.s32 %s22, 2
        // Predicated region
        $region93: #{_lambda_.10} parent=91 // pred_check
          %p921 = pneg %p271
        $region94: #{_lambda_.10} parent=91 // pred_check_branch
          %923 = sbr.rel (%p921) target = $region96
        $region95: #{_lambda_.10} parent=91 // pred_region
          %p924 = scmp.lt.s32.totalorder %s28, 1
          %s925 = scalar_select %p924, %s28, 1
          %s926 = smul.addr %s925, 8
          %s927 = scalar_lea.vmem %s10, %s926
        $region96: #{_lambda_.10} parent=91 // pred_fallthru
          _
      $region92: #{_lambda_.10} parent=5 // pred_fallthru
        _
    $region6: #{_lambda_.10} parent=1 // loop_footer
      %s26 = sadd.s32 1, %s22
    $region7: #{_lambda_.10} parent=1 // loop_footer_branch
      %21 = sbr.rel target = $region3
    $region8: #{_lambda_.10} parent=1 // loop_exit
      _
    %928 = vsyncpa [#allocation3], 1
    %s929 = scalar_lea.sflag [#allocation3], 1
    %930 = vsyncpa %s929, 1
    %931 = vsyncpa [#allocation5], 1
    %932 = vsyncpa [#allocation8], 1
    %933 = vsyncpa [#allocation11], 1

</llo_original>
